<compile_context>
chip_gen: v7x
topology: tpu7x:2x2x1
jax: 0.10.0
libtpu: 0.0.40
codegen_flags: <defaults>
</compile_context>

<pallas_src>
import numpy as np
import jax
import jax.numpy as jnp
from jax import lax
from jax.experimental import pallas as pl
from jax.experimental.pallas import tpu as pltpu

COMPUTE_DTYPE = jnp.bfloat16


def _half(n):
    """Output spatial size of k=3, stride=2, pad=1 (conv or avgpool)."""
    return (n - 1) // 2 + 1


# ----------------------------------------------------------------------------
# In-kernel helpers (operate on VMEM-resident values; all slices unit-stride)
# ----------------------------------------------------------------------------
def _pad_hw1(x):
    """(H, W, C) -> (H+2, W+2, C) zero padded (pad=1), via concat on non-lane dims."""
    h, w, c = x.shape
    zr = jnp.zeros((1, w, c), x.dtype)
    x = jnp.concatenate([zr, x, zr], axis=0)
    zc = jnp.zeros((h + 2, 1, c), x.dtype)
    return jnp.concatenate([zc, x, zc], axis=1)


def _conv3x3(x, w, sel=None, bias=None, relu=False):
    """3x3 conv, pad=1, as ONE im2col matmul (M, 9*Cin) @ (9*Cin, Cout).

    x    : (H, W, Cin) bf16 value
    w    : (9*Cin, Cout) bf16 weight, tap order kh*3+kw (BN scale pre-folded)
    sel  : optional (Mout, H*W) 0/1 bf16 matrix implementing stride-2 row
           selection on the MXU (exact; avoids strided in-kernel loads)
    bias : optional (1, Cout) f32 per-channel shift (folded BN)
    returns (M, Cout) f32.
    """
    h, wd, c = x.shape
    xp = _pad_hw1(x)
    taps = [xp[kh:kh + h, kw:kw + wd, :] for kh in range(3) for kw in range(3)]
    col = jnp.concatenate(taps, axis=-1).reshape(h * wd, 9 * c)
    if sel is not None:
        col = jnp.dot(sel, col, preferred_element_type=jnp.float32).astype(col.dtype)
    y = jnp.dot(col, w, preferred_element_type=jnp.float32)
    if bias is not None:
        y = y + bias
    if relu:
        y = jnp.maximum(y, 0.0)
    return y


def _resblock(x, w1, b1, w2, b2):
    """relu(bn2(conv2(relu(bn1(conv1(x))))) + x); BN folded (inference mode)."""
    h, wd, c = x.shape
    m = h * wd
    h1 = _conv3x3(x, w1, bias=b1, relu=True).astype(x.dtype).reshape(h, wd, c)
    h2 = _conv3x3(h1, w2, bias=b2)
    out = jnp.maximum(h2 + x.reshape(m, c).astype(jnp.float32), 0.0)
    return out.astype(x.dtype).reshape(h, wd, c)


def _avgpool3x3_s2(x, pool_mat, ho, wo):
    """AvgPool2d(3, stride=2, pad=1, count_include_pad=True) as one matmul."""
    h, wd, c = x.shape
    xp = _pad_hw1(x).reshape((h + 2) * (wd + 2), c)
    y = jnp.dot(pool_mat, xp, preferred_element_type=jnp.float32) * (1.0 / 9.0)
    return y.astype(x.dtype).reshape(ho, wo, c)


# ----------------------------------------------------------------------------
# The fused kernel: conv1 -> res1 x2 -> conv2 -> res2 x3 -> pool -> res3 x3 -> pool
# ----------------------------------------------------------------------------
def _downsample_kernel(x_ref,
                       c1w_ref, c1sel_ref,
                       r1w1_ref, r1b1_ref, r1w2_ref, r1b2_ref,
                       c2w_ref, c2sel_ref,
                       r2w1_ref, r2b1_ref, r2w2_ref, r2b2_ref,
                       p1m_ref,
                       r3w1_ref, r3b1_ref, r3w2_ref, r3b2_ref,
                       p2m_ref,
                       o_ref):
    h0, w0 = x_ref.shape[1], x_ref.shape[2]
    cmid = c1w_ref.shape[1]
    cout = c2w_ref.shape[1]
    h1, w1 = _half(h0), _half(w0)
    h2, w2 = _half(h1), _half(w1)
    h3, w3 = _half(h2), _half(w2)
    h4, w4 = _half(h3), _half(w3)

    x = x_ref[0]                                                  # (H, W, Cin) bf16

    # conv1: stride 2, bias=False, no BN / relu (matches the PyTorch spec)
    x = _conv3x3(x, c1w_ref[...], sel=c1sel_ref[...])
    x = x.astype(COMPUTE_DTYPE).reshape(h1, w1, cmid)

    for k in range(r1w1_ref.shape[0]):                            # resblocks1 (x2)
        x = _resblock(x, r1w1_ref[k], r1b1_ref[k], r1w2_ref[k], r1b2_ref[k])

    # conv2: stride 2, bias=False, no BN / relu
    x = _conv3x3(x, c2w_ref[...], sel=c2sel_ref[...])
    x = x.astype(COMPUTE_DTYPE).reshape(h2, w2, cout)

    for k in range(r2w1_ref.shape[0]):                            # resblocks2 (x3)
        x = _resblock(x, r2w1_ref[k], r2b1_ref[k], r2w2_ref[k], r2b2_ref[k])

    x = _avgpool3x3_s2(x, p1m_ref[...], h3, w3)                   # pooling1

    for k in range(r3w1_ref.shape[0]):                            # resblocks3 (x3)
        x = _resblock(x, r3w1_ref[k], r3b1_ref[k], r3w2_ref[k], r3b2_ref[k])

    x = _avgpool3x3_s2(x, p2m_ref[...], h4, w4)                   # pooling2

    o_ref[...] = x.reshape(o_ref.shape).astype(o_ref.dtype)


# ----------------------------------------------------------------------------
# Glue: constant selection / pooling matrices, specs, launch
# ----------------------------------------------------------------------------
def _stride2_select(hin, win):
    """(Ho*Wo, H*W) 0/1 matrix selecting stride-2 rows of a stride-1 im2col."""
    ho, wo = _half(hin), _half(win)
    rows = np.arange(ho * wo)
    tgt = (2 * (rows // wo)) * win + 2 * (rows % wo)
    sel = (np.arange(hin * win)[None, :] == tgt[:, None]).astype(np.float32)
    return jnp.asarray(sel, COMPUTE_DTYPE)


def _avgpool_matrix(hin, win):
    """(Ho*Wo, (H+2)*(W+2)) 0/1 window matrix for AvgPool2d(3,2,1); /9 in-kernel."""
    ho, wo = _half(hin), _half(win)
    wp = win + 2
    m = np.zeros((ho * wo, (hin + 2) * wp), np.float32)
    for r in range(ho):
        for s in range(wo):
            for kh in range(3):
                for kw in range(3):
                    m[r * wo + s, (2 * r + kh) * wp + (2 * s + kw)] = 1.0
    return jnp.asarray(m, COMPUTE_DTYPE)


def _full_spec(a):
    nd = a.ndim
    return pl.BlockSpec(a.shape, lambda i, _nd=nd: (0,) * _nd)


@jax.jit
def downsample_forward(x_nchw, params):
    # NCHW at the boundary (PyTorch convention); NHWC bf16 inside the kernel.
    n, cin, hgt, wid = x_nchw.shape
    x = jnp.transpose(x_nchw, (0, 2, 3, 1)).astype(COMPUTE_DTYPE)

    h1, w1 = _half(hgt), _half(wid)
    h2, w2 = _half(h1), _half(w1)
    h3, w3 = _half(h2), _half(w2)
    h4, w4 = _half(h3), _half(w3)
    cout = params["conv2_w"].shape[-1]

    c1sel = _stride2_select(hgt, wid)
    c2sel = _stride2_select(h1, w1)
    p1m = _avgpool_matrix(h2, w2)
    p2m = _avgpool_matrix(h3, w3)

    inputs = [
        x,
        params["conv1_w"], c1sel,
        params["res1_w1"], params["res1_b1"], params["res1_w2"], params["res1_b2"],
        params["conv2_w"], c2sel,
        params["res2_w1"], params["res2_b1"], params["res2_w2"], params["res2_b2"],
        p1m,
        params["res3_w1"], params["res3_b1"], params["res3_w2"], params["res3_b2"],
        p2m,
    ]
    in_specs = [pl.BlockSpec((1, hgt, wid, cin), lambda i: (i, 0, 0, 0))]
    in_specs += [_full_spec(a) for a in inputs[1:]]

    # Per-grid-step VMEM footprint (double-buffered by the pipeline) + headroom;
    # cap below v7x's 64 MiB physical VMEM.
    step_bytes = (int(x.size) // n) * x.dtype.itemsize
    for a in inputs[1:]:
        step_bytes += int(a.size) * a.dtype.itemsize
    step_bytes += h4 * w4 * cout * 2
    limit = int(min(max(8 * step_bytes, 32 << 20), 48 << 20))

    y = pl.pallas_call(
        _downsample_kernel,
        out_shape=jax.ShapeDtypeStruct((n, h4, w4, cout), COMPUTE_DTYPE),
        grid=(n,),
        in_specs=in_specs,
        out_specs=pl.BlockSpec((1, h4, w4, cout), lambda i: (i, 0, 0, 0)),
        compiler_params=pltpu.CompilerParams(
            dimension_semantics=("parallel",),
            vmem_limit_bytes=limit),
    )(*inputs)

    return jnp.transpose(y, (0, 3, 1, 2)).astype(jnp.float32)


# ----------------------------------------------------------------------------
# Deterministic parameter init (shapes follow the PyTorch __init__), BN folded
# ----------------------------------------------------------------------------
def _init_conv_w(key, cin, cout):
    std = (2.0 / (9 * cin)) ** 0.5
    return jax.random.normal(key, (3, 3, cin, cout), jnp.float32) * std


def _init_bn_folded(key, c, eps=1e-5):
    k1, k2, k3, k4 = jax.random.split(key, 4)
    gamma = jax.random.uniform(k1, (c,), jnp.float32, 0.5, 1.5)
    beta = jax.random.normal(k2, (c,), jnp.float32) * 0.1
    rmean = jax.random.normal(k3, (c,), jnp.float32) * 0.1
    rvar = jax.random.uniform(k4, (c,), jnp.float32, 0.5, 1.5)
    scale = gamma / jnp.sqrt(rvar + eps)
    shift = beta - rmean * scale
    return scale, shift


def _fold_w(w_hwio, scale=None):
    """Fold BN scale into the conv weight; reshape to (9*Cin, Cout); cast bf16."""
    if scale is not None:
        w_hwio = w_hwio * scale[None, None, None, :]
    cin, cout = w_hwio.shape[2], w_hwio.shape[3]
    return w_hwio.reshape(9 * cin, cout).astype(COMPUTE_DTYPE)


def _init_res_group(key, c, n_blocks):
    w1s, b1s, w2s, b2s = [], [], [], []
    for bk in jax.random.split(key, n_blocks):
        k1, k2, k3, k4 = jax.random.split(bk, 4)
        w1 = _init_conv_w(k1, c, c)
        s1, b1 = _init_bn_folded(k2, c)
        w2 = _init_conv_w(k3, c, c)
        s2, b2 = _init_bn_folded(k4, c)
        w1s.append(_fold_w(w1, s1))
        b1s.append(b1.reshape(1, c))
        w2s.append(_fold_w(w2, s2))
        b2s.append(b2.reshape(1, c))
    return (jnp.stack(w1s), jnp.stack(b1s).astype(jnp.float32),
            jnp.stack(w2s), jnp.stack(b2s).astype(jnp.float32))


def init_downsample_params(key, in_channels, out_channels):
    cmid = out_channels // 2
    k = jax.random.split(key, 6)
    r1 = _init_res_group(k[1], cmid, 2)
    r2 = _init_res_group(k[3], out_channels, 3)
    r3 = _init_res_group(k[4], out_channels, 3)
    params = {
        "conv1_w": _fold_w(_init_conv_w(k[0], in_channels, cmid)),
        "res1_w1": r1[0], "res1_b1": r1[1], "res1_w2": r1[2], "res1_b2": r1[3],
        "conv2_w": _fold_w(_init_conv_w(k[2], cmid, out_channels)),
        "res2_w1": r2[0], "res2_b1": r2[1], "res2_w2": r2[2], "res2_b2": r2[3],
        "res3_w1": r3[0], "res3_b1": r3[1], "res3_w2": r3[2], "res3_b2": r3[3],
    }
    return params, k[5]


# ----------------------------------------------------------------------------
# Pure-JAX reference (same bf16/f32 mixed precision) for a numeric sanity check
# ----------------------------------------------------------------------------
def _ref_conv(x, w_flat, stride):
    cin, cout = x.shape[-1], w_flat.shape[-1]
    w = w_flat.reshape(3, 3, cin, cout)
    return lax.conv_general_dilated(
        x, w, window_strides=(stride, stride), padding=((1, 1), (1, 1)),
        dimension_numbers=("NHWC", "HWIO", "NHWC"),
        preferred_element_type=jnp.float32)


def _ref_resblock(x, w1, b1, w2, b2):
    h1 = jnp.maximum(_ref_conv(x, w1, 1) + b1.reshape(1, 1, 1, -1), 0.0)
    h1 = h1.astype(COMPUTE_DTYPE)
    h2 = _ref_conv(h1, w2, 1) + b2.reshape(1, 1, 1, -1)
    return jnp.maximum(h2 + x.astype(jnp.float32), 0.0).astype(COMPUTE_DTYPE)


def _ref_pool(x):
    s = lax.reduce_window(x.astype(jnp.float32), 0.0, lax.add,
                          (1, 3, 3, 1), (1, 2, 2, 1),
                          ((0, 0), (1, 1), (1, 1), (0, 0)))
    return (s * (1.0 / 9.0)).astype(COMPUTE_DTYPE)


@jax.jit
def downsample_reference(x_nchw, params):
    x = jnp.transpose(x_nchw, (0, 2, 3, 1)).astype(COMPUTE_DTYPE)
    x = _ref_conv(x, params["conv1_w"], 2).astype(COMPUTE_DTYPE)
    for k in range(params["res1_w1"].shape[0]):
        x = _ref_resblock(x, params["res1_w1"][k], params["res1_b1"][k],
                          params["res1_w2"][k], params["res1_b2"][k])
    x = _ref_conv(x, params["conv2_w"], 2).astype(COMPUTE_DTYPE)
    for k in range(params["res2_w1"].shape[0]):
        x = _ref_resblock(x, params["res2_w1"][k], params["res2_b1"][k],
                          params["res2_w2"][k], params["res2_b2"][k])
    x = _ref_pool(x)
    for k in range(params["res3_w1"].shape[0]):
        x = _ref_resblock(x, params["res3_w1"][k], params["res3_b1"][k],
                          params["res3_w2"][k], params["res3_b2"][k])
    x = _ref_pool(x)
    return jnp.transpose(x, (0, 3, 1, 2)).astype(jnp.float32)


# ----------------------------------------------------------------------------
if __name__ == "__main__":
    key = jax.random.PRNGKey(0)
    batch, in_channels, spatial = 2, 4, 16
    out_channels = 16

    params, key = init_downsample_params(key, in_channels, out_channels)
    x = jax.random.normal(key, (batch, in_channels, spatial, spatial), jnp.float32)

    y = downsample_forward(x, params)
    y = jax.block_until_ready(y)

    # 16 -> conv s2 -> 8 -> conv s2 -> 4 -> pool s2 -> 2 -> pool s2 -> 1
    assert y.shape == (batch, out_channels, 1, 1), y.shape
    assert bool(jnp.all(jnp.isfinite(y)))

    # Numeric sanity check against a pure-JAX reference at matching precision.
    y_ref = jax.block_until_ready(downsample_reference(x, params))
    err = float(jnp.max(jnp.abs(y - y_ref)))
    scale = float(jnp.max(jnp.abs(y_ref)))
    assert err <= 0.05 * scale + 0.05, (err, scale)

    print("KERNEL_OK")
</pallas_src>

<mosaic_0001>
module attributes {stable_mosaic.version = 11 : i64} {
  func.func @_downsample_kernel(%arg0: i32, %arg1: memref<1x16x16x4xbf16, #tpu.memory_space<vmem>>, %arg2: memref<36x8xbf16, #tpu.memory_space<vmem>>, %arg3: memref<64x256xbf16, #tpu.memory_space<vmem>>, %arg4: memref<2x72x8xbf16, #tpu.memory_space<vmem>>, %arg5: memref<2x1x8xf32, #tpu.memory_space<vmem>>, %arg6: memref<2x72x8xbf16, #tpu.memory_space<vmem>>, %arg7: memref<2x1x8xf32, #tpu.memory_space<vmem>>, %arg8: memref<72x16xbf16, #tpu.memory_space<vmem>>, %arg9: memref<16x64xbf16, #tpu.memory_space<vmem>>, %arg10: memref<3x144x16xbf16, #tpu.memory_space<vmem>>, %arg11: memref<3x1x16xf32, #tpu.memory_space<vmem>>, %arg12: memref<3x144x16xbf16, #tpu.memory_space<vmem>>, %arg13: memref<3x1x16xf32, #tpu.memory_space<vmem>>, %arg14: memref<4x36xbf16, #tpu.memory_space<vmem>>, %arg15: memref<3x144x16xbf16, #tpu.memory_space<vmem>>, %arg16: memref<3x1x16xf32, #tpu.memory_space<vmem>>, %arg17: memref<3x144x16xbf16, #tpu.memory_space<vmem>>, %arg18: memref<3x1x16xf32, #tpu.memory_space<vmem>>, %arg19: memref<1x16xbf16, #tpu.memory_space<vmem>>, %arg20: memref<1x1x1x16xbf16, #tpu.memory_space<vmem>>) attributes {dimension_semantics = [#tpu.dimension_semantics<parallel>], iteration_bounds = array<i64: 2>, scalar_prefetch = 0 : i64, scratch_operands = 0 : i64, tpu.core_type = #tpu.core_type<tc>, window_params = [{transform_indices = @transform_0, window_bounds = array<i64: 1, 16, 16, 4>}, {pipeline_mode = #tpu.pipeline_mode<synchronous>, transform_indices = @transform_1, window_bounds = array<i64: 36, 8>}, {pipeline_mode = #tpu.pipeline_mode<synchronous>, transform_indices = @transform_2, window_bounds = array<i64: 64, 256>}, {pipeline_mode = #tpu.pipeline_mode<synchronous>, transform_indices = @transform_3, window_bounds = array<i64: 2, 72, 8>}, {pipeline_mode = #tpu.pipeline_mode<synchronous>, transform_indices = @transform_4, window_bounds = array<i64: 2, 1, 8>}, {pipeline_mode = #tpu.pipeline_mode<synchronous>, transform_indices = @transform_5, window_bounds = array<i64: 2, 72, 8>}, {pipeline_mode = #tpu.pipeline_mode<synchronous>, transform_indices = @transform_6, window_bounds = array<i64: 2, 1, 8>}, {pipeline_mode = #tpu.pipeline_mode<synchronous>, transform_indices = @transform_7, window_bounds = array<i64: 72, 16>}, {pipeline_mode = #tpu.pipeline_mode<synchronous>, transform_indices = @transform_8, window_bounds = array<i64: 16, 64>}, {pipeline_mode = #tpu.pipeline_mode<synchronous>, transform_indices = @transform_9, window_bounds = array<i64: 3, 144, 16>}, {pipeline_mode = #tpu.pipeline_mode<synchronous>, transform_indices = @transform_10, window_bounds = array<i64: 3, 1, 16>}, {pipeline_mode = #tpu.pipeline_mode<synchronous>, transform_indices = @transform_11, window_bounds = array<i64: 3, 144, 16>}, {pipeline_mode = #tpu.pipeline_mode<synchronous>, transform_indices = @transform_12, window_bounds = array<i64: 3, 1, 16>}, {pipeline_mode = #tpu.pipeline_mode<synchronous>, transform_indices = @transform_13, window_bounds = array<i64: 4, 36>}, {pipeline_mode = #tpu.pipeline_mode<synchronous>, transform_indices = @transform_14, window_bounds = array<i64: 3, 144, 16>}, {pipeline_mode = #tpu.pipeline_mode<synchronous>, transform_indices = @transform_15, window_bounds = array<i64: 3, 1, 16>}, {pipeline_mode = #tpu.pipeline_mode<synchronous>, transform_indices = @transform_16, window_bounds = array<i64: 3, 144, 16>}, {pipeline_mode = #tpu.pipeline_mode<synchronous>, transform_indices = @transform_17, window_bounds = array<i64: 3, 1, 16>}, {pipeline_mode = #tpu.pipeline_mode<synchronous>, transform_indices = @transform_18, window_bounds = array<i64: 1, 16>}, {transform_indices = @transform_19, window_bounds = array<i64: 1, 1, 1, 16>}]} {
    %c0 = arith.constant 0 : index
    %c0_0 = arith.constant 0 : index
    %c0_1 = arith.constant 0 : index
    %c0_2 = arith.constant 0 : index
    %0 = vector.load %arg1[%c0, %c0_0, %c0_1, %c0_2] : memref<1x16x16x4xbf16, #tpu.memory_space<vmem>>, vector<1x16x16x4xbf16>
    %1 = vector.shape_cast %0 : vector<1x16x16x4xbf16> to vector<16x16x4xbf16>
    %c0_3 = arith.constant 0 : index
    %c0_4 = arith.constant 0 : index
    %2 = vector.load %arg2[%c0_3, %c0_4] : memref<36x8xbf16, #tpu.memory_space<vmem>>, vector<36x8xbf16>
    %c0_5 = arith.constant 0 : index
    %c0_6 = arith.constant 0 : index
    %3 = vector.load %arg3[%c0_5, %c0_6] : memref<64x256xbf16, #tpu.memory_space<vmem>>, vector<64x256xbf16>
    %cst = arith.constant 0.000000e+00 : bf16
    %4 = vector.broadcast %cst : bf16 to vector<1x16x4xbf16>
    %5 = tpu.concatenate %4, %1, %4 in 0 : vector<1x16x4xbf16>, vector<16x16x4xbf16>, vector<1x16x4xbf16> -> vector<18x16x4xbf16>
    %cst_7 = arith.constant 0.000000e+00 : bf16
    %6 = vector.broadcast %cst_7 : bf16 to vector<18x1x4xbf16>
    %7 = tpu.concatenate %6, %5, %6 in 1 : vector<18x1x4xbf16>, vector<18x16x4xbf16>, vector<18x1x4xbf16> -> vector<18x18x4xbf16>
    %8 = vector.extract_strided_slice %7 {offsets = [0, 0, 0], sizes = [16, 16, 4], strides = [1, 1, 1]} : vector<18x18x4xbf16> to vector<16x16x4xbf16>
    %9 = vector.extract_strided_slice %7 {offsets = [0, 1, 0], sizes = [16, 16, 4], strides = [1, 1, 1]} : vector<18x18x4xbf16> to vector<16x16x4xbf16>
    %10 = vector.extract_strided_slice %7 {offsets = [0, 2, 0], sizes = [16, 16, 4], strides = [1, 1, 1]} : vector<18x18x4xbf16> to vector<16x16x4xbf16>
    %11 = vector.extract_strided_slice %7 {offsets = [1, 0, 0], sizes = [16, 16, 4], strides = [1, 1, 1]} : vector<18x18x4xbf16> to vector<16x16x4xbf16>
    %12 = vector.extract_strided_slice %7 {offsets = [1, 1, 0], sizes = [16, 16, 4], strides = [1, 1, 1]} : vector<18x18x4xbf16> to vector<16x16x4xbf16>
    %13 = vector.extract_strided_slice %7 {offsets = [1, 2, 0], sizes = [16, 16, 4], strides = [1, 1, 1]} : vector<18x18x4xbf16> to vector<16x16x4xbf16>
    %14 = vector.extract_strided_slice %7 {offsets = [2, 0, 0], sizes = [16, 16, 4], strides = [1, 1, 1]} : vector<18x18x4xbf16> to vector<16x16x4xbf16>
    %15 = vector.extract_strided_slice %7 {offsets = [2, 1, 0], sizes = [16, 16, 4], strides = [1, 1, 1]} : vector<18x18x4xbf16> to vector<16x16x4xbf16>
    %16 = vector.extract_strided_slice %7 {offsets = [2, 2, 0], sizes = [16, 16, 4], strides = [1, 1, 1]} : vector<18x18x4xbf16> to vector<16x16x4xbf16>
    %17 = tpu.concatenate %8, %9, %10, %11, %12, %13, %14, %15, %16 in 2 : vector<16x16x4xbf16>, vector<16x16x4xbf16>, vector<16x16x4xbf16>, vector<16x16x4xbf16>, vector<16x16x4xbf16>, vector<16x16x4xbf16>, vector<16x16x4xbf16>, vector<16x16x4xbf16>, vector<16x16x4xbf16> -> vector<16x16x36xbf16>
    %18 = vector.shape_cast %17 : vector<16x16x36xbf16> to vector<256x36xbf16>
    %cst_8 = arith.constant dense<0.000000e+00> : vector<64x36xf32>
    %19 = tpu.matmul %3, %18, %cst_8 {dimension_numbers = #tpu.dot_dimension_numbers<[1], [0], [0], [1], [0, 0, 1, 1], [], []>} : vector<64x256xbf16>, vector<256x36xbf16>, vector<64x36xf32> -> vector<64x36xf32>
    %20 = arith.truncf %19 : vector<64x36xf32> to vector<64x36xbf16>
    %cst_9 = arith.constant dense<0.000000e+00> : vector<64x8xf32>
    %21 = tpu.matmul %20, %2, %cst_9 {dimension_numbers = #tpu.dot_dimension_numbers<[1], [0], [0], [1], [0, 0, 1, 1], [], []>} : vector<64x36xbf16>, vector<36x8xbf16>, vector<64x8xf32> -> vector<64x8xf32>
    %22 = arith.truncf %21 : vector<64x8xf32> to vector<64x8xbf16>
    %23 = vector.shape_cast %22 : vector<64x8xbf16> to vector<8x8x8xbf16>
    %c0_10 = arith.constant 0 : index
    %c0_11 = arith.constant 0 : index
    %c0_12 = arith.constant 0 : index
    %24 = vector.load %arg4[%c0_10, %c0_11, %c0_12] : memref<2x72x8xbf16, #tpu.memory_space<vmem>>, vector<1x72x8xbf16>
    %25 = vector.shape_cast %24 : vector<1x72x8xbf16> to vector<72x8xbf16>
    %c0_13 = arith.constant 0 : index
    %c0_14 = arith.constant 0 : index
    %c0_15 = arith.constant 0 : index
    %26 = vector.load %arg5[%c0_13, %c0_14, %c0_15] : memref<2x1x8xf32, #tpu.memory_space<vmem>>, vector<1x1x8xf32>
    %27 = vector.shape_cast %26 : vector<1x1x8xf32> to vector<1x8xf32>
    %c0_16 = arith.constant 0 : index
    %c0_17 = arith.constant 0 : index
    %c0_18 = arith.constant 0 : index
    %28 = vector.load %arg6[%c0_16, %c0_17, %c0_18] : memref<2x72x8xbf16, #tpu.memory_space<vmem>>, vector<1x72x8xbf16>
    %29 = vector.shape_cast %28 : vector<1x72x8xbf16> to vector<72x8xbf16>
    %c0_19 = arith.constant 0 : index
    %c0_20 = arith.constant 0 : index
    %c0_21 = arith.constant 0 : index
    %30 = vector.load %arg7[%c0_19, %c0_20, %c0_21] : memref<2x1x8xf32, #tpu.memory_space<vmem>>, vector<1x1x8xf32>
    %31 = vector.shape_cast %30 : vector<1x1x8xf32> to vector<1x8xf32>
    %cst_22 = arith.constant 0.000000e+00 : bf16
    %32 = vector.broadcast %cst_22 : bf16 to vector<1x8x8xbf16>
    %33 = tpu.concatenate %32, %23, %32 in 0 : vector<1x8x8xbf16>, vector<8x8x8xbf16>, vector<1x8x8xbf16> -> vector<10x8x8xbf16>
    %cst_23 = arith.constant 0.000000e+00 : bf16
    %34 = vector.broadcast %cst_23 : bf16 to vector<10x1x8xbf16>
    %35 = tpu.concatenate %34, %33, %34 in 1 : vector<10x1x8xbf16>, vector<10x8x8xbf16>, vector<10x1x8xbf16> -> vector<10x10x8xbf16>
    %36 = vector.extract_strided_slice %35 {offsets = [0, 0, 0], sizes = [8, 8, 8], strides = [1, 1, 1]} : vector<10x10x8xbf16> to vector<8x8x8xbf16>
    %37 = vector.extract_strided_slice %35 {offsets = [0, 1, 0], sizes = [8, 8, 8], strides = [1, 1, 1]} : vector<10x10x8xbf16> to vector<8x8x8xbf16>
    %38 = vector.extract_strided_slice %35 {offsets = [0, 2, 0], sizes = [8, 8, 8], strides = [1, 1, 1]} : vector<10x10x8xbf16> to vector<8x8x8xbf16>
    %39 = vector.extract_strided_slice %35 {offsets = [1, 0, 0], sizes = [8, 8, 8], strides = [1, 1, 1]} : vector<10x10x8xbf16> to vector<8x8x8xbf16>
    %40 = vector.extract_strided_slice %35 {offsets = [1, 1, 0], sizes = [8, 8, 8], strides = [1, 1, 1]} : vector<10x10x8xbf16> to vector<8x8x8xbf16>
    %41 = vector.extract_strided_slice %35 {offsets = [1, 2, 0], sizes = [8, 8, 8], strides = [1, 1, 1]} : vector<10x10x8xbf16> to vector<8x8x8xbf16>
    %42 = vector.extract_strided_slice %35 {offsets = [2, 0, 0], sizes = [8, 8, 8], strides = [1, 1, 1]} : vector<10x10x8xbf16> to vector<8x8x8xbf16>
    %43 = vector.extract_strided_slice %35 {offsets = [2, 1, 0], sizes = [8, 8, 8], strides = [1, 1, 1]} : vector<10x10x8xbf16> to vector<8x8x8xbf16>
    %44 = vector.extract_strided_slice %35 {offsets = [2, 2, 0], sizes = [8, 8, 8], strides = [1, 1, 1]} : vector<10x10x8xbf16> to vector<8x8x8xbf16>
    %45 = tpu.concatenate %36, %37, %38, %39, %40, %41, %42, %43, %44 in 2 : vector<8x8x8xbf16>, vector<8x8x8xbf16>, vector<8x8x8xbf16>, vector<8x8x8xbf16>, vector<8x8x8xbf16>, vector<8x8x8xbf16>, vector<8x8x8xbf16>, vector<8x8x8xbf16>, vector<8x8x8xbf16> -> vector<8x8x72xbf16>
    %46 = vector.shape_cast %45 : vector<8x8x72xbf16> to vector<64x72xbf16>
    %cst_24 = arith.constant dense<0.000000e+00> : vector<64x8xf32>
    %47 = tpu.matmul %46, %25, %cst_24 {dimension_numbers = #tpu.dot_dimension_numbers<[1], [0], [0], [1], [0, 0, 1, 1], [], []>} : vector<64x72xbf16>, vector<72x8xbf16>, vector<64x8xf32> -> vector<64x8xf32>
    %48 = vector.broadcast %27 : vector<1x8xf32> to vector<64x8xf32>
    %49 = arith.addf %47, %48 : vector<64x8xf32>
    %cst_25 = arith.constant 0.000000e+00 : f32
    %50 = vector.broadcast %cst_25 : f32 to vector<64x8xf32>
    %51 = arith.maximumf %49, %50 : vector<64x8xf32>
    %52 = arith.truncf %51 : vector<64x8xf32> to vector<64x8xbf16>
    %53 = vector.shape_cast %52 : vector<64x8xbf16> to vector<8x8x8xbf16>
    %cst_26 = arith.constant 0.000000e+00 : bf16
    %54 = vector.broadcast %cst_26 : bf16 to vector<1x8x8xbf16>
    %55 = tpu.concatenate %54, %53, %54 in 0 : vector<1x8x8xbf16>, vector<8x8x8xbf16>, vector<1x8x8xbf16> -> vector<10x8x8xbf16>
    %cst_27 = arith.constant 0.000000e+00 : bf16
    %56 = vector.broadcast %cst_27 : bf16 to vector<10x1x8xbf16>
    %57 = tpu.concatenate %56, %55, %56 in 1 : vector<10x1x8xbf16>, vector<10x8x8xbf16>, vector<10x1x8xbf16> -> vector<10x10x8xbf16>
    %58 = vector.extract_strided_slice %57 {offsets = [0, 0, 0], sizes = [8, 8, 8], strides = [1, 1, 1]} : vector<10x10x8xbf16> to vector<8x8x8xbf16>
    %59 = vector.extract_strided_slice %57 {offsets = [0, 1, 0], sizes = [8, 8, 8], strides = [1, 1, 1]} : vector<10x10x8xbf16> to vector<8x8x8xbf16>
    %60 = vector.extract_strided_slice %57 {offsets = [0, 2, 0], sizes = [8, 8, 8], strides = [1, 1, 1]} : vector<10x10x8xbf16> to vector<8x8x8xbf16>
    %61 = vector.extract_strided_slice %57 {offsets = [1, 0, 0], sizes = [8, 8, 8], strides = [1, 1, 1]} : vector<10x10x8xbf16> to vector<8x8x8xbf16>
    %62 = vector.extract_strided_slice %57 {offsets = [1, 1, 0], sizes = [8, 8, 8], strides = [1, 1, 1]} : vector<10x10x8xbf16> to vector<8x8x8xbf16>
    %63 = vector.extract_strided_slice %57 {offsets = [1, 2, 0], sizes = [8, 8, 8], strides = [1, 1, 1]} : vector<10x10x8xbf16> to vector<8x8x8xbf16>
    %64 = vector.extract_strided_slice %57 {offsets = [2, 0, 0], sizes = [8, 8, 8], strides = [1, 1, 1]} : vector<10x10x8xbf16> to vector<8x8x8xbf16>
    %65 = vector.extract_strided_slice %57 {offsets = [2, 1, 0], sizes = [8, 8, 8], strides = [1, 1, 1]} : vector<10x10x8xbf16> to vector<8x8x8xbf16>
    %66 = vector.extract_strided_slice %57 {offsets = [2, 2, 0], sizes = [8, 8, 8], strides = [1, 1, 1]} : vector<10x10x8xbf16> to vector<8x8x8xbf16>
    %67 = tpu.concatenate %58, %59, %60, %61, %62, %63, %64, %65, %66 in 2 : vector<8x8x8xbf16>, vector<8x8x8xbf16>, vector<8x8x8xbf16>, vector<8x8x8xbf16>, vector<8x8x8xbf16>, vector<8x8x8xbf16>, vector<8x8x8xbf16>, vector<8x8x8xbf16>, vector<8x8x8xbf16> -> vector<8x8x72xbf16>
    %68 = vector.shape_cast %67 : vector<8x8x72xbf16> to vector<64x72xbf16>
    %cst_28 = arith.constant dense<0.000000e+00> : vector<64x8xf32>
    %69 = tpu.matmul %68, %29, %cst_28 {dimension_numbers = #tpu.dot_dimension_numbers<[1], [0], [0], [1], [0, 0, 1, 1], [], []>} : vector<64x72xbf16>, vector<72x8xbf16>, vector<64x8xf32> -> vector<64x8xf32>
    %70 = vector.broadcast %31 : vector<1x8xf32> to vector<64x8xf32>
    %71 = arith.addf %69, %70 : vector<64x8xf32>
    %72 = vector.shape_cast %23 : vector<8x8x8xbf16> to vector<64x8xbf16>
    %73 = arith.extf %72 : vector<64x8xbf16> to vector<64x8xf32>
    %74 = arith.addf %71, %73 : vector<64x8xf32>
    %cst_29 = arith.constant 0.000000e+00 : f32
    %75 = vector.broadcast %cst_29 : f32 to vector<64x8xf32>
    %76 = arith.maximumf %74, %75 : vector<64x8xf32>
    %77 = arith.truncf %76 : vector<64x8xf32> to vector<64x8xbf16>
    %78 = vector.shape_cast %77 : vector<64x8xbf16> to vector<8x8x8xbf16>
    %c1 = arith.constant 1 : index
    %c0_30 = arith.constant 0 : index
    %c0_31 = arith.constant 0 : index
    %79 = vector.load %arg4[%c1, %c0_30, %c0_31] : memref<2x72x8xbf16, #tpu.memory_space<vmem>>, vector<1x72x8xbf16>
    %80 = vector.shape_cast %79 : vector<1x72x8xbf16> to vector<72x8xbf16>
    %c1_32 = arith.constant 1 : index
    %c0_33 = arith.constant 0 : index
    %c0_34 = arith.constant 0 : index
    %81 = vector.load %arg5[%c1_32, %c0_33, %c0_34] : memref<2x1x8xf32, #tpu.memory_space<vmem>>, vector<1x1x8xf32>
    %82 = vector.shape_cast %81 : vector<1x1x8xf32> to vector<1x8xf32>
    %c1_35 = arith.constant 1 : index
    %c0_36 = arith.constant 0 : index
    %c0_37 = arith.constant 0 : index
    %83 = vector.load %arg6[%c1_35, %c0_36, %c0_37] : memref<2x72x8xbf16, #tpu.memory_space<vmem>>, vector<1x72x8xbf16>
    %84 = vector.shape_cast %83 : vector<1x72x8xbf16> to vector<72x8xbf16>
    %c1_38 = arith.constant 1 : index
    %c0_39 = arith.constant 0 : index
    %c0_40 = arith.constant 0 : index
    %85 = vector.load %arg7[%c1_38, %c0_39, %c0_40] : memref<2x1x8xf32, #tpu.memory_space<vmem>>, vector<1x1x8xf32>
    %86 = vector.shape_cast %85 : vector<1x1x8xf32> to vector<1x8xf32>
    %cst_41 = arith.constant 0.000000e+00 : bf16
    %87 = vector.broadcast %cst_41 : bf16 to vector<1x8x8xbf16>
    %88 = tpu.concatenate %87, %78, %87 in 0 : vector<1x8x8xbf16>, vector<8x8x8xbf16>, vector<1x8x8xbf16> -> vector<10x8x8xbf16>
    %cst_42 = arith.constant 0.000000e+00 : bf16
    %89 = vector.broadcast %cst_42 : bf16 to vector<10x1x8xbf16>
    %90 = tpu.concatenate %89, %88, %89 in 1 : vector<10x1x8xbf16>, vector<10x8x8xbf16>, vector<10x1x8xbf16> -> vector<10x10x8xbf16>
    %91 = vector.extract_strided_slice %90 {offsets = [0, 0, 0], sizes = [8, 8, 8], strides = [1, 1, 1]} : vector<10x10x8xbf16> to vector<8x8x8xbf16>
    %92 = vector.extract_strided_slice %90 {offsets = [0, 1, 0], sizes = [8, 8, 8], strides = [1, 1, 1]} : vector<10x10x8xbf16> to vector<8x8x8xbf16>
    %93 = vector.extract_strided_slice %90 {offsets = [0, 2, 0], sizes = [8, 8, 8], strides = [1, 1, 1]} : vector<10x10x8xbf16> to vector<8x8x8xbf16>
    %94 = vector.extract_strided_slice %90 {offsets = [1, 0, 0], sizes = [8, 8, 8], strides = [1, 1, 1]} : vector<10x10x8xbf16> to vector<8x8x8xbf16>
    %95 = vector.extract_strided_slice %90 {offsets = [1, 1, 0], sizes = [8, 8, 8], strides = [1, 1, 1]} : vector<10x10x8xbf16> to vector<8x8x8xbf16>
    %96 = vector.extract_strided_slice %90 {offsets = [1, 2, 0], sizes = [8, 8, 8], strides = [1, 1, 1]} : vector<10x10x8xbf16> to vector<8x8x8xbf16>
    %97 = vector.extract_strided_slice %90 {offsets = [2, 0, 0], sizes = [8, 8, 8], strides = [1, 1, 1]} : vector<10x10x8xbf16> to vector<8x8x8xbf16>
    %98 = vector.extract_strided_slice %90 {offsets = [2, 1, 0], sizes = [8, 8, 8], strides = [1, 1, 1]} : vector<10x10x8xbf16> to vector<8x8x8xbf16>
    %99 = vector.extract_strided_slice %90 {offsets = [2, 2, 0], sizes = [8, 8, 8], strides = [1, 1, 1]} : vector<10x10x8xbf16> to vector<8x8x8xbf16>
    %100 = tpu.concatenate %91, %92, %93, %94, %95, %96, %97, %98, %99 in 2 : vector<8x8x8xbf16>, vector<8x8x8xbf16>, vector<8x8x8xbf16>, vector<8x8x8xbf16>, vector<8x8x8xbf16>, vector<8x8x8xbf16>, vector<8x8x8xbf16>, vector<8x8x8xbf16>, vector<8x8x8xbf16> -> vector<8x8x72xbf16>
    %101 = vector.shape_cast %100 : vector<8x8x72xbf16> to vector<64x72xbf16>
    %cst_43 = arith.constant dense<0.000000e+00> : vector<64x8xf32>
    %102 = tpu.matmul %101, %80, %cst_43 {dimension_numbers = #tpu.dot_dimension_numbers<[1], [0], [0], [1], [0, 0, 1, 1], [], []>} : vector<64x72xbf16>, vector<72x8xbf16>, vector<64x8xf32> -> vector<64x8xf32>
    %103 = vector.broadcast %82 : vector<1x8xf32> to vector<64x8xf32>
    %104 = arith.addf %102, %103 : vector<64x8xf32>
    %cst_44 = arith.constant 0.000000e+00 : f32
    %105 = vector.broadcast %cst_44 : f32 to vector<64x8xf32>
    %106 = arith.maximumf %104, %105 : vector<64x8xf32>
    %107 = arith.truncf %106 : vector<64x8xf32> to vector<64x8xbf16>
    %108 = vector.shape_cast %107 : vector<64x8xbf16> to vector<8x8x8xbf16>
    %cst_45 = arith.constant 0.000000e+00 : bf16
    %109 = vector.broadcast %cst_45 : bf16 to vector<1x8x8xbf16>
    %110 = tpu.concatenate %109, %108, %109 in 0 : vector<1x8x8xbf16>, vector<8x8x8xbf16>, vector<1x8x8xbf16> -> vector<10x8x8xbf16>
    %cst_46 = arith.constant 0.000000e+00 : bf16
    %111 = vector.broadcast %cst_46 : bf16 to vector<10x1x8xbf16>
    %112 = tpu.concatenate %111, %110, %111 in 1 : vector<10x1x8xbf16>, vector<10x8x8xbf16>, vector<10x1x8xbf16> -> vector<10x10x8xbf16>
    %113 = vector.extract_strided_slice %112 {offsets = [0, 0, 0], sizes = [8, 8, 8], strides = [1, 1, 1]} : vector<10x10x8xbf16> to vector<8x8x8xbf16>
    %114 = vector.extract_strided_slice %112 {offsets = [0, 1, 0], sizes = [8, 8, 8], strides = [1, 1, 1]} : vector<10x10x8xbf16> to vector<8x8x8xbf16>
    %115 = vector.extract_strided_slice %112 {offsets = [0, 2, 0], sizes = [8, 8, 8], strides = [1, 1, 1]} : vector<10x10x8xbf16> to vector<8x8x8xbf16>
    %116 = vector.extract_strided_slice %112 {offsets = [1, 0, 0], sizes = [8, 8, 8], strides = [1, 1, 1]} : vector<10x10x8xbf16> to vector<8x8x8xbf16>
    %117 = vector.extract_strided_slice %112 {offsets = [1, 1, 0], sizes = [8, 8, 8], strides = [1, 1, 1]} : vector<10x10x8xbf16> to vector<8x8x8xbf16>
    %118 = vector.extract_strided_slice %112 {offsets = [1, 2, 0], sizes = [8, 8, 8], strides = [1, 1, 1]} : vector<10x10x8xbf16> to vector<8x8x8xbf16>
    %119 = vector.extract_strided_slice %112 {offsets = [2, 0, 0], sizes = [8, 8, 8], strides = [1, 1, 1]} : vector<10x10x8xbf16> to vector<8x8x8xbf16>
    %120 = vector.extract_strided_slice %112 {offsets = [2, 1, 0], sizes = [8, 8, 8], strides = [1, 1, 1]} : vector<10x10x8xbf16> to vector<8x8x8xbf16>
    %121 = vector.extract_strided_slice %112 {offsets = [2, 2, 0], sizes = [8, 8, 8], strides = [1, 1, 1]} : vector<10x10x8xbf16> to vector<8x8x8xbf16>
    %122 = tpu.concatenate %113, %114, %115, %116, %117, %118, %119, %120, %121 in 2 : vector<8x8x8xbf16>, vector<8x8x8xbf16>, vector<8x8x8xbf16>, vector<8x8x8xbf16>, vector<8x8x8xbf16>, vector<8x8x8xbf16>, vector<8x8x8xbf16>, vector<8x8x8xbf16>, vector<8x8x8xbf16> -> vector<8x8x72xbf16>
    %123 = vector.shape_cast %122 : vector<8x8x72xbf16> to vector<64x72xbf16>
    %cst_47 = arith.constant dense<0.000000e+00> : vector<64x8xf32>
    %124 = tpu.matmul %123, %84, %cst_47 {dimension_numbers = #tpu.dot_dimension_numbers<[1], [0], [0], [1], [0, 0, 1, 1], [], []>} : vector<64x72xbf16>, vector<72x8xbf16>, vector<64x8xf32> -> vector<64x8xf32>
    %125 = vector.broadcast %86 : vector<1x8xf32> to vector<64x8xf32>
    %126 = arith.addf %124, %125 : vector<64x8xf32>
    %127 = vector.shape_cast %78 : vector<8x8x8xbf16> to vector<64x8xbf16>
    %128 = arith.extf %127 : vector<64x8xbf16> to vector<64x8xf32>
    %129 = arith.addf %126, %128 : vector<64x8xf32>
    %cst_48 = arith.constant 0.000000e+00 : f32
    %130 = vector.broadcast %cst_48 : f32 to vector<64x8xf32>
    %131 = arith.maximumf %129, %130 : vector<64x8xf32>
    %132 = arith.truncf %131 : vector<64x8xf32> to vector<64x8xbf16>
    %133 = vector.shape_cast %132 : vector<64x8xbf16> to vector<8x8x8xbf16>
    %c0_49 = arith.constant 0 : index
    %c0_50 = arith.constant 0 : index
    %134 = vector.load %arg8[%c0_49, %c0_50] : memref<72x16xbf16, #tpu.memory_space<vmem>>, vector<72x16xbf16>
    %c0_51 = arith.constant 0 : index
    %c0_52 = arith.constant 0 : index
    %135 = vector.load %arg9[%c0_51, %c0_52] : memref<16x64xbf16, #tpu.memory_space<vmem>>, vector<16x64xbf16>
    %cst_53 = arith.constant 0.000000e+00 : bf16
    %136 = vector.broadcast %cst_53 : bf16 to vector<1x8x8xbf16>
    %137 = tpu.concatenate %136, %133, %136 in 0 : vector<1x8x8xbf16>, vector<8x8x8xbf16>, vector<1x8x8xbf16> -> vector<10x8x8xbf16>
    %cst_54 = arith.constant 0.000000e+00 : bf16
    %138 = vector.broadcast %cst_54 : bf16 to vector<10x1x8xbf16>
    %139 = tpu.concatenate %138, %137, %138 in 1 : vector<10x1x8xbf16>, vector<10x8x8xbf16>, vector<10x1x8xbf16> -> vector<10x10x8xbf16>
    %140 = vector.extract_strided_slice %139 {offsets = [0, 0, 0], sizes = [8, 8, 8], strides = [1, 1, 1]} : vector<10x10x8xbf16> to vector<8x8x8xbf16>
    %141 = vector.extract_strided_slice %139 {offsets = [0, 1, 0], sizes = [8, 8, 8], strides = [1, 1, 1]} : vector<10x10x8xbf16> to vector<8x8x8xbf16>
    %142 = vector.extract_strided_slice %139 {offsets = [0, 2, 0], sizes = [8, 8, 8], strides = [1, 1, 1]} : vector<10x10x8xbf16> to vector<8x8x8xbf16>
    %143 = vector.extract_strided_slice %139 {offsets = [1, 0, 0], sizes = [8, 8, 8], strides = [1, 1, 1]} : vector<10x10x8xbf16> to vector<8x8x8xbf16>
    %144 = vector.extract_strided_slice %139 {offsets = [1, 1, 0], sizes = [8, 8, 8], strides = [1, 1, 1]} : vector<10x10x8xbf16> to vector<8x8x8xbf16>
    %145 = vector.extract_strided_slice %139 {offsets = [1, 2, 0], sizes = [8, 8, 8], strides = [1, 1, 1]} : vector<10x10x8xbf16> to vector<8x8x8xbf16>
    %146 = vector.extract_strided_slice %139 {offsets = [2, 0, 0], sizes = [8, 8, 8], strides = [1, 1, 1]} : vector<10x10x8xbf16> to vector<8x8x8xbf16>
    %147 = vector.extract_strided_slice %139 {offsets = [2, 1, 0], sizes = [8, 8, 8], strides = [1, 1, 1]} : vector<10x10x8xbf16> to vector<8x8x8xbf16>
    %148 = vector.extract_strided_slice %139 {offsets = [2, 2, 0], sizes = [8, 8, 8], strides = [1, 1, 1]} : vector<10x10x8xbf16> to vector<8x8x8xbf16>
    %149 = tpu.concatenate %140, %141, %142, %143, %144, %145, %146, %147, %148 in 2 : vector<8x8x8xbf16>, vector<8x8x8xbf16>, vector<8x8x8xbf16>, vector<8x8x8xbf16>, vector<8x8x8xbf16>, vector<8x8x8xbf16>, vector<8x8x8xbf16>, vector<8x8x8xbf16>, vector<8x8x8xbf16> -> vector<8x8x72xbf16>
    %150 = vector.shape_cast %149 : vector<8x8x72xbf16> to vector<64x72xbf16>
    %cst_55 = arith.constant dense<0.000000e+00> : vector<16x72xf32>
    %151 = tpu.matmul %135, %150, %cst_55 {dimension_numbers = #tpu.dot_dimension_numbers<[1], [0], [0], [1], [0, 0, 1, 1], [], []>} : vector<16x64xbf16>, vector<64x72xbf16>, vector<16x72xf32> -> vector<16x72xf32>
    %152 = arith.truncf %151 : vector<16x72xf32> to vector<16x72xbf16>
    %cst_56 = arith.constant dense<0.000000e+00> : vector<16x16xf32>
    %153 = tpu.matmul %152, %134, %cst_56 {dimension_numbers = #tpu.dot_dimension_numbers<[1], [0], [0], [1], [0, 0, 1, 1], [], []>} : vector<16x72xbf16>, vector<72x16xbf16>, vector<16x16xf32> -> vector<16x16xf32>
    %154 = arith.truncf %153 : vector<16x16xf32> to vector<16x16xbf16>
    %155 = vector.shape_cast %154 : vector<16x16xbf16> to vector<4x4x16xbf16>
    %c0_57 = arith.constant 0 : index
    %c0_58 = arith.constant 0 : index
    %c0_59 = arith.constant 0 : index
    %156 = vector.load %arg10[%c0_57, %c0_58, %c0_59] : memref<3x144x16xbf16, #tpu.memory_space<vmem>>, vector<1x144x16xbf16>
    %157 = vector.shape_cast %156 : vector<1x144x16xbf16> to vector<144x16xbf16>
    %c0_60 = arith.constant 0 : index
    %c0_61 = arith.constant 0 : index
    %c0_62 = arith.constant 0 : index
    %158 = vector.load %arg11[%c0_60, %c0_61, %c0_62] : memref<3x1x16xf32, #tpu.memory_space<vmem>>, vector<1x1x16xf32>
    %159 = vector.shape_cast %158 : vector<1x1x16xf32> to vector<1x16xf32>
    %c0_63 = arith.constant 0 : index
    %c0_64 = arith.constant 0 : index
    %c0_65 = arith.constant 0 : index
    %160 = vector.load %arg12[%c0_63, %c0_64, %c0_65] : memref<3x144x16xbf16, #tpu.memory_space<vmem>>, vector<1x144x16xbf16>
    %161 = vector.shape_cast %160 : vector<1x144x16xbf16> to vector<144x16xbf16>
    %c0_66 = arith.constant 0 : index
    %c0_67 = arith.constant 0 : index
    %c0_68 = arith.constant 0 : index
    %162 = vector.load %arg13[%c0_66, %c0_67, %c0_68] : memref<3x1x16xf32, #tpu.memory_space<vmem>>, vector<1x1x16xf32>
    %163 = vector.shape_cast %162 : vector<1x1x16xf32> to vector<1x16xf32>
    %cst_69 = arith.constant 0.000000e+00 : bf16
    %164 = vector.broadcast %cst_69 : bf16 to vector<1x4x16xbf16>
    %165 = tpu.concatenate %164, %155, %164 in 0 : vector<1x4x16xbf16>, vector<4x4x16xbf16>, vector<1x4x16xbf16> -> vector<6x4x16xbf16>
    %cst_70 = arith.constant 0.000000e+00 : bf16
    %166 = vector.broadcast %cst_70 : bf16 to vector<6x1x16xbf16>
    %167 = tpu.concatenate %166, %165, %166 in 1 : vector<6x1x16xbf16>, vector<6x4x16xbf16>, vector<6x1x16xbf16> -> vector<6x6x16xbf16>
    %168 = vector.extract_strided_slice %167 {offsets = [0, 0, 0], sizes = [4, 4, 16], strides = [1, 1, 1]} : vector<6x6x16xbf16> to vector<4x4x16xbf16>
    %169 = vector.extract_strided_slice %167 {offsets = [0, 1, 0], sizes = [4, 4, 16], strides = [1, 1, 1]} : vector<6x6x16xbf16> to vector<4x4x16xbf16>
    %170 = vector.extract_strided_slice %167 {offsets = [0, 2, 0], sizes = [4, 4, 16], strides = [1, 1, 1]} : vector<6x6x16xbf16> to vector<4x4x16xbf16>
    %171 = vector.extract_strided_slice %167 {offsets = [1, 0, 0], sizes = [4, 4, 16], strides = [1, 1, 1]} : vector<6x6x16xbf16> to vector<4x4x16xbf16>
    %172 = vector.extract_strided_slice %167 {offsets = [1, 1, 0], sizes = [4, 4, 16], strides = [1, 1, 1]} : vector<6x6x16xbf16> to vector<4x4x16xbf16>
    %173 = vector.extract_strided_slice %167 {offsets = [1, 2, 0], sizes = [4, 4, 16], strides = [1, 1, 1]} : vector<6x6x16xbf16> to vector<4x4x16xbf16>
    %174 = vector.extract_strided_slice %167 {offsets = [2, 0, 0], sizes = [4, 4, 16], strides = [1, 1, 1]} : vector<6x6x16xbf16> to vector<4x4x16xbf16>
    %175 = vector.extract_strided_slice %167 {offsets = [2, 1, 0], sizes = [4, 4, 16], strides = [1, 1, 1]} : vector<6x6x16xbf16> to vector<4x4x16xbf16>
    %176 = vector.extract_strided_slice %167 {offsets = [2, 2, 0], sizes = [4, 4, 16], strides = [1, 1, 1]} : vector<6x6x16xbf16> to vector<4x4x16xbf16>
    %177 = tpu.concatenate %168, %169, %170, %171, %172, %173, %174, %175, %176 in 2 : vector<4x4x16xbf16>, vector<4x4x16xbf16>, vector<4x4x16xbf16>, vector<4x4x16xbf16>, vector<4x4x16xbf16>, vector<4x4x16xbf16>, vector<4x4x16xbf16>, vector<4x4x16xbf16>, vector<4x4x16xbf16> -> vector<4x4x144xbf16>
    %178 = vector.shape_cast %177 : vector<4x4x144xbf16> to vector<16x144xbf16>
    %cst_71 = arith.constant dense<0.000000e+00> : vector<16x16xf32>
    %179 = tpu.matmul %178, %157, %cst_71 {dimension_numbers = #tpu.dot_dimension_numbers<[1], [0], [0], [1], [0, 0, 1, 1], [], []>} : vector<16x144xbf16>, vector<144x16xbf16>, vector<16x16xf32> -> vector<16x16xf32>
    %180 = vector.broadcast %159 : vector<1x16xf32> to vector<16x16xf32>
    %181 = arith.addf %179, %180 : vector<16x16xf32>
    %cst_72 = arith.constant 0.000000e+00 : f32
    %182 = vector.broadcast %cst_72 : f32 to vector<16x16xf32>
    %183 = arith.maximumf %181, %182 : vector<16x16xf32>
    %184 = arith.truncf %183 : vector<16x16xf32> to vector<16x16xbf16>
    %185 = vector.shape_cast %184 : vector<16x16xbf16> to vector<4x4x16xbf16>
    %cst_73 = arith.constant 0.000000e+00 : bf16
    %186 = vector.broadcast %cst_73 : bf16 to vector<1x4x16xbf16>
    %187 = tpu.concatenate %186, %185, %186 in 0 : vector<1x4x16xbf16>, vector<4x4x16xbf16>, vector<1x4x16xbf16> -> vector<6x4x16xbf16>
    %cst_74 = arith.constant 0.000000e+00 : bf16
    %188 = vector.broadcast %cst_74 : bf16 to vector<6x1x16xbf16>
    %189 = tpu.concatenate %188, %187, %188 in 1 : vector<6x1x16xbf16>, vector<6x4x16xbf16>, vector<6x1x16xbf16> -> vector<6x6x16xbf16>
    %190 = vector.extract_strided_slice %189 {offsets = [0, 0, 0], sizes = [4, 4, 16], strides = [1, 1, 1]} : vector<6x6x16xbf16> to vector<4x4x16xbf16>
    %191 = vector.extract_strided_slice %189 {offsets = [0, 1, 0], sizes = [4, 4, 16], strides = [1, 1, 1]} : vector<6x6x16xbf16> to vector<4x4x16xbf16>
    %192 = vector.extract_strided_slice %189 {offsets = [0, 2, 0], sizes = [4, 4, 16], strides = [1, 1, 1]} : vector<6x6x16xbf16> to vector<4x4x16xbf16>
    %193 = vector.extract_strided_slice %189 {offsets = [1, 0, 0], sizes = [4, 4, 16], strides = [1, 1, 1]} : vector<6x6x16xbf16> to vector<4x4x16xbf16>
    %194 = vector.extract_strided_slice %189 {offsets = [1, 1, 0], sizes = [4, 4, 16], strides = [1, 1, 1]} : vector<6x6x16xbf16> to vector<4x4x16xbf16>
    %195 = vector.extract_strided_slice %189 {offsets = [1, 2, 0], sizes = [4, 4, 16], strides = [1, 1, 1]} : vector<6x6x16xbf16> to vector<4x4x16xbf16>
    %196 = vector.extract_strided_slice %189 {offsets = [2, 0, 0], sizes = [4, 4, 16], strides = [1, 1, 1]} : vector<6x6x16xbf16> to vector<4x4x16xbf16>
    %197 = vector.extract_strided_slice %189 {offsets = [2, 1, 0], sizes = [4, 4, 16], strides = [1, 1, 1]} : vector<6x6x16xbf16> to vector<4x4x16xbf16>
    %198 = vector.extract_strided_slice %189 {offsets = [2, 2, 0], sizes = [4, 4, 16], strides = [1, 1, 1]} : vector<6x6x16xbf16> to vector<4x4x16xbf16>
    %199 = tpu.concatenate %190, %191, %192, %193, %194, %195, %196, %197, %198 in 2 : vector<4x4x16xbf16>, vector<4x4x16xbf16>, vector<4x4x16xbf16>, vector<4x4x16xbf16>, vector<4x4x16xbf16>, vector<4x4x16xbf16>, vector<4x4x16xbf16>, vector<4x4x16xbf16>, vector<4x4x16xbf16> -> vector<4x4x144xbf16>
    %200 = vector.shape_cast %199 : vector<4x4x144xbf16> to vector<16x144xbf16>
    %cst_75 = arith.constant dense<0.000000e+00> : vector<16x16xf32>
    %201 = tpu.matmul %200, %161, %cst_75 {dimension_numbers = #tpu.dot_dimension_numbers<[1], [0], [0], [1], [0, 0, 1, 1], [], []>} : vector<16x144xbf16>, vector<144x16xbf16>, vector<16x16xf32> -> vector<16x16xf32>
    %202 = vector.broadcast %163 : vector<1x16xf32> to vector<16x16xf32>
    %203 = arith.addf %201, %202 : vector<16x16xf32>
    %204 = vector.shape_cast %155 : vector<4x4x16xbf16> to vector<16x16xbf16>
    %205 = arith.extf %204 : vector<16x16xbf16> to vector<16x16xf32>
    %206 = arith.addf %203, %205 : vector<16x16xf32>
    %cst_76 = arith.constant 0.000000e+00 : f32
    %207 = vector.broadcast %cst_76 : f32 to vector<16x16xf32>
    %208 = arith.maximumf %206, %207 : vector<16x16xf32>
    %209 = arith.truncf %208 : vector<16x16xf32> to vector<16x16xbf16>
    %210 = vector.shape_cast %209 : vector<16x16xbf16> to vector<4x4x16xbf16>
    %c1_77 = arith.constant 1 : index
    %c0_78 = arith.constant 0 : index
    %c0_79 = arith.constant 0 : index
    %211 = vector.load %arg10[%c1_77, %c0_78, %c0_79] : memref<3x144x16xbf16, #tpu.memory_space<vmem>>, vector<1x144x16xbf16>
    %212 = vector.shape_cast %211 : vector<1x144x16xbf16> to vector<144x16xbf16>
    %c1_80 = arith.constant 1 : index
    %c0_81 = arith.constant 0 : index
    %c0_82 = arith.constant 0 : index
    %213 = vector.load %arg11[%c1_80, %c0_81, %c0_82] : memref<3x1x16xf32, #tpu.memory_space<vmem>>, vector<1x1x16xf32>
    %214 = vector.shape_cast %213 : vector<1x1x16xf32> to vector<1x16xf32>
    %c1_83 = arith.constant 1 : index
    %c0_84 = arith.constant 0 : index
    %c0_85 = arith.constant 0 : index
    %215 = vector.load %arg12[%c1_83, %c0_84, %c0_85] : memref<3x144x16xbf16, #tpu.memory_space<vmem>>, vector<1x144x16xbf16>
    %216 = vector.shape_cast %215 : vector<1x144x16xbf16> to vector<144x16xbf16>
    %c1_86 = arith.constant 1 : index
    %c0_87 = arith.constant 0 : index
    %c0_88 = arith.constant 0 : index
    %217 = vector.load %arg13[%c1_86, %c0_87, %c0_88] : memref<3x1x16xf32, #tpu.memory_space<vmem>>, vector<1x1x16xf32>
    %218 = vector.shape_cast %217 : vector<1x1x16xf32> to vector<1x16xf32>
    %cst_89 = arith.constant 0.000000e+00 : bf16
    %219 = vector.broadcast %cst_89 : bf16 to vector<1x4x16xbf16>
    %220 = tpu.concatenate %219, %210, %219 in 0 : vector<1x4x16xbf16>, vector<4x4x16xbf16>, vector<1x4x16xbf16> -> vector<6x4x16xbf16>
    %cst_90 = arith.constant 0.000000e+00 : bf16
    %221 = vector.broadcast %cst_90 : bf16 to vector<6x1x16xbf16>
    %222 = tpu.concatenate %221, %220, %221 in 1 : vector<6x1x16xbf16>, vector<6x4x16xbf16>, vector<6x1x16xbf16> -> vector<6x6x16xbf16>
    %223 = vector.extract_strided_slice %222 {offsets = [0, 0, 0], sizes = [4, 4, 16], strides = [1, 1, 1]} : vector<6x6x16xbf16> to vector<4x4x16xbf16>
    %224 = vector.extract_strided_slice %222 {offsets = [0, 1, 0], sizes = [4, 4, 16], strides = [1, 1, 1]} : vector<6x6x16xbf16> to vector<4x4x16xbf16>
    %225 = vector.extract_strided_slice %222 {offsets = [0, 2, 0], sizes = [4, 4, 16], strides = [1, 1, 1]} : vector<6x6x16xbf16> to vector<4x4x16xbf16>
    %226 = vector.extract_strided_slice %222 {offsets = [1, 0, 0], sizes = [4, 4, 16], strides = [1, 1, 1]} : vector<6x6x16xbf16> to vector<4x4x16xbf16>
    %227 = vector.extract_strided_slice %222 {offsets = [1, 1, 0], sizes = [4, 4, 16], strides = [1, 1, 1]} : vector<6x6x16xbf16> to vector<4x4x16xbf16>
    %228 = vector.extract_strided_slice %222 {offsets = [1, 2, 0], sizes = [4, 4, 16], strides = [1, 1, 1]} : vector<6x6x16xbf16> to vector<4x4x16xbf16>
    %229 = vector.extract_strided_slice %222 {offsets = [2, 0, 0], sizes = [4, 4, 16], strides = [1, 1, 1]} : vector<6x6x16xbf16> to vector<4x4x16xbf16>
    %230 = vector.extract_strided_slice %222 {offsets = [2, 1, 0], sizes = [4, 4, 16], strides = [1, 1, 1]} : vector<6x6x16xbf16> to vector<4x4x16xbf16>
    %231 = vector.extract_strided_slice %222 {offsets = [2, 2, 0], sizes = [4, 4, 16], strides = [1, 1, 1]} : vector<6x6x16xbf16> to vector<4x4x16xbf16>
    %232 = tpu.concatenate %223, %224, %225, %226, %227, %228, %229, %230, %231 in 2 : vector<4x4x16xbf16>, vector<4x4x16xbf16>, vector<4x4x16xbf16>, vector<4x4x16xbf16>, vector<4x4x16xbf16>, vector<4x4x16xbf16>, vector<4x4x16xbf16>, vector<4x4x16xbf16>, vector<4x4x16xbf16> -> vector<4x4x144xbf16>
    %233 = vector.shape_cast %232 : vector<4x4x144xbf16> to vector<16x144xbf16>
    %cst_91 = arith.constant dense<0.000000e+00> : vector<16x16xf32>
    %234 = tpu.matmul %233, %212, %cst_91 {dimension_numbers = #tpu.dot_dimension_numbers<[1], [0], [0], [1], [0, 0, 1, 1], [], []>} : vector<16x144xbf16>, vector<144x16xbf16>, vector<16x16xf32> -> vector<16x16xf32>
    %235 = vector.broadcast %214 : vector<1x16xf32> to vector<16x16xf32>
    %236 = arith.addf %234, %235 : vector<16x16xf32>
    %cst_92 = arith.constant 0.000000e+00 : f32
    %237 = vector.broadcast %cst_92 : f32 to vector<16x16xf32>
    %238 = arith.maximumf %236, %237 : vector<16x16xf32>
    %239 = arith.truncf %238 : vector<16x16xf32> to vector<16x16xbf16>
    %240 = vector.shape_cast %239 : vector<16x16xbf16> to vector<4x4x16xbf16>
    %cst_93 = arith.constant 0.000000e+00 : bf16
    %241 = vector.broadcast %cst_93 : bf16 to vector<1x4x16xbf16>
    %242 = tpu.concatenate %241, %240, %241 in 0 : vector<1x4x16xbf16>, vector<4x4x16xbf16>, vector<1x4x16xbf16> -> vector<6x4x16xbf16>
    %cst_94 = arith.constant 0.000000e+00 : bf16
    %243 = vector.broadcast %cst_94 : bf16 to vector<6x1x16xbf16>
    %244 = tpu.concatenate %243, %242, %243 in 1 : vector<6x1x16xbf16>, vector<6x4x16xbf16>, vector<6x1x16xbf16> -> vector<6x6x16xbf16>
    %245 = vector.extract_strided_slice %244 {offsets = [0, 0, 0], sizes = [4, 4, 16], strides = [1, 1, 1]} : vector<6x6x16xbf16> to vector<4x4x16xbf16>
    %246 = vector.extract_strided_slice %244 {offsets = [0, 1, 0], sizes = [4, 4, 16], strides = [1, 1, 1]} : vector<6x6x16xbf16> to vector<4x4x16xbf16>
    %247 = vector.extract_strided_slice %244 {offsets = [0, 2, 0], sizes = [4, 4, 16], strides = [1, 1, 1]} : vector<6x6x16xbf16> to vector<4x4x16xbf16>
    %248 = vector.extract_strided_slice %244 {offsets = [1, 0, 0], sizes = [4, 4, 16], strides = [1, 1, 1]} : vector<6x6x16xbf16> to vector<4x4x16xbf16>
    %249 = vector.extract_strided_slice %244 {offsets = [1, 1, 0], sizes = [4, 4, 16], strides = [1, 1, 1]} : vector<6x6x16xbf16> to vector<4x4x16xbf16>
    %250 = vector.extract_strided_slice %244 {offsets = [1, 2, 0], sizes = [4, 4, 16], strides = [1, 1, 1]} : vector<6x6x16xbf16> to vector<4x4x16xbf16>
    %251 = vector.extract_strided_slice %244 {offsets = [2, 0, 0], sizes = [4, 4, 16], strides = [1, 1, 1]} : vector<6x6x16xbf16> to vector<4x4x16xbf16>
    %252 = vector.extract_strided_slice %244 {offsets = [2, 1, 0], sizes = [4, 4, 16], strides = [1, 1, 1]} : vector<6x6x16xbf16> to vector<4x4x16xbf16>
    %253 = vector.extract_strided_slice %244 {offsets = [2, 2, 0], sizes = [4, 4, 16], strides = [1, 1, 1]} : vector<6x6x16xbf16> to vector<4x4x16xbf16>
    %254 = tpu.concatenate %245, %246, %247, %248, %249, %250, %251, %252, %253 in 2 : vector<4x4x16xbf16>, vector<4x4x16xbf16>, vector<4x4x16xbf16>, vector<4x4x16xbf16>, vector<4x4x16xbf16>, vector<4x4x16xbf16>, vector<4x4x16xbf16>, vector<4x4x16xbf16>, vector<4x4x16xbf16> -> vector<4x4x144xbf16>
    %255 = vector.shape_cast %254 : vector<4x4x144xbf16> to vector<16x144xbf16>
    %cst_95 = arith.constant dense<0.000000e+00> : vector<16x16xf32>
    %256 = tpu.matmul %255, %216, %cst_95 {dimension_numbers = #tpu.dot_dimension_numbers<[1], [0], [0], [1], [0, 0, 1, 1], [], []>} : vector<16x144xbf16>, vector<144x16xbf16>, vector<16x16xf32> -> vector<16x16xf32>
    %257 = vector.broadcast %218 : vector<1x16xf32> to vector<16x16xf32>
    %258 = arith.addf %256, %257 : vector<16x16xf32>
    %259 = vector.shape_cast %210 : vector<4x4x16xbf16> to vector<16x16xbf16>
    %260 = arith.extf %259 : vector<16x16xbf16> to vector<16x16xf32>
    %261 = arith.addf %258, %260 : vector<16x16xf32>
    %cst_96 = arith.constant 0.000000e+00 : f32
    %262 = vector.broadcast %cst_96 : f32 to vector<16x16xf32>
    %263 = arith.maximumf %261, %262 : vector<16x16xf32>
    %264 = arith.truncf %263 : vector<16x16xf32> to vector<16x16xbf16>
    %265 = vector.shape_cast %264 : vector<16x16xbf16> to vector<4x4x16xbf16>
    %c2 = arith.constant 2 : index
    %c0_97 = arith.constant 0 : index
    %c0_98 = arith.constant 0 : index
    %266 = vector.load %arg10[%c2, %c0_97, %c0_98] : memref<3x144x16xbf16, #tpu.memory_space<vmem>>, vector<1x144x16xbf16>
    %267 = vector.shape_cast %266 : vector<1x144x16xbf16> to vector<144x16xbf16>
    %c2_99 = arith.constant 2 : index
    %c0_100 = arith.constant 0 : index
    %c0_101 = arith.constant 0 : index
    %268 = vector.load %arg11[%c2_99, %c0_100, %c0_101] : memref<3x1x16xf32, #tpu.memory_space<vmem>>, vector<1x1x16xf32>
    %269 = vector.shape_cast %268 : vector<1x1x16xf32> to vector<1x16xf32>
    %c2_102 = arith.constant 2 : index
    %c0_103 = arith.constant 0 : index
    %c0_104 = arith.constant 0 : index
    %270 = vector.load %arg12[%c2_102, %c0_103, %c0_104] : memref<3x144x16xbf16, #tpu.memory_space<vmem>>, vector<1x144x16xbf16>
    %271 = vector.shape_cast %270 : vector<1x144x16xbf16> to vector<144x16xbf16>
    %c2_105 = arith.constant 2 : index
    %c0_106 = arith.constant 0 : index
    %c0_107 = arith.constant 0 : index
    %272 = vector.load %arg13[%c2_105, %c0_106, %c0_107] : memref<3x1x16xf32, #tpu.memory_space<vmem>>, vector<1x1x16xf32>
    %273 = vector.shape_cast %272 : vector<1x1x16xf32> to vector<1x16xf32>
    %cst_108 = arith.constant 0.000000e+00 : bf16
    %274 = vector.broadcast %cst_108 : bf16 to vector<1x4x16xbf16>
    %275 = tpu.concatenate %274, %265, %274 in 0 : vector<1x4x16xbf16>, vector<4x4x16xbf16>, vector<1x4x16xbf16> -> vector<6x4x16xbf16>
    %cst_109 = arith.constant 0.000000e+00 : bf16
    %276 = vector.broadcast %cst_109 : bf16 to vector<6x1x16xbf16>
    %277 = tpu.concatenate %276, %275, %276 in 1 : vector<6x1x16xbf16>, vector<6x4x16xbf16>, vector<6x1x16xbf16> -> vector<6x6x16xbf16>
    %278 = vector.extract_strided_slice %277 {offsets = [0, 0, 0], sizes = [4, 4, 16], strides = [1, 1, 1]} : vector<6x6x16xbf16> to vector<4x4x16xbf16>
    %279 = vector.extract_strided_slice %277 {offsets = [0, 1, 0], sizes = [4, 4, 16], strides = [1, 1, 1]} : vector<6x6x16xbf16> to vector<4x4x16xbf16>
    %280 = vector.extract_strided_slice %277 {offsets = [0, 2, 0], sizes = [4, 4, 16], strides = [1, 1, 1]} : vector<6x6x16xbf16> to vector<4x4x16xbf16>
    %281 = vector.extract_strided_slice %277 {offsets = [1, 0, 0], sizes = [4, 4, 16], strides = [1, 1, 1]} : vector<6x6x16xbf16> to vector<4x4x16xbf16>
    %282 = vector.extract_strided_slice %277 {offsets = [1, 1, 0], sizes = [4, 4, 16], strides = [1, 1, 1]} : vector<6x6x16xbf16> to vector<4x4x16xbf16>
    %283 = vector.extract_strided_slice %277 {offsets = [1, 2, 0], sizes = [4, 4, 16], strides = [1, 1, 1]} : vector<6x6x16xbf16> to vector<4x4x16xbf16>
    %284 = vector.extract_strided_slice %277 {offsets = [2, 0, 0], sizes = [4, 4, 16], strides = [1, 1, 1]} : vector<6x6x16xbf16> to vector<4x4x16xbf16>
    %285 = vector.extract_strided_slice %277 {offsets = [2, 1, 0], sizes = [4, 4, 16], strides = [1, 1, 1]} : vector<6x6x16xbf16> to vector<4x4x16xbf16>
    %286 = vector.extract_strided_slice %277 {offsets = [2, 2, 0], sizes = [4, 4, 16], strides = [1, 1, 1]} : vector<6x6x16xbf16> to vector<4x4x16xbf16>
    %287 = tpu.concatenate %278, %279, %280, %281, %282, %283, %284, %285, %286 in 2 : vector<4x4x16xbf16>, vector<4x4x16xbf16>, vector<4x4x16xbf16>, vector<4x4x16xbf16>, vector<4x4x16xbf16>, vector<4x4x16xbf16>, vector<4x4x16xbf16>, vector<4x4x16xbf16>, vector<4x4x16xbf16> -> vector<4x4x144xbf16>
    %288 = vector.shape_cast %287 : vector<4x4x144xbf16> to vector<16x144xbf16>
    %cst_110 = arith.constant dense<0.000000e+00> : vector<16x16xf32>
    %289 = tpu.matmul %288, %267, %cst_110 {dimension_numbers = #tpu.dot_dimension_numbers<[1], [0], [0], [1], [0, 0, 1, 1], [], []>} : vector<16x144xbf16>, vector<144x16xbf16>, vector<16x16xf32> -> vector<16x16xf32>
    %290 = vector.broadcast %269 : vector<1x16xf32> to vector<16x16xf32>
    %291 = arith.addf %289, %290 : vector<16x16xf32>
    %cst_111 = arith.constant 0.000000e+00 : f32
    %292 = vector.broadcast %cst_111 : f32 to vector<16x16xf32>
    %293 = arith.maximumf %291, %292 : vector<16x16xf32>
    %294 = arith.truncf %293 : vector<16x16xf32> to vector<16x16xbf16>
    %295 = vector.shape_cast %294 : vector<16x16xbf16> to vector<4x4x16xbf16>
    %cst_112 = arith.constant 0.000000e+00 : bf16
    %296 = vector.broadcast %cst_112 : bf16 to vector<1x4x16xbf16>
    %297 = tpu.concatenate %296, %295, %296 in 0 : vector<1x4x16xbf16>, vector<4x4x16xbf16>, vector<1x4x16xbf16> -> vector<6x4x16xbf16>
    %cst_113 = arith.constant 0.000000e+00 : bf16
    %298 = vector.broadcast %cst_113 : bf16 to vector<6x1x16xbf16>
    %299 = tpu.concatenate %298, %297, %298 in 1 : vector<6x1x16xbf16>, vector<6x4x16xbf16>, vector<6x1x16xbf16> -> vector<6x6x16xbf16>
    %300 = vector.extract_strided_slice %299 {offsets = [0, 0, 0], sizes = [4, 4, 16], strides = [1, 1, 1]} : vector<6x6x16xbf16> to vector<4x4x16xbf16>
    %301 = vector.extract_strided_slice %299 {offsets = [0, 1, 0], sizes = [4, 4, 16], strides = [1, 1, 1]} : vector<6x6x16xbf16> to vector<4x4x16xbf16>
    %302 = vector.extract_strided_slice %299 {offsets = [0, 2, 0], sizes = [4, 4, 16], strides = [1, 1, 1]} : vector<6x6x16xbf16> to vector<4x4x16xbf16>
    %303 = vector.extract_strided_slice %299 {offsets = [1, 0, 0], sizes = [4, 4, 16], strides = [1, 1, 1]} : vector<6x6x16xbf16> to vector<4x4x16xbf16>
    %304 = vector.extract_strided_slice %299 {offsets = [1, 1, 0], sizes = [4, 4, 16], strides = [1, 1, 1]} : vector<6x6x16xbf16> to vector<4x4x16xbf16>
    %305 = vector.extract_strided_slice %299 {offsets = [1, 2, 0], sizes = [4, 4, 16], strides = [1, 1, 1]} : vector<6x6x16xbf16> to vector<4x4x16xbf16>
    %306 = vector.extract_strided_slice %299 {offsets = [2, 0, 0], sizes = [4, 4, 16], strides = [1, 1, 1]} : vector<6x6x16xbf16> to vector<4x4x16xbf16>
    %307 = vector.extract_strided_slice %299 {offsets = [2, 1, 0], sizes = [4, 4, 16], strides = [1, 1, 1]} : vector<6x6x16xbf16> to vector<4x4x16xbf16>
    %308 = vector.extract_strided_slice %299 {offsets = [2, 2, 0], sizes = [4, 4, 16], strides = [1, 1, 1]} : vector<6x6x16xbf16> to vector<4x4x16xbf16>
    %309 = tpu.concatenate %300, %301, %302, %303, %304, %305, %306, %307, %308 in 2 : vector<4x4x16xbf16>, vector<4x4x16xbf16>, vector<4x4x16xbf16>, vector<4x4x16xbf16>, vector<4x4x16xbf16>, vector<4x4x16xbf16>, vector<4x4x16xbf16>, vector<4x4x16xbf16>, vector<4x4x16xbf16> -> vector<4x4x144xbf16>
    %310 = vector.shape_cast %309 : vector<4x4x144xbf16> to vector<16x144xbf16>
    %cst_114 = arith.constant dense<0.000000e+00> : vector<16x16xf32>
    %311 = tpu.matmul %310, %271, %cst_114 {dimension_numbers = #tpu.dot_dimension_numbers<[1], [0], [0], [1], [0, 0, 1, 1], [], []>} : vector<16x144xbf16>, vector<144x16xbf16>, vector<16x16xf32> -> vector<16x16xf32>
    %312 = vector.broadcast %273 : vector<1x16xf32> to vector<16x16xf32>
    %313 = arith.addf %311, %312 : vector<16x16xf32>
    %314 = vector.shape_cast %265 : vector<4x4x16xbf16> to vector<16x16xbf16>
    %315 = arith.extf %314 : vector<16x16xbf16> to vector<16x16xf32>
    %316 = arith.addf %313, %315 : vector<16x16xf32>
    %cst_115 = arith.constant 0.000000e+00 : f32
    %317 = vector.broadcast %cst_115 : f32 to vector<16x16xf32>
    %318 = arith.maximumf %316, %317 : vector<16x16xf32>
    %319 = arith.truncf %318 : vector<16x16xf32> to vector<16x16xbf16>
    %320 = vector.shape_cast %319 : vector<16x16xbf16> to vector<4x4x16xbf16>
    %c0_116 = arith.constant 0 : index
    %c0_117 = arith.constant 0 : index
    %321 = vector.load %arg14[%c0_116, %c0_117] : memref<4x36xbf16, #tpu.memory_space<vmem>>, vector<4x36xbf16>
    %cst_118 = arith.constant 0.000000e+00 : bf16
    %322 = vector.broadcast %cst_118 : bf16 to vector<1x4x16xbf16>
    %323 = tpu.concatenate %322, %320, %322 in 0 : vector<1x4x16xbf16>, vector<4x4x16xbf16>, vector<1x4x16xbf16> -> vector<6x4x16xbf16>
    %cst_119 = arith.constant 0.000000e+00 : bf16
    %324 = vector.broadcast %cst_119 : bf16 to vector<6x1x16xbf16>
    %325 = tpu.concatenate %324, %323, %324 in 1 : vector<6x1x16xbf16>, vector<6x4x16xbf16>, vector<6x1x16xbf16> -> vector<6x6x16xbf16>
    %326 = vector.shape_cast %325 : vector<6x6x16xbf16> to vector<36x16xbf16>
    %cst_120 = arith.constant dense<0.000000e+00> : vector<4x16xf32>
    %327 = tpu.matmul %321, %326, %cst_120 {dimension_numbers = #tpu.dot_dimension_numbers<[1], [0], [0], [1], [0, 0, 1, 1], [], []>} : vector<4x36xbf16>, vector<36x16xbf16>, vector<4x16xf32> -> vector<4x16xf32>
    %cst_121 = arith.constant 0.111111112 : f32
    %328 = vector.broadcast %cst_121 : f32 to vector<4x16xf32>
    %329 = arith.mulf %327, %328 : vector<4x16xf32>
    %330 = arith.truncf %329 : vector<4x16xf32> to vector<4x16xbf16>
    %331 = vector.shape_cast %330 : vector<4x16xbf16> to vector<2x2x16xbf16>
    %c0_122 = arith.constant 0 : index
    %c0_123 = arith.constant 0 : index
    %c0_124 = arith.constant 0 : index
    %332 = vector.load %arg15[%c0_122, %c0_123, %c0_124] : memref<3x144x16xbf16, #tpu.memory_space<vmem>>, vector<1x144x16xbf16>
    %333 = vector.shape_cast %332 : vector<1x144x16xbf16> to vector<144x16xbf16>
    %c0_125 = arith.constant 0 : index
    %c0_126 = arith.constant 0 : index
    %c0_127 = arith.constant 0 : index
    %334 = vector.load %arg16[%c0_125, %c0_126, %c0_127] : memref<3x1x16xf32, #tpu.memory_space<vmem>>, vector<1x1x16xf32>
    %335 = vector.shape_cast %334 : vector<1x1x16xf32> to vector<1x16xf32>
    %c0_128 = arith.constant 0 : index
    %c0_129 = arith.constant 0 : index
    %c0_130 = arith.constant 0 : index
    %336 = vector.load %arg17[%c0_128, %c0_129, %c0_130] : memref<3x144x16xbf16, #tpu.memory_space<vmem>>, vector<1x144x16xbf16>
    %337 = vector.shape_cast %336 : vector<1x144x16xbf16> to vector<144x16xbf16>
    %c0_131 = arith.constant 0 : index
    %c0_132 = arith.constant 0 : index
    %c0_133 = arith.constant 0 : index
    %338 = vector.load %arg18[%c0_131, %c0_132, %c0_133] : memref<3x1x16xf32, #tpu.memory_space<vmem>>, vector<1x1x16xf32>
    %339 = vector.shape_cast %338 : vector<1x1x16xf32> to vector<1x16xf32>
    %cst_134 = arith.constant 0.000000e+00 : bf16
    %340 = vector.broadcast %cst_134 : bf16 to vector<1x2x16xbf16>
    %341 = tpu.concatenate %340, %331, %340 in 0 : vector<1x2x16xbf16>, vector<2x2x16xbf16>, vector<1x2x16xbf16> -> vector<4x2x16xbf16>
    %cst_135 = arith.constant 0.000000e+00 : bf16
    %342 = vector.broadcast %cst_135 : bf16 to vector<4x1x16xbf16>
    %343 = tpu.concatenate %342, %341, %342 in 1 : vector<4x1x16xbf16>, vector<4x2x16xbf16>, vector<4x1x16xbf16> -> vector<4x4x16xbf16>
    %344 = vector.extract_strided_slice %343 {offsets = [0, 0, 0], sizes = [2, 2, 16], strides = [1, 1, 1]} : vector<4x4x16xbf16> to vector<2x2x16xbf16>
    %345 = vector.extract_strided_slice %343 {offsets = [0, 1, 0], sizes = [2, 2, 16], strides = [1, 1, 1]} : vector<4x4x16xbf16> to vector<2x2x16xbf16>
    %346 = vector.extract_strided_slice %343 {offsets = [0, 2, 0], sizes = [2, 2, 16], strides = [1, 1, 1]} : vector<4x4x16xbf16> to vector<2x2x16xbf16>
    %347 = vector.extract_strided_slice %343 {offsets = [1, 0, 0], sizes = [2, 2, 16], strides = [1, 1, 1]} : vector<4x4x16xbf16> to vector<2x2x16xbf16>
    %348 = vector.extract_strided_slice %343 {offsets = [1, 1, 0], sizes = [2, 2, 16], strides = [1, 1, 1]} : vector<4x4x16xbf16> to vector<2x2x16xbf16>
    %349 = vector.extract_strided_slice %343 {offsets = [1, 2, 0], sizes = [2, 2, 16], strides = [1, 1, 1]} : vector<4x4x16xbf16> to vector<2x2x16xbf16>
    %350 = vector.extract_strided_slice %343 {offsets = [2, 0, 0], sizes = [2, 2, 16], strides = [1, 1, 1]} : vector<4x4x16xbf16> to vector<2x2x16xbf16>
    %351 = vector.extract_strided_slice %343 {offsets = [2, 1, 0], sizes = [2, 2, 16], strides = [1, 1, 1]} : vector<4x4x16xbf16> to vector<2x2x16xbf16>
    %352 = vector.extract_strided_slice %343 {offsets = [2, 2, 0], sizes = [2, 2, 16], strides = [1, 1, 1]} : vector<4x4x16xbf16> to vector<2x2x16xbf16>
    %353 = tpu.concatenate %344, %345, %346, %347, %348, %349, %350, %351, %352 in 2 : vector<2x2x16xbf16>, vector<2x2x16xbf16>, vector<2x2x16xbf16>, vector<2x2x16xbf16>, vector<2x2x16xbf16>, vector<2x2x16xbf16>, vector<2x2x16xbf16>, vector<2x2x16xbf16>, vector<2x2x16xbf16> -> vector<2x2x144xbf16>
    %354 = vector.shape_cast %353 : vector<2x2x144xbf16> to vector<4x144xbf16>
    %cst_136 = arith.constant dense<0.000000e+00> : vector<4x16xf32>
    %355 = tpu.matmul %354, %333, %cst_136 {dimension_numbers = #tpu.dot_dimension_numbers<[1], [0], [0], [1], [0, 0, 1, 1], [], []>} : vector<4x144xbf16>, vector<144x16xbf16>, vector<4x16xf32> -> vector<4x16xf32>
    %356 = vector.broadcast %335 : vector<1x16xf32> to vector<4x16xf32>
    %357 = arith.addf %355, %356 : vector<4x16xf32>
    %cst_137 = arith.constant 0.000000e+00 : f32
    %358 = vector.broadcast %cst_137 : f32 to vector<4x16xf32>
    %359 = arith.maximumf %357, %358 : vector<4x16xf32>
    %360 = arith.truncf %359 : vector<4x16xf32> to vector<4x16xbf16>
    %361 = vector.shape_cast %360 : vector<4x16xbf16> to vector<2x2x16xbf16>
    %cst_138 = arith.constant 0.000000e+00 : bf16
    %362 = vector.broadcast %cst_138 : bf16 to vector<1x2x16xbf16>
    %363 = tpu.concatenate %362, %361, %362 in 0 : vector<1x2x16xbf16>, vector<2x2x16xbf16>, vector<1x2x16xbf16> -> vector<4x2x16xbf16>
    %cst_139 = arith.constant 0.000000e+00 : bf16
    %364 = vector.broadcast %cst_139 : bf16 to vector<4x1x16xbf16>
    %365 = tpu.concatenate %364, %363, %364 in 1 : vector<4x1x16xbf16>, vector<4x2x16xbf16>, vector<4x1x16xbf16> -> vector<4x4x16xbf16>
    %366 = vector.extract_strided_slice %365 {offsets = [0, 0, 0], sizes = [2, 2, 16], strides = [1, 1, 1]} : vector<4x4x16xbf16> to vector<2x2x16xbf16>
    %367 = vector.extract_strided_slice %365 {offsets = [0, 1, 0], sizes = [2, 2, 16], strides = [1, 1, 1]} : vector<4x4x16xbf16> to vector<2x2x16xbf16>
    %368 = vector.extract_strided_slice %365 {offsets = [0, 2, 0], sizes = [2, 2, 16], strides = [1, 1, 1]} : vector<4x4x16xbf16> to vector<2x2x16xbf16>
    %369 = vector.extract_strided_slice %365 {offsets = [1, 0, 0], sizes = [2, 2, 16], strides = [1, 1, 1]} : vector<4x4x16xbf16> to vector<2x2x16xbf16>
    %370 = vector.extract_strided_slice %365 {offsets = [1, 1, 0], sizes = [2, 2, 16], strides = [1, 1, 1]} : vector<4x4x16xbf16> to vector<2x2x16xbf16>
    %371 = vector.extract_strided_slice %365 {offsets = [1, 2, 0], sizes = [2, 2, 16], strides = [1, 1, 1]} : vector<4x4x16xbf16> to vector<2x2x16xbf16>
    %372 = vector.extract_strided_slice %365 {offsets = [2, 0, 0], sizes = [2, 2, 16], strides = [1, 1, 1]} : vector<4x4x16xbf16> to vector<2x2x16xbf16>
    %373 = vector.extract_strided_slice %365 {offsets = [2, 1, 0], sizes = [2, 2, 16], strides = [1, 1, 1]} : vector<4x4x16xbf16> to vector<2x2x16xbf16>
    %374 = vector.extract_strided_slice %365 {offsets = [2, 2, 0], sizes = [2, 2, 16], strides = [1, 1, 1]} : vector<4x4x16xbf16> to vector<2x2x16xbf16>
    %375 = tpu.concatenate %366, %367, %368, %369, %370, %371, %372, %373, %374 in 2 : vector<2x2x16xbf16>, vector<2x2x16xbf16>, vector<2x2x16xbf16>, vector<2x2x16xbf16>, vector<2x2x16xbf16>, vector<2x2x16xbf16>, vector<2x2x16xbf16>, vector<2x2x16xbf16>, vector<2x2x16xbf16> -> vector<2x2x144xbf16>
    %376 = vector.shape_cast %375 : vector<2x2x144xbf16> to vector<4x144xbf16>
    %cst_140 = arith.constant dense<0.000000e+00> : vector<4x16xf32>
    %377 = tpu.matmul %376, %337, %cst_140 {dimension_numbers = #tpu.dot_dimension_numbers<[1], [0], [0], [1], [0, 0, 1, 1], [], []>} : vector<4x144xbf16>, vector<144x16xbf16>, vector<4x16xf32> -> vector<4x16xf32>
    %378 = vector.broadcast %339 : vector<1x16xf32> to vector<4x16xf32>
    %379 = arith.addf %377, %378 : vector<4x16xf32>
    %380 = vector.shape_cast %331 : vector<2x2x16xbf16> to vector<4x16xbf16>
    %381 = arith.extf %380 : vector<4x16xbf16> to vector<4x16xf32>
    %382 = arith.addf %379, %381 : vector<4x16xf32>
    %cst_141 = arith.constant 0.000000e+00 : f32
    %383 = vector.broadcast %cst_141 : f32 to vector<4x16xf32>
    %384 = arith.maximumf %382, %383 : vector<4x16xf32>
    %385 = arith.truncf %384 : vector<4x16xf32> to vector<4x16xbf16>
    %386 = vector.shape_cast %385 : vector<4x16xbf16> to vector<2x2x16xbf16>
    %c1_142 = arith.constant 1 : index
    %c0_143 = arith.constant 0 : index
    %c0_144 = arith.constant 0 : index
    %387 = vector.load %arg15[%c1_142, %c0_143, %c0_144] : memref<3x144x16xbf16, #tpu.memory_space<vmem>>, vector<1x144x16xbf16>
    %388 = vector.shape_cast %387 : vector<1x144x16xbf16> to vector<144x16xbf16>
    %c1_145 = arith.constant 1 : index
    %c0_146 = arith.constant 0 : index
    %c0_147 = arith.constant 0 : index
    %389 = vector.load %arg16[%c1_145, %c0_146, %c0_147] : memref<3x1x16xf32, #tpu.memory_space<vmem>>, vector<1x1x16xf32>
    %390 = vector.shape_cast %389 : vector<1x1x16xf32> to vector<1x16xf32>
    %c1_148 = arith.constant 1 : index
    %c0_149 = arith.constant 0 : index
    %c0_150 = arith.constant 0 : index
    %391 = vector.load %arg17[%c1_148, %c0_149, %c0_150] : memref<3x144x16xbf16, #tpu.memory_space<vmem>>, vector<1x144x16xbf16>
    %392 = vector.shape_cast %391 : vector<1x144x16xbf16> to vector<144x16xbf16>
    %c1_151 = arith.constant 1 : index
    %c0_152 = arith.constant 0 : index
    %c0_153 = arith.constant 0 : index
    %393 = vector.load %arg18[%c1_151, %c0_152, %c0_153] : memref<3x1x16xf32, #tpu.memory_space<vmem>>, vector<1x1x16xf32>
    %394 = vector.shape_cast %393 : vector<1x1x16xf32> to vector<1x16xf32>
    %cst_154 = arith.constant 0.000000e+00 : bf16
    %395 = vector.broadcast %cst_154 : bf16 to vector<1x2x16xbf16>
    %396 = tpu.concatenate %395, %386, %395 in 0 : vector<1x2x16xbf16>, vector<2x2x16xbf16>, vector<1x2x16xbf16> -> vector<4x2x16xbf16>
    %cst_155 = arith.constant 0.000000e+00 : bf16
    %397 = vector.broadcast %cst_155 : bf16 to vector<4x1x16xbf16>
    %398 = tpu.concatenate %397, %396, %397 in 1 : vector<4x1x16xbf16>, vector<4x2x16xbf16>, vector<4x1x16xbf16> -> vector<4x4x16xbf16>
    %399 = vector.extract_strided_slice %398 {offsets = [0, 0, 0], sizes = [2, 2, 16], strides = [1, 1, 1]} : vector<4x4x16xbf16> to vector<2x2x16xbf16>
    %400 = vector.extract_strided_slice %398 {offsets = [0, 1, 0], sizes = [2, 2, 16], strides = [1, 1, 1]} : vector<4x4x16xbf16> to vector<2x2x16xbf16>
    %401 = vector.extract_strided_slice %398 {offsets = [0, 2, 0], sizes = [2, 2, 16], strides = [1, 1, 1]} : vector<4x4x16xbf16> to vector<2x2x16xbf16>
    %402 = vector.extract_strided_slice %398 {offsets = [1, 0, 0], sizes = [2, 2, 16], strides = [1, 1, 1]} : vector<4x4x16xbf16> to vector<2x2x16xbf16>
    %403 = vector.extract_strided_slice %398 {offsets = [1, 1, 0], sizes = [2, 2, 16], strides = [1, 1, 1]} : vector<4x4x16xbf16> to vector<2x2x16xbf16>
    %404 = vector.extract_strided_slice %398 {offsets = [1, 2, 0], sizes = [2, 2, 16], strides = [1, 1, 1]} : vector<4x4x16xbf16> to vector<2x2x16xbf16>
    %405 = vector.extract_strided_slice %398 {offsets = [2, 0, 0], sizes = [2, 2, 16], strides = [1, 1, 1]} : vector<4x4x16xbf16> to vector<2x2x16xbf16>
    %406 = vector.extract_strided_slice %398 {offsets = [2, 1, 0], sizes = [2, 2, 16], strides = [1, 1, 1]} : vector<4x4x16xbf16> to vector<2x2x16xbf16>
    %407 = vector.extract_strided_slice %398 {offsets = [2, 2, 0], sizes = [2, 2, 16], strides = [1, 1, 1]} : vector<4x4x16xbf16> to vector<2x2x16xbf16>
    %408 = tpu.concatenate %399, %400, %401, %402, %403, %404, %405, %406, %407 in 2 : vector<2x2x16xbf16>, vector<2x2x16xbf16>, vector<2x2x16xbf16>, vector<2x2x16xbf16>, vector<2x2x16xbf16>, vector<2x2x16xbf16>, vector<2x2x16xbf16>, vector<2x2x16xbf16>, vector<2x2x16xbf16> -> vector<2x2x144xbf16>
    %409 = vector.shape_cast %408 : vector<2x2x144xbf16> to vector<4x144xbf16>
    %cst_156 = arith.constant dense<0.000000e+00> : vector<4x16xf32>
    %410 = tpu.matmul %409, %388, %cst_156 {dimension_numbers = #tpu.dot_dimension_numbers<[1], [0], [0], [1], [0, 0, 1, 1], [], []>} : vector<4x144xbf16>, vector<144x16xbf16>, vector<4x16xf32> -> vector<4x16xf32>
    %411 = vector.broadcast %390 : vector<1x16xf32> to vector<4x16xf32>
    %412 = arith.addf %410, %411 : vector<4x16xf32>
    %cst_157 = arith.constant 0.000000e+00 : f32
    %413 = vector.broadcast %cst_157 : f32 to vector<4x16xf32>
    %414 = arith.maximumf %412, %413 : vector<4x16xf32>
    %415 = arith.truncf %414 : vector<4x16xf32> to vector<4x16xbf16>
    %416 = vector.shape_cast %415 : vector<4x16xbf16> to vector<2x2x16xbf16>
    %cst_158 = arith.constant 0.000000e+00 : bf16
    %417 = vector.broadcast %cst_158 : bf16 to vector<1x2x16xbf16>
    %418 = tpu.concatenate %417, %416, %417 in 0 : vector<1x2x16xbf16>, vector<2x2x16xbf16>, vector<1x2x16xbf16> -> vector<4x2x16xbf16>
    %cst_159 = arith.constant 0.000000e+00 : bf16
    %419 = vector.broadcast %cst_159 : bf16 to vector<4x1x16xbf16>
    %420 = tpu.concatenate %419, %418, %419 in 1 : vector<4x1x16xbf16>, vector<4x2x16xbf16>, vector<4x1x16xbf16> -> vector<4x4x16xbf16>
    %421 = vector.extract_strided_slice %420 {offsets = [0, 0, 0], sizes = [2, 2, 16], strides = [1, 1, 1]} : vector<4x4x16xbf16> to vector<2x2x16xbf16>
    %422 = vector.extract_strided_slice %420 {offsets = [0, 1, 0], sizes = [2, 2, 16], strides = [1, 1, 1]} : vector<4x4x16xbf16> to vector<2x2x16xbf16>
    %423 = vector.extract_strided_slice %420 {offsets = [0, 2, 0], sizes = [2, 2, 16], strides = [1, 1, 1]} : vector<4x4x16xbf16> to vector<2x2x16xbf16>
    %424 = vector.extract_strided_slice %420 {offsets = [1, 0, 0], sizes = [2, 2, 16], strides = [1, 1, 1]} : vector<4x4x16xbf16> to vector<2x2x16xbf16>
    %425 = vector.extract_strided_slice %420 {offsets = [1, 1, 0], sizes = [2, 2, 16], strides = [1, 1, 1]} : vector<4x4x16xbf16> to vector<2x2x16xbf16>
    %426 = vector.extract_strided_slice %420 {offsets = [1, 2, 0], sizes = [2, 2, 16], strides = [1, 1, 1]} : vector<4x4x16xbf16> to vector<2x2x16xbf16>
    %427 = vector.extract_strided_slice %420 {offsets = [2, 0, 0], sizes = [2, 2, 16], strides = [1, 1, 1]} : vector<4x4x16xbf16> to vector<2x2x16xbf16>
    %428 = vector.extract_strided_slice %420 {offsets = [2, 1, 0], sizes = [2, 2, 16], strides = [1, 1, 1]} : vector<4x4x16xbf16> to vector<2x2x16xbf16>
    %429 = vector.extract_strided_slice %420 {offsets = [2, 2, 0], sizes = [2, 2, 16], strides = [1, 1, 1]} : vector<4x4x16xbf16> to vector<2x2x16xbf16>
    %430 = tpu.concatenate %421, %422, %423, %424, %425, %426, %427, %428, %429 in 2 : vector<2x2x16xbf16>, vector<2x2x16xbf16>, vector<2x2x16xbf16>, vector<2x2x16xbf16>, vector<2x2x16xbf16>, vector<2x2x16xbf16>, vector<2x2x16xbf16>, vector<2x2x16xbf16>, vector<2x2x16xbf16> -> vector<2x2x144xbf16>
    %431 = vector.shape_cast %430 : vector<2x2x144xbf16> to vector<4x144xbf16>
    %cst_160 = arith.constant dense<0.000000e+00> : vector<4x16xf32>
    %432 = tpu.matmul %431, %392, %cst_160 {dimension_numbers = #tpu.dot_dimension_numbers<[1], [0], [0], [1], [0, 0, 1, 1], [], []>} : vector<4x144xbf16>, vector<144x16xbf16>, vector<4x16xf32> -> vector<4x16xf32>
    %433 = vector.broadcast %394 : vector<1x16xf32> to vector<4x16xf32>
    %434 = arith.addf %432, %433 : vector<4x16xf32>
    %435 = vector.shape_cast %386 : vector<2x2x16xbf16> to vector<4x16xbf16>
    %436 = arith.extf %435 : vector<4x16xbf16> to vector<4x16xf32>
    %437 = arith.addf %434, %436 : vector<4x16xf32>
    %cst_161 = arith.constant 0.000000e+00 : f32
    %438 = vector.broadcast %cst_161 : f32 to vector<4x16xf32>
    %439 = arith.maximumf %437, %438 : vector<4x16xf32>
    %440 = arith.truncf %439 : vector<4x16xf32> to vector<4x16xbf16>
    %441 = vector.shape_cast %440 : vector<4x16xbf16> to vector<2x2x16xbf16>
    %c2_162 = arith.constant 2 : index
    %c0_163 = arith.constant 0 : index
    %c0_164 = arith.constant 0 : index
    %442 = vector.load %arg15[%c2_162, %c0_163, %c0_164] : memref<3x144x16xbf16, #tpu.memory_space<vmem>>, vector<1x144x16xbf16>
    %443 = vector.shape_cast %442 : vector<1x144x16xbf16> to vector<144x16xbf16>
    %c2_165 = arith.constant 2 : index
    %c0_166 = arith.constant 0 : index
    %c0_167 = arith.constant 0 : index
    %444 = vector.load %arg16[%c2_165, %c0_166, %c0_167] : memref<3x1x16xf32, #tpu.memory_space<vmem>>, vector<1x1x16xf32>
    %445 = vector.shape_cast %444 : vector<1x1x16xf32> to vector<1x16xf32>
    %c2_168 = arith.constant 2 : index
    %c0_169 = arith.constant 0 : index
    %c0_170 = arith.constant 0 : index
    %446 = vector.load %arg17[%c2_168, %c0_169, %c0_170] : memref<3x144x16xbf16, #tpu.memory_space<vmem>>, vector<1x144x16xbf16>
    %447 = vector.shape_cast %446 : vector<1x144x16xbf16> to vector<144x16xbf16>
    %c2_171 = arith.constant 2 : index
    %c0_172 = arith.constant 0 : index
    %c0_173 = arith.constant 0 : index
    %448 = vector.load %arg18[%c2_171, %c0_172, %c0_173] : memref<3x1x16xf32, #tpu.memory_space<vmem>>, vector<1x1x16xf32>
    %449 = vector.shape_cast %448 : vector<1x1x16xf32> to vector<1x16xf32>
    %cst_174 = arith.constant 0.000000e+00 : bf16
    %450 = vector.broadcast %cst_174 : bf16 to vector<1x2x16xbf16>
    %451 = tpu.concatenate %450, %441, %450 in 0 : vector<1x2x16xbf16>, vector<2x2x16xbf16>, vector<1x2x16xbf16> -> vector<4x2x16xbf16>
    %cst_175 = arith.constant 0.000000e+00 : bf16
    %452 = vector.broadcast %cst_175 : bf16 to vector<4x1x16xbf16>
    %453 = tpu.concatenate %452, %451, %452 in 1 : vector<4x1x16xbf16>, vector<4x2x16xbf16>, vector<4x1x16xbf16> -> vector<4x4x16xbf16>
    %454 = vector.extract_strided_slice %453 {offsets = [0, 0, 0], sizes = [2, 2, 16], strides = [1, 1, 1]} : vector<4x4x16xbf16> to vector<2x2x16xbf16>
    %455 = vector.extract_strided_slice %453 {offsets = [0, 1, 0], sizes = [2, 2, 16], strides = [1, 1, 1]} : vector<4x4x16xbf16> to vector<2x2x16xbf16>
    %456 = vector.extract_strided_slice %453 {offsets = [0, 2, 0], sizes = [2, 2, 16], strides = [1, 1, 1]} : vector<4x4x16xbf16> to vector<2x2x16xbf16>
    %457 = vector.extract_strided_slice %453 {offsets = [1, 0, 0], sizes = [2, 2, 16], strides = [1, 1, 1]} : vector<4x4x16xbf16> to vector<2x2x16xbf16>
    %458 = vector.extract_strided_slice %453 {offsets = [1, 1, 0], sizes = [2, 2, 16], strides = [1, 1, 1]} : vector<4x4x16xbf16> to vector<2x2x16xbf16>
    %459 = vector.extract_strided_slice %453 {offsets = [1, 2, 0], sizes = [2, 2, 16], strides = [1, 1, 1]} : vector<4x4x16xbf16> to vector<2x2x16xbf16>
    %460 = vector.extract_strided_slice %453 {offsets = [2, 0, 0], sizes = [2, 2, 16], strides = [1, 1, 1]} : vector<4x4x16xbf16> to vector<2x2x16xbf16>
    %461 = vector.extract_strided_slice %453 {offsets = [2, 1, 0], sizes = [2, 2, 16], strides = [1, 1, 1]} : vector<4x4x16xbf16> to vector<2x2x16xbf16>
    %462 = vector.extract_strided_slice %453 {offsets = [2, 2, 0], sizes = [2, 2, 16], strides = [1, 1, 1]} : vector<4x4x16xbf16> to vector<2x2x16xbf16>
    %463 = tpu.concatenate %454, %455, %456, %457, %458, %459, %460, %461, %462 in 2 : vector<2x2x16xbf16>, vector<2x2x16xbf16>, vector<2x2x16xbf16>, vector<2x2x16xbf16>, vector<2x2x16xbf16>, vector<2x2x16xbf16>, vector<2x2x16xbf16>, vector<2x2x16xbf16>, vector<2x2x16xbf16> -> vector<2x2x144xbf16>
    %464 = vector.shape_cast %463 : vector<2x2x144xbf16> to vector<4x144xbf16>
    %cst_176 = arith.constant dense<0.000000e+00> : vector<4x16xf32>
    %465 = tpu.matmul %464, %443, %cst_176 {dimension_numbers = #tpu.dot_dimension_numbers<[1], [0], [0], [1], [0, 0, 1, 1], [], []>} : vector<4x144xbf16>, vector<144x16xbf16>, vector<4x16xf32> -> vector<4x16xf32>
    %466 = vector.broadcast %445 : vector<1x16xf32> to vector<4x16xf32>
    %467 = arith.addf %465, %466 : vector<4x16xf32>
    %cst_177 = arith.constant 0.000000e+00 : f32
    %468 = vector.broadcast %cst_177 : f32 to vector<4x16xf32>
    %469 = arith.maximumf %467, %468 : vector<4x16xf32>
    %470 = arith.truncf %469 : vector<4x16xf32> to vector<4x16xbf16>
    %471 = vector.shape_cast %470 : vector<4x16xbf16> to vector<2x2x16xbf16>
    %cst_178 = arith.constant 0.000000e+00 : bf16
    %472 = vector.broadcast %cst_178 : bf16 to vector<1x2x16xbf16>
    %473 = tpu.concatenate %472, %471, %472 in 0 : vector<1x2x16xbf16>, vector<2x2x16xbf16>, vector<1x2x16xbf16> -> vector<4x2x16xbf16>
    %cst_179 = arith.constant 0.000000e+00 : bf16
    %474 = vector.broadcast %cst_179 : bf16 to vector<4x1x16xbf16>
    %475 = tpu.concatenate %474, %473, %474 in 1 : vector<4x1x16xbf16>, vector<4x2x16xbf16>, vector<4x1x16xbf16> -> vector<4x4x16xbf16>
    %476 = vector.extract_strided_slice %475 {offsets = [0, 0, 0], sizes = [2, 2, 16], strides = [1, 1, 1]} : vector<4x4x16xbf16> to vector<2x2x16xbf16>
    %477 = vector.extract_strided_slice %475 {offsets = [0, 1, 0], sizes = [2, 2, 16], strides = [1, 1, 1]} : vector<4x4x16xbf16> to vector<2x2x16xbf16>
    %478 = vector.extract_strided_slice %475 {offsets = [0, 2, 0], sizes = [2, 2, 16], strides = [1, 1, 1]} : vector<4x4x16xbf16> to vector<2x2x16xbf16>
    %479 = vector.extract_strided_slice %475 {offsets = [1, 0, 0], sizes = [2, 2, 16], strides = [1, 1, 1]} : vector<4x4x16xbf16> to vector<2x2x16xbf16>
    %480 = vector.extract_strided_slice %475 {offsets = [1, 1, 0], sizes = [2, 2, 16], strides = [1, 1, 1]} : vector<4x4x16xbf16> to vector<2x2x16xbf16>
    %481 = vector.extract_strided_slice %475 {offsets = [1, 2, 0], sizes = [2, 2, 16], strides = [1, 1, 1]} : vector<4x4x16xbf16> to vector<2x2x16xbf16>
    %482 = vector.extract_strided_slice %475 {offsets = [2, 0, 0], sizes = [2, 2, 16], strides = [1, 1, 1]} : vector<4x4x16xbf16> to vector<2x2x16xbf16>
    %483 = vector.extract_strided_slice %475 {offsets = [2, 1, 0], sizes = [2, 2, 16], strides = [1, 1, 1]} : vector<4x4x16xbf16> to vector<2x2x16xbf16>
    %484 = vector.extract_strided_slice %475 {offsets = [2, 2, 0], sizes = [2, 2, 16], strides = [1, 1, 1]} : vector<4x4x16xbf16> to vector<2x2x16xbf16>
    %485 = tpu.concatenate %476, %477, %478, %479, %480, %481, %482, %483, %484 in 2 : vector<2x2x16xbf16>, vector<2x2x16xbf16>, vector<2x2x16xbf16>, vector<2x2x16xbf16>, vector<2x2x16xbf16>, vector<2x2x16xbf16>, vector<2x2x16xbf16>, vector<2x2x16xbf16>, vector<2x2x16xbf16> -> vector<2x2x144xbf16>
    %486 = vector.shape_cast %485 : vector<2x2x144xbf16> to vector<4x144xbf16>
    %cst_180 = arith.constant dense<0.000000e+00> : vector<4x16xf32>
    %487 = tpu.matmul %486, %447, %cst_180 {dimension_numbers = #tpu.dot_dimension_numbers<[1], [0], [0], [1], [0, 0, 1, 1], [], []>} : vector<4x144xbf16>, vector<144x16xbf16>, vector<4x16xf32> -> vector<4x16xf32>
    %488 = vector.broadcast %449 : vector<1x16xf32> to vector<4x16xf32>
    %489 = arith.addf %487, %488 : vector<4x16xf32>
    %490 = vector.shape_cast %441 : vector<2x2x16xbf16> to vector<4x16xbf16>
    %491 = arith.extf %490 : vector<4x16xbf16> to vector<4x16xf32>
    %492 = arith.addf %489, %491 : vector<4x16xf32>
    %cst_181 = arith.constant 0.000000e+00 : f32
    %493 = vector.broadcast %cst_181 : f32 to vector<4x16xf32>
    %494 = arith.maximumf %492, %493 : vector<4x16xf32>
    %495 = arith.truncf %494 : vector<4x16xf32> to vector<4x16xbf16>
    %496 = vector.shape_cast %495 : vector<4x16xbf16> to vector<2x2x16xbf16>
    %c0_182 = arith.constant 0 : index
    %c0_183 = arith.constant 0 : index
    %497 = vector.load %arg19[%c0_182, %c0_183] : memref<1x16xbf16, #tpu.memory_space<vmem>>, vector<1x16xbf16>
    %cst_184 = arith.constant 0.000000e+00 : bf16
    %498 = vector.broadcast %cst_184 : bf16 to vector<1x2x16xbf16>
    %499 = tpu.concatenate %498, %496, %498 in 0 : vector<1x2x16xbf16>, vector<2x2x16xbf16>, vector<1x2x16xbf16> -> vector<4x2x16xbf16>
    %cst_185 = arith.constant 0.000000e+00 : bf16
    %500 = vector.broadcast %cst_185 : bf16 to vector<4x1x16xbf16>
    %501 = tpu.concatenate %500, %499, %500 in 1 : vector<4x1x16xbf16>, vector<4x2x16xbf16>, vector<4x1x16xbf16> -> vector<4x4x16xbf16>
    %502 = vector.shape_cast %501 : vector<4x4x16xbf16> to vector<16x16xbf16>
    %cst_186 = arith.constant dense<0.000000e+00> : vector<1x16xf32>
    %503 = tpu.matmul %497, %502, %cst_186 {dimension_numbers = #tpu.dot_dimension_numbers<[1], [0], [0], [1], [0, 0, 1, 1], [], []>} : vector<1x16xbf16>, vector<16x16xbf16>, vector<1x16xf32> -> vector<1x16xf32>
    %cst_187 = arith.constant 0.111111112 : f32
    %504 = vector.broadcast %cst_187 : f32 to vector<1x16xf32>
    %505 = arith.mulf %503, %504 : vector<1x16xf32>
    %506 = arith.truncf %505 : vector<1x16xf32> to vector<1x16xbf16>
    %507 = vector.shape_cast %506 : vector<1x16xbf16> to vector<1x1x16xbf16>
    %508 = vector.shape_cast %507 : vector<1x1x16xbf16> to vector<1x1x1x16xbf16>
    %c0_188 = arith.constant 0 : index
    %c0_189 = arith.constant 0 : index
    %c0_190 = arith.constant 0 : index
    %c0_191 = arith.constant 0 : index
    %509 = vector.load %arg20[%c0_188, %c0_189, %c0_190, %c0_191] : memref<1x1x1x16xbf16, #tpu.memory_space<vmem>>, vector<1x1x1x16xbf16>
    tpu.vector_store %arg20[%c0_188, %c0_189, %c0_190, %c0_191], %508 {strides = array<i32>} : memref<1x1x1x16xbf16, #tpu.memory_space<vmem>>, vector<1x1x1x16xbf16>,
    return
  }
  func.func @transform_0(%arg0: i32) -> (i32, i32, i32, i32) {
    %c0_i32 = arith.constant 0 : i32
    %c0_i32_0 = arith.constant 0 : i32
    %c0_i32_1 = arith.constant 0 : i32
    %c0_i32_2 = arith.constant 0 : i32
    return %arg0, %c0_i32, %c0_i32_0, %c0_i32_1 : i32, i32, i32, i32
  }
  func.func @transform_1(%arg0: i32) -> (i32, i32) {
    %c0_i32 = arith.constant 0 : i32
    %c0_i32_0 = arith.constant 0 : i32
    %c0_i32_1 = arith.constant 0 : i32
    return %c0_i32, %c0_i32_0 : i32, i32
  }
  func.func @transform_2(%arg0: i32) -> (i32, i32) {
    %c0_i32 = arith.constant 0 : i32
    %c0_i32_0 = arith.constant 0 : i32
    %c0_i32_1 = arith.constant 0 : i32
    return %c0_i32, %c0_i32_0 : i32, i32
  }
  func.func @transform_3(%arg0: i32) -> (i32, i32, i32) {
    %c0_i32 = arith.constant 0 : i32
    %c0_i32_0 = arith.constant 0 : i32
    %c0_i32_1 = arith.constant 0 : i32
    %c0_i32_2 = arith.constant 0 : i32
    return %c0_i32, %c0_i32_0, %c0_i32_1 : i32, i32, i32
  }
  func.func @transform_4(%arg0: i32) -> (i32, i32, i32) {
    %c0_i32 = arith.constant 0 : i32
    %c0_i32_0 = arith.constant 0 : i32
    %c0_i32_1 = arith.constant 0 : i32
    %c0_i32_2 = arith.constant 0 : i32
    return %c0_i32, %c0_i32_0, %c0_i32_1 : i32, i32, i32
  }
  func.func @transform_5(%arg0: i32) -> (i32, i32, i32) {
    %c0_i32 = arith.constant 0 : i32
    %c0_i32_0 = arith.constant 0 : i32
    %c0_i32_1 = arith.constant 0 : i32
    %c0_i32_2 = arith.constant 0 : i32
    return %c0_i32, %c0_i32_0, %c0_i32_1 : i32, i32, i32
  }
  func.func @transform_6(%arg0: i32) -> (i32, i32, i32) {
    %c0_i32 = arith.constant 0 : i32
    %c0_i32_0 = arith.constant 0 : i32
    %c0_i32_1 = arith.constant 0 : i32
    %c0_i32_2 = arith.constant 0 : i32
    return %c0_i32, %c0_i32_0, %c0_i32_1 : i32, i32, i32
  }
  func.func @transform_7(%arg0: i32) -> (i32, i32) {
    %c0_i32 = arith.constant 0 : i32
    %c0_i32_0 = arith.constant 0 : i32
    %c0_i32_1 = arith.constant 0 : i32
    return %c0_i32, %c0_i32_0 : i32, i32
  }
  func.func @transform_8(%arg0: i32) -> (i32, i32) {
    %c0_i32 = arith.constant 0 : i32
    %c0_i32_0 = arith.constant 0 : i32
    %c0_i32_1 = arith.constant 0 : i32
    return %c0_i32, %c0_i32_0 : i32, i32
  }
  func.func @transform_9(%arg0: i32) -> (i32, i32, i32) {
    %c0_i32 = arith.constant 0 : i32
    %c0_i32_0 = arith.constant 0 : i32
    %c0_i32_1 = arith.constant 0 : i32
    %c0_i32_2 = arith.constant 0 : i32
    return %c0_i32, %c0_i32_0, %c0_i32_1 : i32, i32, i32
  }
  func.func @transform_10(%arg0: i32) -> (i32, i32, i32) {
    %c0_i32 = arith.constant 0 : i32
    %c0_i32_0 = arith.constant 0 : i32
    %c0_i32_1 = arith.constant 0 : i32
    %c0_i32_2 = arith.constant 0 : i32
    return %c0_i32, %c0_i32_0, %c0_i32_1 : i32, i32, i32
  }
  func.func @transform_11(%arg0: i32) -> (i32, i32, i32) {
    %c0_i32 = arith.constant 0 : i32
    %c0_i32_0 = arith.constant 0 : i32
    %c0_i32_1 = arith.constant 0 : i32
    %c0_i32_2 = arith.constant 0 : i32
    return %c0_i32, %c0_i32_0, %c0_i32_1 : i32, i32, i32
  }
  func.func @transform_12(%arg0: i32) -> (i32, i32, i32) {
    %c0_i32 = arith.constant 0 : i32
    %c0_i32_0 = arith.constant 0 : i32
    %c0_i32_1 = arith.constant 0 : i32
    %c0_i32_2 = arith.constant 0 : i32
    return %c0_i32, %c0_i32_0, %c0_i32_1 : i32, i32, i32
  }
  func.func @transform_13(%arg0: i32) -> (i32, i32) {
    %c0_i32 = arith.constant 0 : i32
    %c0_i32_0 = arith.constant 0 : i32
    %c0_i32_1 = arith.constant 0 : i32
    return %c0_i32, %c0_i32_0 : i32, i32
  }
  func.func @transform_14(%arg0: i32) -> (i32, i32, i32) {
    %c0_i32 = arith.constant 0 : i32
    %c0_i32_0 = arith.constant 0 : i32
    %c0_i32_1 = arith.constant 0 : i32
    %c0_i32_2 = arith.constant 0 : i32
    return %c0_i32, %c0_i32_0, %c0_i32_1 : i32, i32, i32
  }
  func.func @transform_15(%arg0: i32) -> (i32, i32, i32) {
    %c0_i32 = arith.constant 0 : i32
    %c0_i32_0 = arith.constant 0 : i32
    %c0_i32_1 = arith.constant 0 : i32
    %c0_i32_2 = arith.constant 0 : i32
    return %c0_i32, %c0_i32_0, %c0_i32_1 : i32, i32, i32
  }
  func.func @transform_16(%arg0: i32) -> (i32, i32, i32) {
    %c0_i32 = arith.constant 0 : i32
    %c0_i32_0 = arith.constant 0 : i32
    %c0_i32_1 = arith.constant 0 : i32
    %c0_i32_2 = arith.constant 0 : i32
    return %c0_i32, %c0_i32_0, %c0_i32_1 : i32, i32, i32
  }
  func.func @transform_17(%arg0: i32) -> (i32, i32, i32) {
    %c0_i32 = arith.constant 0 : i32
    %c0_i32_0 = arith.constant 0 : i32
    %c0_i32_1 = arith.constant 0 : i32
    %c0_i32_2 = arith.constant 0 : i32
    return %c0_i32, %c0_i32_0, %c0_i32_1 : i32, i32, i32
  }
  func.func @transform_18(%arg0: i32) -> (i32, i32) {
    %c0_i32 = arith.constant 0 : i32
    %c0_i32_0 = arith.constant 0 : i32
    %c0_i32_1 = arith.constant 0 : i32
    return %c0_i32, %c0_i32_0 : i32, i32
  }
  func.func @transform_19(%arg0: i32) -> (i32, i32, i32, i32) {
    %c0_i32 = arith.constant 0 : i32
    %c0_i32_0 = arith.constant 0 : i32
    %c0_i32_1 = arith.constant 0 : i32
    %c0_i32_2 = arith.constant 0 : i32
    return %arg0, %c0_i32, %c0_i32_0, %c0_i32_1 : i32, i32, i32, i32
  }
}

</mosaic_0001>

<llo_original>
// kernel: downsample_forward.1
$region0: #{downsample_forward.1}
  #allocation0 [shape = 'u32[]', space=smem, size = 0x4, offset = 0x4, fixed_abs, tag = 'smem constant byte address 0x4 - core index']
  #allocation1 [shape = 'u32[144,128]{1,0:T(1,128)}', space=vmem, size = 0x12000, scoped, tag = 'internal scratch']
  %s0 = inlined_call_operand.vmem [shape: bf16[2,16,16,4], index: 0, kind: input, shape index: {}]
  %s1 = inlined_call_operand.vmem [shape: bf16[36,8], index: 1, kind: input, shape index: {}]
  %s2 = inlined_call_operand.vmem [shape: bf16[64,256], index: 2, kind: input, shape index: {}]
  %s3 = inlined_call_operand.vmem [shape: bf16[2,72,8], index: 3, kind: input, shape index: {}]
  %s4 = inlined_call_operand.vmem [shape: f32[2,1,8], index: 4, kind: input, shape index: {}]
  %s5 = inlined_call_operand.vmem [shape: bf16[2,72,8], index: 5, kind: input, shape index: {}]
  %s6 = inlined_call_operand.vmem [shape: f32[2,1,8], index: 6, kind: input, shape index: {}]
  %s7 = inlined_call_operand.vmem [shape: bf16[72,16], index: 7, kind: input, shape index: {}]
  %s8 = inlined_call_operand.vmem [shape: bf16[16,64], index: 8, kind: input, shape index: {}]
  %s9 = inlined_call_operand.vmem [shape: bf16[3,144,16], index: 9, kind: input, shape index: {}]
  %s10 = inlined_call_operand.vmem [shape: f32[3,1,16], index: 10, kind: input, shape index: {}]
  %s11 = inlined_call_operand.vmem [shape: bf16[3,144,16], index: 11, kind: input, shape index: {}]
  %s12 = inlined_call_operand.vmem [shape: f32[3,1,16], index: 12, kind: input, shape index: {}]
  %s13 = inlined_call_operand.vmem [shape: bf16[4,36], index: 13, kind: input, shape index: {}]
  %s14 = inlined_call_operand.vmem [shape: bf16[3,144,16], index: 14, kind: input, shape index: {}]
  %s15 = inlined_call_operand.vmem [shape: f32[3,1,16], index: 15, kind: input, shape index: {}]
  %s16 = inlined_call_operand.vmem [shape: bf16[3,144,16], index: 16, kind: input, shape index: {}]
  %s17 = inlined_call_operand.vmem [shape: f32[3,1,16], index: 17, kind: input, shape index: {}]
  %s18 = inlined_call_operand.vmem [shape: bf16[1,16], index: 18, kind: input, shape index: {}]
  %s19 = inlined_call_operand.vmem [shape: bf16[2,1,1,16], index: 19, kind: output, shape index: {}]
  %s20 = sld [smem:[#allocation0]]
  $region109: #{downsample_forward.1} parent=0
    _
  %s22 = ssub.s32 1, %s20
  %s23 = scalar_select 0, %s22, %s20
  loop: start=0, step=1, limit=4
  $region2: #{downsample_forward.1} parent=0 // loop_pre_header
    _
  $region3: #{downsample_forward.1} parent=0 // loop_header
    %s25 = sphi 0, %s29
    %p26 = scmp.ge.s32.totalorder %s25, 4
    %s35 = sphi 0, %s37
    %s38 = sphi 0, %s35
    %s39 = sphi 0, %s38
    %s55 = sphi 0, %s39
    %s59 = sphi 0, %s59
    %s61 = sphi 0, %s59
    %s62 = sphi 0, %s61
    %s76 = sphi 0, %s62
    %s80 = sphi 0, %s80
    %s82 = sphi 0, %s80
    %s83 = sphi 0, %s82
    %s97 = sphi 0, %s83
    %s101 = sphi 0, %s101
    %s103 = sphi 0, %s101
    %s104 = sphi 0, %s103
    %s118 = sphi 0, %s104
    %s122 = sphi 0, %s122
    %s124 = sphi 0, %s122
    %s125 = sphi 0, %s124
    %s139 = sphi 0, %s125
    %s143 = sphi 0, %s143
    %s145 = sphi 0, %s143
    %s146 = sphi 0, %s145
    %s160 = sphi 0, %s146
    %s164 = sphi 0, %s164
    %s166 = sphi 0, %s164
    %s167 = sphi 0, %s166
    %s181 = sphi 0, %s167
    %s185 = sphi 0, %s185
    %s187 = sphi 0, %s185
    %s188 = sphi 0, %s187
    %s202 = sphi 0, %s188
    %s206 = sphi 0, %s206
    %s208 = sphi 0, %s206
    %s209 = sphi 0, %s208
    %s223 = sphi 0, %s209
    %s227 = sphi 0, %s227
    %s229 = sphi 0, %s227
    %s230 = sphi 0, %s229
    %s244 = sphi 0, %s230
    %s248 = sphi 0, %s248
    %s250 = sphi 0, %s248
    %s251 = sphi 0, %s250
    %s265 = sphi 0, %s251
    %s269 = sphi 0, %s269
    %s271 = sphi 0, %s269
    %s272 = sphi 0, %s271
    %s286 = sphi 0, %s272
    %s290 = sphi 0, %s290
    %s292 = sphi 0, %s290
    %s293 = sphi 0, %s292
    %s307 = sphi 0, %s293
    %s311 = sphi 0, %s311
    %s313 = sphi 0, %s311
    %s314 = sphi 0, %s313
    %s328 = sphi 0, %s314
    %s332 = sphi 0, %s332
    %s334 = sphi 0, %s332
    %s335 = sphi 0, %s334
    %s349 = sphi 0, %s335
    %s353 = sphi 0, %s353
    %s355 = sphi 0, %s353
    %s356 = sphi 0, %s355
    %s370 = sphi 0, %s356
    %s374 = sphi 0, %s374
    %s376 = sphi 0, %s374
    %s377 = sphi 0, %s376
    %s391 = sphi 0, %s377
    %s395 = sphi 0, %s395
    %s397 = sphi 0, %s395
    %s398 = sphi 0, %s397
    %s412 = sphi 0, %s398
    %s416 = sphi 0, %s416
    %s418 = sphi 0, %s416
    %s419 = sphi 0, %s418
    %s433 = sphi 0, %s419
    %s439 = sphi 0, %s441
    %s442 = sphi 0, %s439
    %s443 = sphi 0, %s442
    %s459 = sphi 0, %s443
  $region4: #{downsample_forward.1} parent=0 // loop_header_branch
    %28 = sbr.rel (%p26) target = $region8
  $region5: #{downsample_forward.1} parent=0 // loop_body
    %s30 = ssub.s32 %s25, 1
    %s31 = ssub.s32 %s25, 2
    %s32 = sadd.s32 %s25, 1
    %s33 = ssub.s32 %s25, %s32
    %p34 = scmp.eq.s32.totalorder %s33, 0
    %s36 = sadd.s32 %s35, 1
    %s37 = scalar_select %p34, %s35, %s36
    %p40 = pneg %p34
    %p41 = scmp.eq.s32.totalorder %s25, 1
    %p42 = por %p40, %p41
    %p43 = scmp.ne.s32.totalorder %s35, %s38
    %p44 = scmp.eq.s32.totalorder %s25, 0
    %p45 = por %p43, %p44
    %p46 = scmp.ne.s32.totalorder %s35, %s38
    %p47 = scmp.eq.s32.totalorder %s30, 1
    %p48 = por %p46, %p47
    %p49 = scmp.ne.s32.totalorder %s38, %s39
    %p50 = scmp.eq.s32.totalorder %s30, 0
    %p51 = por %p49, %p50
    %p52 = scmp.ne.s32.totalorder %s38, %s39
    %p53 = scmp.eq.s32.totalorder %s31, 1
    %p54 = por %p52, %p53
    %p56 = scmp.ne.s32.totalorder %s39, %s55
    %p57 = scmp.eq.s32.totalorder %s31, 0
    %p58 = por %p56, %p57
    %s60 = sadd.s32 %s59, 1
    %p63 = scmp.eq.s32.totalorder %s25, 1
    %p64 = scmp.ne.s32.totalorder %s59, %s61
    %p65 = scmp.eq.s32.totalorder %s25, 0
    %p66 = por %p64, %p65
    %p67 = scmp.ne.s32.totalorder %s59, %s61
    %p68 = scmp.eq.s32.totalorder %s30, 1
    %p69 = por %p67, %p68
    %p70 = scmp.ne.s32.totalorder %s61, %s62
    %p71 = scmp.eq.s32.totalorder %s30, 0
    %p72 = por %p70, %p71
    %p73 = scmp.ne.s32.totalorder %s61, %s62
    %p74 = scmp.eq.s32.totalorder %s31, 1
    %p75 = por %p73, %p74
    %p77 = scmp.ne.s32.totalorder %s62, %s76
    %p78 = scmp.eq.s32.totalorder %s31, 0
    %p79 = por %p77, %p78
    %s81 = sadd.s32 %s80, 1
    %p84 = scmp.eq.s32.totalorder %s25, 1
    %p85 = scmp.ne.s32.totalorder %s80, %s82
    %p86 = scmp.eq.s32.totalorder %s25, 0
    %p87 = por %p85, %p86
    %p88 = scmp.ne.s32.totalorder %s80, %s82
    %p89 = scmp.eq.s32.totalorder %s30, 1
    %p90 = por %p88, %p89
    %p91 = scmp.ne.s32.totalorder %s82, %s83
    %p92 = scmp.eq.s32.totalorder %s30, 0
    %p93 = por %p91, %p92
    %p94 = scmp.ne.s32.totalorder %s82, %s83
    %p95 = scmp.eq.s32.totalorder %s31, 1
    %p96 = por %p94, %p95
    %p98 = scmp.ne.s32.totalorder %s83, %s97
    %p99 = scmp.eq.s32.totalorder %s31, 0
    %p100 = por %p98, %p99
    %s102 = sadd.s32 %s101, 1
    %p105 = scmp.eq.s32.totalorder %s25, 1
    %p106 = scmp.ne.s32.totalorder %s101, %s103
    %p107 = scmp.eq.s32.totalorder %s25, 0
    %p108 = por %p106, %p107
    %p109 = scmp.ne.s32.totalorder %s101, %s103
    %p110 = scmp.eq.s32.totalorder %s30, 1
    %p111 = por %p109, %p110
    %p112 = scmp.ne.s32.totalorder %s103, %s104
    %p113 = scmp.eq.s32.totalorder %s30, 0
    %p114 = por %p112, %p113
    %p115 = scmp.ne.s32.totalorder %s103, %s104
    %p116 = scmp.eq.s32.totalorder %s31, 1
    %p117 = por %p115, %p116
    %p119 = scmp.ne.s32.totalorder %s104, %s118
    %p120 = scmp.eq.s32.totalorder %s31, 0
    %p121 = por %p119, %p120
    %s123 = sadd.s32 %s122, 1
    %p126 = scmp.eq.s32.totalorder %s25, 1
    %p127 = scmp.ne.s32.totalorder %s122, %s124
    %p128 = scmp.eq.s32.totalorder %s25, 0
    %p129 = por %p127, %p128
    %p130 = scmp.ne.s32.totalorder %s122, %s124
    %p131 = scmp.eq.s32.totalorder %s30, 1
    %p132 = por %p130, %p131
    %p133 = scmp.ne.s32.totalorder %s124, %s125
    %p134 = scmp.eq.s32.totalorder %s30, 0
    %p135 = por %p133, %p134
    %p136 = scmp.ne.s32.totalorder %s124, %s125
    %p137 = scmp.eq.s32.totalorder %s31, 1
    %p138 = por %p136, %p137
    %p140 = scmp.ne.s32.totalorder %s125, %s139
    %p141 = scmp.eq.s32.totalorder %s31, 0
    %p142 = por %p140, %p141
    %s144 = sadd.s32 %s143, 1
    %p147 = scmp.eq.s32.totalorder %s25, 1
    %p148 = scmp.ne.s32.totalorder %s143, %s145
    %p149 = scmp.eq.s32.totalorder %s25, 0
    %p150 = por %p148, %p149
    %p151 = scmp.ne.s32.totalorder %s143, %s145
    %p152 = scmp.eq.s32.totalorder %s30, 1
    %p153 = por %p151, %p152
    %p154 = scmp.ne.s32.totalorder %s145, %s146
    %p155 = scmp.eq.s32.totalorder %s30, 0
    %p156 = por %p154, %p155
    %p157 = scmp.ne.s32.totalorder %s145, %s146
    %p158 = scmp.eq.s32.totalorder %s31, 1
    %p159 = por %p157, %p158
    %p161 = scmp.ne.s32.totalorder %s146, %s160
    %p162 = scmp.eq.s32.totalorder %s31, 0
    %p163 = por %p161, %p162
    %s165 = sadd.s32 %s164, 1
    %p168 = scmp.eq.s32.totalorder %s25, 1
    %p169 = scmp.ne.s32.totalorder %s164, %s166
    %p170 = scmp.eq.s32.totalorder %s25, 0
    %p171 = por %p169, %p170
    %p172 = scmp.ne.s32.totalorder %s164, %s166
    %p173 = scmp.eq.s32.totalorder %s30, 1
    %p174 = por %p172, %p173
    %p175 = scmp.ne.s32.totalorder %s166, %s167
    %p176 = scmp.eq.s32.totalorder %s30, 0
    %p177 = por %p175, %p176
    %p178 = scmp.ne.s32.totalorder %s166, %s167
    %p179 = scmp.eq.s32.totalorder %s31, 1
    %p180 = por %p178, %p179
    %p182 = scmp.ne.s32.totalorder %s167, %s181
    %p183 = scmp.eq.s32.totalorder %s31, 0
    %p184 = por %p182, %p183
    %s186 = sadd.s32 %s185, 1
    %p189 = scmp.eq.s32.totalorder %s25, 1
    %p190 = scmp.ne.s32.totalorder %s185, %s187
    %p191 = scmp.eq.s32.totalorder %s25, 0
    %p192 = por %p190, %p191
    %p193 = scmp.ne.s32.totalorder %s185, %s187
    %p194 = scmp.eq.s32.totalorder %s30, 1
    %p195 = por %p193, %p194
    %p196 = scmp.ne.s32.totalorder %s187, %s188
    %p197 = scmp.eq.s32.totalorder %s30, 0
    %p198 = por %p196, %p197
    %p199 = scmp.ne.s32.totalorder %s187, %s188
    %p200 = scmp.eq.s32.totalorder %s31, 1
    %p201 = por %p199, %p200
    %p203 = scmp.ne.s32.totalorder %s188, %s202
    %p204 = scmp.eq.s32.totalorder %s31, 0
    %p205 = por %p203, %p204
    %s207 = sadd.s32 %s206, 1
    %p210 = scmp.eq.s32.totalorder %s25, 1
    %p211 = scmp.ne.s32.totalorder %s206, %s208
    %p212 = scmp.eq.s32.totalorder %s25, 0
    %p213 = por %p211, %p212
    %p214 = scmp.ne.s32.totalorder %s206, %s208
    %p215 = scmp.eq.s32.totalorder %s30, 1
    %p216 = por %p214, %p215
    %p217 = scmp.ne.s32.totalorder %s208, %s209
    %p218 = scmp.eq.s32.totalorder %s30, 0
    %p219 = por %p217, %p218
    %p220 = scmp.ne.s32.totalorder %s208, %s209
    %p221 = scmp.eq.s32.totalorder %s31, 1
    %p222 = por %p220, %p221
    %p224 = scmp.ne.s32.totalorder %s209, %s223
    %p225 = scmp.eq.s32.totalorder %s31, 0
    %p226 = por %p224, %p225
    %s228 = sadd.s32 %s227, 1
    %p231 = scmp.eq.s32.totalorder %s25, 1
    %p232 = scmp.ne.s32.totalorder %s227, %s229
    %p233 = scmp.eq.s32.totalorder %s25, 0
    %p234 = por %p232, %p233
    %p235 = scmp.ne.s32.totalorder %s227, %s229
    %p236 = scmp.eq.s32.totalorder %s30, 1
    %p237 = por %p235, %p236
    %p238 = scmp.ne.s32.totalorder %s229, %s230
    %p239 = scmp.eq.s32.totalorder %s30, 0
    %p240 = por %p238, %p239
    %p241 = scmp.ne.s32.totalorder %s229, %s230
    %p242 = scmp.eq.s32.totalorder %s31, 1
    %p243 = por %p241, %p242
    %p245 = scmp.ne.s32.totalorder %s230, %s244
    %p246 = scmp.eq.s32.totalorder %s31, 0
    %p247 = por %p245, %p246
    %s249 = sadd.s32 %s248, 1
    %p252 = scmp.eq.s32.totalorder %s25, 1
    %p253 = scmp.ne.s32.totalorder %s248, %s250
    %p254 = scmp.eq.s32.totalorder %s25, 0
    %p255 = por %p253, %p254
    %p256 = scmp.ne.s32.totalorder %s248, %s250
    %p257 = scmp.eq.s32.totalorder %s30, 1
    %p258 = por %p256, %p257
    %p259 = scmp.ne.s32.totalorder %s250, %s251
    %p260 = scmp.eq.s32.totalorder %s30, 0
    %p261 = por %p259, %p260
    %p262 = scmp.ne.s32.totalorder %s250, %s251
    %p263 = scmp.eq.s32.totalorder %s31, 1
    %p264 = por %p262, %p263
    %p266 = scmp.ne.s32.totalorder %s251, %s265
    %p267 = scmp.eq.s32.totalorder %s31, 0
    %p268 = por %p266, %p267
    %s270 = sadd.s32 %s269, 1
    %p273 = scmp.eq.s32.totalorder %s25, 1
    %p274 = scmp.ne.s32.totalorder %s269, %s271
    %p275 = scmp.eq.s32.totalorder %s25, 0
    %p276 = por %p274, %p275
    %p277 = scmp.ne.s32.totalorder %s269, %s271
    %p278 = scmp.eq.s32.totalorder %s30, 1
    %p279 = por %p277, %p278
    %p280 = scmp.ne.s32.totalorder %s271, %s272
    %p281 = scmp.eq.s32.totalorder %s30, 0
    %p282 = por %p280, %p281
    %p283 = scmp.ne.s32.totalorder %s271, %s272
    %p284 = scmp.eq.s32.totalorder %s31, 1
    %p285 = por %p283, %p284
    %p287 = scmp.ne.s32.totalorder %s272, %s286
    %p288 = scmp.eq.s32.totalorder %s31, 0
    %p289 = por %p287, %p288
    %s291 = sadd.s32 %s290, 1
    %p294 = scmp.eq.s32.totalorder %s25, 1
    %p295 = scmp.ne.s32.totalorder %s290, %s292
    %p296 = scmp.eq.s32.totalorder %s25, 0
    %p297 = por %p295, %p296
    %p298 = scmp.ne.s32.totalorder %s290, %s292
    %p299 = scmp.eq.s32.totalorder %s30, 1
    %p300 = por %p298, %p299
    %p301 = scmp.ne.s32.totalorder %s292, %s293
    %p302 = scmp.eq.s32.totalorder %s30, 0
    %p303 = por %p301, %p302
    %p304 = scmp.ne.s32.totalorder %s292, %s293
    %p305 = scmp.eq.s32.totalorder %s31, 1
    %p306 = por %p304, %p305
    %p308 = scmp.ne.s32.totalorder %s293, %s307
    %p309 = scmp.eq.s32.totalorder %s31, 0
    %p310 = por %p308, %p309
    %s312 = sadd.s32 %s311, 1
    %p315 = scmp.eq.s32.totalorder %s25, 1
    %p316 = scmp.ne.s32.totalorder %s311, %s313
    %p317 = scmp.eq.s32.totalorder %s25, 0
    %p318 = por %p316, %p317
    %p319 = scmp.ne.s32.totalorder %s311, %s313
    %p320 = scmp.eq.s32.totalorder %s30, 1
    %p321 = por %p319, %p320
    %p322 = scmp.ne.s32.totalorder %s313, %s314
    %p323 = scmp.eq.s32.totalorder %s30, 0
    %p324 = por %p322, %p323
    %p325 = scmp.ne.s32.totalorder %s313, %s314
    %p326 = scmp.eq.s32.totalorder %s31, 1
    %p327 = por %p325, %p326
    %p329 = scmp.ne.s32.totalorder %s314, %s328
    %p330 = scmp.eq.s32.totalorder %s31, 0
    %p331 = por %p329, %p330
    %s333 = sadd.s32 %s332, 1
    %p336 = scmp.eq.s32.totalorder %s25, 1
    %p337 = scmp.ne.s32.totalorder %s332, %s334
    %p338 = scmp.eq.s32.totalorder %s25, 0
    %p339 = por %p337, %p338
    %p340 = scmp.ne.s32.totalorder %s332, %s334
    %p341 = scmp.eq.s32.totalorder %s30, 1
    %p342 = por %p340, %p341
    %p343 = scmp.ne.s32.totalorder %s334, %s335
    %p344 = scmp.eq.s32.totalorder %s30, 0
    %p345 = por %p343, %p344
    %p346 = scmp.ne.s32.totalorder %s334, %s335
    %p347 = scmp.eq.s32.totalorder %s31, 1
    %p348 = por %p346, %p347
    %p350 = scmp.ne.s32.totalorder %s335, %s349
    %p351 = scmp.eq.s32.totalorder %s31, 0
    %p352 = por %p350, %p351
    %s354 = sadd.s32 %s353, 1
    %p357 = scmp.eq.s32.totalorder %s25, 1
    %p358 = scmp.ne.s32.totalorder %s353, %s355
    %p359 = scmp.eq.s32.totalorder %s25, 0
    %p360 = por %p358, %p359
    %p361 = scmp.ne.s32.totalorder %s353, %s355
    %p362 = scmp.eq.s32.totalorder %s30, 1
    %p363 = por %p361, %p362
    %p364 = scmp.ne.s32.totalorder %s355, %s356
    %p365 = scmp.eq.s32.totalorder %s30, 0
    %p366 = por %p364, %p365
    %p367 = scmp.ne.s32.totalorder %s355, %s356
    %p368 = scmp.eq.s32.totalorder %s31, 1
    %p369 = por %p367, %p368
    %p371 = scmp.ne.s32.totalorder %s356, %s370
    %p372 = scmp.eq.s32.totalorder %s31, 0
    %p373 = por %p371, %p372
    %s375 = sadd.s32 %s374, 1
    %p378 = scmp.eq.s32.totalorder %s25, 1
    %p379 = scmp.ne.s32.totalorder %s374, %s376
    %p380 = scmp.eq.s32.totalorder %s25, 0
    %p381 = por %p379, %p380
    %p382 = scmp.ne.s32.totalorder %s374, %s376
    %p383 = scmp.eq.s32.totalorder %s30, 1
    %p384 = por %p382, %p383
    %p385 = scmp.ne.s32.totalorder %s376, %s377
    %p386 = scmp.eq.s32.totalorder %s30, 0
    %p387 = por %p385, %p386
    %p388 = scmp.ne.s32.totalorder %s376, %s377
    %p389 = scmp.eq.s32.totalorder %s31, 1
    %p390 = por %p388, %p389
    %p392 = scmp.ne.s32.totalorder %s377, %s391
    %p393 = scmp.eq.s32.totalorder %s31, 0
    %p394 = por %p392, %p393
    %s396 = sadd.s32 %s395, 1
    %p399 = scmp.eq.s32.totalorder %s25, 1
    %p400 = scmp.ne.s32.totalorder %s395, %s397
    %p401 = scmp.eq.s32.totalorder %s25, 0
    %p402 = por %p400, %p401
    %p403 = scmp.ne.s32.totalorder %s395, %s397
    %p404 = scmp.eq.s32.totalorder %s30, 1
    %p405 = por %p403, %p404
    %p406 = scmp.ne.s32.totalorder %s397, %s398
    %p407 = scmp.eq.s32.totalorder %s30, 0
    %p408 = por %p406, %p407
    %p409 = scmp.ne.s32.totalorder %s397, %s398
    %p410 = scmp.eq.s32.totalorder %s31, 1
    %p411 = por %p409, %p410
    %p413 = scmp.ne.s32.totalorder %s398, %s412
    %p414 = scmp.eq.s32.totalorder %s31, 0
    %p415 = por %p413, %p414
    %s417 = sadd.s32 %s416, 1
    %p420 = scmp.eq.s32.totalorder %s25, 1
    %p421 = scmp.ne.s32.totalorder %s416, %s418
    %p422 = scmp.eq.s32.totalorder %s25, 0
    %p423 = por %p421, %p422
    %p424 = scmp.ne.s32.totalorder %s416, %s418
    %p425 = scmp.eq.s32.totalorder %s30, 1
    %p426 = por %p424, %p425
    %p427 = scmp.ne.s32.totalorder %s418, %s419
    %p428 = scmp.eq.s32.totalorder %s30, 0
    %p429 = por %p427, %p428
    %p430 = scmp.ne.s32.totalorder %s418, %s419
    %p431 = scmp.eq.s32.totalorder %s31, 1
    %p432 = por %p430, %p431
    %p434 = scmp.ne.s32.totalorder %s419, %s433
    %p435 = scmp.eq.s32.totalorder %s31, 0
    %p436 = por %p434, %p435
    %s437 = ssub.s32 %s25, %s32
    %p438 = scmp.eq.s32.totalorder %s437, 0
    %s440 = sadd.s32 %s439, 1
    %s441 = scalar_select %p438, %s439, %s440
    %p444 = pneg %p438
    %p445 = scmp.eq.s32.totalorder %s25, 1
    %p446 = por %p444, %p445
    %p447 = scmp.ne.s32.totalorder %s439, %s442
    %p448 = scmp.eq.s32.totalorder %s25, 0
    %p449 = por %p447, %p448
    %p450 = scmp.ne.s32.totalorder %s439, %s442
    %p451 = scmp.eq.s32.totalorder %s30, 1
    %p452 = por %p450, %p451
    %p453 = scmp.ne.s32.totalorder %s442, %s443
    %p454 = scmp.eq.s32.totalorder %s30, 0
    %p455 = por %p453, %p454
    %p456 = scmp.ne.s32.totalorder %s442, %s443
    %p457 = scmp.eq.s32.totalorder %s31, 1
    %p458 = por %p456, %p457
    %p460 = scmp.ne.s32.totalorder %s443, %s459
    %p461 = scmp.eq.s32.totalorder %s31, 0
    %p462 = por %p460, %p461
    %p463 = scmp.le.s32.totalorder 1, %s25
    %p464 = scmp.lt.s32.totalorder %s25, 3
    %p465 = pnand %p463, %p464
    %p466 = pneg %p465
    // Predicated region
    $region9: #{downsample_forward.1} parent=5 // pred_check
      _
    $region10: #{downsample_forward.1} parent=5 // pred_check_branch
      %468 = sbr.rel (%p465) target = $region12
    $region11: #{downsample_forward.1} parent=5 // pred_region
      %s469 = ssub.s32 %s25, 1
      // Predicated region
      $region13: #{downsample_forward.1} parent=11 // pred_check
        %p470 = pneg %p72
      $region14: #{downsample_forward.1} parent=11 // pred_check_branch
        %472 = sbr.rel (%p470) target = $region16
      $region15: #{downsample_forward.1} parent=11 // pred_region
        _
      $region16: #{downsample_forward.1} parent=11 // pred_fallthru
        _
      // Predicated region
      $region17: #{downsample_forward.1} parent=11 // pred_check
        %p473 = pneg %p93
      $region18: #{downsample_forward.1} parent=11 // pred_check_branch
        %475 = sbr.rel (%p473) target = $region20
      $region19: #{downsample_forward.1} parent=11 // pred_region
        _
      $region20: #{downsample_forward.1} parent=11 // pred_fallthru
        _
      // Predicated region
      $region21: #{downsample_forward.1} parent=11 // pred_check
        %p476 = pneg %p114
      $region22: #{downsample_forward.1} parent=11 // pred_check_branch
        %478 = sbr.rel (%p476) target = $region24
      $region23: #{downsample_forward.1} parent=11 // pred_region
        _
      $region24: #{downsample_forward.1} parent=11 // pred_fallthru
        _
      // Predicated region
      $region25: #{downsample_forward.1} parent=11 // pred_check
        %p479 = pneg %p135
      $region26: #{downsample_forward.1} parent=11 // pred_check_branch
        %481 = sbr.rel (%p479) target = $region28
      $region27: #{downsample_forward.1} parent=11 // pred_region
        _
      $region28: #{downsample_forward.1} parent=11 // pred_fallthru
        _
      // Predicated region
      $region29: #{downsample_forward.1} parent=11 // pred_check
        %p482 = pneg %p156
      $region30: #{downsample_forward.1} parent=11 // pred_check_branch
        %484 = sbr.rel (%p482) target = $region32
      $region31: #{downsample_forward.1} parent=11 // pred_region
        _
      $region32: #{downsample_forward.1} parent=11 // pred_fallthru
        _
      // Predicated region
      $region33: #{downsample_forward.1} parent=11 // pred_check
        %p485 = pneg %p177
      $region34: #{downsample_forward.1} parent=11 // pred_check_branch
        %487 = sbr.rel (%p485) target = $region36
      $region35: #{downsample_forward.1} parent=11 // pred_region
        _
      $region36: #{downsample_forward.1} parent=11 // pred_fallthru
        _
      // Predicated region
      $region37: #{downsample_forward.1} parent=11 // pred_check
        %p488 = pneg %p198
      $region38: #{downsample_forward.1} parent=11 // pred_check_branch
        %490 = sbr.rel (%p488) target = $region40
      $region39: #{downsample_forward.1} parent=11 // pred_region
        _
      $region40: #{downsample_forward.1} parent=11 // pred_fallthru
        _
      // Predicated region
      $region41: #{downsample_forward.1} parent=11 // pred_check
        %p491 = pneg %p219
      $region42: #{downsample_forward.1} parent=11 // pred_check_branch
        %493 = sbr.rel (%p491) target = $region44
      $region43: #{downsample_forward.1} parent=11 // pred_region
        _
      $region44: #{downsample_forward.1} parent=11 // pred_fallthru
        _
      // Predicated region
      $region45: #{downsample_forward.1} parent=11 // pred_check
        %p494 = pneg %p240
      $region46: #{downsample_forward.1} parent=11 // pred_check_branch
        %496 = sbr.rel (%p494) target = $region48
      $region47: #{downsample_forward.1} parent=11 // pred_region
        _
      $region48: #{downsample_forward.1} parent=11 // pred_fallthru
        _
      // Predicated region
      $region49: #{downsample_forward.1} parent=11 // pred_check
        %p497 = pneg %p261
      $region50: #{downsample_forward.1} parent=11 // pred_check_branch
        %499 = sbr.rel (%p497) target = $region52
      $region51: #{downsample_forward.1} parent=11 // pred_region
        _
      $region52: #{downsample_forward.1} parent=11 // pred_fallthru
        _
      // Predicated region
      $region53: #{downsample_forward.1} parent=11 // pred_check
        %p500 = pneg %p282
      $region54: #{downsample_forward.1} parent=11 // pred_check_branch
        %502 = sbr.rel (%p500) target = $region56
      $region55: #{downsample_forward.1} parent=11 // pred_region
        _
      $region56: #{downsample_forward.1} parent=11 // pred_fallthru
        _
      // Predicated region
      $region57: #{downsample_forward.1} parent=11 // pred_check
        %p503 = pneg %p303
      $region58: #{downsample_forward.1} parent=11 // pred_check_branch
        %505 = sbr.rel (%p503) target = $region60
      $region59: #{downsample_forward.1} parent=11 // pred_region
        _
      $region60: #{downsample_forward.1} parent=11 // pred_fallthru
        _
      // Predicated region
      $region61: #{downsample_forward.1} parent=11 // pred_check
        %p506 = pneg %p324
      $region62: #{downsample_forward.1} parent=11 // pred_check_branch
        %508 = sbr.rel (%p506) target = $region64
      $region63: #{downsample_forward.1} parent=11 // pred_region
        _
      $region64: #{downsample_forward.1} parent=11 // pred_fallthru
        _
      // Predicated region
      $region65: #{downsample_forward.1} parent=11 // pred_check
        %p509 = pneg %p345
      $region66: #{downsample_forward.1} parent=11 // pred_check_branch
        %511 = sbr.rel (%p509) target = $region68
      $region67: #{downsample_forward.1} parent=11 // pred_region
        _
      $region68: #{downsample_forward.1} parent=11 // pred_fallthru
        _
      // Predicated region
      $region69: #{downsample_forward.1} parent=11 // pred_check
        %p512 = pneg %p366
      $region70: #{downsample_forward.1} parent=11 // pred_check_branch
        %514 = sbr.rel (%p512) target = $region72
      $region71: #{downsample_forward.1} parent=11 // pred_region
        _
      $region72: #{downsample_forward.1} parent=11 // pred_fallthru
        _
      // Predicated region
      $region73: #{downsample_forward.1} parent=11 // pred_check
        %p515 = pneg %p387
      $region74: #{downsample_forward.1} parent=11 // pred_check_branch
        %517 = sbr.rel (%p515) target = $region76
      $region75: #{downsample_forward.1} parent=11 // pred_region
        _
      $region76: #{downsample_forward.1} parent=11 // pred_fallthru
        _
      // Predicated region
      $region77: #{downsample_forward.1} parent=11 // pred_check
        %p518 = pneg %p408
      $region78: #{downsample_forward.1} parent=11 // pred_check_branch
        %520 = sbr.rel (%p518) target = $region80
      $region79: #{downsample_forward.1} parent=11 // pred_region
        _
      $region80: #{downsample_forward.1} parent=11 // pred_fallthru
        _
      // Predicated region
      $region81: #{downsample_forward.1} parent=11 // pred_check
        %p521 = pneg %p429
      $region82: #{downsample_forward.1} parent=11 // pred_check_branch
        %523 = sbr.rel (%p521) target = $region84
      $region83: #{downsample_forward.1} parent=11 // pred_region
        _
      $region84: #{downsample_forward.1} parent=11 // pred_fallthru
        _
    $region12: #{downsample_forward.1} parent=5 // pred_fallthru
      _
    %p524 = scmp.lt.s32.totalorder %s25, 2
    // Predicated region
    $region85: #{downsample_forward.1} parent=5 // pred_check
      %p525 = pneg %p524
    $region86: #{downsample_forward.1} parent=5 // pred_check_branch
      %527 = sbr.rel (%p525) target = $region88
    $region87: #{downsample_forward.1} parent=5 // pred_region
      // Predicated region
      $region89: #{downsample_forward.1} parent=87 // pred_check
        %p528 = pneg %p45
      $region90: #{downsample_forward.1} parent=87 // pred_check_branch
        %530 = sbr.rel (%p528) target = $region92
      $region91: #{downsample_forward.1} parent=87 // pred_region
        %p531 = scmp.lt.s32.totalorder %s25, 1
        %s532 = scalar_select %p531, %s25, 1
        %s533 = smul.addr %s532, 32
        %s534 = smul.addr %s533, 4
        %s535 = scalar_lea.vmem %s0, %s534
      $region92: #{downsample_forward.1} parent=87 // pred_fallthru
        _
    $region88: #{downsample_forward.1} parent=5 // pred_fallthru
      _
    %p536 = scmp.le.s32.totalorder 1, %s25
    %p537 = scmp.lt.s32.totalorder %s25, 3
    %p538 = pnand %p536, %p537
    %p539 = pneg %p538
    // Predicated region
    $region93: #{downsample_forward.1} parent=5 // pred_check
      _
    $region94: #{downsample_forward.1} parent=5 // pred_check_branch
      %541 = sbr.rel (%p538) target = $region96
    $region95: #{downsample_forward.1} parent=5 // pred_region
      %s542 = ssub.s32 %s25, 1
      %p543 = scmp.lt.s32.totalorder %s30, 1
      %s544 = scalar_select %p543, %s30, 1
      %s545 = smul.addr %s544, 32
      %s546 = smul.addr %s545, 4
      %s547 = scalar_lea.vmem %s0, %s546
      %p548 = pneg %p51
      %p549 = pneg %p48
      %p550 = pneg %p72
      %p551 = pneg %p69
      %p552 = pneg %p93
      %p553 = pneg %p90
      %p554 = pneg %p114
      %p555 = pneg %p111
      %p556 = pneg %p135
      %p557 = pneg %p132
      %p558 = pneg %p156
      %p559 = pneg %p153
      %p560 = pneg %p177
      %p561 = pneg %p174
      %p562 = pneg %p198
      %p563 = pneg %p195
      %p564 = pneg %p219
      %p565 = pneg %p216
      %p566 = pneg %p240
      %p567 = pneg %p237
      %p568 = pneg %p261
      %p569 = pneg %p258
      %p570 = pneg %p282
      %p571 = pneg %p279
      %p572 = pneg %p303
      %p573 = pneg %p300
      %p574 = pneg %p324
      %p575 = pneg %p321
      %p576 = pneg %p345
      %p577 = pneg %p342
      %p578 = pneg %p366
      %p579 = pneg %p363
      %p580 = pneg %p387
      %p581 = pneg %p384
      %p582 = pneg %p408
      %p583 = pneg %p405
      %p584 = pneg %p429
      %p585 = pneg %p426
      %p586 = pneg %p455
      %p587 = pneg %p452
      %p588 = scmp.lt.s32.totalorder %s30, 1
      %s589 = scalar_select %p588, %s30, 1
      %s590 = scalar_lea.vmem %s19, %s589
      %p591 = scmp.lt.s32.totalorder %s30, 1
      %s592 = scalar_select %p591, %s30, 1
      %s593 = smul.addr %s592, 32
      %s594 = smul.addr %s593, 4
      %s595 = scalar_lea.vmem %s0, %s594
      %p596 = scmp.lt.s32.totalorder %s30, 1
      %s597 = scalar_select %p596, %s30, 1
      %s598 = scalar_lea.vmem %s19, %s597
      %v600 = vld [vmem:[%s595] sm:$0xf]
      %v601 = vld [vmem:[%s595 + $0x4] sm:$0xf]
      %v602 = vld [vmem:[%s595 + $0x8] sm:$0xf]
      %v603 = vld [vmem:[%s595 + $0xc] sm:$0xf]
      %v604 = vld [vmem:[%s595 + $0x10] sm:$0xf]
      %v605 = vld [vmem:[%s595 + $0x14] sm:$0xf]
      %v606 = vld [vmem:[%s595 + $0x18] sm:$0xf]
      %v607 = vld [vmem:[%s595 + $0x1c] sm:$0xf]
      %v608 = vld [vmem:[%s595 + $0x20] sm:$0xf]
      %v609 = vld [vmem:[%s595 + $0x24] sm:$0xf]
      %v610 = vld [vmem:[%s595 + $0x28] sm:$0xf]
      %v611 = vld [vmem:[%s595 + $0x2c] sm:$0xf]
      %v612 = vld [vmem:[%s595 + $0x30] sm:$0xf]
      %v613 = vld [vmem:[%s595 + $0x34] sm:$0xf]
      %v614 = vld [vmem:[%s595 + $0x38] sm:$0xf]
      %v615 = vld [vmem:[%s595 + $0x3c] sm:$0xf]
      %v616 = vld [vmem:[%s595 + $0x40] sm:$0xf]
      %v617 = vld [vmem:[%s595 + $0x44] sm:$0xf]
      %v618 = vld [vmem:[%s595 + $0x48] sm:$0xf]
      %v619 = vld [vmem:[%s595 + $0x4c] sm:$0xf]
      %v620 = vld [vmem:[%s595 + $0x50] sm:$0xf]
      %v621 = vld [vmem:[%s595 + $0x54] sm:$0xf]
      %v622 = vld [vmem:[%s595 + $0x58] sm:$0xf]
      %v623 = vld [vmem:[%s595 + $0x5c] sm:$0xf]
      %v624 = vld [vmem:[%s595 + $0x60] sm:$0xf]
      %v625 = vld [vmem:[%s595 + $0x64] sm:$0xf]
      %v626 = vld [vmem:[%s595 + $0x68] sm:$0xf]
      %v627 = vld [vmem:[%s595 + $0x6c] sm:$0xf]
      %v628 = vld [vmem:[%s595 + $0x70] sm:$0xf]
      %v629 = vld [vmem:[%s595 + $0x74] sm:$0xf]
      %v630 = vld [vmem:[%s595 + $0x78] sm:$0xf]
      %v631 = vld [vmem:[%s595 + $0x7c] sm:$0xf]
      %v632 = vld [vmem:[%s1] sm:$0xf]
      %v633 = vld [vmem:[%s1 + $0x4] sm:$0xf]
      %v634 = vld [vmem:[%s1 + $0x8] sm:$0xf]
      %v635 = vld [vmem:[%s1 + $0xc] sm:$0xf]
      %v636 = vld [vmem:[%s1 + $0x10] sm:$0x3]
      %v637 = vld [vmem:[%s2] sm:$0xff]
      %v638 = vld [vmem:[%s2 + $0x8] sm:$0xff]
      %v639 = vld [vmem:[%s2 + $0x10] sm:$0xff]
      %v640 = vld [vmem:[%s2 + $0x18] sm:$0xff]
      %v641 = vld [vmem:[%s2 + $0x20] sm:$0xff]
      %v642 = vld [vmem:[%s2 + $0x28] sm:$0xff]
      %v643 = vld [vmem:[%s2 + $0x30] sm:$0xff]
      %v644 = vld [vmem:[%s2 + $0x38] sm:$0xff]
      %v677 = vunpack.c.l.b16 %v600
      %v678 = vunpack.c.l.b16 %v601
      %v679 = vunpack.c.l.b16 %v602
      %v680 = vunpack.c.l.b16 %v603
      %v681 = vunpack.c.l.b16 %v604
      %v682 = vunpack.c.l.b16 %v605
      %v683 = vunpack.c.l.b16 %v606
      %v684 = vunpack.c.l.b16 %v607
      %v685 = vunpack.c.l.b16 %v608
      %v686 = vunpack.c.l.b16 %v609
      %v687 = vunpack.c.l.b16 %v610
      %v688 = vunpack.c.l.b16 %v611
      %v689 = vunpack.c.l.b16 %v612
      %v690 = vunpack.c.l.b16 %v613
      %v691 = vunpack.c.l.b16 %v614
      %v692 = vunpack.c.l.b16 %v615
      %v693 = vunpack.c.l.b16 %v616
      %v694 = vunpack.c.l.b16 %v617
      %v695 = vunpack.c.l.b16 %v618
      %v696 = vunpack.c.l.b16 %v619
      %v697 = vunpack.c.l.b16 %v620
      %v698 = vunpack.c.l.b16 %v621
      %v699 = vunpack.c.l.b16 %v622
      %v700 = vunpack.c.l.b16 %v623
      %v701 = vunpack.c.l.b16 %v624
      %v702 = vunpack.c.l.b16 %v625
      %v703 = vunpack.c.l.b16 %v626
      %v704 = vunpack.c.l.b16 %v627
      %v705 = vunpack.c.l.b16 %v628
      %v706 = vunpack.c.l.b16 %v629
      %v707 = vunpack.c.l.b16 %v630
      %v708 = vunpack.c.l.b16 %v631
      %v709 = vpack.c.b16 %v678, %v677
      %v710 = vpack.c.b16 %v680, %v679
      %v711 = vpack.c.b16 %v682, %v681
      %v712 = vpack.c.b16 %v684, %v683
      %v713 = vpack.c.b16 %v686, %v685
      %v714 = vpack.c.b16 %v688, %v687
      %v715 = vpack.c.b16 %v690, %v689
      %v716 = vpack.c.b16 %v692, %v691
      %v717 = vpack.c.b16 %v694, %v693
      %v718 = vpack.c.b16 %v696, %v695
      %v719 = vpack.c.b16 %v698, %v697
      %v720 = vpack.c.b16 %v700, %v699
      %v721 = vpack.c.b16 %v702, %v701
      %v722 = vpack.c.b16 %v704, %v703
      %v723 = vpack.c.b16 %v706, %v705
      %v724 = vpack.c.b16 %v708, %v707
      %v726 = vshrl.u32 0, 16
      %v728 = vrot.slane %v726, 7
      %v729 = vshll.u32 0, 16
      %v731 = vor.u32 %v728, %v729
      %v733 = vshrl.u32 %v709, 16
      %v735 = vrot.slane %v733, 7
      %v736 = vshll.u32 %v709, 16
      %v738 = vor.u32 %v735, %v736
      %v740 = vshrl.u32 %v710, 16
      %v742 = vrot.slane %v740, 7
      %v743 = vshll.u32 %v710, 16
      %v745 = vor.u32 %v742, %v743
      %v747 = vshrl.u32 %v711, 16
      %v749 = vrot.slane %v747, 7
      %v750 = vshll.u32 %v711, 16
      %v752 = vor.u32 %v749, %v750
      %v754 = vshrl.u32 %v712, 16
      %v756 = vrot.slane %v754, 7
      %v757 = vshll.u32 %v712, 16
      %v759 = vor.u32 %v756, %v757
      %v761 = vshrl.u32 %v713, 16
      %v763 = vrot.slane %v761, 7
      %v764 = vshll.u32 %v713, 16
      %v766 = vor.u32 %v763, %v764
      %v768 = vshrl.u32 %v714, 16
      %v770 = vrot.slane %v768, 7
      %v771 = vshll.u32 %v714, 16
      %v773 = vor.u32 %v770, %v771
      %v775 = vshrl.u32 %v715, 16
      %v777 = vrot.slane %v775, 7
      %v778 = vshll.u32 %v715, 16
      %v780 = vor.u32 %v777, %v778
      %v782 = vshrl.u32 %v716, 16
      %v784 = vrot.slane %v782, 7
      %v785 = vshll.u32 %v716, 16
      %v787 = vor.u32 %v784, %v785
      %v789 = vshrl.u32 %v717, 16
      %v791 = vrot.slane %v789, 7
      %v792 = vshll.u32 %v717, 16
      %v794 = vor.u32 %v791, %v792
      %v796 = vshrl.u32 %v718, 16
      %v798 = vrot.slane %v796, 7
      %v799 = vshll.u32 %v718, 16
      %v801 = vor.u32 %v798, %v799
      %v803 = vshrl.u32 %v719, 16
      %v805 = vrot.slane %v803, 7
      %v806 = vshll.u32 %v719, 16
      %v808 = vor.u32 %v805, %v806
      %v810 = vshrl.u32 %v720, 16
      %v812 = vrot.slane %v810, 7
      %v813 = vshll.u32 %v720, 16
      %v815 = vor.u32 %v812, %v813
      %v817 = vshrl.u32 %v721, 16
      %v819 = vrot.slane %v817, 7
      %v820 = vshll.u32 %v721, 16
      %v822 = vor.u32 %v819, %v820
      %v824 = vshrl.u32 %v722, 16
      %v826 = vrot.slane %v824, 7
      %v827 = vshll.u32 %v722, 16
      %v829 = vor.u32 %v826, %v827
      %v831 = vshrl.u32 %v723, 16
      %v833 = vrot.slane %v831, 7
      %v834 = vshll.u32 %v723, 16
      %v836 = vor.u32 %v833, %v834
      %v838 = vshrl.u32 %v724, 16
      %v840 = vrot.slane %v838, 7
      %v841 = vshll.u32 %v724, 16
      %v843 = vor.u32 %v840, %v841
      %vm878 = vcmask 1040384
      %vm879 = vsmask.f32 256
      %vm880 = vmand %vm878, %vm879
      %v881 = vsel %vm880, 0, %v731
      %v882 = vsel %vm880, 0, %v738
      %v883 = vsel %vm880, 0, %v745
      %v884 = vsel %vm880, 0, %v752
      %v885 = vsel %vm880, 0, %v759
      %v886 = vsel %vm880, 0, %v766
      %v887 = vsel %vm880, 0, %v773
      %v888 = vsel %vm880, 0, %v780
      %v889 = vsel %vm880, 0, %v787
      %v890 = vsel %vm880, 0, %v794
      %v891 = vsel %vm880, 0, %v801
      %v892 = vsel %vm880, 0, %v808
      %v893 = vsel %vm880, 0, %v815
      %v894 = vsel %vm880, 0, %v822
      %v895 = vsel %vm880, 0, %v829
      %v896 = vsel %vm880, 0, %v836
      %v897 = vsel %vm880, 0, %v843
      %v898 = vsel %vm880, %v728, 0
      %v899 = vsel %vm880, %v735, 0
      %v900 = vsel %vm880, %v742, 0
      %v901 = vsel %vm880, %v749, 0
      %v902 = vsel %vm880, %v756, 0
      %v903 = vsel %vm880, %v763, 0
      %v904 = vsel %vm880, %v770, 0
      %v905 = vsel %vm880, %v777, 0
      %v906 = vsel %vm880, %v784, 0
      %v907 = vsel %vm880, %v791, 0
      %v908 = vsel %vm880, %v798, 0
      %v909 = vsel %vm880, %v805, 0
      %v910 = vsel %vm880, %v812, 0
      %v911 = vsel %vm880, %v819, 0
      %v912 = vsel %vm880, %v826, 0
      %v913 = vsel %vm880, %v833, 0
      %v914 = vsel %vm880, %v840, 0
      %vm915 = vsmask.f32 7424
      %v917 = vshrl.u32 %v881, 16
      %v919 = vshll.u32 %v881, 16
      %v921 = vrot.slane %v919, 1
      %v922 = vor.u32 %v917, %v921
      %v924 = vshll.u32 %v898, 16
      %v926 = vrot.slane %v924, 1
      %v927 = vsel %vm915, %v922, %v926
      %v929 = vshrl.u32 %v882, 16
      %v931 = vshll.u32 %v882, 16
      %v933 = vrot.slane %v931, 1
      %v934 = vor.u32 %v929, %v933
      %v936 = vshll.u32 %v899, 16
      %v938 = vrot.slane %v936, 1
      %v939 = vsel %vm915, %v934, %v938
      %v941 = vshrl.u32 %v883, 16
      %v943 = vshll.u32 %v883, 16
      %v945 = vrot.slane %v943, 1
      %v946 = vor.u32 %v941, %v945
      %v948 = vshll.u32 %v900, 16
      %v950 = vrot.slane %v948, 1
      %v951 = vsel %vm915, %v946, %v950
      %v953 = vshrl.u32 %v884, 16
      %v955 = vshll.u32 %v884, 16
      %v957 = vrot.slane %v955, 1
      %v958 = vor.u32 %v953, %v957
      %v960 = vshll.u32 %v901, 16
      %v962 = vrot.slane %v960, 1
      %v963 = vsel %vm915, %v958, %v962
      %v965 = vshrl.u32 %v885, 16
      %v967 = vshll.u32 %v885, 16
      %v969 = vrot.slane %v967, 1
      %v970 = vor.u32 %v965, %v969
      %v972 = vshll.u32 %v902, 16
      %v974 = vrot.slane %v972, 1
      %v975 = vsel %vm915, %v970, %v974
      %v977 = vshrl.u32 %v886, 16
      %v979 = vshll.u32 %v886, 16
      %v981 = vrot.slane %v979, 1
      %v982 = vor.u32 %v977, %v981
      %v984 = vshll.u32 %v903, 16
      %v986 = vrot.slane %v984, 1
      %v987 = vsel %vm915, %v982, %v986
      %v989 = vshrl.u32 %v887, 16
      %v991 = vshll.u32 %v887, 16
      %v993 = vrot.slane %v991, 1
      %v994 = vor.u32 %v989, %v993
      %v996 = vshll.u32 %v904, 16
      %v998 = vrot.slane %v996, 1
      %v999 = vsel %vm915, %v994, %v998
      %v1001 = vshrl.u32 %v888, 16
      %v1003 = vshll.u32 %v888, 16
      %v1005 = vrot.slane %v1003, 1
      %v1006 = vor.u32 %v1001, %v1005
      %v1008 = vshll.u32 %v905, 16
      %v1010 = vrot.slane %v1008, 1
      %v1011 = vsel %vm915, %v1006, %v1010
      %v1013 = vshrl.u32 %v889, 16
      %v1015 = vshll.u32 %v889, 16
      %v1017 = vrot.slane %v1015, 1
      %v1018 = vor.u32 %v1013, %v1017
      %v1020 = vshll.u32 %v906, 16
      %v1022 = vrot.slane %v1020, 1
      %v1023 = vsel %vm915, %v1018, %v1022
      %v1025 = vshrl.u32 %v890, 16
      %v1027 = vshll.u32 %v890, 16
      %v1029 = vrot.slane %v1027, 1
      %v1030 = vor.u32 %v1025, %v1029
      %v1032 = vshll.u32 %v907, 16
      %v1034 = vrot.slane %v1032, 1
      %v1035 = vsel %vm915, %v1030, %v1034
      %v1037 = vshrl.u32 %v891, 16
      %v1039 = vshll.u32 %v891, 16
      %v1041 = vrot.slane %v1039, 1
      %v1042 = vor.u32 %v1037, %v1041
      %v1044 = vshll.u32 %v908, 16
      %v1046 = vrot.slane %v1044, 1
      %v1047 = vsel %vm915, %v1042, %v1046
      %v1049 = vshrl.u32 %v892, 16
      %v1051 = vshll.u32 %v892, 16
      %v1053 = vrot.slane %v1051, 1
      %v1054 = vor.u32 %v1049, %v1053
      %v1056 = vshll.u32 %v909, 16
      %v1058 = vrot.slane %v1056, 1
      %v1059 = vsel %vm915, %v1054, %v1058
      %v1061 = vshrl.u32 %v893, 16
      %v1063 = vshll.u32 %v893, 16
      %v1065 = vrot.slane %v1063, 1
      %v1066 = vor.u32 %v1061, %v1065
      %v1068 = vshll.u32 %v910, 16
      %v1070 = vrot.slane %v1068, 1
      %v1071 = vsel %vm915, %v1066, %v1070
      %v1073 = vshrl.u32 %v894, 16
      %v1075 = vshll.u32 %v894, 16
      %v1077 = vrot.slane %v1075, 1
      %v1078 = vor.u32 %v1073, %v1077
      %v1080 = vshll.u32 %v911, 16
      %v1082 = vrot.slane %v1080, 1
      %v1083 = vsel %vm915, %v1078, %v1082
      %v1085 = vshrl.u32 %v895, 16
      %v1087 = vshll.u32 %v895, 16
      %v1089 = vrot.slane %v1087, 1
      %v1090 = vor.u32 %v1085, %v1089
      %v1092 = vshll.u32 %v912, 16
      %v1094 = vrot.slane %v1092, 1
      %v1095 = vsel %vm915, %v1090, %v1094
      %v1097 = vshrl.u32 %v896, 16
      %v1099 = vshll.u32 %v896, 16
      %v1101 = vrot.slane %v1099, 1
      %v1102 = vor.u32 %v1097, %v1101
      %v1104 = vshll.u32 %v913, 16
      %v1106 = vrot.slane %v1104, 1
      %v1107 = vsel %vm915, %v1102, %v1106
      %1108 = vrot.lane.b32.xlu0 %v927, 4
      %v1109 = vpop.permute.xlu0 %1108
      %1110 = vrot.lane.b32.xlu0 %v939, 4
      %v1111 = vpop.permute.xlu0 %1110
      %1112 = vrot.lane.b32.xlu0 %v951, 4
      %v1113 = vpop.permute.xlu0 %1112
      %1114 = vrot.lane.b32.xlu0 %v963, 4
      %v1115 = vpop.permute.xlu0 %1114
      %1116 = vrot.lane.b32.xlu0 %v975, 4
      %v1117 = vpop.permute.xlu0 %1116
      %1118 = vrot.lane.b32.xlu0 %v987, 4
      %v1119 = vpop.permute.xlu0 %1118
      %1120 = vrot.lane.b32.xlu0 %v999, 4
      %v1121 = vpop.permute.xlu0 %1120
      %1122 = vrot.lane.b32.xlu0 %v1011, 4
      %v1123 = vpop.permute.xlu0 %1122
      %1124 = vrot.lane.b32.xlu0 %v1023, 4
      %v1125 = vpop.permute.xlu0 %1124
      %1126 = vrot.lane.b32.xlu0 %v1035, 4
      %v1127 = vpop.permute.xlu0 %1126
      %1128 = vrot.lane.b32.xlu0 %v1047, 4
      %v1129 = vpop.permute.xlu0 %1128
      %1130 = vrot.lane.b32.xlu0 %v1059, 4
      %v1131 = vpop.permute.xlu0 %1130
      %1132 = vrot.lane.b32.xlu0 %v1071, 4
      %v1133 = vpop.permute.xlu0 %1132
      %1134 = vrot.lane.b32.xlu0 %v1083, 4
      %v1135 = vpop.permute.xlu0 %1134
      %1136 = vrot.lane.b32.xlu0 %v1095, 4
      %v1137 = vpop.permute.xlu0 %1136
      %1138 = vrot.lane.b32.xlu0 %v1107, 4
      %v1139 = vpop.permute.xlu0 %1138
      %vm1172 = vcmask 1046528
      %v1173 = vrot.slane %v881, 1
      %v1174 = vrot.slane %v898, 1
      %v1175 = vsel %vm1172, %v1173, %v1174
      %v1176 = vrot.slane %v882, 1
      %v1177 = vrot.slane %v899, 1
      %v1178 = vsel %vm1172, %v1176, %v1177
      %v1179 = vrot.slane %v883, 1
      %v1180 = vrot.slane %v900, 1
      %v1181 = vsel %vm1172, %v1179, %v1180
      %v1182 = vrot.slane %v884, 1
      %v1183 = vrot.slane %v901, 1
      %v1184 = vsel %vm1172, %v1182, %v1183
      %v1185 = vrot.slane %v885, 1
      %v1186 = vrot.slane %v902, 1
      %v1187 = vsel %vm1172, %v1185, %v1186
      %v1188 = vrot.slane %v886, 1
      %v1189 = vrot.slane %v903, 1
      %v1190 = vsel %vm1172, %v1188, %v1189
      %v1191 = vrot.slane %v887, 1
      %v1192 = vrot.slane %v904, 1
      %v1193 = vsel %vm1172, %v1191, %v1192
      %v1194 = vrot.slane %v888, 1
      %v1195 = vrot.slane %v905, 1
      %v1196 = vsel %vm1172, %v1194, %v1195
      %v1197 = vrot.slane %v889, 1
      %v1198 = vrot.slane %v906, 1
      %v1199 = vsel %vm1172, %v1197, %v1198
      %v1200 = vrot.slane %v890, 1
      %v1201 = vrot.slane %v907, 1
      %v1202 = vsel %vm1172, %v1200, %v1201
      %v1203 = vrot.slane %v891, 1
      %v1204 = vrot.slane %v908, 1
      %v1205 = vsel %vm1172, %v1203, %v1204
      %v1206 = vrot.slane %v892, 1
      %v1207 = vrot.slane %v909, 1
      %v1208 = vsel %vm1172, %v1206, %v1207
      %v1209 = vrot.slane %v893, 1
      %v1210 = vrot.slane %v910, 1
      %v1211 = vsel %vm1172, %v1209, %v1210
      %v1212 = vrot.slane %v894, 1
      %v1213 = vrot.slane %v911, 1
      %v1214 = vsel %vm1172, %v1212, %v1213
      %v1215 = vrot.slane %v895, 1
      %v1216 = vrot.slane %v912, 1
      %v1217 = vsel %vm1172, %v1215, %v1216
      %v1218 = vrot.slane %v896, 1
      %v1219 = vrot.slane %v913, 1
      %v1220 = vsel %vm1172, %v1218, %v1219
      %1221 = vrot.lane.b32.xlu0 %v1175, 8
      %v1222 = vpop.permute.xlu0 %1221
      %1223 = vrot.lane.b32.xlu0 %v1178, 8
      %v1224 = vpop.permute.xlu0 %1223
      %1225 = vrot.lane.b32.xlu0 %v1181, 8
      %v1226 = vpop.permute.xlu0 %1225
      %1227 = vrot.lane.b32.xlu0 %v1184, 8
      %v1228 = vpop.permute.xlu0 %1227
      %1229 = vrot.lane.b32.xlu0 %v1187, 8
      %v1230 = vpop.permute.xlu0 %1229
      %1231 = vrot.lane.b32.xlu0 %v1190, 8
      %v1232 = vpop.permute.xlu0 %1231
      %1233 = vrot.lane.b32.xlu0 %v1193, 8
      %v1234 = vpop.permute.xlu0 %1233
      %1235 = vrot.lane.b32.xlu0 %v1196, 8
      %v1236 = vpop.permute.xlu0 %1235
      %1237 = vrot.lane.b32.xlu0 %v1199, 8
      %v1238 = vpop.permute.xlu0 %1237
      %1239 = vrot.lane.b32.xlu0 %v1202, 8
      %v1240 = vpop.permute.xlu0 %1239
      %1241 = vrot.lane.b32.xlu0 %v1205, 8
      %v1242 = vpop.permute.xlu0 %1241
      %1243 = vrot.lane.b32.xlu0 %v1208, 8
      %v1244 = vpop.permute.xlu0 %1243
      %1245 = vrot.lane.b32.xlu0 %v1211, 8
      %v1246 = vpop.permute.xlu0 %1245
      %1247 = vrot.lane.b32.xlu0 %v1214, 8
      %v1248 = vpop.permute.xlu0 %1247
      %1249 = vrot.lane.b32.xlu0 %v1217, 8
      %v1250 = vpop.permute.xlu0 %1249
      %1251 = vrot.lane.b32.xlu0 %v1220, 8
      %v1252 = vpop.permute.xlu0 %1251
      %1254 = vrot.lane.b32.xlu0 %v882, 12
      %v1255 = vpop.permute.xlu0 %1254
      %1256 = vrot.lane.b32.xlu0 %v883, 12
      %v1257 = vpop.permute.xlu0 %1256
      %1258 = vrot.lane.b32.xlu0 %v884, 12
      %v1259 = vpop.permute.xlu0 %1258
      %1260 = vrot.lane.b32.xlu0 %v885, 12
      %v1261 = vpop.permute.xlu0 %1260
      %1262 = vrot.lane.b32.xlu0 %v886, 12
      %v1263 = vpop.permute.xlu0 %1262
      %1264 = vrot.lane.b32.xlu0 %v887, 12
      %v1265 = vpop.permute.xlu0 %1264
      %1266 = vrot.lane.b32.xlu0 %v888, 12
      %v1267 = vpop.permute.xlu0 %1266
      %1268 = vrot.lane.b32.xlu0 %v889, 12
      %v1269 = vpop.permute.xlu0 %1268
      %1270 = vrot.lane.b32.xlu0 %v890, 12
      %v1271 = vpop.permute.xlu0 %1270
      %1272 = vrot.lane.b32.xlu0 %v891, 12
      %v1273 = vpop.permute.xlu0 %1272
      %1274 = vrot.lane.b32.xlu0 %v892, 12
      %v1275 = vpop.permute.xlu0 %1274
      %1276 = vrot.lane.b32.xlu0 %v893, 12
      %v1277 = vpop.permute.xlu0 %1276
      %1278 = vrot.lane.b32.xlu0 %v894, 12
      %v1279 = vpop.permute.xlu0 %1278
      %1280 = vrot.lane.b32.xlu0 %v895, 12
      %v1281 = vpop.permute.xlu0 %1280
      %1282 = vrot.lane.b32.xlu0 %v896, 12
      %v1283 = vpop.permute.xlu0 %1282
      %1284 = vrot.lane.b32.xlu0 %v897, 12
      %v1285 = vpop.permute.xlu0 %1284
      %v1287 = vshrl.u32 %v897, 16
      %v1289 = vshll.u32 %v897, 16
      %v1291 = vrot.slane %v1289, 1
      %v1292 = vor.u32 %v1287, %v1291
      %v1294 = vshll.u32 %v914, 16
      %v1296 = vrot.slane %v1294, 1
      %v1297 = vsel %vm915, %v1292, %v1296
      %1298 = vrot.lane.b32.xlu0 %v939, 16
      %v1299 = vpop.permute.xlu0 %1298
      %1300 = vrot.lane.b32.xlu0 %v951, 16
      %v1301 = vpop.permute.xlu0 %1300
      %1302 = vrot.lane.b32.xlu0 %v963, 16
      %v1303 = vpop.permute.xlu0 %1302
      %1304 = vrot.lane.b32.xlu0 %v975, 16
      %v1305 = vpop.permute.xlu0 %1304
      %1306 = vrot.lane.b32.xlu0 %v987, 16
      %v1307 = vpop.permute.xlu0 %1306
      %1308 = vrot.lane.b32.xlu0 %v999, 16
      %v1309 = vpop.permute.xlu0 %1308
      %1310 = vrot.lane.b32.xlu0 %v1011, 16
      %v1311 = vpop.permute.xlu0 %1310
      %1312 = vrot.lane.b32.xlu0 %v1023, 16
      %v1313 = vpop.permute.xlu0 %1312
      %1314 = vrot.lane.b32.xlu0 %v1035, 16
      %v1315 = vpop.permute.xlu0 %1314
      %1316 = vrot.lane.b32.xlu0 %v1047, 16
      %v1317 = vpop.permute.xlu0 %1316
      %1318 = vrot.lane.b32.xlu0 %v1059, 16
      %v1319 = vpop.permute.xlu0 %1318
      %1320 = vrot.lane.b32.xlu0 %v1071, 16
      %v1321 = vpop.permute.xlu0 %1320
      %1322 = vrot.lane.b32.xlu0 %v1083, 16
      %v1323 = vpop.permute.xlu0 %1322
      %1324 = vrot.lane.b32.xlu0 %v1095, 16
      %v1325 = vpop.permute.xlu0 %1324
      %1326 = vrot.lane.b32.xlu0 %v1107, 16
      %v1327 = vpop.permute.xlu0 %1326
      %1328 = vrot.lane.b32.xlu0 %v1297, 16
      %v1329 = vpop.permute.xlu0 %1328
      %v1331 = vrot.slane %v897, 1
      %v1332 = vrot.slane %v914, 1
      %v1333 = vsel %vm1172, %v1331, %v1332
      %1334 = vrot.lane.b32.xlu0 %v1178, 20
      %v1335 = vpop.permute.xlu0 %1334
      %1336 = vrot.lane.b32.xlu0 %v1181, 20
      %v1337 = vpop.permute.xlu0 %1336
      %1338 = vrot.lane.b32.xlu0 %v1184, 20
      %v1339 = vpop.permute.xlu0 %1338
      %1340 = vrot.lane.b32.xlu0 %v1187, 20
      %v1341 = vpop.permute.xlu0 %1340
      %1342 = vrot.lane.b32.xlu0 %v1190, 20
      %v1343 = vpop.permute.xlu0 %1342
      %1344 = vrot.lane.b32.xlu0 %v1193, 20
      %v1345 = vpop.permute.xlu0 %1344
      %1346 = vrot.lane.b32.xlu0 %v1196, 20
      %v1347 = vpop.permute.xlu0 %1346
      %1348 = vrot.lane.b32.xlu0 %v1199, 20
      %v1349 = vpop.permute.xlu0 %1348
      %1350 = vrot.lane.b32.xlu0 %v1202, 20
      %v1351 = vpop.permute.xlu0 %1350
      %1352 = vrot.lane.b32.xlu0 %v1205, 20
      %v1353 = vpop.permute.xlu0 %1352
      %1354 = vrot.lane.b32.xlu0 %v1208, 20
      %v1355 = vpop.permute.xlu0 %1354
      %1356 = vrot.lane.b32.xlu0 %v1211, 20
      %v1357 = vpop.permute.xlu0 %1356
      %1358 = vrot.lane.b32.xlu0 %v1214, 20
      %v1359 = vpop.permute.xlu0 %1358
      %1360 = vrot.lane.b32.xlu0 %v1217, 20
      %v1361 = vpop.permute.xlu0 %1360
      %1362 = vrot.lane.b32.xlu0 %v1220, 20
      %v1363 = vpop.permute.xlu0 %1362
      %1364 = vrot.lane.b32.xlu0 %v1333, 20
      %v1365 = vpop.permute.xlu0 %1364
      %1366 = vrot.lane.b32.xlu0 %v883, 24
      %v1367 = vpop.permute.xlu0 %1366
      %1368 = vrot.lane.b32.xlu0 %v884, 24
      %v1369 = vpop.permute.xlu0 %1368
      %1370 = vrot.lane.b32.xlu0 %v885, 24
      %v1371 = vpop.permute.xlu0 %1370
      %1372 = vrot.lane.b32.xlu0 %v886, 24
      %v1373 = vpop.permute.xlu0 %1372
      %1374 = vrot.lane.b32.xlu0 %v887, 24
      %v1375 = vpop.permute.xlu0 %1374
      %1376 = vrot.lane.b32.xlu0 %v888, 24
      %v1377 = vpop.permute.xlu0 %1376
      %1378 = vrot.lane.b32.xlu0 %v889, 24
      %v1379 = vpop.permute.xlu0 %1378
      %1380 = vrot.lane.b32.xlu0 %v890, 24
      %v1381 = vpop.permute.xlu0 %1380
      %1382 = vrot.lane.b32.xlu0 %v891, 24
      %v1383 = vpop.permute.xlu0 %1382
      %1384 = vrot.lane.b32.xlu0 %v892, 24
      %v1385 = vpop.permute.xlu0 %1384
      %1386 = vrot.lane.b32.xlu0 %v893, 24
      %v1387 = vpop.permute.xlu0 %1386
      %1388 = vrot.lane.b32.xlu0 %v894, 24
      %v1389 = vpop.permute.xlu0 %1388
      %1390 = vrot.lane.b32.xlu0 %v895, 24
      %v1391 = vpop.permute.xlu0 %1390
      %1392 = vrot.lane.b32.xlu0 %v896, 24
      %v1393 = vpop.permute.xlu0 %1392
      %1394 = vrot.lane.b32.xlu0 %v897, 24
      %v1395 = vpop.permute.xlu0 %1394
      %1396 = vrot.lane.b32.xlu0 %v881, 24
      %v1397 = vpop.permute.xlu0 %1396
      %1398 = vrot.lane.b32.xlu0 %v951, 28
      %v1399 = vpop.permute.xlu0 %1398
      %1400 = vrot.lane.b32.xlu0 %v963, 28
      %v1401 = vpop.permute.xlu0 %1400
      %1402 = vrot.lane.b32.xlu0 %v975, 28
      %v1403 = vpop.permute.xlu0 %1402
      %1404 = vrot.lane.b32.xlu0 %v987, 28
      %v1405 = vpop.permute.xlu0 %1404
      %1406 = vrot.lane.b32.xlu0 %v999, 28
      %v1407 = vpop.permute.xlu0 %1406
      %1408 = vrot.lane.b32.xlu0 %v1011, 28
      %v1409 = vpop.permute.xlu0 %1408
      %1410 = vrot.lane.b32.xlu0 %v1023, 28
      %v1411 = vpop.permute.xlu0 %1410
      %1412 = vrot.lane.b32.xlu0 %v1035, 28
      %v1413 = vpop.permute.xlu0 %1412
      %1414 = vrot.lane.b32.xlu0 %v1047, 28
      %v1415 = vpop.permute.xlu0 %1414
      %1416 = vrot.lane.b32.xlu0 %v1059, 28
      %v1417 = vpop.permute.xlu0 %1416
      %1418 = vrot.lane.b32.xlu0 %v1071, 28
      %v1419 = vpop.permute.xlu0 %1418
      %1420 = vrot.lane.b32.xlu0 %v1083, 28
      %v1421 = vpop.permute.xlu0 %1420
      %1422 = vrot.lane.b32.xlu0 %v1095, 28
      %v1423 = vpop.permute.xlu0 %1422
      %1424 = vrot.lane.b32.xlu0 %v1107, 28
      %v1425 = vpop.permute.xlu0 %1424
      %1426 = vrot.lane.b32.xlu0 %v1297, 28
      %v1427 = vpop.permute.xlu0 %1426
      %1428 = vrot.lane.b32.xlu0 %v927, 28
      %v1429 = vpop.permute.xlu0 %1428
      %1430 = vrot.lane.b32.xlu0 %v1181, 32
      %v1431 = vpop.permute.xlu0 %1430
      %1432 = vrot.lane.b32.xlu0 %v1184, 32
      %v1433 = vpop.permute.xlu0 %1432
      %1434 = vrot.lane.b32.xlu0 %v1187, 32
      %v1435 = vpop.permute.xlu0 %1434
      %1436 = vrot.lane.b32.xlu0 %v1190, 32
      %v1437 = vpop.permute.xlu0 %1436
      %1438 = vrot.lane.b32.xlu0 %v1193, 32
      %v1439 = vpop.permute.xlu0 %1438
      %1440 = vrot.lane.b32.xlu0 %v1196, 32
      %v1441 = vpop.permute.xlu0 %1440
      %1442 = vrot.lane.b32.xlu0 %v1199, 32
      %v1443 = vpop.permute.xlu0 %1442
      %1444 = vrot.lane.b32.xlu0 %v1202, 32
      %v1445 = vpop.permute.xlu0 %1444
      %1446 = vrot.lane.b32.xlu0 %v1205, 32
      %v1447 = vpop.permute.xlu0 %1446
      %1448 = vrot.lane.b32.xlu0 %v1208, 32
      %v1449 = vpop.permute.xlu0 %1448
      %1450 = vrot.lane.b32.xlu0 %v1211, 32
      %v1451 = vpop.permute.xlu0 %1450
      %1452 = vrot.lane.b32.xlu0 %v1214, 32
      %v1453 = vpop.permute.xlu0 %1452
      %1454 = vrot.lane.b32.xlu0 %v1217, 32
      %v1455 = vpop.permute.xlu0 %1454
      %1456 = vrot.lane.b32.xlu0 %v1220, 32
      %v1457 = vpop.permute.xlu0 %1456
      %1458 = vrot.lane.b32.xlu0 %v1333, 32
      %v1459 = vpop.permute.xlu0 %1458
      %1460 = vrot.lane.b32.xlu0 %v1175, 32
      %v1461 = vpop.permute.xlu0 %1460
      %vm1462 = vcmask 31744
      %v1464 = vsel %vm1462, %v881, %v1109
      %v1466 = vsel %vm1462, %v882, %v1111
      %v1468 = vsel %vm1462, %v883, %v1113
      %v1470 = vsel %vm1462, %v884, %v1115
      %v1472 = vsel %vm1462, %v885, %v1117
      %v1474 = vsel %vm1462, %v886, %v1119
      %v1476 = vsel %vm1462, %v887, %v1121
      %v1478 = vsel %vm1462, %v888, %v1123
      %v1480 = vsel %vm1462, %v889, %v1125
      %v1482 = vsel %vm1462, %v890, %v1127
      %v1484 = vsel %vm1462, %v891, %v1129
      %v1486 = vsel %vm1462, %v892, %v1131
      %v1488 = vsel %vm1462, %v893, %v1133
      %v1490 = vsel %vm1462, %v894, %v1135
      %v1492 = vsel %vm1462, %v895, %v1137
      %v1494 = vsel %vm1462, %v896, %v1139
      %vm1495 = vcmask 64512
      %v1497 = vsel %vm1495, %v1464, %v1222
      %v1499 = vsel %vm1495, %v1466, %v1224
      %v1501 = vsel %vm1495, %v1468, %v1226
      %v1503 = vsel %vm1495, %v1470, %v1228
      %v1505 = vsel %vm1495, %v1472, %v1230
      %v1507 = vsel %vm1495, %v1474, %v1232
      %v1509 = vsel %vm1495, %v1476, %v1234
      %v1511 = vsel %vm1495, %v1478, %v1236
      %v1513 = vsel %vm1495, %v1480, %v1238
      %v1515 = vsel %vm1495, %v1482, %v1240
      %v1517 = vsel %vm1495, %v1484, %v1242
      %v1519 = vsel %vm1495, %v1486, %v1244
      %v1521 = vsel %vm1495, %v1488, %v1246
      %v1523 = vsel %vm1495, %v1490, %v1248
      %v1525 = vsel %vm1495, %v1492, %v1250
      %v1527 = vsel %vm1495, %v1494, %v1252
      %vm1528 = vcmask 97280
      %v1530 = vsel %vm1528, %v1497, %v1255
      %v1532 = vsel %vm1528, %v1499, %v1257
      %v1534 = vsel %vm1528, %v1501, %v1259
      %v1536 = vsel %vm1528, %v1503, %v1261
      %v1538 = vsel %vm1528, %v1505, %v1263
      %v1540 = vsel %vm1528, %v1507, %v1265
      %v1542 = vsel %vm1528, %v1509, %v1267
      %v1544 = vsel %vm1528, %v1511, %v1269
      %v1546 = vsel %vm1528, %v1513, %v1271
      %v1548 = vsel %vm1528, %v1515, %v1273
      %v1550 = vsel %vm1528, %v1517, %v1275
      %v1552 = vsel %vm1528, %v1519, %v1277
      %v1554 = vsel %vm1528, %v1521, %v1279
      %v1556 = vsel %vm1528, %v1523, %v1281
      %v1558 = vsel %vm1528, %v1525, %v1283
      %v1560 = vsel %vm1528, %v1527, %v1285
      %vm1561 = vcmask 130048
      %v1563 = vsel %vm1561, %v1530, %v1299
      %v1565 = vsel %vm1561, %v1532, %v1301
      %v1567 = vsel %vm1561, %v1534, %v1303
      %v1569 = vsel %vm1561, %v1536, %v1305
      %v1571 = vsel %vm1561, %v1538, %v1307
      %v1573 = vsel %vm1561, %v1540, %v1309
      %v1575 = vsel %vm1561, %v1542, %v1311
      %v1577 = vsel %vm1561, %v1544, %v1313
      %v1579 = vsel %vm1561, %v1546, %v1315
      %v1581 = vsel %vm1561, %v1548, %v1317
      %v1583 = vsel %vm1561, %v1550, %v1319
      %v1585 = vsel %vm1561, %v1552, %v1321
      %v1587 = vsel %vm1561, %v1554, %v1323
      %v1589 = vsel %vm1561, %v1556, %v1325
      %v1591 = vsel %vm1561, %v1558, %v1327
      %v1593 = vsel %vm1561, %v1560, %v1329
      %vm1594 = vcmask 162816
      %v1596 = vsel %vm1594, %v1563, %v1335
      %v1598 = vsel %vm1594, %v1565, %v1337
      %v1600 = vsel %vm1594, %v1567, %v1339
      %v1602 = vsel %vm1594, %v1569, %v1341
      %v1604 = vsel %vm1594, %v1571, %v1343
      %v1606 = vsel %vm1594, %v1573, %v1345
      %v1608 = vsel %vm1594, %v1575, %v1347
      %v1610 = vsel %vm1594, %v1577, %v1349
      %v1612 = vsel %vm1594, %v1579, %v1351
      %v1614 = vsel %vm1594, %v1581, %v1353
      %v1616 = vsel %vm1594, %v1583, %v1355
      %v1618 = vsel %vm1594, %v1585, %v1357
      %v1620 = vsel %vm1594, %v1587, %v1359
      %v1622 = vsel %vm1594, %v1589, %v1361
      %v1624 = vsel %vm1594, %v1591, %v1363
      %v1626 = vsel %vm1594, %v1593, %v1365
      %vm1627 = vcmask 195584
      %v1629 = vsel %vm1627, %v1596, %v1367
      %v1631 = vsel %vm1627, %v1598, %v1369
      %v1633 = vsel %vm1627, %v1600, %v1371
      %v1635 = vsel %vm1627, %v1602, %v1373
      %v1637 = vsel %vm1627, %v1604, %v1375
      %v1639 = vsel %vm1627, %v1606, %v1377
      %v1641 = vsel %vm1627, %v1608, %v1379
      %v1643 = vsel %vm1627, %v1610, %v1381
      %v1645 = vsel %vm1627, %v1612, %v1383
      %v1647 = vsel %vm1627, %v1614, %v1385
      %v1649 = vsel %vm1627, %v1616, %v1387
      %v1651 = vsel %vm1627, %v1618, %v1389
      %v1653 = vsel %vm1627, %v1620, %v1391
      %v1655 = vsel %vm1627, %v1622, %v1393
      %v1657 = vsel %vm1627, %v1624, %v1395
      %v1659 = vsel %vm1627, %v1626, %v1397
      %vm1660 = vcmask 228352
      %v1662 = vsel %vm1660, %v1629, %v1399
      %v1664 = vsel %vm1660, %v1631, %v1401
      %v1666 = vsel %vm1660, %v1633, %v1403
      %v1668 = vsel %vm1660, %v1635, %v1405
      %v1670 = vsel %vm1660, %v1637, %v1407
      %v1672 = vsel %vm1660, %v1639, %v1409
      %v1674 = vsel %vm1660, %v1641, %v1411
      %v1676 = vsel %vm1660, %v1643, %v1413
      %v1678 = vsel %vm1660, %v1645, %v1415
      %v1680 = vsel %vm1660, %v1647, %v1417
      %v1682 = vsel %vm1660, %v1649, %v1419
      %v1684 = vsel %vm1660, %v1651, %v1421
      %v1686 = vsel %vm1660, %v1653, %v1423
      %v1688 = vsel %vm1660, %v1655, %v1425
      %v1690 = vsel %vm1660, %v1657, %v1427
      %v1692 = vsel %vm1660, %v1659, %v1429
      %vm1693 = vcmask 261120
      %v1695 = vsel %vm1693, %v1662, %v1431
      %v1698 = vsel %vm1693, %v1664, %v1433
      %v1701 = vsel %vm1693, %v1666, %v1435
      %v1704 = vsel %vm1693, %v1668, %v1437
      %v1707 = vsel %vm1693, %v1670, %v1439
      %v1710 = vsel %vm1693, %v1672, %v1441
      %v1713 = vsel %vm1693, %v1674, %v1443
      %v1716 = vsel %vm1693, %v1676, %v1445
      %v1719 = vsel %vm1693, %v1678, %v1447
      %v1722 = vsel %vm1693, %v1680, %v1449
      %v1725 = vsel %vm1693, %v1682, %v1451
      %v1728 = vsel %vm1693, %v1684, %v1453
      %v1731 = vsel %vm1693, %v1686, %v1455
      %v1734 = vsel %vm1693, %v1688, %v1457
      %v1737 = vsel %vm1693, %v1690, %v1459
      %v1740 = vsel %vm1693, %v1692, %v1461
      %v1750 = vunpack.c.l.b16 %v637
      %v1751 = vunpack.c.h.b16 %v637
      %v1752 = vunpack.c.l.b16 %v638
      %v1753 = vunpack.c.h.b16 %v638
      %v1754 = vunpack.c.l.b16 %v639
      %v1755 = vunpack.c.h.b16 %v639
      %v1756 = vunpack.c.l.b16 %v640
      %v1757 = vunpack.c.h.b16 %v640
      %v1758 = vunpack.c.l.b16 %v641
      %v1759 = vunpack.c.h.b16 %v641
      %v1760 = vunpack.c.l.b16 %v642
      %v1761 = vunpack.c.h.b16 %v642
      %v1762 = vunpack.c.l.b16 %v643
      %v1763 = vunpack.c.h.b16 %v643
      %v1764 = vunpack.c.l.b16 %v644
      %v1765 = vunpack.c.h.b16 %v644
      %v1766 = vpack.c.b16 %v1752, %v1750
      %v1767 = vpack.c.b16 %v1753, %v1751
      %v1768 = vpack.c.b16 %v1756, %v1754
      %v1769 = vpack.c.b16 %v1757, %v1755
      %v1770 = vpack.c.b16 %v1760, %v1758
      %v1771 = vpack.c.b16 %v1761, %v1759
      %v1772 = vpack.c.b16 %v1764, %v1762
      %v1773 = vpack.c.b16 %v1765, %v1763
      %1782 = vmatprep.subr.bf16.mxu0 0
      %1783 = vmatpush1.bf16.msra.mxu0 %v1695
      %1784 = vmatprep.subr.bf16.mxu0 0
      %1785 = vmatpush1.bf16.msra.mxu0 %v1698
      %1786 = vmatprep.subr.bf16.mxu0 0
      %1787 = vmatpush1.bf16.msra.mxu0 %v1701
      %1788 = vmatprep.subr.bf16.mxu0 0
      %1789 = vmatpush1.bf16.msra.mxu0 %v1704
      %1790 = vmatprep.subr.bf16.mxu0 0
      %1791 = vmatpush1.bf16.msra.mxu0 %v1707
      %1792 = vmatprep.subr.bf16.mxu0 0
      %1793 = vmatpush1.bf16.msra.mxu0 %v1710
      %1794 = vmatprep.subr.bf16.mxu0 0
      %1795 = vmatpush1.bf16.msra.mxu0 %v1713
      %1796 = vmatprep.subr.bf16.mxu0 0
      %1797 = vmatpush1.bf16.msra.mxu0 %v1716
      %1798 = vmatprep.subr.bf16.mxu0 0
      %1799 = vmatpush1.bf16.msra.mxu0 %v1719
      %1800 = vmatprep.subr.bf16.mxu0 0
      %1801 = vmatpush1.bf16.msra.mxu0 %v1722
      %1802 = vmatprep.subr.bf16.mxu0 0
      %1803 = vmatpush1.bf16.msra.mxu0 %v1725
      %1804 = vmatprep.subr.bf16.mxu0 0
      %1805 = vmatpush1.bf16.msra.mxu0 %v1728
      %1806 = vmatprep.subr.bf16.mxu0 0
      %1807 = vmatpush1.bf16.msra.mxu0 %v1731
      %1808 = vmatprep.subr.bf16.mxu0 0
      %1809 = vmatpush1.bf16.msra.mxu0 %v1734
      %1810 = vmatprep.subr.bf16.mxu0 0
      %1811 = vmatpush1.bf16.msra.mxu0 %v1737
      %1812 = vmatprep.subr.bf16.mxu0 0
      %1813 = vmatpush1.bf16.msra.mxu0 %v1740
      %1814 = vmatprep.mubr.bf16.mxu0 %v1767
      %1815 = vmatmul.mubr.bf16.gmra.mrb[0].mxu0 %v1766
      %v1816 = vpop.f32.mrb[0].mxu0
      %v1817 = vadd.f32 0.0, %v1816
      %v1818 = vpop.f32.mrb[0].mxu0
      %v1819 = vpop.f32.mrb[0].mxu0
      %v1820 = vadd.f32 0.0, %v1819
      %v1821 = vpop.f32.mrb[0].mxu0
      %1822 = vmatprep.mubr.bf16.mxu0 %v1769
      %1823 = vmatmul.mubr.bf16.gmra.mrb[0].mxu0 %v1768
      %v1824 = vpop.f32.mrb[0].mxu0
      %v1825 = vadd.f32 0.0, %v1824
      %v1826 = vpop.f32.mrb[0].mxu0
      %v1827 = vpop.f32.mrb[0].mxu0
      %v1828 = vadd.f32 0.0, %v1827
      %v1829 = vpop.f32.mrb[0].mxu0
      %1830 = vmatprep.mubr.bf16.mxu0 %v1771
      %1831 = vmatmul.mubr.bf16.gmra.mrb[0].mxu0 %v1770
      %v1832 = vpop.f32.mrb[0].mxu0
      %v1833 = vadd.f32 0.0, %v1832
      %v1834 = vpop.f32.mrb[0].mxu0
      %v1835 = vpop.f32.mrb[0].mxu0
      %v1836 = vadd.f32 0.0, %v1835
      %v1837 = vpop.f32.mrb[0].mxu0
      %1838 = vmatprep.mubr.bf16.mxu0 %v1773
      %1839 = vmatmul.mubr.bf16.gmra.mrb[0].mxu0 %v1772
      %v1840 = vpop.f32.mrb[0].mxu0
      %v1841 = vadd.f32 0.0, %v1840
      %v1842 = vpop.f32.mrb[0].mxu0
      %v1843 = vpop.f32.mrb[0].mxu0
      %v1844 = vadd.f32 0.0, %v1843
      %v1845 = vpop.f32.mrb[0].mxu0
      %1846 = vdwg.mxu0
      %v1847 = vpack.c.bf16 %v1820, %v1817
      %v1848 = vpack.c.bf16 %v1828, %v1825
      %v1849 = vpack.c.bf16 %v1836, %v1833
      %v1850 = vpack.c.bf16 %v1844, %v1841
      %v1856 = vunpack.c.l.b16 %v632
      %v1857 = vunpack.c.l.b16 %v633
      %v1858 = vunpack.c.l.b16 %v634
      %v1859 = vunpack.c.l.b16 %v635
      %v1860 = vunpack.c.l.b16 %v636
      %v1861 = vpack.c.b16 %v1857, %v1856
      %v1862 = vpack.c.b16 %v1859, %v1858
      %v1863 = vpack.c.b16 %v1860, %v1860
      %vm1866 = vcmask 293888
      %v1868 = vsel %vm1866, %v1847, 0
      %v1871 = vsel %vm1866, %v1848, 0
      %v1874 = vsel %vm1866, %v1849, 0
      %v1877 = vsel %vm1866, %v1850, 0
      %vm1879 = vcmask 1041408
      %v1881 = vsel %vm1879, %v1863, 0
      %1883 = vmatprep.subr.bf16.mxu0 0
      %1884 = vmatpush1.bf16.msra.mxu0 %v1861
      %1885 = vmatprep.subr.bf16.mxu0 0
      %1886 = vmatpush1.bf16.msra.mxu0 %v1862
      %1887 = vmatprep.subr.bf16.mxu0 0
      %1888 = vmatpush1.bf16.msra.mxu0 %v1881
      %1889 = vmatprep.subr.bf16.mxu0 0
      %1890 = vmatpush1.bf16.msra.mxu0 0
      %1891 = vmatprep.subr.bf16.mxu0 0
      %1892 = vmatpush1.bf16.msra.mxu0 0
      %1893 = vmatprep.subr.bf16.mxu0 0
      %1894 = vmatpush1.bf16.msra.mxu0 0
      %1895 = vmatprep.subr.bf16.mxu0 0
      %1896 = vmatpush1.bf16.msra.mxu0 0
      %1897 = vmatprep.subr.bf16.mxu0 0
      %1898 = vmatpush1.bf16.msra.mxu0 0
      %1899 = vmatprep.subr.bf16.mxu0 0
      %1900 = vmatpush1.bf16.msra.mxu0 0
      %1901 = vmatprep.subr.bf16.mxu0 0
      %1902 = vmatpush1.bf16.msra.mxu0 0
      %1903 = vmatprep.subr.bf16.mxu0 0
      %1904 = vmatpush1.bf16.msra.mxu0 0
      %1905 = vmatprep.subr.bf16.mxu0 0
      %1906 = vmatpush1.bf16.msra.mxu0 0
      %1907 = vmatprep.subr.bf16.mxu0 0
      %1908 = vmatpush1.bf16.msra.mxu0 0
      %1909 = vmatprep.subr.bf16.mxu0 0
      %1910 = vmatpush1.bf16.msra.mxu0 0
      %1911 = vmatprep.subr.bf16.mxu0 0
      %1912 = vmatpush1.bf16.msra.mxu0 0
      %1913 = vmatprep.subr.bf16.mxu0 0
      %1914 = vmatpush1.bf16.msra.mxu0 0
      %1915 = vmatprep.mubr.bf16.mxu0 0
      %1916 = vmatmul.mubr.bf16.gmra.mrb[0].mxu0 %v1868
      %v1917 = vpop.f32.mrb[0].mxu0
      %v1918 = vadd.f32 0.0, %v1917
      %v1919 = vpop.f32.mrb[0].mxu0
      %v1920 = vpop.f32.mrb[0].mxu0
      %v1921 = vadd.f32 0.0, %v1920
      %v1922 = vpop.f32.mrb[0].mxu0
      %1923 = vmatprep.mubr.bf16.mxu0 0
      %1924 = vmatmul.mubr.bf16.gmra.mrb[0].mxu0 %v1871
      %v1925 = vpop.f32.mrb[0].mxu0
      %v1926 = vadd.f32 0.0, %v1925
      %v1927 = vpop.f32.mrb[0].mxu0
      %v1928 = vpop.f32.mrb[0].mxu0
      %v1929 = vadd.f32 0.0, %v1928
      %v1930 = vpop.f32.mrb[0].mxu0
      %1931 = vmatprep.mubr.bf16.mxu0 0
      %1932 = vmatmul.mubr.bf16.gmra.mrb[0].mxu0 %v1874
      %v1933 = vpop.f32.mrb[0].mxu0
      %v1934 = vadd.f32 0.0, %v1933
      %v1935 = vpop.f32.mrb[0].mxu0
      %v1936 = vpop.f32.mrb[0].mxu0
      %v1937 = vadd.f32 0.0, %v1936
      %v1938 = vpop.f32.mrb[0].mxu0
      %1939 = vmatprep.mubr.bf16.mxu0 0
      %1940 = vmatmul.mubr.bf16.gmra.mrb[0].mxu0 %v1877
      %v1941 = vpop.f32.mrb[0].mxu0
      %v1942 = vadd.f32 0.0, %v1941
      %v1943 = vpop.f32.mrb[0].mxu0
      %v1944 = vpop.f32.mrb[0].mxu0
      %v1945 = vadd.f32 0.0, %v1944
      %v1946 = vpop.f32.mrb[0].mxu0
      %1947 = vdwg.mxu0
      %v1948 = vpack.c.bf16 %v1921, %v1918
      %v1949 = vpack.c.bf16 %v1929, %v1926
      %v1950 = vpack.c.bf16 %v1937, %v1934
      %v1951 = vpack.c.bf16 %v1945, %v1942
      %v1956 = vunpack.c.l.b16 %v1948
      %v1957 = vunpack.c.h.b16 %v1948
      %v1958 = vunpack.c.l.b16 %v1949
      %v1959 = vunpack.c.h.b16 %v1949
      %v1960 = vunpack.c.l.b16 %v1950
      %v1961 = vunpack.c.h.b16 %v1950
      %v1962 = vunpack.c.l.b16 %v1951
      %v1963 = vunpack.c.h.b16 %v1951
      %v1964 = vpack.c.b16 %v1956, %v1956
      %v1965 = vpack.c.b16 %v1957, %v1957
      %v1966 = vpack.c.b16 %v1958, %v1958
      %v1967 = vpack.c.b16 %v1959, %v1959
      %v1968 = vpack.c.b16 %v1960, %v1960
      %v1969 = vpack.c.b16 %v1961, %v1961
      %v1970 = vpack.c.b16 %v1962, %v1962
      %v1971 = vpack.c.b16 %v1963, %v1963
      %v1972 = vld [vmem:[%s3] sm:$0xf]
      %v1973 = vld [vmem:[%s3 + $0x4] sm:$0xf]
      %v1974 = vld [vmem:[%s3 + $0x8] sm:$0xf]
      %v1975 = vld [vmem:[%s3 + $0xc] sm:$0xf]
      %v1976 = vld [vmem:[%s3 + $0x10] sm:$0xf]
      %v1977 = vld [vmem:[%s3 + $0x14] sm:$0xf]
      %v1978 = vld [vmem:[%s3 + $0x18] sm:$0xf]
      %v1979 = vld [vmem:[%s3 + $0x1c] sm:$0xf]
      %v1980 = vld [vmem:[%s3 + $0x20] sm:$0xf]
      %v1981 = vld [vmem:[%s4] sm:$0x1]
      %v1982 = vld [vmem:[%s5] sm:$0xf]
      %v1983 = vld [vmem:[%s5 + $0x4] sm:$0xf]
      %v1984 = vld [vmem:[%s5 + $0x8] sm:$0xf]
      %v1985 = vld [vmem:[%s5 + $0xc] sm:$0xf]
      %v1986 = vld [vmem:[%s5 + $0x10] sm:$0xf]
      %v1987 = vld [vmem:[%s5 + $0x14] sm:$0xf]
      %v1988 = vld [vmem:[%s5 + $0x18] sm:$0xf]
      %v1989 = vld [vmem:[%s5 + $0x1c] sm:$0xf]
      %v1990 = vld [vmem:[%s5 + $0x20] sm:$0xf]
      %v1991 = vld [vmem:[%s6] sm:$0x1]
      %v1993 = vshrl.u32 %v1964, 16
      %v1995 = vrot.slane %v1993, 7
      %v1996 = vshll.u32 %v1964, 16
      %v1998 = vor.u32 %v1995, %v1996
      %v2000 = vshrl.u32 %v1965, 16
      %v2002 = vrot.slane %v2000, 7
      %v2003 = vshll.u32 %v1965, 16
      %v2005 = vor.u32 %v2002, %v2003
      %v2007 = vshrl.u32 %v1966, 16
      %v2009 = vrot.slane %v2007, 7
      %v2010 = vshll.u32 %v1966, 16
      %v2012 = vor.u32 %v2009, %v2010
      %v2014 = vshrl.u32 %v1967, 16
      %v2016 = vrot.slane %v2014, 7
      %v2017 = vshll.u32 %v1967, 16
      %v2019 = vor.u32 %v2016, %v2017
      %v2021 = vshrl.u32 %v1968, 16
      %v2023 = vrot.slane %v2021, 7
      %v2024 = vshll.u32 %v1968, 16
      %v2026 = vor.u32 %v2023, %v2024
      %v2028 = vshrl.u32 %v1969, 16
      %v2030 = vrot.slane %v2028, 7
      %v2031 = vshll.u32 %v1969, 16
      %v2033 = vor.u32 %v2030, %v2031
      %v2035 = vshrl.u32 %v1970, 16
      %v2037 = vrot.slane %v2035, 7
      %v2038 = vshll.u32 %v1970, 16
      %v2040 = vor.u32 %v2037, %v2038
      %v2042 = vshrl.u32 %v1971, 16
      %v2044 = vrot.slane %v2042, 7
      %v2045 = vshll.u32 %v1971, 16
      %v2047 = vor.u32 %v2044, %v2045
      %v2056 = vsel %vm880, 0, %v1998
      %v2057 = vsel %vm880, 0, %v2005
      %v2058 = vsel %vm880, 0, %v2012
      %v2059 = vsel %vm880, 0, %v2019
      %v2060 = vsel %vm880, 0, %v2026
      %v2061 = vsel %vm880, 0, %v2033
      %v2062 = vsel %vm880, 0, %v2040
      %v2063 = vsel %vm880, 0, %v2047
      %vm2064 = vcmask 1044480
      %vm2065 = vsmask.f32 4352
      %vm2066 = vmand %vm2064, %vm2065
      %v2067 = vsel %vm2066, %v881, 0
      %v2068 = vsel %vm2066, %v2056, 0
      %v2069 = vsel %vm2066, %v2057, 0
      %v2070 = vsel %vm2066, %v2058, 0
      %v2071 = vsel %vm2066, %v2059, 0
      %v2072 = vsel %vm2066, %v2060, 0
      %v2073 = vsel %vm2066, %v2061, 0
      %v2074 = vsel %vm2066, %v2062, 0
      %v2075 = vsel %vm2066, %v2063, 0
      %v2077 = vshrl.u32 %v2067, 16
      %v2079 = vshll.u32 %v2067, 16
      %v2081 = vrot.slane %v2079, 1
      %v2082 = vor.u32 %v2077, %v2081
      %v2084 = vshrl.u32 %v2068, 16
      %v2086 = vshll.u32 %v2068, 16
      %v2088 = vrot.slane %v2086, 1
      %v2089 = vor.u32 %v2084, %v2088
      %v2091 = vshrl.u32 %v2069, 16
      %v2093 = vshll.u32 %v2069, 16
      %v2095 = vrot.slane %v2093, 1
      %v2096 = vor.u32 %v2091, %v2095
      %v2098 = vshrl.u32 %v2070, 16
      %v2100 = vshll.u32 %v2070, 16
      %v2102 = vrot.slane %v2100, 1
      %v2103 = vor.u32 %v2098, %v2102
      %v2105 = vshrl.u32 %v2071, 16
      %v2107 = vshll.u32 %v2071, 16
      %v2109 = vrot.slane %v2107, 1
      %v2110 = vor.u32 %v2105, %v2109
      %v2112 = vshrl.u32 %v2072, 16
      %v2114 = vshll.u32 %v2072, 16
      %v2116 = vrot.slane %v2114, 1
      %v2117 = vor.u32 %v2112, %v2116
      %v2119 = vshrl.u32 %v2073, 16
      %v2121 = vshll.u32 %v2073, 16
      %v2123 = vrot.slane %v2121, 1
      %v2124 = vor.u32 %v2119, %v2123
      %v2126 = vshrl.u32 %v2074, 16
      %v2128 = vshll.u32 %v2074, 16
      %v2130 = vrot.slane %v2128, 1
      %v2131 = vor.u32 %v2126, %v2130
      %2132 = vrot.lane.b32.xlu0 %v2082, 8
      %v2133 = vpop.permute.xlu0 %2132
      %2134 = vrot.lane.b32.xlu0 %v2089, 8
      %v2135 = vpop.permute.xlu0 %2134
      %2136 = vrot.lane.b32.xlu0 %v2096, 8
      %v2137 = vpop.permute.xlu0 %2136
      %2138 = vrot.lane.b32.xlu0 %v2103, 8
      %v2139 = vpop.permute.xlu0 %2138
      %2140 = vrot.lane.b32.xlu0 %v2110, 8
      %v2141 = vpop.permute.xlu0 %2140
      %2142 = vrot.lane.b32.xlu0 %v2117, 8
      %v2143 = vpop.permute.xlu0 %2142
      %2144 = vrot.lane.b32.xlu0 %v2124, 8
      %v2145 = vpop.permute.xlu0 %2144
      %2146 = vrot.lane.b32.xlu0 %v2131, 8
      %v2147 = vpop.permute.xlu0 %2146
      %v2156 = vrot.slane %v2067, 1
      %v2157 = vrot.slane %v2068, 1
      %v2158 = vrot.slane %v2069, 1
      %v2159 = vrot.slane %v2070, 1
      %v2160 = vrot.slane %v2071, 1
      %v2161 = vrot.slane %v2072, 1
      %v2162 = vrot.slane %v2073, 1
      %v2163 = vrot.slane %v2074, 1
      %2164 = vrot.lane.b32.xlu0 %v2156, 16
      %v2165 = vpop.permute.xlu0 %2164
      %2166 = vrot.lane.b32.xlu0 %v2157, 16
      %v2167 = vpop.permute.xlu0 %2166
      %2168 = vrot.lane.b32.xlu0 %v2158, 16
      %v2169 = vpop.permute.xlu0 %2168
      %2170 = vrot.lane.b32.xlu0 %v2159, 16
      %v2171 = vpop.permute.xlu0 %2170
      %2172 = vrot.lane.b32.xlu0 %v2160, 16
      %v2173 = vpop.permute.xlu0 %2172
      %2174 = vrot.lane.b32.xlu0 %v2161, 16
      %v2175 = vpop.permute.xlu0 %2174
      %2176 = vrot.lane.b32.xlu0 %v2162, 16
      %v2177 = vpop.permute.xlu0 %2176
      %2178 = vrot.lane.b32.xlu0 %v2163, 16
      %v2179 = vpop.permute.xlu0 %2178
      %2181 = vrot.lane.b32.xlu0 %v2068, 24
      %v2182 = vpop.permute.xlu0 %2181
      %2183 = vrot.lane.b32.xlu0 %v2069, 24
      %v2184 = vpop.permute.xlu0 %2183
      %2185 = vrot.lane.b32.xlu0 %v2070, 24
      %v2186 = vpop.permute.xlu0 %2185
      %2187 = vrot.lane.b32.xlu0 %v2071, 24
      %v2188 = vpop.permute.xlu0 %2187
      %2189 = vrot.lane.b32.xlu0 %v2072, 24
      %v2190 = vpop.permute.xlu0 %2189
      %2191 = vrot.lane.b32.xlu0 %v2073, 24
      %v2192 = vpop.permute.xlu0 %2191
      %2193 = vrot.lane.b32.xlu0 %v2074, 24
      %v2194 = vpop.permute.xlu0 %2193
      %2195 = vrot.lane.b32.xlu0 %v2075, 24
      %v2196 = vpop.permute.xlu0 %2195
      %v2198 = vshrl.u32 %v2075, 16
      %v2200 = vshll.u32 %v2075, 16
      %v2202 = vrot.slane %v2200, 1
      %v2203 = vor.u32 %v2198, %v2202
      %2204 = vrot.lane.b32.xlu0 %v2089, 32
      %v2205 = vpop.permute.xlu0 %2204
      %2206 = vrot.lane.b32.xlu0 %v2096, 32
      %v2207 = vpop.permute.xlu0 %2206
      %2208 = vrot.lane.b32.xlu0 %v2103, 32
      %v2209 = vpop.permute.xlu0 %2208
      %2210 = vrot.lane.b32.xlu0 %v2110, 32
      %v2211 = vpop.permute.xlu0 %2210
      %2212 = vrot.lane.b32.xlu0 %v2117, 32
      %v2213 = vpop.permute.xlu0 %2212
      %2214 = vrot.lane.b32.xlu0 %v2124, 32
      %v2215 = vpop.permute.xlu0 %2214
      %2216 = vrot.lane.b32.xlu0 %v2131, 32
      %v2217 = vpop.permute.xlu0 %2216
      %2218 = vrot.lane.b32.xlu0 %v2203, 32
      %v2219 = vpop.permute.xlu0 %2218
      %v2220 = vrot.slane %v2075, 1
      %2221 = vrot.lane.b32.xlu0 %v2157, 40
      %v2222 = vpop.permute.xlu0 %2221
      %2223 = vrot.lane.b32.xlu0 %v2158, 40
      %v2224 = vpop.permute.xlu0 %2223
      %2225 = vrot.lane.b32.xlu0 %v2159, 40
      %v2226 = vpop.permute.xlu0 %2225
      %2227 = vrot.lane.b32.xlu0 %v2160, 40
      %v2228 = vpop.permute.xlu0 %2227
      %2229 = vrot.lane.b32.xlu0 %v2161, 40
      %v2230 = vpop.permute.xlu0 %2229
      %2231 = vrot.lane.b32.xlu0 %v2162, 40
      %v2232 = vpop.permute.xlu0 %2231
      %2233 = vrot.lane.b32.xlu0 %v2163, 40
      %v2234 = vpop.permute.xlu0 %2233
      %2235 = vrot.lane.b32.xlu0 %v2220, 40
      %v2236 = vpop.permute.xlu0 %2235
      %2237 = vrot.lane.b32.xlu0 %v2069, 48
      %v2238 = vpop.permute.xlu0 %2237
      %2239 = vrot.lane.b32.xlu0 %v2070, 48
      %v2240 = vpop.permute.xlu0 %2239
      %2241 = vrot.lane.b32.xlu0 %v2071, 48
      %v2242 = vpop.permute.xlu0 %2241
      %2243 = vrot.lane.b32.xlu0 %v2072, 48
      %v2244 = vpop.permute.xlu0 %2243
      %2245 = vrot.lane.b32.xlu0 %v2073, 48
      %v2246 = vpop.permute.xlu0 %2245
      %2247 = vrot.lane.b32.xlu0 %v2074, 48
      %v2248 = vpop.permute.xlu0 %2247
      %2249 = vrot.lane.b32.xlu0 %v2075, 48
      %v2250 = vpop.permute.xlu0 %2249
      %2251 = vrot.lane.b32.xlu0 %v2067, 48
      %v2252 = vpop.permute.xlu0 %2251
      %2253 = vrot.lane.b32.xlu0 %v2096, 56
      %v2254 = vpop.permute.xlu0 %2253
      %2255 = vrot.lane.b32.xlu0 %v2103, 56
      %v2256 = vpop.permute.xlu0 %2255
      %2257 = vrot.lane.b32.xlu0 %v2110, 56
      %v2258 = vpop.permute.xlu0 %2257
      %2259 = vrot.lane.b32.xlu0 %v2117, 56
      %v2260 = vpop.permute.xlu0 %2259
      %2261 = vrot.lane.b32.xlu0 %v2124, 56
      %v2262 = vpop.permute.xlu0 %2261
      %2263 = vrot.lane.b32.xlu0 %v2131, 56
      %v2264 = vpop.permute.xlu0 %2263
      %2265 = vrot.lane.b32.xlu0 %v2203, 56
      %v2266 = vpop.permute.xlu0 %2265
      %2267 = vrot.lane.b32.xlu0 %v2082, 56
      %v2268 = vpop.permute.xlu0 %2267
      %2269 = vrot.lane.b32.xlu0 %v2158, 64
      %v2270 = vpop.permute.xlu0 %2269
      %2271 = vrot.lane.b32.xlu0 %v2159, 64
      %v2272 = vpop.permute.xlu0 %2271
      %2273 = vrot.lane.b32.xlu0 %v2160, 64
      %v2274 = vpop.permute.xlu0 %2273
      %2275 = vrot.lane.b32.xlu0 %v2161, 64
      %v2276 = vpop.permute.xlu0 %2275
      %2277 = vrot.lane.b32.xlu0 %v2162, 64
      %v2278 = vpop.permute.xlu0 %2277
      %2279 = vrot.lane.b32.xlu0 %v2163, 64
      %v2280 = vpop.permute.xlu0 %2279
      %2281 = vrot.lane.b32.xlu0 %v2220, 64
      %v2282 = vpop.permute.xlu0 %2281
      %2283 = vrot.lane.b32.xlu0 %v2156, 64
      %v2284 = vpop.permute.xlu0 %2283
      %v2286 = vsel %vm1495, %v2067, %v2133
      %v2288 = vsel %vm1495, %v2068, %v2135
      %v2290 = vsel %vm1495, %v2069, %v2137
      %v2292 = vsel %vm1495, %v2070, %v2139
      %v2294 = vsel %vm1495, %v2071, %v2141
      %v2296 = vsel %vm1495, %v2072, %v2143
      %v2298 = vsel %vm1495, %v2073, %v2145
      %v2300 = vsel %vm1495, %v2074, %v2147
      %v2302 = vsel %vm1561, %v2286, %v2165
      %v2304 = vsel %vm1561, %v2288, %v2167
      %v2306 = vsel %vm1561, %v2290, %v2169
      %v2308 = vsel %vm1561, %v2292, %v2171
      %v2310 = vsel %vm1561, %v2294, %v2173
      %v2312 = vsel %vm1561, %v2296, %v2175
      %v2314 = vsel %vm1561, %v2298, %v2177
      %v2316 = vsel %vm1561, %v2300, %v2179
      %v2318 = vsel %vm1627, %v2302, %v2182
      %v2320 = vsel %vm1627, %v2304, %v2184
      %v2322 = vsel %vm1627, %v2306, %v2186
      %v2324 = vsel %vm1627, %v2308, %v2188
      %v2326 = vsel %vm1627, %v2310, %v2190
      %v2328 = vsel %vm1627, %v2312, %v2192
      %v2330 = vsel %vm1627, %v2314, %v2194
      %v2332 = vsel %vm1627, %v2316, %v2196
      %v2334 = vsel %vm1693, %v2318, %v2205
      %v2336 = vsel %vm1693, %v2320, %v2207
      %v2338 = vsel %vm1693, %v2322, %v2209
      %v2340 = vsel %vm1693, %v2324, %v2211
      %v2342 = vsel %vm1693, %v2326, %v2213
      %v2344 = vsel %vm1693, %v2328, %v2215
      %v2346 = vsel %vm1693, %v2330, %v2217
      %v2348 = vsel %vm1693, %v2332, %v2219
      %vm2349 = vcmask 326656
      %v2351 = vsel %vm2349, %v2334, %v2222
      %v2353 = vsel %vm2349, %v2336, %v2224
      %v2355 = vsel %vm2349, %v2338, %v2226
      %v2357 = vsel %vm2349, %v2340, %v2228
      %v2359 = vsel %vm2349, %v2342, %v2230
      %v2361 = vsel %vm2349, %v2344, %v2232
      %v2363 = vsel %vm2349, %v2346, %v2234
      %v2365 = vsel %vm2349, %v2348, %v2236
      %vm2366 = vcmask 392192
      %v2368 = vsel %vm2366, %v2351, %v2238
      %v2370 = vsel %vm2366, %v2353, %v2240
      %v2372 = vsel %vm2366, %v2355, %v2242
      %v2374 = vsel %vm2366, %v2357, %v2244
      %v2376 = vsel %vm2366, %v2359, %v2246
      %v2378 = vsel %vm2366, %v2361, %v2248
      %v2380 = vsel %vm2366, %v2363, %v2250
      %v2382 = vsel %vm2366, %v2365, %v2252
      %vm2383 = vcmask 457728
      %v2385 = vsel %vm2383, %v2368, %v2254
      %v2387 = vsel %vm2383, %v2370, %v2256
      %v2389 = vsel %vm2383, %v2372, %v2258
      %v2391 = vsel %vm2383, %v2374, %v2260
      %v2393 = vsel %vm2383, %v2376, %v2262
      %v2395 = vsel %vm2383, %v2378, %v2264
      %v2397 = vsel %vm2383, %v2380, %v2266
      %v2399 = vsel %vm2383, %v2382, %v2268
      %vm2400 = vcmask 523264
      %v2402 = vsel %vm2400, %v2385, %v2270
      %v2404 = vsel %vm2400, %v2387, %v2272
      %v2406 = vsel %vm2400, %v2389, %v2274
      %v2408 = vsel %vm2400, %v2391, %v2276
      %v2410 = vsel %vm2400, %v2393, %v2278
      %v2412 = vsel %vm2400, %v2395, %v2280
      %v2414 = vsel %vm2400, %v2397, %v2282
      %v2416 = vsel %vm2400, %v2399, %v2284
      %v2418 = vlaneseq
      %v2419 = vshrl.u32 %v2418, 7
      %v2420 = vsub.s32 0, %v2419
      %v2421 = vrot.slane %v1981, %v2420
      %v2431 = vunpack.c.l.b16 %v2402
      %v2432 = vunpack.c.l.b16 %v2404
      %v2433 = vunpack.c.l.b16 %v2406
      %v2434 = vunpack.c.l.b16 %v2408
      %v2435 = vunpack.c.l.b16 %v2410
      %v2436 = vunpack.c.l.b16 %v2412
      %v2437 = vunpack.c.l.b16 %v2414
      %v2438 = vunpack.c.l.b16 %v2416
      %v2439 = vpack.c.b16 %v2432, %v2431
      %v2440 = vpack.c.b16 %v2434, %v2433
      %v2441 = vpack.c.b16 %v2436, %v2435
      %v2442 = vpack.c.b16 %v2438, %v2437
      %v2452 = vunpack.c.l.b16 %v1972
      %v2453 = vunpack.c.l.b16 %v1973
      %v2454 = vunpack.c.l.b16 %v1974
      %v2455 = vunpack.c.l.b16 %v1975
      %v2456 = vunpack.c.l.b16 %v1976
      %v2457 = vunpack.c.l.b16 %v1977
      %v2458 = vunpack.c.l.b16 %v1978
      %v2459 = vunpack.c.l.b16 %v1979
      %v2460 = vunpack.c.l.b16 %v1980
      %v2461 = vpack.c.b16 %v2453, %v2452
      %v2462 = vpack.c.b16 %v2455, %v2454
      %v2463 = vpack.c.b16 %v2457, %v2456
      %v2464 = vpack.c.b16 %v2459, %v2458
      %v2465 = vpack.c.b16 %v2460, %v2460
      %vm2470 = vcmask 588800
      %v2472 = vsel %vm2470, %v2439, 0
      %v2475 = vsel %vm2470, %v2440, 0
      %v2478 = vsel %vm2470, %v2441, 0
      %v2481 = vsel %vm2470, %v2442, 0
      %vm2483 = vcmask 1043456
      %v2485 = vsel %vm2483, %v2465, 0
      %2487 = vmatprep.subr.bf16.mxu0 0
      %2488 = vmatpush1.bf16.msra.mxu0 %v2461
      %2489 = vmatprep.subr.bf16.mxu0 0
      %2490 = vmatpush1.bf16.msra.mxu0 %v2462
      %2491 = vmatprep.subr.bf16.mxu0 0
      %2492 = vmatpush1.bf16.msra.mxu0 %v2463
      %2493 = vmatprep.subr.bf16.mxu0 0
      %2494 = vmatpush1.bf16.msra.mxu0 %v2464
      %2495 = vmatprep.subr.bf16.mxu0 0
      %2496 = vmatpush1.bf16.msra.mxu0 %v2485
      %2497 = vmatprep.subr.bf16.mxu0 0
      %2498 = vmatpush1.bf16.msra.mxu0 0
      %2499 = vmatprep.subr.bf16.mxu0 0
      %2500 = vmatpush1.bf16.msra.mxu0 0
      %2501 = vmatprep.subr.bf16.mxu0 0
      %2502 = vmatpush1.bf16.msra.mxu0 0
      %2503 = vmatprep.subr.bf16.mxu0 0
      %2504 = vmatpush1.bf16.msra.mxu0 0
      %2505 = vmatprep.subr.bf16.mxu0 0
      %2506 = vmatpush1.bf16.msra.mxu0 0
      %2507 = vmatprep.subr.bf16.mxu0 0
      %2508 = vmatpush1.bf16.msra.mxu0 0
      %2509 = vmatprep.subr.bf16.mxu0 0
      %2510 = vmatpush1.bf16.msra.mxu0 0
      %2511 = vmatprep.subr.bf16.mxu0 0
      %2512 = vmatpush1.bf16.msra.mxu0 0
      %2513 = vmatprep.subr.bf16.mxu0 0
      %2514 = vmatpush1.bf16.msra.mxu0 0
      %2515 = vmatprep.subr.bf16.mxu0 0
      %2516 = vmatpush1.bf16.msra.mxu0 0
      %2517 = vmatprep.subr.bf16.mxu0 0
      %2518 = vmatpush1.bf16.msra.mxu0 0
      %2519 = vmatprep.mubr.bf16.mxu0 0
      %2520 = vmatmul.mubr.bf16.gmra.mrb[0].mxu0 %v2472
      %v2521 = vpop.f32.mrb[0].mxu0
      %v2522 = vadd.f32 %v2421, %v2521
      %v2523 = vpop.f32.mrb[0].mxu0
      %v2524 = vpop.f32.mrb[0].mxu0
      %v2525 = vadd.f32 %v2421, %v2524
      %v2526 = vpop.f32.mrb[0].mxu0
      %2527 = vmatprep.mubr.bf16.mxu0 0
      %2528 = vmatmul.mubr.bf16.gmra.mrb[0].mxu0 %v2475
      %v2529 = vpop.f32.mrb[0].mxu0
      %v2530 = vadd.f32 %v2421, %v2529
      %v2531 = vpop.f32.mrb[0].mxu0
      %v2532 = vpop.f32.mrb[0].mxu0
      %v2533 = vadd.f32 %v2421, %v2532
      %v2534 = vpop.f32.mrb[0].mxu0
      %2535 = vmatprep.mubr.bf16.mxu0 0
      %2536 = vmatmul.mubr.bf16.gmra.mrb[0].mxu0 %v2478
      %v2537 = vpop.f32.mrb[0].mxu0
      %v2538 = vadd.f32 %v2421, %v2537
      %v2539 = vpop.f32.mrb[0].mxu0
      %v2540 = vpop.f32.mrb[0].mxu0
      %v2541 = vadd.f32 %v2421, %v2540
      %v2542 = vpop.f32.mrb[0].mxu0
      %2543 = vmatprep.mubr.bf16.mxu0 0
      %2544 = vmatmul.mubr.bf16.gmra.mrb[0].mxu0 %v2481
      %v2545 = vpop.f32.mrb[0].mxu0
      %v2546 = vadd.f32 %v2421, %v2545
      %v2547 = vpop.f32.mrb[0].mxu0
      %v2548 = vpop.f32.mrb[0].mxu0
      %v2549 = vadd.f32 %v2421, %v2548
      %v2550 = vpop.f32.mrb[0].mxu0
      %2551 = vdwg.mxu0
      %v2552 = vmax.f32 %v2522, 0.0
      %v2553 = vmax.f32 %v2525, 0.0
      %v2554 = vmax.f32 %v2530, 0.0
      %v2555 = vmax.f32 %v2533, 0.0
      %v2556 = vmax.f32 %v2538, 0.0
      %v2557 = vmax.f32 %v2541, 0.0
      %v2558 = vmax.f32 %v2546, 0.0
      %v2559 = vmax.f32 %v2549, 0.0
      %v2560 = vpack.c.bf16 %v2553, %v2552
      %v2561 = vpack.c.bf16 %v2555, %v2554
      %v2562 = vpack.c.bf16 %v2557, %v2556
      %v2563 = vpack.c.bf16 %v2559, %v2558
      %v2568 = vunpack.c.l.b16 %v2560
      %v2569 = vunpack.c.h.b16 %v2560
      %v2570 = vunpack.c.l.b16 %v2561
      %v2571 = vunpack.c.h.b16 %v2561
      %v2572 = vunpack.c.l.b16 %v2562
      %v2573 = vunpack.c.h.b16 %v2562
      %v2574 = vunpack.c.l.b16 %v2563
      %v2575 = vunpack.c.h.b16 %v2563
      %v2576 = vpack.c.b16 %v2568, %v2568
      %v2577 = vpack.c.b16 %v2569, %v2569
      %v2578 = vpack.c.b16 %v2570, %v2570
      %v2579 = vpack.c.b16 %v2571, %v2571
      %v2580 = vpack.c.b16 %v2572, %v2572
      %v2581 = vpack.c.b16 %v2573, %v2573
      %v2582 = vpack.c.b16 %v2574, %v2574
      %v2583 = vpack.c.b16 %v2575, %v2575
      %v2585 = vshrl.u32 %v2576, 16
      %v2587 = vrot.slane %v2585, 7
      %v2588 = vshll.u32 %v2576, 16
      %v2590 = vor.u32 %v2587, %v2588
      %v2592 = vshrl.u32 %v2577, 16
      %v2594 = vrot.slane %v2592, 7
      %v2595 = vshll.u32 %v2577, 16
      %v2597 = vor.u32 %v2594, %v2595
      %v2599 = vshrl.u32 %v2578, 16
      %v2601 = vrot.slane %v2599, 7
      %v2602 = vshll.u32 %v2578, 16
      %v2604 = vor.u32 %v2601, %v2602
      %v2606 = vshrl.u32 %v2579, 16
      %v2608 = vrot.slane %v2606, 7
      %v2609 = vshll.u32 %v2579, 16
      %v2611 = vor.u32 %v2608, %v2609
      %v2613 = vshrl.u32 %v2580, 16
      %v2615 = vrot.slane %v2613, 7
      %v2616 = vshll.u32 %v2580, 16
      %v2618 = vor.u32 %v2615, %v2616
      %v2620 = vshrl.u32 %v2581, 16
      %v2622 = vrot.slane %v2620, 7
      %v2623 = vshll.u32 %v2581, 16
      %v2625 = vor.u32 %v2622, %v2623
      %v2627 = vshrl.u32 %v2582, 16
      %v2629 = vrot.slane %v2627, 7
      %v2630 = vshll.u32 %v2582, 16
      %v2632 = vor.u32 %v2629, %v2630
      %v2634 = vshrl.u32 %v2583, 16
      %v2636 = vrot.slane %v2634, 7
      %v2637 = vshll.u32 %v2583, 16
      %v2639 = vor.u32 %v2636, %v2637
      %v2648 = vsel %vm880, 0, %v2590
      %v2649 = vsel %vm880, 0, %v2597
      %v2650 = vsel %vm880, 0, %v2604
      %v2651 = vsel %vm880, 0, %v2611
      %v2652 = vsel %vm880, 0, %v2618
      %v2653 = vsel %vm880, 0, %v2625
      %v2654 = vsel %vm880, 0, %v2632
      %v2655 = vsel %vm880, 0, %v2639
      %v2656 = vsel %vm2066, %v2648, 0
      %v2657 = vsel %vm2066, %v2649, 0
      %v2658 = vsel %vm2066, %v2650, 0
      %v2659 = vsel %vm2066, %v2651, 0
      %v2660 = vsel %vm2066, %v2652, 0
      %v2661 = vsel %vm2066, %v2653, 0
      %v2662 = vsel %vm2066, %v2654, 0
      %v2663 = vsel %vm2066, %v2655, 0
      %v2665 = vshrl.u32 %v2656, 16
      %v2667 = vshll.u32 %v2656, 16
      %v2669 = vrot.slane %v2667, 1
      %v2670 = vor.u32 %v2665, %v2669
      %v2672 = vshrl.u32 %v2657, 16
      %v2674 = vshll.u32 %v2657, 16
      %v2676 = vrot.slane %v2674, 1
      %v2677 = vor.u32 %v2672, %v2676
      %v2679 = vshrl.u32 %v2658, 16
      %v2681 = vshll.u32 %v2658, 16
      %v2683 = vrot.slane %v2681, 1
      %v2684 = vor.u32 %v2679, %v2683
      %v2686 = vshrl.u32 %v2659, 16
      %v2688 = vshll.u32 %v2659, 16
      %v2690 = vrot.slane %v2688, 1
      %v2691 = vor.u32 %v2686, %v2690
      %v2693 = vshrl.u32 %v2660, 16
      %v2695 = vshll.u32 %v2660, 16
      %v2697 = vrot.slane %v2695, 1
      %v2698 = vor.u32 %v2693, %v2697
      %v2700 = vshrl.u32 %v2661, 16
      %v2702 = vshll.u32 %v2661, 16
      %v2704 = vrot.slane %v2702, 1
      %v2705 = vor.u32 %v2700, %v2704
      %v2707 = vshrl.u32 %v2662, 16
      %v2709 = vshll.u32 %v2662, 16
      %v2711 = vrot.slane %v2709, 1
      %v2712 = vor.u32 %v2707, %v2711
      %2713 = vrot.lane.b32.xlu0 %v2670, 8
      %v2714 = vpop.permute.xlu0 %2713
      %2715 = vrot.lane.b32.xlu0 %v2677, 8
      %v2716 = vpop.permute.xlu0 %2715
      %2717 = vrot.lane.b32.xlu0 %v2684, 8
      %v2718 = vpop.permute.xlu0 %2717
      %2719 = vrot.lane.b32.xlu0 %v2691, 8
      %v2720 = vpop.permute.xlu0 %2719
      %2721 = vrot.lane.b32.xlu0 %v2698, 8
      %v2722 = vpop.permute.xlu0 %2721
      %2723 = vrot.lane.b32.xlu0 %v2705, 8
      %v2724 = vpop.permute.xlu0 %2723
      %2725 = vrot.lane.b32.xlu0 %v2712, 8
      %v2726 = vpop.permute.xlu0 %2725
      %v2734 = vrot.slane %v2656, 1
      %v2735 = vrot.slane %v2657, 1
      %v2736 = vrot.slane %v2658, 1
      %v2737 = vrot.slane %v2659, 1
      %v2738 = vrot.slane %v2660, 1
      %v2739 = vrot.slane %v2661, 1
      %v2740 = vrot.slane %v2662, 1
      %2741 = vrot.lane.b32.xlu0 %v2734, 16
      %v2742 = vpop.permute.xlu0 %2741
      %2743 = vrot.lane.b32.xlu0 %v2735, 16
      %v2744 = vpop.permute.xlu0 %2743
      %2745 = vrot.lane.b32.xlu0 %v2736, 16
      %v2746 = vpop.permute.xlu0 %2745
      %2747 = vrot.lane.b32.xlu0 %v2737, 16
      %v2748 = vpop.permute.xlu0 %2747
      %2749 = vrot.lane.b32.xlu0 %v2738, 16
      %v2750 = vpop.permute.xlu0 %2749
      %2751 = vrot.lane.b32.xlu0 %v2739, 16
      %v2752 = vpop.permute.xlu0 %2751
      %2753 = vrot.lane.b32.xlu0 %v2740, 16
      %v2754 = vpop.permute.xlu0 %2753
      %2756 = vrot.lane.b32.xlu0 %v2656, 24
      %v2757 = vpop.permute.xlu0 %2756
      %2758 = vrot.lane.b32.xlu0 %v2657, 24
      %v2759 = vpop.permute.xlu0 %2758
      %2760 = vrot.lane.b32.xlu0 %v2658, 24
      %v2761 = vpop.permute.xlu0 %2760
      %2762 = vrot.lane.b32.xlu0 %v2659, 24
      %v2763 = vpop.permute.xlu0 %2762
      %2764 = vrot.lane.b32.xlu0 %v2660, 24
      %v2765 = vpop.permute.xlu0 %2764
      %2766 = vrot.lane.b32.xlu0 %v2661, 24
      %v2767 = vpop.permute.xlu0 %2766
      %2768 = vrot.lane.b32.xlu0 %v2662, 24
      %v2769 = vpop.permute.xlu0 %2768
      %2770 = vrot.lane.b32.xlu0 %v2663, 24
      %v2771 = vpop.permute.xlu0 %2770
      %v2773 = vshrl.u32 %v2663, 16
      %v2775 = vshll.u32 %v2663, 16
      %v2777 = vrot.slane %v2775, 1
      %v2778 = vor.u32 %v2773, %v2777
      %2779 = vrot.lane.b32.xlu0 %v2670, 32
      %v2780 = vpop.permute.xlu0 %2779
      %2781 = vrot.lane.b32.xlu0 %v2677, 32
      %v2782 = vpop.permute.xlu0 %2781
      %2783 = vrot.lane.b32.xlu0 %v2684, 32
      %v2784 = vpop.permute.xlu0 %2783
      %2785 = vrot.lane.b32.xlu0 %v2691, 32
      %v2786 = vpop.permute.xlu0 %2785
      %2787 = vrot.lane.b32.xlu0 %v2698, 32
      %v2788 = vpop.permute.xlu0 %2787
      %2789 = vrot.lane.b32.xlu0 %v2705, 32
      %v2790 = vpop.permute.xlu0 %2789
      %2791 = vrot.lane.b32.xlu0 %v2712, 32
      %v2792 = vpop.permute.xlu0 %2791
      %2793 = vrot.lane.b32.xlu0 %v2778, 32
      %v2794 = vpop.permute.xlu0 %2793
      %v2795 = vrot.slane %v2663, 1
      %2796 = vrot.lane.b32.xlu0 %v2734, 40
      %v2797 = vpop.permute.xlu0 %2796
      %2798 = vrot.lane.b32.xlu0 %v2735, 40
      %v2799 = vpop.permute.xlu0 %2798
      %2800 = vrot.lane.b32.xlu0 %v2736, 40
      %v2801 = vpop.permute.xlu0 %2800
      %2802 = vrot.lane.b32.xlu0 %v2737, 40
      %v2803 = vpop.permute.xlu0 %2802
      %2804 = vrot.lane.b32.xlu0 %v2738, 40
      %v2805 = vpop.permute.xlu0 %2804
      %2806 = vrot.lane.b32.xlu0 %v2739, 40
      %v2807 = vpop.permute.xlu0 %2806
      %2808 = vrot.lane.b32.xlu0 %v2740, 40
      %v2809 = vpop.permute.xlu0 %2808
      %2810 = vrot.lane.b32.xlu0 %v2795, 40
      %v2811 = vpop.permute.xlu0 %2810
      %2812 = vrot.lane.b32.xlu0 %v2657, 48
      %v2813 = vpop.permute.xlu0 %2812
      %2814 = vrot.lane.b32.xlu0 %v2658, 48
      %v2815 = vpop.permute.xlu0 %2814
      %2816 = vrot.lane.b32.xlu0 %v2659, 48
      %v2817 = vpop.permute.xlu0 %2816
      %2818 = vrot.lane.b32.xlu0 %v2660, 48
      %v2819 = vpop.permute.xlu0 %2818
      %2820 = vrot.lane.b32.xlu0 %v2661, 48
      %v2821 = vpop.permute.xlu0 %2820
      %2822 = vrot.lane.b32.xlu0 %v2662, 48
      %v2823 = vpop.permute.xlu0 %2822
      %2824 = vrot.lane.b32.xlu0 %v2663, 48
      %v2825 = vpop.permute.xlu0 %2824
      %2826 = vrot.lane.b32.xlu0 %v2677, 56
      %v2827 = vpop.permute.xlu0 %2826
      %2828 = vrot.lane.b32.xlu0 %v2684, 56
      %v2829 = vpop.permute.xlu0 %2828
      %2830 = vrot.lane.b32.xlu0 %v2691, 56
      %v2831 = vpop.permute.xlu0 %2830
      %2832 = vrot.lane.b32.xlu0 %v2698, 56
      %v2833 = vpop.permute.xlu0 %2832
      %2834 = vrot.lane.b32.xlu0 %v2705, 56
      %v2835 = vpop.permute.xlu0 %2834
      %2836 = vrot.lane.b32.xlu0 %v2712, 56
      %v2837 = vpop.permute.xlu0 %2836
      %2838 = vrot.lane.b32.xlu0 %v2778, 56
      %v2839 = vpop.permute.xlu0 %2838
      %2840 = vrot.lane.b32.xlu0 %v2735, 64
      %v2841 = vpop.permute.xlu0 %2840
      %2842 = vrot.lane.b32.xlu0 %v2736, 64
      %v2843 = vpop.permute.xlu0 %2842
      %2844 = vrot.lane.b32.xlu0 %v2737, 64
      %v2845 = vpop.permute.xlu0 %2844
      %2846 = vrot.lane.b32.xlu0 %v2738, 64
      %v2847 = vpop.permute.xlu0 %2846
      %2848 = vrot.lane.b32.xlu0 %v2739, 64
      %v2849 = vpop.permute.xlu0 %2848
      %2850 = vrot.lane.b32.xlu0 %v2740, 64
      %v2851 = vpop.permute.xlu0 %2850
      %2852 = vrot.lane.b32.xlu0 %v2795, 64
      %v2853 = vpop.permute.xlu0 %2852
      %v2855 = vsel %vm1495, %v2656, %v2714
      %v2857 = vsel %vm1495, %v2657, %v2716
      %v2859 = vsel %vm1495, %v2658, %v2718
      %v2861 = vsel %vm1495, %v2659, %v2720
      %v2863 = vsel %vm1495, %v2660, %v2722
      %v2865 = vsel %vm1495, %v2661, %v2724
      %v2867 = vsel %vm1495, %v2662, %v2726
      %v2869 = vsel %vm1561, %v2855, %v2742
      %v2871 = vsel %vm1561, %v2857, %v2744
      %v2873 = vsel %vm1561, %v2859, %v2746
      %v2875 = vsel %vm1561, %v2861, %v2748
      %v2877 = vsel %vm1561, %v2863, %v2750
      %v2879 = vsel %vm1561, %v2865, %v2752
      %v2881 = vsel %vm1561, %v2867, %v2754
      %v2883 = vsel %vm1627, %v2302, %v2757
      %v2885 = vsel %vm1627, %v2869, %v2759
      %v2887 = vsel %vm1627, %v2871, %v2761
      %v2889 = vsel %vm1627, %v2873, %v2763
      %v2891 = vsel %vm1627, %v2875, %v2765
      %v2893 = vsel %vm1627, %v2877, %v2767
      %v2895 = vsel %vm1627, %v2879, %v2769
      %v2897 = vsel %vm1627, %v2881, %v2771
      %v2899 = vsel %vm1693, %v2883, %v2780
      %v2901 = vsel %vm1693, %v2885, %v2782
      %v2903 = vsel %vm1693, %v2887, %v2784
      %v2905 = vsel %vm1693, %v2889, %v2786
      %v2907 = vsel %vm1693, %v2891, %v2788
      %v2909 = vsel %vm1693, %v2893, %v2790
      %v2911 = vsel %vm1693, %v2895, %v2792
      %v2913 = vsel %vm1693, %v2897, %v2794
      %v2915 = vsel %vm2349, %v2899, %v2797
      %v2917 = vsel %vm2349, %v2901, %v2799
      %v2919 = vsel %vm2349, %v2903, %v2801
      %v2921 = vsel %vm2349, %v2905, %v2803
      %v2923 = vsel %vm2349, %v2907, %v2805
      %v2925 = vsel %vm2349, %v2909, %v2807
      %v2927 = vsel %vm2349, %v2911, %v2809
      %v2929 = vsel %vm2349, %v2913, %v2811
      %v2931 = vsel %vm2366, %v2915, %v2813
      %v2933 = vsel %vm2366, %v2917, %v2815
      %v2935 = vsel %vm2366, %v2919, %v2817
      %v2937 = vsel %vm2366, %v2921, %v2819
      %v2939 = vsel %vm2366, %v2923, %v2821
      %v2941 = vsel %vm2366, %v2925, %v2823
      %v2943 = vsel %vm2366, %v2927, %v2825
      %v2944 = vsel %vm2366, %v2929, %v2252
      %v2946 = vsel %vm2383, %v2931, %v2827
      %v2948 = vsel %vm2383, %v2933, %v2829
      %v2950 = vsel %vm2383, %v2935, %v2831
      %v2952 = vsel %vm2383, %v2937, %v2833
      %v2954 = vsel %vm2383, %v2939, %v2835
      %v2956 = vsel %vm2383, %v2941, %v2837
      %v2958 = vsel %vm2383, %v2943, %v2839
      %v2959 = vsel %vm2383, %v2944, %v2268
      %v2961 = vsel %vm2400, %v2946, %v2841
      %v2963 = vsel %vm2400, %v2948, %v2843
      %v2965 = vsel %vm2400, %v2950, %v2845
      %v2967 = vsel %vm2400, %v2952, %v2847
      %v2969 = vsel %vm2400, %v2954, %v2849
      %v2971 = vsel %vm2400, %v2956, %v2851
      %v2973 = vsel %vm2400, %v2958, %v2853
      %v2974 = vsel %vm2400, %v2959, %v2284
      %v2976 = vlaneseq
      %v2977 = vshrl.u32 %v2976, 7
      %v2978 = vsub.s32 0, %v2977
      %v2979 = vrot.slane %v1991, %v2978
      %v2989 = vunpack.c.l.b16 %v2961
      %v2990 = vunpack.c.l.b16 %v2963
      %v2991 = vunpack.c.l.b16 %v2965
      %v2992 = vunpack.c.l.b16 %v2967
      %v2993 = vunpack.c.l.b16 %v2969
      %v2994 = vunpack.c.l.b16 %v2971
      %v2995 = vunpack.c.l.b16 %v2973
      %v2996 = vunpack.c.l.b16 %v2974
      %v2997 = vpack.c.b16 %v2990, %v2989
      %v2998 = vpack.c.b16 %v2992, %v2991
      %v2999 = vpack.c.b16 %v2994, %v2993
      %v3000 = vpack.c.b16 %v2996, %v2995
      %v3010 = vunpack.c.l.b16 %v1982
      %v3011 = vunpack.c.l.b16 %v1983
      %v3012 = vunpack.c.l.b16 %v1984
      %v3013 = vunpack.c.l.b16 %v1985
      %v3014 = vunpack.c.l.b16 %v1986
      %v3015 = vunpack.c.l.b16 %v1987
      %v3016 = vunpack.c.l.b16 %v1988
      %v3017 = vunpack.c.l.b16 %v1989
      %v3018 = vunpack.c.l.b16 %v1990
      %v3019 = vpack.c.b16 %v3011, %v3010
      %v3020 = vpack.c.b16 %v3013, %v3012
      %v3021 = vpack.c.b16 %v3015, %v3014
      %v3022 = vpack.c.b16 %v3017, %v3016
      %v3023 = vpack.c.b16 %v3018, %v3018
      %v3029 = vsel %vm2470, %v2997, 0
      %v3032 = vsel %vm2470, %v2998, 0
      %v3035 = vsel %vm2470, %v2999, 0
      %v3038 = vsel %vm2470, %v3000, 0
      %v3041 = vsel %vm2483, %v3023, 0
      %3043 = vmatprep.subr.bf16.mxu0 0
      %3044 = vmatpush1.bf16.msra.mxu0 %v3019
      %3045 = vmatprep.subr.bf16.mxu0 0
      %3046 = vmatpush1.bf16.msra.mxu0 %v3020
      %3047 = vmatprep.subr.bf16.mxu0 0
      %3048 = vmatpush1.bf16.msra.mxu0 %v3021
      %3049 = vmatprep.subr.bf16.mxu0 0
      %3050 = vmatpush1.bf16.msra.mxu0 %v3022
      %3051 = vmatprep.subr.bf16.mxu0 0
      %3052 = vmatpush1.bf16.msra.mxu0 %v3041
      %3053 = vmatprep.subr.bf16.mxu0 0
      %3054 = vmatpush1.bf16.msra.mxu0 0
      %3055 = vmatprep.subr.bf16.mxu0 0
      %3056 = vmatpush1.bf16.msra.mxu0 0
      %3057 = vmatprep.subr.bf16.mxu0 0
      %3058 = vmatpush1.bf16.msra.mxu0 0
      %3059 = vmatprep.subr.bf16.mxu0 0
      %3060 = vmatpush1.bf16.msra.mxu0 0
      %3061 = vmatprep.subr.bf16.mxu0 0
      %3062 = vmatpush1.bf16.msra.mxu0 0
      %3063 = vmatprep.subr.bf16.mxu0 0
      %3064 = vmatpush1.bf16.msra.mxu0 0
      %3065 = vmatprep.subr.bf16.mxu0 0
      %3066 = vmatpush1.bf16.msra.mxu0 0
      %3067 = vmatprep.subr.bf16.mxu0 0
      %3068 = vmatpush1.bf16.msra.mxu0 0
      %3069 = vmatprep.subr.bf16.mxu0 0
      %3070 = vmatpush1.bf16.msra.mxu0 0
      %3071 = vmatprep.subr.bf16.mxu0 0
      %3072 = vmatpush1.bf16.msra.mxu0 0
      %3073 = vmatprep.subr.bf16.mxu0 0
      %3074 = vmatpush1.bf16.msra.mxu0 0
      %3075 = vmatprep.mubr.bf16.mxu0 0
      %3076 = vmatmul.mubr.bf16.gmra.mrb[0].mxu0 %v3029
      %v3077 = vpop.f32.mrb[0].mxu0
      %v3078 = vadd.f32 %v2979, %v3077
      %v3079 = vpop.f32.mrb[0].mxu0
      %v3080 = vpop.f32.mrb[0].mxu0
      %v3081 = vadd.f32 %v2979, %v3080
      %v3082 = vpop.f32.mrb[0].mxu0
      %3083 = vmatprep.mubr.bf16.mxu0 0
      %3084 = vmatmul.mubr.bf16.gmra.mrb[0].mxu0 %v3032
      %v3085 = vpop.f32.mrb[0].mxu0
      %v3086 = vadd.f32 %v2979, %v3085
      %v3087 = vpop.f32.mrb[0].mxu0
      %v3088 = vpop.f32.mrb[0].mxu0
      %v3089 = vadd.f32 %v2979, %v3088
      %v3090 = vpop.f32.mrb[0].mxu0
      %3091 = vmatprep.mubr.bf16.mxu0 0
      %3092 = vmatmul.mubr.bf16.gmra.mrb[0].mxu0 %v3035
      %v3093 = vpop.f32.mrb[0].mxu0
      %v3094 = vadd.f32 %v2979, %v3093
      %v3095 = vpop.f32.mrb[0].mxu0
      %v3096 = vpop.f32.mrb[0].mxu0
      %v3097 = vadd.f32 %v2979, %v3096
      %v3098 = vpop.f32.mrb[0].mxu0
      %3099 = vmatprep.mubr.bf16.mxu0 0
      %3100 = vmatmul.mubr.bf16.gmra.mrb[0].mxu0 %v3038
      %v3101 = vpop.f32.mrb[0].mxu0
      %v3102 = vadd.f32 %v2979, %v3101
      %v3103 = vpop.f32.mrb[0].mxu0
      %v3104 = vpop.f32.mrb[0].mxu0
      %v3105 = vadd.f32 %v2979, %v3104
      %v3106 = vpop.f32.mrb[0].mxu0
      %3107 = vdwg.mxu0
      %v3108 = vunpack.c.l.bf16 %v1948
      %v3109 = vunpack.c.h.bf16 %v1948
      %v3110 = vunpack.c.l.bf16 %v1949
      %v3111 = vunpack.c.h.bf16 %v1949
      %v3112 = vunpack.c.l.bf16 %v1950
      %v3113 = vunpack.c.h.bf16 %v1950
      %v3114 = vunpack.c.l.bf16 %v1951
      %v3115 = vunpack.c.h.bf16 %v1951
      %v3116 = vadd.f32 %v3078, %v3108
      %v3117 = vadd.f32 %v3081, %v3109
      %v3118 = vadd.f32 %v3086, %v3110
      %v3119 = vadd.f32 %v3089, %v3111
      %v3120 = vadd.f32 %v3094, %v3112
      %v3121 = vadd.f32 %v3097, %v3113
      %v3122 = vadd.f32 %v3102, %v3114
      %v3123 = vadd.f32 %v3105, %v3115
      %v3124 = vmax.f32 %v3116, 0.0
      %v3125 = vmax.f32 %v3117, 0.0
      %v3126 = vmax.f32 %v3118, 0.0
      %v3127 = vmax.f32 %v3119, 0.0
      %v3128 = vmax.f32 %v3120, 0.0
      %v3129 = vmax.f32 %v3121, 0.0
      %v3130 = vmax.f32 %v3122, 0.0
      %v3131 = vmax.f32 %v3123, 0.0
      %v3132 = vpack.c.bf16 %v3125, %v3124
      %v3133 = vpack.c.bf16 %v3127, %v3126
      %v3134 = vpack.c.bf16 %v3129, %v3128
      %v3135 = vpack.c.bf16 %v3131, %v3130
      %v3140 = vunpack.c.l.b16 %v3132
      %v3141 = vunpack.c.h.b16 %v3132
      %v3142 = vunpack.c.l.b16 %v3133
      %v3143 = vunpack.c.h.b16 %v3133
      %v3144 = vunpack.c.l.b16 %v3134
      %v3145 = vunpack.c.h.b16 %v3134
      %v3146 = vunpack.c.l.b16 %v3135
      %v3147 = vunpack.c.h.b16 %v3135
      %v3148 = vpack.c.b16 %v3140, %v3140
      %v3149 = vpack.c.b16 %v3141, %v3141
      %v3150 = vpack.c.b16 %v3142, %v3142
      %v3151 = vpack.c.b16 %v3143, %v3143
      %v3152 = vpack.c.b16 %v3144, %v3144
      %v3153 = vpack.c.b16 %v3145, %v3145
      %v3154 = vpack.c.b16 %v3146, %v3146
      %v3155 = vpack.c.b16 %v3147, %v3147
      %s3156 = scalar_lea.vmem %s3, 36
      %v3157 = vld [vmem:[%s3156] sm:$0xf]
      %v3158 = vld [vmem:[%s3156 + $0x4] sm:$0xf]
      %v3159 = vld [vmem:[%s3156 + $0x8] sm:$0xf]
      %v3160 = vld [vmem:[%s3156 + $0xc] sm:$0xf]
      %v3161 = vld [vmem:[%s3156 + $0x10] sm:$0xf]
      %v3162 = vld [vmem:[%s3156 + $0x14] sm:$0xf]
      %v3163 = vld [vmem:[%s3156 + $0x18] sm:$0xf]
      %v3164 = vld [vmem:[%s3156 + $0x1c] sm:$0xf]
      %v3165 = vld [vmem:[%s3156 + $0x20] sm:$0xf]
      %s3166 = scalar_lea.vmem %s4, 1
      %v3167 = vld [vmem:[%s3166] sm:$0x1]
      %s3168 = scalar_lea.vmem %s5, 36
      %v3169 = vld [vmem:[%s3168] sm:$0xf]
      %v3170 = vld [vmem:[%s3168 + $0x4] sm:$0xf]
      %v3171 = vld [vmem:[%s3168 + $0x8] sm:$0xf]
      %v3172 = vld [vmem:[%s3168 + $0xc] sm:$0xf]
      %v3173 = vld [vmem:[%s3168 + $0x10] sm:$0xf]
      %v3174 = vld [vmem:[%s3168 + $0x14] sm:$0xf]
      %v3175 = vld [vmem:[%s3168 + $0x18] sm:$0xf]
      %v3176 = vld [vmem:[%s3168 + $0x1c] sm:$0xf]
      %v3177 = vld [vmem:[%s3168 + $0x20] sm:$0xf]
      %s3178 = scalar_lea.vmem %s6, 1
      %v3179 = vld [vmem:[%s3178] sm:$0x1]
      %v3181 = vshrl.u32 %v3148, 16
      %v3183 = vrot.slane %v3181, 7
      %v3184 = vshll.u32 %v3148, 16
      %v3186 = vor.u32 %v3183, %v3184
      %v3188 = vshrl.u32 %v3149, 16
      %v3190 = vrot.slane %v3188, 7
      %v3191 = vshll.u32 %v3149, 16
      %v3193 = vor.u32 %v3190, %v3191
      %v3195 = vshrl.u32 %v3150, 16
      %v3197 = vrot.slane %v3195, 7
      %v3198 = vshll.u32 %v3150, 16
      %v3200 = vor.u32 %v3197, %v3198
      %v3202 = vshrl.u32 %v3151, 16
      %v3204 = vrot.slane %v3202, 7
      %v3205 = vshll.u32 %v3151, 16
      %v3207 = vor.u32 %v3204, %v3205
      %v3209 = vshrl.u32 %v3152, 16
      %v3211 = vrot.slane %v3209, 7
      %v3212 = vshll.u32 %v3152, 16
      %v3214 = vor.u32 %v3211, %v3212
      %v3216 = vshrl.u32 %v3153, 16
      %v3218 = vrot.slane %v3216, 7
      %v3219 = vshll.u32 %v3153, 16
      %v3221 = vor.u32 %v3218, %v3219
      %v3223 = vshrl.u32 %v3154, 16
      %v3225 = vrot.slane %v3223, 7
      %v3226 = vshll.u32 %v3154, 16
      %v3228 = vor.u32 %v3225, %v3226
      %v3230 = vshrl.u32 %v3155, 16
      %v3232 = vrot.slane %v3230, 7
      %v3233 = vshll.u32 %v3155, 16
      %v3235 = vor.u32 %v3232, %v3233
      %v3244 = vsel %vm880, 0, %v3186
      %v3245 = vsel %vm880, 0, %v3193
      %v3246 = vsel %vm880, 0, %v3200
      %v3247 = vsel %vm880, 0, %v3207
      %v3248 = vsel %vm880, 0, %v3214
      %v3249 = vsel %vm880, 0, %v3221
      %v3250 = vsel %vm880, 0, %v3228
      %v3251 = vsel %vm880, 0, %v3235
      %v3252 = vsel %vm2066, %v3244, 0
      %v3253 = vsel %vm2066, %v3245, 0
      %v3254 = vsel %vm2066, %v3246, 0
      %v3255 = vsel %vm2066, %v3247, 0
      %v3256 = vsel %vm2066, %v3248, 0
      %v3257 = vsel %vm2066, %v3249, 0
      %v3258 = vsel %vm2066, %v3250, 0
      %v3259 = vsel %vm2066, %v3251, 0
      %v3261 = vshrl.u32 %v3252, 16
      %v3263 = vshll.u32 %v3252, 16
      %v3265 = vrot.slane %v3263, 1
      %v3266 = vor.u32 %v3261, %v3265
      %v3268 = vshrl.u32 %v3253, 16
      %v3270 = vshll.u32 %v3253, 16
      %v3272 = vrot.slane %v3270, 1
      %v3273 = vor.u32 %v3268, %v3272
      %v3275 = vshrl.u32 %v3254, 16
      %v3277 = vshll.u32 %v3254, 16
      %v3279 = vrot.slane %v3277, 1
      %v3280 = vor.u32 %v3275, %v3279
      %v3282 = vshrl.u32 %v3255, 16
      %v3284 = vshll.u32 %v3255, 16
      %v3286 = vrot.slane %v3284, 1
      %v3287 = vor.u32 %v3282, %v3286
      %v3289 = vshrl.u32 %v3256, 16
      %v3291 = vshll.u32 %v3256, 16
      %v3293 = vrot.slane %v3291, 1
      %v3294 = vor.u32 %v3289, %v3293
      %v3296 = vshrl.u32 %v3257, 16
      %v3298 = vshll.u32 %v3257, 16
      %v3300 = vrot.slane %v3298, 1
      %v3301 = vor.u32 %v3296, %v3300
      %v3303 = vshrl.u32 %v3258, 16
      %v3305 = vshll.u32 %v3258, 16
      %v3307 = vrot.slane %v3305, 1
      %v3308 = vor.u32 %v3303, %v3307
      %3309 = vrot.lane.b32.xlu0 %v3266, 8
      %v3310 = vpop.permute.xlu0 %3309
      %3311 = vrot.lane.b32.xlu0 %v3273, 8
      %v3312 = vpop.permute.xlu0 %3311
      %3313 = vrot.lane.b32.xlu0 %v3280, 8
      %v3314 = vpop.permute.xlu0 %3313
      %3315 = vrot.lane.b32.xlu0 %v3287, 8
      %v3316 = vpop.permute.xlu0 %3315
      %3317 = vrot.lane.b32.xlu0 %v3294, 8
      %v3318 = vpop.permute.xlu0 %3317
      %3319 = vrot.lane.b32.xlu0 %v3301, 8
      %v3320 = vpop.permute.xlu0 %3319
      %3321 = vrot.lane.b32.xlu0 %v3308, 8
      %v3322 = vpop.permute.xlu0 %3321
      %v3330 = vrot.slane %v3252, 1
      %v3331 = vrot.slane %v3253, 1
      %v3332 = vrot.slane %v3254, 1
      %v3333 = vrot.slane %v3255, 1
      %v3334 = vrot.slane %v3256, 1
      %v3335 = vrot.slane %v3257, 1
      %v3336 = vrot.slane %v3258, 1
      %3337 = vrot.lane.b32.xlu0 %v3330, 16
      %v3338 = vpop.permute.xlu0 %3337
      %3339 = vrot.lane.b32.xlu0 %v3331, 16
      %v3340 = vpop.permute.xlu0 %3339
      %3341 = vrot.lane.b32.xlu0 %v3332, 16
      %v3342 = vpop.permute.xlu0 %3341
      %3343 = vrot.lane.b32.xlu0 %v3333, 16
      %v3344 = vpop.permute.xlu0 %3343
      %3345 = vrot.lane.b32.xlu0 %v3334, 16
      %v3346 = vpop.permute.xlu0 %3345
      %3347 = vrot.lane.b32.xlu0 %v3335, 16
      %v3348 = vpop.permute.xlu0 %3347
      %3349 = vrot.lane.b32.xlu0 %v3336, 16
      %v3350 = vpop.permute.xlu0 %3349
      %3352 = vrot.lane.b32.xlu0 %v3252, 24
      %v3353 = vpop.permute.xlu0 %3352
      %3354 = vrot.lane.b32.xlu0 %v3253, 24
      %v3355 = vpop.permute.xlu0 %3354
      %3356 = vrot.lane.b32.xlu0 %v3254, 24
      %v3357 = vpop.permute.xlu0 %3356
      %3358 = vrot.lane.b32.xlu0 %v3255, 24
      %v3359 = vpop.permute.xlu0 %3358
      %3360 = vrot.lane.b32.xlu0 %v3256, 24
      %v3361 = vpop.permute.xlu0 %3360
      %3362 = vrot.lane.b32.xlu0 %v3257, 24
      %v3363 = vpop.permute.xlu0 %3362
      %3364 = vrot.lane.b32.xlu0 %v3258, 24
      %v3365 = vpop.permute.xlu0 %3364
      %3366 = vrot.lane.b32.xlu0 %v3259, 24
      %v3367 = vpop.permute.xlu0 %3366
      %v3369 = vshrl.u32 %v3259, 16
      %v3371 = vshll.u32 %v3259, 16
      %v3373 = vrot.slane %v3371, 1
      %v3374 = vor.u32 %v3369, %v3373
      %3375 = vrot.lane.b32.xlu0 %v3266, 32
      %v3376 = vpop.permute.xlu0 %3375
      %3377 = vrot.lane.b32.xlu0 %v3273, 32
      %v3378 = vpop.permute.xlu0 %3377
      %3379 = vrot.lane.b32.xlu0 %v3280, 32
      %v3380 = vpop.permute.xlu0 %3379
      %3381 = vrot.lane.b32.xlu0 %v3287, 32
      %v3382 = vpop.permute.xlu0 %3381
      %3383 = vrot.lane.b32.xlu0 %v3294, 32
      %v3384 = vpop.permute.xlu0 %3383
      %3385 = vrot.lane.b32.xlu0 %v3301, 32
      %v3386 = vpop.permute.xlu0 %3385
      %3387 = vrot.lane.b32.xlu0 %v3308, 32
      %v3388 = vpop.permute.xlu0 %3387
      %3389 = vrot.lane.b32.xlu0 %v3374, 32
      %v3390 = vpop.permute.xlu0 %3389
      %v3391 = vrot.slane %v3259, 1
      %3392 = vrot.lane.b32.xlu0 %v3330, 40
      %v3393 = vpop.permute.xlu0 %3392
      %3394 = vrot.lane.b32.xlu0 %v3331, 40
      %v3395 = vpop.permute.xlu0 %3394
      %3396 = vrot.lane.b32.xlu0 %v3332, 40
      %v3397 = vpop.permute.xlu0 %3396
      %3398 = vrot.lane.b32.xlu0 %v3333, 40
      %v3399 = vpop.permute.xlu0 %3398
      %3400 = vrot.lane.b32.xlu0 %v3334, 40
      %v3401 = vpop.permute.xlu0 %3400
      %3402 = vrot.lane.b32.xlu0 %v3335, 40
      %v3403 = vpop.permute.xlu0 %3402
      %3404 = vrot.lane.b32.xlu0 %v3336, 40
      %v3405 = vpop.permute.xlu0 %3404
      %3406 = vrot.lane.b32.xlu0 %v3391, 40
      %v3407 = vpop.permute.xlu0 %3406
      %3408 = vrot.lane.b32.xlu0 %v3253, 48
      %v3409 = vpop.permute.xlu0 %3408
      %3410 = vrot.lane.b32.xlu0 %v3254, 48
      %v3411 = vpop.permute.xlu0 %3410
      %3412 = vrot.lane.b32.xlu0 %v3255, 48
      %v3413 = vpop.permute.xlu0 %3412
      %3414 = vrot.lane.b32.xlu0 %v3256, 48
      %v3415 = vpop.permute.xlu0 %3414
      %3416 = vrot.lane.b32.xlu0 %v3257, 48
      %v3417 = vpop.permute.xlu0 %3416
      %3418 = vrot.lane.b32.xlu0 %v3258, 48
      %v3419 = vpop.permute.xlu0 %3418
      %3420 = vrot.lane.b32.xlu0 %v3259, 48
      %v3421 = vpop.permute.xlu0 %3420
      %3422 = vrot.lane.b32.xlu0 %v3273, 56
      %v3423 = vpop.permute.xlu0 %3422
      %3424 = vrot.lane.b32.xlu0 %v3280, 56
      %v3425 = vpop.permute.xlu0 %3424
      %3426 = vrot.lane.b32.xlu0 %v3287, 56
      %v3427 = vpop.permute.xlu0 %3426
      %3428 = vrot.lane.b32.xlu0 %v3294, 56
      %v3429 = vpop.permute.xlu0 %3428
      %3430 = vrot.lane.b32.xlu0 %v3301, 56
      %v3431 = vpop.permute.xlu0 %3430
      %3432 = vrot.lane.b32.xlu0 %v3308, 56
      %v3433 = vpop.permute.xlu0 %3432
      %3434 = vrot.lane.b32.xlu0 %v3374, 56
      %v3435 = vpop.permute.xlu0 %3434
      %3436 = vrot.lane.b32.xlu0 %v3331, 64
      %v3437 = vpop.permute.xlu0 %3436
      %3438 = vrot.lane.b32.xlu0 %v3332, 64
      %v3439 = vpop.permute.xlu0 %3438
      %3440 = vrot.lane.b32.xlu0 %v3333, 64
      %v3441 = vpop.permute.xlu0 %3440
      %3442 = vrot.lane.b32.xlu0 %v3334, 64
      %v3443 = vpop.permute.xlu0 %3442
      %3444 = vrot.lane.b32.xlu0 %v3335, 64
      %v3445 = vpop.permute.xlu0 %3444
      %3446 = vrot.lane.b32.xlu0 %v3336, 64
      %v3447 = vpop.permute.xlu0 %3446
      %3448 = vrot.lane.b32.xlu0 %v3391, 64
      %v3449 = vpop.permute.xlu0 %3448
      %v3451 = vsel %vm1495, %v3252, %v3310
      %v3453 = vsel %vm1495, %v3253, %v3312
      %v3455 = vsel %vm1495, %v3254, %v3314
      %v3457 = vsel %vm1495, %v3255, %v3316
      %v3459 = vsel %vm1495, %v3256, %v3318
      %v3461 = vsel %vm1495, %v3257, %v3320
      %v3463 = vsel %vm1495, %v3258, %v3322
      %v3465 = vsel %vm1561, %v3451, %v3338
      %v3467 = vsel %vm1561, %v3453, %v3340
      %v3469 = vsel %vm1561, %v3455, %v3342
      %v3471 = vsel %vm1561, %v3457, %v3344
      %v3473 = vsel %vm1561, %v3459, %v3346
      %v3475 = vsel %vm1561, %v3461, %v3348
      %v3477 = vsel %vm1561, %v3463, %v3350
      %v3479 = vsel %vm1627, %v2302, %v3353
      %v3481 = vsel %vm1627, %v3465, %v3355
      %v3483 = vsel %vm1627, %v3467, %v3357
      %v3485 = vsel %vm1627, %v3469, %v3359
      %v3487 = vsel %vm1627, %v3471, %v3361
      %v3489 = vsel %vm1627, %v3473, %v3363
      %v3491 = vsel %vm1627, %v3475, %v3365
      %v3493 = vsel %vm1627, %v3477, %v3367
      %v3495 = vsel %vm1693, %v3479, %v3376
      %v3497 = vsel %vm1693, %v3481, %v3378
      %v3499 = vsel %vm1693, %v3483, %v3380
      %v3501 = vsel %vm1693, %v3485, %v3382
      %v3503 = vsel %vm1693, %v3487, %v3384
      %v3505 = vsel %vm1693, %v3489, %v3386
      %v3507 = vsel %vm1693, %v3491, %v3388
      %v3509 = vsel %vm1693, %v3493, %v3390
      %v3511 = vsel %vm2349, %v3495, %v3393
      %v3513 = vsel %vm2349, %v3497, %v3395
      %v3515 = vsel %vm2349, %v3499, %v3397
      %v3517 = vsel %vm2349, %v3501, %v3399
      %v3519 = vsel %vm2349, %v3503, %v3401
      %v3521 = vsel %vm2349, %v3505, %v3403
      %v3523 = vsel %vm2349, %v3507, %v3405
      %v3525 = vsel %vm2349, %v3509, %v3407
      %v3527 = vsel %vm2366, %v3511, %v3409
      %v3529 = vsel %vm2366, %v3513, %v3411
      %v3531 = vsel %vm2366, %v3515, %v3413
      %v3533 = vsel %vm2366, %v3517, %v3415
      %v3535 = vsel %vm2366, %v3519, %v3417
      %v3537 = vsel %vm2366, %v3521, %v3419
      %v3539 = vsel %vm2366, %v3523, %v3421
      %v3540 = vsel %vm2366, %v3525, %v2252
      %v3542 = vsel %vm2383, %v3527, %v3423
      %v3544 = vsel %vm2383, %v3529, %v3425
      %v3546 = vsel %vm2383, %v3531, %v3427
      %v3548 = vsel %vm2383, %v3533, %v3429
      %v3550 = vsel %vm2383, %v3535, %v3431
      %v3552 = vsel %vm2383, %v3537, %v3433
      %v3554 = vsel %vm2383, %v3539, %v3435
      %v3555 = vsel %vm2383, %v3540, %v2268
      %v3557 = vsel %vm2400, %v3542, %v3437
      %v3559 = vsel %vm2400, %v3544, %v3439
      %v3561 = vsel %vm2400, %v3546, %v3441
      %v3563 = vsel %vm2400, %v3548, %v3443
      %v3565 = vsel %vm2400, %v3550, %v3445
      %v3567 = vsel %vm2400, %v3552, %v3447
      %v3569 = vsel %vm2400, %v3554, %v3449
      %v3570 = vsel %vm2400, %v3555, %v2284
      %v3572 = vlaneseq
      %v3573 = vshrl.u32 %v3572, 7
      %v3574 = vsub.s32 0, %v3573
      %v3575 = vrot.slane %v3167, %v3574
      %v3585 = vunpack.c.l.b16 %v3557
      %v3586 = vunpack.c.l.b16 %v3559
      %v3587 = vunpack.c.l.b16 %v3561
      %v3588 = vunpack.c.l.b16 %v3563
      %v3589 = vunpack.c.l.b16 %v3565
      %v3590 = vunpack.c.l.b16 %v3567
      %v3591 = vunpack.c.l.b16 %v3569
      %v3592 = vunpack.c.l.b16 %v3570
      %v3593 = vpack.c.b16 %v3586, %v3585
      %v3594 = vpack.c.b16 %v3588, %v3587
      %v3595 = vpack.c.b16 %v3590, %v3589
      %v3596 = vpack.c.b16 %v3592, %v3591
      %v3606 = vunpack.c.l.b16 %v3157
      %v3607 = vunpack.c.l.b16 %v3158
      %v3608 = vunpack.c.l.b16 %v3159
      %v3609 = vunpack.c.l.b16 %v3160
      %v3610 = vunpack.c.l.b16 %v3161
      %v3611 = vunpack.c.l.b16 %v3162
      %v3612 = vunpack.c.l.b16 %v3163
      %v3613 = vunpack.c.l.b16 %v3164
      %v3614 = vunpack.c.l.b16 %v3165
      %v3615 = vpack.c.b16 %v3607, %v3606
      %v3616 = vpack.c.b16 %v3609, %v3608
      %v3617 = vpack.c.b16 %v3611, %v3610
      %v3618 = vpack.c.b16 %v3613, %v3612
      %v3619 = vpack.c.b16 %v3614, %v3614
      %v3625 = vsel %vm2470, %v3593, 0
      %v3628 = vsel %vm2470, %v3594, 0
      %v3631 = vsel %vm2470, %v3595, 0
      %v3634 = vsel %vm2470, %v3596, 0
      %v3637 = vsel %vm2483, %v3619, 0
      %3639 = vmatprep.subr.bf16.mxu0 0
      %3640 = vmatpush1.bf16.msra.mxu0 %v3615
      %3641 = vmatprep.subr.bf16.mxu0 0
      %3642 = vmatpush1.bf16.msra.mxu0 %v3616
      %3643 = vmatprep.subr.bf16.mxu0 0
      %3644 = vmatpush1.bf16.msra.mxu0 %v3617
      %3645 = vmatprep.subr.bf16.mxu0 0
      %3646 = vmatpush1.bf16.msra.mxu0 %v3618
      %3647 = vmatprep.subr.bf16.mxu0 0
      %3648 = vmatpush1.bf16.msra.mxu0 %v3637
      %3649 = vmatprep.subr.bf16.mxu0 0
      %3650 = vmatpush1.bf16.msra.mxu0 0
      %3651 = vmatprep.subr.bf16.mxu0 0
      %3652 = vmatpush1.bf16.msra.mxu0 0
      %3653 = vmatprep.subr.bf16.mxu0 0
      %3654 = vmatpush1.bf16.msra.mxu0 0
      %3655 = vmatprep.subr.bf16.mxu0 0
      %3656 = vmatpush1.bf16.msra.mxu0 0
      %3657 = vmatprep.subr.bf16.mxu0 0
      %3658 = vmatpush1.bf16.msra.mxu0 0
      %3659 = vmatprep.subr.bf16.mxu0 0
      %3660 = vmatpush1.bf16.msra.mxu0 0
      %3661 = vmatprep.subr.bf16.mxu0 0
      %3662 = vmatpush1.bf16.msra.mxu0 0
      %3663 = vmatprep.subr.bf16.mxu0 0
      %3664 = vmatpush1.bf16.msra.mxu0 0
      %3665 = vmatprep.subr.bf16.mxu0 0
      %3666 = vmatpush1.bf16.msra.mxu0 0
      %3667 = vmatprep.subr.bf16.mxu0 0
      %3668 = vmatpush1.bf16.msra.mxu0 0
      %3669 = vmatprep.subr.bf16.mxu0 0
      %3670 = vmatpush1.bf16.msra.mxu0 0
      %3671 = vmatprep.mubr.bf16.mxu0 0
      %3672 = vmatmul.mubr.bf16.gmra.mrb[0].mxu0 %v3625
      %v3673 = vpop.f32.mrb[0].mxu0
      %v3674 = vadd.f32 %v3575, %v3673
      %v3675 = vpop.f32.mrb[0].mxu0
      %v3676 = vpop.f32.mrb[0].mxu0
      %v3677 = vadd.f32 %v3575, %v3676
      %v3678 = vpop.f32.mrb[0].mxu0
      %3679 = vmatprep.mubr.bf16.mxu0 0
      %3680 = vmatmul.mubr.bf16.gmra.mrb[0].mxu0 %v3628
      %v3681 = vpop.f32.mrb[0].mxu0
      %v3682 = vadd.f32 %v3575, %v3681
      %v3683 = vpop.f32.mrb[0].mxu0
      %v3684 = vpop.f32.mrb[0].mxu0
      %v3685 = vadd.f32 %v3575, %v3684
      %v3686 = vpop.f32.mrb[0].mxu0
      %3687 = vmatprep.mubr.bf16.mxu0 0
      %3688 = vmatmul.mubr.bf16.gmra.mrb[0].mxu0 %v3631
      %v3689 = vpop.f32.mrb[0].mxu0
      %v3690 = vadd.f32 %v3575, %v3689
      %v3691 = vpop.f32.mrb[0].mxu0
      %v3692 = vpop.f32.mrb[0].mxu0
      %v3693 = vadd.f32 %v3575, %v3692
      %v3694 = vpop.f32.mrb[0].mxu0
      %3695 = vmatprep.mubr.bf16.mxu0 0
      %3696 = vmatmul.mubr.bf16.gmra.mrb[0].mxu0 %v3634
      %v3697 = vpop.f32.mrb[0].mxu0
      %v3698 = vadd.f32 %v3575, %v3697
      %v3699 = vpop.f32.mrb[0].mxu0
      %v3700 = vpop.f32.mrb[0].mxu0
      %v3701 = vadd.f32 %v3575, %v3700
      %v3702 = vpop.f32.mrb[0].mxu0
      %3703 = vdwg.mxu0
      %v3704 = vmax.f32 %v3674, 0.0
      %v3705 = vmax.f32 %v3677, 0.0
      %v3706 = vmax.f32 %v3682, 0.0
      %v3707 = vmax.f32 %v3685, 0.0
      %v3708 = vmax.f32 %v3690, 0.0
      %v3709 = vmax.f32 %v3693, 0.0
      %v3710 = vmax.f32 %v3698, 0.0
      %v3711 = vmax.f32 %v3701, 0.0
      %v3712 = vpack.c.bf16 %v3705, %v3704
      %v3713 = vpack.c.bf16 %v3707, %v3706
      %v3714 = vpack.c.bf16 %v3709, %v3708
      %v3715 = vpack.c.bf16 %v3711, %v3710
      %v3720 = vunpack.c.l.b16 %v3712
      %v3721 = vunpack.c.h.b16 %v3712
      %v3722 = vunpack.c.l.b16 %v3713
      %v3723 = vunpack.c.h.b16 %v3713
      %v3724 = vunpack.c.l.b16 %v3714
      %v3725 = vunpack.c.h.b16 %v3714
      %v3726 = vunpack.c.l.b16 %v3715
      %v3727 = vunpack.c.h.b16 %v3715
      %v3728 = vpack.c.b16 %v3720, %v3720
      %v3729 = vpack.c.b16 %v3721, %v3721
      %v3730 = vpack.c.b16 %v3722, %v3722
      %v3731 = vpack.c.b16 %v3723, %v3723
      %v3732 = vpack.c.b16 %v3724, %v3724
      %v3733 = vpack.c.b16 %v3725, %v3725
      %v3734 = vpack.c.b16 %v3726, %v3726
      %v3735 = vpack.c.b16 %v3727, %v3727
      %v3737 = vshrl.u32 %v3728, 16
      %v3739 = vrot.slane %v3737, 7
      %v3740 = vshll.u32 %v3728, 16
      %v3742 = vor.u32 %v3739, %v3740
      %v3744 = vshrl.u32 %v3729, 16
      %v3746 = vrot.slane %v3744, 7
      %v3747 = vshll.u32 %v3729, 16
      %v3749 = vor.u32 %v3746, %v3747
      %v3751 = vshrl.u32 %v3730, 16
      %v3753 = vrot.slane %v3751, 7
      %v3754 = vshll.u32 %v3730, 16
      %v3756 = vor.u32 %v3753, %v3754
      %v3758 = vshrl.u32 %v3731, 16
      %v3760 = vrot.slane %v3758, 7
      %v3761 = vshll.u32 %v3731, 16
      %v3763 = vor.u32 %v3760, %v3761
      %v3765 = vshrl.u32 %v3732, 16
      %v3767 = vrot.slane %v3765, 7
      %v3768 = vshll.u32 %v3732, 16
      %v3770 = vor.u32 %v3767, %v3768
      %v3772 = vshrl.u32 %v3733, 16
      %v3774 = vrot.slane %v3772, 7
      %v3775 = vshll.u32 %v3733, 16
      %v3777 = vor.u32 %v3774, %v3775
      %v3779 = vshrl.u32 %v3734, 16
      %v3781 = vrot.slane %v3779, 7
      %v3782 = vshll.u32 %v3734, 16
      %v3784 = vor.u32 %v3781, %v3782
      %v3786 = vshrl.u32 %v3735, 16
      %v3788 = vrot.slane %v3786, 7
      %v3789 = vshll.u32 %v3735, 16
      %v3791 = vor.u32 %v3788, %v3789
      %v3800 = vsel %vm880, 0, %v3742
      %v3801 = vsel %vm880, 0, %v3749
      %v3802 = vsel %vm880, 0, %v3756
      %v3803 = vsel %vm880, 0, %v3763
      %v3804 = vsel %vm880, 0, %v3770
      %v3805 = vsel %vm880, 0, %v3777
      %v3806 = vsel %vm880, 0, %v3784
      %v3807 = vsel %vm880, 0, %v3791
      %v3808 = vsel %vm2066, %v3800, 0
      %v3809 = vsel %vm2066, %v3801, 0
      %v3810 = vsel %vm2066, %v3802, 0
      %v3811 = vsel %vm2066, %v3803, 0
      %v3812 = vsel %vm2066, %v3804, 0
      %v3813 = vsel %vm2066, %v3805, 0
      %v3814 = vsel %vm2066, %v3806, 0
      %v3815 = vsel %vm2066, %v3807, 0
      %v3817 = vshrl.u32 %v3808, 16
      %v3819 = vshll.u32 %v3808, 16
      %v3821 = vrot.slane %v3819, 1
      %v3822 = vor.u32 %v3817, %v3821
      %v3824 = vshrl.u32 %v3809, 16
      %v3826 = vshll.u32 %v3809, 16
      %v3828 = vrot.slane %v3826, 1
      %v3829 = vor.u32 %v3824, %v3828
      %v3831 = vshrl.u32 %v3810, 16
      %v3833 = vshll.u32 %v3810, 16
      %v3835 = vrot.slane %v3833, 1
      %v3836 = vor.u32 %v3831, %v3835
      %v3838 = vshrl.u32 %v3811, 16
      %v3840 = vshll.u32 %v3811, 16
      %v3842 = vrot.slane %v3840, 1
      %v3843 = vor.u32 %v3838, %v3842
      %v3845 = vshrl.u32 %v3812, 16
      %v3847 = vshll.u32 %v3812, 16
      %v3849 = vrot.slane %v3847, 1
      %v3850 = vor.u32 %v3845, %v3849
      %v3852 = vshrl.u32 %v3813, 16
      %v3854 = vshll.u32 %v3813, 16
      %v3856 = vrot.slane %v3854, 1
      %v3857 = vor.u32 %v3852, %v3856
      %v3859 = vshrl.u32 %v3814, 16
      %v3861 = vshll.u32 %v3814, 16
      %v3863 = vrot.slane %v3861, 1
      %v3864 = vor.u32 %v3859, %v3863
      %3865 = vrot.lane.b32.xlu0 %v3822, 8
      %v3866 = vpop.permute.xlu0 %3865
      %3867 = vrot.lane.b32.xlu0 %v3829, 8
      %v3868 = vpop.permute.xlu0 %3867
      %3869 = vrot.lane.b32.xlu0 %v3836, 8
      %v3870 = vpop.permute.xlu0 %3869
      %3871 = vrot.lane.b32.xlu0 %v3843, 8
      %v3872 = vpop.permute.xlu0 %3871
      %3873 = vrot.lane.b32.xlu0 %v3850, 8
      %v3874 = vpop.permute.xlu0 %3873
      %3875 = vrot.lane.b32.xlu0 %v3857, 8
      %v3876 = vpop.permute.xlu0 %3875
      %3877 = vrot.lane.b32.xlu0 %v3864, 8
      %v3878 = vpop.permute.xlu0 %3877
      %v3886 = vrot.slane %v3808, 1
      %v3887 = vrot.slane %v3809, 1
      %v3888 = vrot.slane %v3810, 1
      %v3889 = vrot.slane %v3811, 1
      %v3890 = vrot.slane %v3812, 1
      %v3891 = vrot.slane %v3813, 1
      %v3892 = vrot.slane %v3814, 1
      %3893 = vrot.lane.b32.xlu0 %v3886, 16
      %v3894 = vpop.permute.xlu0 %3893
      %3895 = vrot.lane.b32.xlu0 %v3887, 16
      %v3896 = vpop.permute.xlu0 %3895
      %3897 = vrot.lane.b32.xlu0 %v3888, 16
      %v3898 = vpop.permute.xlu0 %3897
      %3899 = vrot.lane.b32.xlu0 %v3889, 16
      %v3900 = vpop.permute.xlu0 %3899
      %3901 = vrot.lane.b32.xlu0 %v3890, 16
      %v3902 = vpop.permute.xlu0 %3901
      %3903 = vrot.lane.b32.xlu0 %v3891, 16
      %v3904 = vpop.permute.xlu0 %3903
      %3905 = vrot.lane.b32.xlu0 %v3892, 16
      %v3906 = vpop.permute.xlu0 %3905
      %3908 = vrot.lane.b32.xlu0 %v3808, 24
      %v3909 = vpop.permute.xlu0 %3908
      %3910 = vrot.lane.b32.xlu0 %v3809, 24
      %v3911 = vpop.permute.xlu0 %3910
      %3912 = vrot.lane.b32.xlu0 %v3810, 24
      %v3913 = vpop.permute.xlu0 %3912
      %3914 = vrot.lane.b32.xlu0 %v3811, 24
      %v3915 = vpop.permute.xlu0 %3914
      %3916 = vrot.lane.b32.xlu0 %v3812, 24
      %v3917 = vpop.permute.xlu0 %3916
      %3918 = vrot.lane.b32.xlu0 %v3813, 24
      %v3919 = vpop.permute.xlu0 %3918
      %3920 = vrot.lane.b32.xlu0 %v3814, 24
      %v3921 = vpop.permute.xlu0 %3920
      %3922 = vrot.lane.b32.xlu0 %v3815, 24
      %v3923 = vpop.permute.xlu0 %3922
      %v3925 = vshrl.u32 %v3815, 16
      %v3927 = vshll.u32 %v3815, 16
      %v3929 = vrot.slane %v3927, 1
      %v3930 = vor.u32 %v3925, %v3929
      %3931 = vrot.lane.b32.xlu0 %v3822, 32
      %v3932 = vpop.permute.xlu0 %3931
      %3933 = vrot.lane.b32.xlu0 %v3829, 32
      %v3934 = vpop.permute.xlu0 %3933
      %3935 = vrot.lane.b32.xlu0 %v3836, 32
      %v3936 = vpop.permute.xlu0 %3935
      %3937 = vrot.lane.b32.xlu0 %v3843, 32
      %v3938 = vpop.permute.xlu0 %3937
      %3939 = vrot.lane.b32.xlu0 %v3850, 32
      %v3940 = vpop.permute.xlu0 %3939
      %3941 = vrot.lane.b32.xlu0 %v3857, 32
      %v3942 = vpop.permute.xlu0 %3941
      %3943 = vrot.lane.b32.xlu0 %v3864, 32
      %v3944 = vpop.permute.xlu0 %3943
      %3945 = vrot.lane.b32.xlu0 %v3930, 32
      %v3946 = vpop.permute.xlu0 %3945
      %v3947 = vrot.slane %v3815, 1
      %3948 = vrot.lane.b32.xlu0 %v3886, 40
      %v3949 = vpop.permute.xlu0 %3948
      %3950 = vrot.lane.b32.xlu0 %v3887, 40
      %v3951 = vpop.permute.xlu0 %3950
      %3952 = vrot.lane.b32.xlu0 %v3888, 40
      %v3953 = vpop.permute.xlu0 %3952
      %3954 = vrot.lane.b32.xlu0 %v3889, 40
      %v3955 = vpop.permute.xlu0 %3954
      %3956 = vrot.lane.b32.xlu0 %v3890, 40
      %v3957 = vpop.permute.xlu0 %3956
      %3958 = vrot.lane.b32.xlu0 %v3891, 40
      %v3959 = vpop.permute.xlu0 %3958
      %3960 = vrot.lane.b32.xlu0 %v3892, 40
      %v3961 = vpop.permute.xlu0 %3960
      %3962 = vrot.lane.b32.xlu0 %v3947, 40
      %v3963 = vpop.permute.xlu0 %3962
      %3964 = vrot.lane.b32.xlu0 %v3809, 48
      %v3965 = vpop.permute.xlu0 %3964
      %3966 = vrot.lane.b32.xlu0 %v3810, 48
      %v3967 = vpop.permute.xlu0 %3966
      %3968 = vrot.lane.b32.xlu0 %v3811, 48
      %v3969 = vpop.permute.xlu0 %3968
      %3970 = vrot.lane.b32.xlu0 %v3812, 48
      %v3971 = vpop.permute.xlu0 %3970
      %3972 = vrot.lane.b32.xlu0 %v3813, 48
      %v3973 = vpop.permute.xlu0 %3972
      %3974 = vrot.lane.b32.xlu0 %v3814, 48
      %v3975 = vpop.permute.xlu0 %3974
      %3976 = vrot.lane.b32.xlu0 %v3815, 48
      %v3977 = vpop.permute.xlu0 %3976
      %3978 = vrot.lane.b32.xlu0 %v3829, 56
      %v3979 = vpop.permute.xlu0 %3978
      %3980 = vrot.lane.b32.xlu0 %v3836, 56
      %v3981 = vpop.permute.xlu0 %3980
      %3982 = vrot.lane.b32.xlu0 %v3843, 56
      %v3983 = vpop.permute.xlu0 %3982
      %3984 = vrot.lane.b32.xlu0 %v3850, 56
      %v3985 = vpop.permute.xlu0 %3984
      %3986 = vrot.lane.b32.xlu0 %v3857, 56
      %v3987 = vpop.permute.xlu0 %3986
      %3988 = vrot.lane.b32.xlu0 %v3864, 56
      %v3989 = vpop.permute.xlu0 %3988
      %3990 = vrot.lane.b32.xlu0 %v3930, 56
      %v3991 = vpop.permute.xlu0 %3990
      %3992 = vrot.lane.b32.xlu0 %v3887, 64
      %v3993 = vpop.permute.xlu0 %3992
      %3994 = vrot.lane.b32.xlu0 %v3888, 64
      %v3995 = vpop.permute.xlu0 %3994
      %3996 = vrot.lane.b32.xlu0 %v3889, 64
      %v3997 = vpop.permute.xlu0 %3996
      %3998 = vrot.lane.b32.xlu0 %v3890, 64
      %v3999 = vpop.permute.xlu0 %3998
      %4000 = vrot.lane.b32.xlu0 %v3891, 64
      %v4001 = vpop.permute.xlu0 %4000
      %4002 = vrot.lane.b32.xlu0 %v3892, 64
      %v4003 = vpop.permute.xlu0 %4002
      %4004 = vrot.lane.b32.xlu0 %v3947, 64
      %v4005 = vpop.permute.xlu0 %4004
      %v4007 = vsel %vm1495, %v3808, %v3866
      %v4009 = vsel %vm1495, %v3809, %v3868
      %v4011 = vsel %vm1495, %v3810, %v3870
      %v4013 = vsel %vm1495, %v3811, %v3872
      %v4015 = vsel %vm1495, %v3812, %v3874
      %v4017 = vsel %vm1495, %v3813, %v3876
      %v4019 = vsel %vm1495, %v3814, %v3878
      %v4021 = vsel %vm1561, %v4007, %v3894
      %v4023 = vsel %vm1561, %v4009, %v3896
      %v4025 = vsel %vm1561, %v4011, %v3898
      %v4027 = vsel %vm1561, %v4013, %v3900
      %v4029 = vsel %vm1561, %v4015, %v3902
      %v4031 = vsel %vm1561, %v4017, %v3904
      %v4033 = vsel %vm1561, %v4019, %v3906
      %v4035 = vsel %vm1627, %v2302, %v3909
      %v4037 = vsel %vm1627, %v4021, %v3911
      %v4039 = vsel %vm1627, %v4023, %v3913
      %v4041 = vsel %vm1627, %v4025, %v3915
      %v4043 = vsel %vm1627, %v4027, %v3917
      %v4045 = vsel %vm1627, %v4029, %v3919
      %v4047 = vsel %vm1627, %v4031, %v3921
      %v4049 = vsel %vm1627, %v4033, %v3923
      %v4051 = vsel %vm1693, %v4035, %v3932
      %v4053 = vsel %vm1693, %v4037, %v3934
      %v4055 = vsel %vm1693, %v4039, %v3936
      %v4057 = vsel %vm1693, %v4041, %v3938
      %v4059 = vsel %vm1693, %v4043, %v3940
      %v4061 = vsel %vm1693, %v4045, %v3942
      %v4063 = vsel %vm1693, %v4047, %v3944
      %v4065 = vsel %vm1693, %v4049, %v3946
      %v4067 = vsel %vm2349, %v4051, %v3949
      %v4069 = vsel %vm2349, %v4053, %v3951
      %v4071 = vsel %vm2349, %v4055, %v3953
      %v4073 = vsel %vm2349, %v4057, %v3955
      %v4075 = vsel %vm2349, %v4059, %v3957
      %v4077 = vsel %vm2349, %v4061, %v3959
      %v4079 = vsel %vm2349, %v4063, %v3961
      %v4081 = vsel %vm2349, %v4065, %v3963
      %v4083 = vsel %vm2366, %v4067, %v3965
      %v4085 = vsel %vm2366, %v4069, %v3967
      %v4087 = vsel %vm2366, %v4071, %v3969
      %v4089 = vsel %vm2366, %v4073, %v3971
      %v4091 = vsel %vm2366, %v4075, %v3973
      %v4093 = vsel %vm2366, %v4077, %v3975
      %v4095 = vsel %vm2366, %v4079, %v3977
      %v4096 = vsel %vm2366, %v4081, %v2252
      %v4098 = vsel %vm2383, %v4083, %v3979
      %v4100 = vsel %vm2383, %v4085, %v3981
      %v4102 = vsel %vm2383, %v4087, %v3983
      %v4104 = vsel %vm2383, %v4089, %v3985
      %v4106 = vsel %vm2383, %v4091, %v3987
      %v4108 = vsel %vm2383, %v4093, %v3989
      %v4110 = vsel %vm2383, %v4095, %v3991
      %v4111 = vsel %vm2383, %v4096, %v2268
      %v4113 = vsel %vm2400, %v4098, %v3993
      %v4115 = vsel %vm2400, %v4100, %v3995
      %v4117 = vsel %vm2400, %v4102, %v3997
      %v4119 = vsel %vm2400, %v4104, %v3999
      %v4121 = vsel %vm2400, %v4106, %v4001
      %v4123 = vsel %vm2400, %v4108, %v4003
      %v4125 = vsel %vm2400, %v4110, %v4005
      %v4126 = vsel %vm2400, %v4111, %v2284
      %v4128 = vlaneseq
      %v4129 = vshrl.u32 %v4128, 7
      %v4130 = vsub.s32 0, %v4129
      %v4131 = vrot.slane %v3179, %v4130
      %v4141 = vunpack.c.l.b16 %v4113
      %v4142 = vunpack.c.l.b16 %v4115
      %v4143 = vunpack.c.l.b16 %v4117
      %v4144 = vunpack.c.l.b16 %v4119
      %v4145 = vunpack.c.l.b16 %v4121
      %v4146 = vunpack.c.l.b16 %v4123
      %v4147 = vunpack.c.l.b16 %v4125
      %v4148 = vunpack.c.l.b16 %v4126
      %v4149 = vpack.c.b16 %v4142, %v4141
      %v4150 = vpack.c.b16 %v4144, %v4143
      %v4151 = vpack.c.b16 %v4146, %v4145
      %v4152 = vpack.c.b16 %v4148, %v4147
      %v4162 = vunpack.c.l.b16 %v3169
      %v4163 = vunpack.c.l.b16 %v3170
      %v4164 = vunpack.c.l.b16 %v3171
      %v4165 = vunpack.c.l.b16 %v3172
      %v4166 = vunpack.c.l.b16 %v3173
      %v4167 = vunpack.c.l.b16 %v3174
      %v4168 = vunpack.c.l.b16 %v3175
      %v4169 = vunpack.c.l.b16 %v3176
      %v4170 = vunpack.c.l.b16 %v3177
      %v4171 = vpack.c.b16 %v4163, %v4162
      %v4172 = vpack.c.b16 %v4165, %v4164
      %v4173 = vpack.c.b16 %v4167, %v4166
      %v4174 = vpack.c.b16 %v4169, %v4168
      %v4175 = vpack.c.b16 %v4170, %v4170
      %v4181 = vsel %vm2470, %v4149, 0
      %v4184 = vsel %vm2470, %v4150, 0
      %v4187 = vsel %vm2470, %v4151, 0
      %v4190 = vsel %vm2470, %v4152, 0
      %v4193 = vsel %vm2483, %v4175, 0
      %4195 = vmatprep.subr.bf16.mxu0 0
      %4196 = vmatpush1.bf16.msra.mxu0 %v4171
      %4197 = vmatprep.subr.bf16.mxu0 0
      %4198 = vmatpush1.bf16.msra.mxu0 %v4172
      %4199 = vmatprep.subr.bf16.mxu0 0
      %4200 = vmatpush1.bf16.msra.mxu0 %v4173
      %4201 = vmatprep.subr.bf16.mxu0 0
      %4202 = vmatpush1.bf16.msra.mxu0 %v4174
      %4203 = vmatprep.subr.bf16.mxu0 0
      %4204 = vmatpush1.bf16.msra.mxu0 %v4193
      %4205 = vmatprep.subr.bf16.mxu0 0
      %4206 = vmatpush1.bf16.msra.mxu0 0
      %4207 = vmatprep.subr.bf16.mxu0 0
      %4208 = vmatpush1.bf16.msra.mxu0 0
      %4209 = vmatprep.subr.bf16.mxu0 0
      %4210 = vmatpush1.bf16.msra.mxu0 0
      %4211 = vmatprep.subr.bf16.mxu0 0
      %4212 = vmatpush1.bf16.msra.mxu0 0
      %4213 = vmatprep.subr.bf16.mxu0 0
      %4214 = vmatpush1.bf16.msra.mxu0 0
      %4215 = vmatprep.subr.bf16.mxu0 0
      %4216 = vmatpush1.bf16.msra.mxu0 0
      %4217 = vmatprep.subr.bf16.mxu0 0
      %4218 = vmatpush1.bf16.msra.mxu0 0
      %4219 = vmatprep.subr.bf16.mxu0 0
      %4220 = vmatpush1.bf16.msra.mxu0 0
      %4221 = vmatprep.subr.bf16.mxu0 0
      %4222 = vmatpush1.bf16.msra.mxu0 0
      %4223 = vmatprep.subr.bf16.mxu0 0
      %4224 = vmatpush1.bf16.msra.mxu0 0
      %4225 = vmatprep.subr.bf16.mxu0 0
      %4226 = vmatpush1.bf16.msra.mxu0 0
      %4227 = vmatprep.mubr.bf16.mxu0 0
      %4228 = vmatmul.mubr.bf16.gmra.mrb[0].mxu0 %v4181
      %v4229 = vpop.f32.mrb[0].mxu0
      %v4230 = vadd.f32 %v4131, %v4229
      %v4231 = vpop.f32.mrb[0].mxu0
      %v4232 = vpop.f32.mrb[0].mxu0
      %v4233 = vadd.f32 %v4131, %v4232
      %v4234 = vpop.f32.mrb[0].mxu0
      %4235 = vmatprep.mubr.bf16.mxu0 0
      %4236 = vmatmul.mubr.bf16.gmra.mrb[0].mxu0 %v4184
      %v4237 = vpop.f32.mrb[0].mxu0
      %v4238 = vadd.f32 %v4131, %v4237
      %v4239 = vpop.f32.mrb[0].mxu0
      %v4240 = vpop.f32.mrb[0].mxu0
      %v4241 = vadd.f32 %v4131, %v4240
      %v4242 = vpop.f32.mrb[0].mxu0
      %4243 = vmatprep.mubr.bf16.mxu0 0
      %4244 = vmatmul.mubr.bf16.gmra.mrb[0].mxu0 %v4187
      %v4245 = vpop.f32.mrb[0].mxu0
      %v4246 = vadd.f32 %v4131, %v4245
      %v4247 = vpop.f32.mrb[0].mxu0
      %v4248 = vpop.f32.mrb[0].mxu0
      %v4249 = vadd.f32 %v4131, %v4248
      %v4250 = vpop.f32.mrb[0].mxu0
      %4251 = vmatprep.mubr.bf16.mxu0 0
      %4252 = vmatmul.mubr.bf16.gmra.mrb[0].mxu0 %v4190
      %v4253 = vpop.f32.mrb[0].mxu0
      %v4254 = vadd.f32 %v4131, %v4253
      %v4255 = vpop.f32.mrb[0].mxu0
      %v4256 = vpop.f32.mrb[0].mxu0
      %v4257 = vadd.f32 %v4131, %v4256
      %v4258 = vpop.f32.mrb[0].mxu0
      %4259 = vdwg.mxu0
      %v4260 = vunpack.c.l.bf16 %v3132
      %v4261 = vunpack.c.h.bf16 %v3132
      %v4262 = vunpack.c.l.bf16 %v3133
      %v4263 = vunpack.c.h.bf16 %v3133
      %v4264 = vunpack.c.l.bf16 %v3134
      %v4265 = vunpack.c.h.bf16 %v3134
      %v4266 = vunpack.c.l.bf16 %v3135
      %v4267 = vunpack.c.h.bf16 %v3135
      %v4268 = vadd.f32 %v4230, %v4260
      %v4269 = vadd.f32 %v4233, %v4261
      %v4270 = vadd.f32 %v4238, %v4262
      %v4271 = vadd.f32 %v4241, %v4263
      %v4272 = vadd.f32 %v4246, %v4264
      %v4273 = vadd.f32 %v4249, %v4265
      %v4274 = vadd.f32 %v4254, %v4266
      %v4275 = vadd.f32 %v4257, %v4267
      %v4276 = vmax.f32 %v4268, 0.0
      %v4277 = vmax.f32 %v4269, 0.0
      %v4278 = vmax.f32 %v4270, 0.0
      %v4279 = vmax.f32 %v4271, 0.0
      %v4280 = vmax.f32 %v4272, 0.0
      %v4281 = vmax.f32 %v4273, 0.0
      %v4282 = vmax.f32 %v4274, 0.0
      %v4283 = vmax.f32 %v4275, 0.0
      %v4284 = vpack.c.bf16 %v4277, %v4276
      %v4285 = vpack.c.bf16 %v4279, %v4278
      %v4286 = vpack.c.bf16 %v4281, %v4280
      %v4287 = vpack.c.bf16 %v4283, %v4282
      %v4292 = vunpack.c.l.b16 %v4284
      %v4293 = vunpack.c.h.b16 %v4284
      %v4294 = vunpack.c.l.b16 %v4285
      %v4295 = vunpack.c.h.b16 %v4285
      %v4296 = vunpack.c.l.b16 %v4286
      %v4297 = vunpack.c.h.b16 %v4286
      %v4298 = vunpack.c.l.b16 %v4287
      %v4299 = vunpack.c.h.b16 %v4287
      %v4300 = vpack.c.b16 %v4292, %v4292
      %v4301 = vpack.c.b16 %v4293, %v4293
      %v4302 = vpack.c.b16 %v4294, %v4294
      %v4303 = vpack.c.b16 %v4295, %v4295
      %v4304 = vpack.c.b16 %v4296, %v4296
      %v4305 = vpack.c.b16 %v4297, %v4297
      %v4306 = vpack.c.b16 %v4298, %v4298
      %v4307 = vpack.c.b16 %v4299, %v4299
      %v4308 = vld [vmem:[%s7] sm:$0xf]
      %v4309 = vld [vmem:[%s7 + $0x4] sm:$0xf]
      %v4310 = vld [vmem:[%s7 + $0x8] sm:$0xf]
      %v4311 = vld [vmem:[%s7 + $0xc] sm:$0xf]
      %v4312 = vld [vmem:[%s7 + $0x10] sm:$0xf]
      %v4313 = vld [vmem:[%s7 + $0x14] sm:$0xf]
      %v4314 = vld [vmem:[%s7 + $0x18] sm:$0xf]
      %v4315 = vld [vmem:[%s7 + $0x1c] sm:$0xf]
      %v4316 = vld [vmem:[%s7 + $0x20] sm:$0xf]
      %v4317 = vld [vmem:[%s8] sm:$0xf]
      %v4318 = vld [vmem:[%s8 + $0x4] sm:$0xf]
      %v4320 = vshrl.u32 %v4300, 16
      %v4322 = vrot.slane %v4320, 7
      %v4323 = vshll.u32 %v4300, 16
      %v4325 = vor.u32 %v4322, %v4323
      %v4327 = vshrl.u32 %v4301, 16
      %v4329 = vrot.slane %v4327, 7
      %v4330 = vshll.u32 %v4301, 16
      %v4332 = vor.u32 %v4329, %v4330
      %v4334 = vshrl.u32 %v4302, 16
      %v4336 = vrot.slane %v4334, 7
      %v4337 = vshll.u32 %v4302, 16
      %v4339 = vor.u32 %v4336, %v4337
      %v4341 = vshrl.u32 %v4303, 16
      %v4343 = vrot.slane %v4341, 7
      %v4344 = vshll.u32 %v4303, 16
      %v4346 = vor.u32 %v4343, %v4344
      %v4348 = vshrl.u32 %v4304, 16
      %v4350 = vrot.slane %v4348, 7
      %v4351 = vshll.u32 %v4304, 16
      %v4353 = vor.u32 %v4350, %v4351
      %v4355 = vshrl.u32 %v4305, 16
      %v4357 = vrot.slane %v4355, 7
      %v4358 = vshll.u32 %v4305, 16
      %v4360 = vor.u32 %v4357, %v4358
      %v4362 = vshrl.u32 %v4306, 16
      %v4364 = vrot.slane %v4362, 7
      %v4365 = vshll.u32 %v4306, 16
      %v4367 = vor.u32 %v4364, %v4365
      %v4369 = vshrl.u32 %v4307, 16
      %v4371 = vrot.slane %v4369, 7
      %v4372 = vshll.u32 %v4307, 16
      %v4374 = vor.u32 %v4371, %v4372
      %v4383 = vsel %vm880, 0, %v4325
      %v4384 = vsel %vm880, 0, %v4332
      %v4385 = vsel %vm880, 0, %v4339
      %v4386 = vsel %vm880, 0, %v4346
      %v4387 = vsel %vm880, 0, %v4353
      %v4388 = vsel %vm880, 0, %v4360
      %v4389 = vsel %vm880, 0, %v4367
      %v4390 = vsel %vm880, 0, %v4374
      %v4391 = vsel %vm2066, %v4383, 0
      %v4392 = vsel %vm2066, %v4384, 0
      %v4393 = vsel %vm2066, %v4385, 0
      %v4394 = vsel %vm2066, %v4386, 0
      %v4395 = vsel %vm2066, %v4387, 0
      %v4396 = vsel %vm2066, %v4388, 0
      %v4397 = vsel %vm2066, %v4389, 0
      %v4398 = vsel %vm2066, %v4390, 0
      %v4400 = vshrl.u32 %v4391, 16
      %v4402 = vshll.u32 %v4391, 16
      %v4404 = vrot.slane %v4402, 1
      %v4405 = vor.u32 %v4400, %v4404
      %v4407 = vshrl.u32 %v4392, 16
      %v4409 = vshll.u32 %v4392, 16
      %v4411 = vrot.slane %v4409, 1
      %v4412 = vor.u32 %v4407, %v4411
      %v4414 = vshrl.u32 %v4393, 16
      %v4416 = vshll.u32 %v4393, 16
      %v4418 = vrot.slane %v4416, 1
      %v4419 = vor.u32 %v4414, %v4418
      %v4421 = vshrl.u32 %v4394, 16
      %v4423 = vshll.u32 %v4394, 16
      %v4425 = vrot.slane %v4423, 1
      %v4426 = vor.u32 %v4421, %v4425
      %v4428 = vshrl.u32 %v4395, 16
      %v4430 = vshll.u32 %v4395, 16
      %v4432 = vrot.slane %v4430, 1
      %v4433 = vor.u32 %v4428, %v4432
      %v4435 = vshrl.u32 %v4396, 16
      %v4437 = vshll.u32 %v4396, 16
      %v4439 = vrot.slane %v4437, 1
      %v4440 = vor.u32 %v4435, %v4439
      %v4442 = vshrl.u32 %v4397, 16
      %v4444 = vshll.u32 %v4397, 16
      %v4446 = vrot.slane %v4444, 1
      %v4447 = vor.u32 %v4442, %v4446
      %4448 = vrot.lane.b32.xlu0 %v4405, 8
      %v4449 = vpop.permute.xlu0 %4448
      %4450 = vrot.lane.b32.xlu0 %v4412, 8
      %v4451 = vpop.permute.xlu0 %4450
      %4452 = vrot.lane.b32.xlu0 %v4419, 8
      %v4453 = vpop.permute.xlu0 %4452
      %4454 = vrot.lane.b32.xlu0 %v4426, 8
      %v4455 = vpop.permute.xlu0 %4454
      %4456 = vrot.lane.b32.xlu0 %v4433, 8
      %v4457 = vpop.permute.xlu0 %4456
      %4458 = vrot.lane.b32.xlu0 %v4440, 8
      %v4459 = vpop.permute.xlu0 %4458
      %4460 = vrot.lane.b32.xlu0 %v4447, 8
      %v4461 = vpop.permute.xlu0 %4460
      %v4469 = vrot.slane %v4391, 1
      %v4470 = vrot.slane %v4392, 1
      %v4471 = vrot.slane %v4393, 1
      %v4472 = vrot.slane %v4394, 1
      %v4473 = vrot.slane %v4395, 1
      %v4474 = vrot.slane %v4396, 1
      %v4475 = vrot.slane %v4397, 1
      %4476 = vrot.lane.b32.xlu0 %v4469, 16
      %v4477 = vpop.permute.xlu0 %4476
      %4478 = vrot.lane.b32.xlu0 %v4470, 16
      %v4479 = vpop.permute.xlu0 %4478
      %4480 = vrot.lane.b32.xlu0 %v4471, 16
      %v4481 = vpop.permute.xlu0 %4480
      %4482 = vrot.lane.b32.xlu0 %v4472, 16
      %v4483 = vpop.permute.xlu0 %4482
      %4484 = vrot.lane.b32.xlu0 %v4473, 16
      %v4485 = vpop.permute.xlu0 %4484
      %4486 = vrot.lane.b32.xlu0 %v4474, 16
      %v4487 = vpop.permute.xlu0 %4486
      %4488 = vrot.lane.b32.xlu0 %v4475, 16
      %v4489 = vpop.permute.xlu0 %4488
      %4491 = vrot.lane.b32.xlu0 %v4391, 24
      %v4492 = vpop.permute.xlu0 %4491
      %4493 = vrot.lane.b32.xlu0 %v4392, 24
      %v4494 = vpop.permute.xlu0 %4493
      %4495 = vrot.lane.b32.xlu0 %v4393, 24
      %v4496 = vpop.permute.xlu0 %4495
      %4497 = vrot.lane.b32.xlu0 %v4394, 24
      %v4498 = vpop.permute.xlu0 %4497
      %4499 = vrot.lane.b32.xlu0 %v4395, 24
      %v4500 = vpop.permute.xlu0 %4499
      %4501 = vrot.lane.b32.xlu0 %v4396, 24
      %v4502 = vpop.permute.xlu0 %4501
      %4503 = vrot.lane.b32.xlu0 %v4397, 24
      %v4504 = vpop.permute.xlu0 %4503
      %4505 = vrot.lane.b32.xlu0 %v4398, 24
      %v4506 = vpop.permute.xlu0 %4505
      %v4508 = vshrl.u32 %v4398, 16
      %v4510 = vshll.u32 %v4398, 16
      %v4512 = vrot.slane %v4510, 1
      %v4513 = vor.u32 %v4508, %v4512
      %4514 = vrot.lane.b32.xlu0 %v4405, 32
      %v4515 = vpop.permute.xlu0 %4514
      %4516 = vrot.lane.b32.xlu0 %v4412, 32
      %v4517 = vpop.permute.xlu0 %4516
      %4518 = vrot.lane.b32.xlu0 %v4419, 32
      %v4519 = vpop.permute.xlu0 %4518
      %4520 = vrot.lane.b32.xlu0 %v4426, 32
      %v4521 = vpop.permute.xlu0 %4520
      %4522 = vrot.lane.b32.xlu0 %v4433, 32
      %v4523 = vpop.permute.xlu0 %4522
      %4524 = vrot.lane.b32.xlu0 %v4440, 32
      %v4525 = vpop.permute.xlu0 %4524
      %4526 = vrot.lane.b32.xlu0 %v4447, 32
      %v4527 = vpop.permute.xlu0 %4526
      %4528 = vrot.lane.b32.xlu0 %v4513, 32
      %v4529 = vpop.permute.xlu0 %4528
      %v4530 = vrot.slane %v4398, 1
      %4531 = vrot.lane.b32.xlu0 %v4469, 40
      %v4532 = vpop.permute.xlu0 %4531
      %4533 = vrot.lane.b32.xlu0 %v4470, 40
      %v4534 = vpop.permute.xlu0 %4533
      %4535 = vrot.lane.b32.xlu0 %v4471, 40
      %v4536 = vpop.permute.xlu0 %4535
      %4537 = vrot.lane.b32.xlu0 %v4472, 40
      %v4538 = vpop.permute.xlu0 %4537
      %4539 = vrot.lane.b32.xlu0 %v4473, 40
      %v4540 = vpop.permute.xlu0 %4539
      %4541 = vrot.lane.b32.xlu0 %v4474, 40
      %v4542 = vpop.permute.xlu0 %4541
      %4543 = vrot.lane.b32.xlu0 %v4475, 40
      %v4544 = vpop.permute.xlu0 %4543
      %4545 = vrot.lane.b32.xlu0 %v4530, 40
      %v4546 = vpop.permute.xlu0 %4545
      %4547 = vrot.lane.b32.xlu0 %v4392, 48
      %v4548 = vpop.permute.xlu0 %4547
      %4549 = vrot.lane.b32.xlu0 %v4393, 48
      %v4550 = vpop.permute.xlu0 %4549
      %4551 = vrot.lane.b32.xlu0 %v4394, 48
      %v4552 = vpop.permute.xlu0 %4551
      %4553 = vrot.lane.b32.xlu0 %v4395, 48
      %v4554 = vpop.permute.xlu0 %4553
      %4555 = vrot.lane.b32.xlu0 %v4396, 48
      %v4556 = vpop.permute.xlu0 %4555
      %4557 = vrot.lane.b32.xlu0 %v4397, 48
      %v4558 = vpop.permute.xlu0 %4557
      %4559 = vrot.lane.b32.xlu0 %v4398, 48
      %v4560 = vpop.permute.xlu0 %4559
      %4561 = vrot.lane.b32.xlu0 %v4412, 56
      %v4562 = vpop.permute.xlu0 %4561
      %4563 = vrot.lane.b32.xlu0 %v4419, 56
      %v4564 = vpop.permute.xlu0 %4563
      %4565 = vrot.lane.b32.xlu0 %v4426, 56
      %v4566 = vpop.permute.xlu0 %4565
      %4567 = vrot.lane.b32.xlu0 %v4433, 56
      %v4568 = vpop.permute.xlu0 %4567
      %4569 = vrot.lane.b32.xlu0 %v4440, 56
      %v4570 = vpop.permute.xlu0 %4569
      %4571 = vrot.lane.b32.xlu0 %v4447, 56
      %v4572 = vpop.permute.xlu0 %4571
      %4573 = vrot.lane.b32.xlu0 %v4513, 56
      %v4574 = vpop.permute.xlu0 %4573
      %4575 = vrot.lane.b32.xlu0 %v4470, 64
      %v4576 = vpop.permute.xlu0 %4575
      %4577 = vrot.lane.b32.xlu0 %v4471, 64
      %v4578 = vpop.permute.xlu0 %4577
      %4579 = vrot.lane.b32.xlu0 %v4472, 64
      %v4580 = vpop.permute.xlu0 %4579
      %4581 = vrot.lane.b32.xlu0 %v4473, 64
      %v4582 = vpop.permute.xlu0 %4581
      %4583 = vrot.lane.b32.xlu0 %v4474, 64
      %v4584 = vpop.permute.xlu0 %4583
      %4585 = vrot.lane.b32.xlu0 %v4475, 64
      %v4586 = vpop.permute.xlu0 %4585
      %4587 = vrot.lane.b32.xlu0 %v4530, 64
      %v4588 = vpop.permute.xlu0 %4587
      %v4590 = vsel %vm1495, %v4391, %v4449
      %v4592 = vsel %vm1495, %v4392, %v4451
      %v4594 = vsel %vm1495, %v4393, %v4453
      %v4596 = vsel %vm1495, %v4394, %v4455
      %v4598 = vsel %vm1495, %v4395, %v4457
      %v4600 = vsel %vm1495, %v4396, %v4459
      %v4602 = vsel %vm1495, %v4397, %v4461
      %v4604 = vsel %vm1561, %v4590, %v4477
      %v4606 = vsel %vm1561, %v4592, %v4479
      %v4608 = vsel %vm1561, %v4594, %v4481
      %v4610 = vsel %vm1561, %v4596, %v4483
      %v4612 = vsel %vm1561, %v4598, %v4485
      %v4614 = vsel %vm1561, %v4600, %v4487
      %v4616 = vsel %vm1561, %v4602, %v4489
      %v4618 = vsel %vm1627, %v2302, %v4492
      %v4620 = vsel %vm1627, %v4604, %v4494
      %v4622 = vsel %vm1627, %v4606, %v4496
      %v4624 = vsel %vm1627, %v4608, %v4498
      %v4626 = vsel %vm1627, %v4610, %v4500
      %v4628 = vsel %vm1627, %v4612, %v4502
      %v4630 = vsel %vm1627, %v4614, %v4504
      %v4632 = vsel %vm1627, %v4616, %v4506
      %v4634 = vsel %vm1693, %v4618, %v4515
      %v4636 = vsel %vm1693, %v4620, %v4517
      %v4638 = vsel %vm1693, %v4622, %v4519
      %v4640 = vsel %vm1693, %v4624, %v4521
      %v4642 = vsel %vm1693, %v4626, %v4523
      %v4644 = vsel %vm1693, %v4628, %v4525
      %v4646 = vsel %vm1693, %v4630, %v4527
      %v4648 = vsel %vm1693, %v4632, %v4529
      %v4650 = vsel %vm2349, %v4634, %v4532
      %v4652 = vsel %vm2349, %v4636, %v4534
      %v4654 = vsel %vm2349, %v4638, %v4536
      %v4656 = vsel %vm2349, %v4640, %v4538
      %v4658 = vsel %vm2349, %v4642, %v4540
      %v4660 = vsel %vm2349, %v4644, %v4542
      %v4662 = vsel %vm2349, %v4646, %v4544
      %v4664 = vsel %vm2349, %v4648, %v4546
      %v4666 = vsel %vm2366, %v4650, %v4548
      %v4668 = vsel %vm2366, %v4652, %v4550
      %v4670 = vsel %vm2366, %v4654, %v4552
      %v4672 = vsel %vm2366, %v4656, %v4554
      %v4674 = vsel %vm2366, %v4658, %v4556
      %v4676 = vsel %vm2366, %v4660, %v4558
      %v4678 = vsel %vm2366, %v4662, %v4560
      %v4679 = vsel %vm2366, %v4664, %v2252
      %v4681 = vsel %vm2383, %v4666, %v4562
      %v4683 = vsel %vm2383, %v4668, %v4564
      %v4685 = vsel %vm2383, %v4670, %v4566
      %v4687 = vsel %vm2383, %v4672, %v4568
      %v4689 = vsel %vm2383, %v4674, %v4570
      %v4691 = vsel %vm2383, %v4676, %v4572
      %v4693 = vsel %vm2383, %v4678, %v4574
      %v4694 = vsel %vm2383, %v4679, %v2268
      %v4696 = vsel %vm2400, %v4681, %v4576
      %v4698 = vsel %vm2400, %v4683, %v4578
      %v4700 = vsel %vm2400, %v4685, %v4580
      %v4702 = vsel %vm2400, %v4687, %v4582
      %v4704 = vsel %vm2400, %v4689, %v4584
      %v4706 = vsel %vm2400, %v4691, %v4586
      %v4708 = vsel %vm2400, %v4693, %v4588
      %v4709 = vsel %vm2400, %v4694, %v2284
      %v4712 = vunpack.c.l.b16 %v4317
      %v4713 = vunpack.c.l.b16 %v4318
      %v4714 = vpack.c.b16 %v4713, %v4712
      %v4723 = vunpack.c.l.b16 %v4696
      %v4724 = vunpack.c.l.b16 %v4698
      %v4725 = vunpack.c.l.b16 %v4700
      %v4726 = vunpack.c.l.b16 %v4702
      %v4727 = vunpack.c.l.b16 %v4704
      %v4728 = vunpack.c.l.b16 %v4706
      %v4729 = vunpack.c.l.b16 %v4708
      %v4730 = vunpack.c.l.b16 %v4709
      %v4731 = vpack.c.b16 %v4724, %v4723
      %v4732 = vpack.c.b16 %v4726, %v4725
      %v4733 = vpack.c.b16 %v4728, %v4727
      %v4734 = vpack.c.b16 %v4730, %v4729
      %v4740 = vsel %vm2400, %v4714, 0
      %4742 = vmatprep.subr.bf16.mxu0 0
      %4743 = vmatpush1.bf16.msra.mxu0 %v4731
      %4744 = vmatprep.subr.bf16.mxu0 0
      %4745 = vmatpush1.bf16.msra.mxu0 %v4732
      %4746 = vmatprep.subr.bf16.mxu0 0
      %4747 = vmatpush1.bf16.msra.mxu0 %v4733
      %4748 = vmatprep.subr.bf16.mxu0 0
      %4749 = vmatpush1.bf16.msra.mxu0 %v4734
      %4750 = vmatprep.subr.bf16.mxu0 0
      %4751 = vmatpush1.bf16.msra.mxu0 0
      %4752 = vmatprep.subr.bf16.mxu0 0
      %4753 = vmatpush1.bf16.msra.mxu0 0
      %4754 = vmatprep.subr.bf16.mxu0 0
      %4755 = vmatpush1.bf16.msra.mxu0 0
      %4756 = vmatprep.subr.bf16.mxu0 0
      %4757 = vmatpush1.bf16.msra.mxu0 0
      %4758 = vmatprep.subr.bf16.mxu0 0
      %4759 = vmatpush1.bf16.msra.mxu0 0
      %4760 = vmatprep.subr.bf16.mxu0 0
      %4761 = vmatpush1.bf16.msra.mxu0 0
      %4762 = vmatprep.subr.bf16.mxu0 0
      %4763 = vmatpush1.bf16.msra.mxu0 0
      %4764 = vmatprep.subr.bf16.mxu0 0
      %4765 = vmatpush1.bf16.msra.mxu0 0
      %4766 = vmatprep.subr.bf16.mxu0 0
      %4767 = vmatpush1.bf16.msra.mxu0 0
      %4768 = vmatprep.subr.bf16.mxu0 0
      %4769 = vmatpush1.bf16.msra.mxu0 0
      %4770 = vmatprep.subr.bf16.mxu0 0
      %4771 = vmatpush1.bf16.msra.mxu0 0
      %4772 = vmatprep.subr.bf16.mxu0 0
      %4773 = vmatpush1.bf16.msra.mxu0 0
      %4774 = vmatprep.mubr.bf16.mxu0 0
      %4775 = vmatmul.mubr.bf16.gmra.mrb[0].mxu0 %v4740
      %v4776 = vpop.f32.mrb[0].mxu0
      %v4777 = vadd.f32 0.0, %v4776
      %v4778 = vpop.f32.mrb[0].mxu0
      %v4779 = vpop.f32.mrb[0].mxu0
      %v4780 = vadd.f32 0.0, %v4779
      %v4781 = vpop.f32.mrb[0].mxu0
      %4782 = vdwg.mxu0
      %v4783 = vpack.c.bf16 %v4780, %v4777
      %v4793 = vunpack.c.l.b16 %v4308
      %v4794 = vunpack.c.l.b16 %v4309
      %v4795 = vunpack.c.l.b16 %v4310
      %v4796 = vunpack.c.l.b16 %v4311
      %v4797 = vunpack.c.l.b16 %v4312
      %v4798 = vunpack.c.l.b16 %v4313
      %v4799 = vunpack.c.l.b16 %v4314
      %v4800 = vunpack.c.l.b16 %v4315
      %v4801 = vunpack.c.l.b16 %v4316
      %v4802 = vpack.c.b16 %v4794, %v4793
      %v4803 = vpack.c.b16 %v4796, %v4795
      %v4804 = vpack.c.b16 %v4798, %v4797
      %v4805 = vpack.c.b16 %v4800, %v4799
      %v4806 = vpack.c.b16 %v4801, %v4801
      %v4812 = vsel %vm2470, %v4783, 0
      %v4815 = vsel %vm2483, %v4806, 0
      %4817 = vmatprep.subr.bf16.mxu0 0
      %4818 = vmatpush1.bf16.msra.mxu0 %v4802
      %4819 = vmatprep.subr.bf16.mxu0 0
      %4820 = vmatpush1.bf16.msra.mxu0 %v4803
      %4821 = vmatprep.subr.bf16.mxu0 0
      %4822 = vmatpush1.bf16.msra.mxu0 %v4804
      %4823 = vmatprep.subr.bf16.mxu0 0
      %4824 = vmatpush1.bf16.msra.mxu0 %v4805
      %4825 = vmatprep.subr.bf16.mxu0 0
      %4826 = vmatpush1.bf16.msra.mxu0 %v4815
      %4827 = vmatprep.subr.bf16.mxu0 0
      %4828 = vmatpush1.bf16.msra.mxu0 0
      %4829 = vmatprep.subr.bf16.mxu0 0
      %4830 = vmatpush1.bf16.msra.mxu0 0
      %4831 = vmatprep.subr.bf16.mxu0 0
      %4832 = vmatpush1.bf16.msra.mxu0 0
      %4833 = vmatprep.subr.bf16.mxu0 0
      %4834 = vmatpush1.bf16.msra.mxu0 0
      %4835 = vmatprep.subr.bf16.mxu0 0
      %4836 = vmatpush1.bf16.msra.mxu0 0
      %4837 = vmatprep.subr.bf16.mxu0 0
      %4838 = vmatpush1.bf16.msra.mxu0 0
      %4839 = vmatprep.subr.bf16.mxu0 0
      %4840 = vmatpush1.bf16.msra.mxu0 0
      %4841 = vmatprep.subr.bf16.mxu0 0
      %4842 = vmatpush1.bf16.msra.mxu0 0
      %4843 = vmatprep.subr.bf16.mxu0 0
      %4844 = vmatpush1.bf16.msra.mxu0 0
      %4845 = vmatprep.subr.bf16.mxu0 0
      %4846 = vmatpush1.bf16.msra.mxu0 0
      %4847 = vmatprep.subr.bf16.mxu0 0
      %4848 = vmatpush1.bf16.msra.mxu0 0
      %4849 = vmatprep.mubr.bf16.mxu0 0
      %4850 = vmatmul.mubr.bf16.gmra.mrb[0].mxu0 %v4812
      %v4851 = vpop.f32.mrb[0].mxu0
      %v4852 = vadd.f32 0.0, %v4851
      %v4853 = vpop.f32.mrb[0].mxu0
      %v4854 = vpop.f32.mrb[0].mxu0
      %v4855 = vadd.f32 0.0, %v4854
      %v4856 = vpop.f32.mrb[0].mxu0
      %4857 = vdwg.mxu0
      %v4858 = vpack.c.bf16 %v4855, %v4852
      %v4860 = vcombine.high %v4858, %v4858
      %v4862 = vunpack.c.l.s4 1983009808
      %v4863 = vunpack.c.0.s8 %v4862
      %v4864 = vlaneseq
      %v4865 = vshrl.u32 %v4864, 7
      %v4866 = vsub.s32 %v4863, %v4865
      %v4867 = vrot.slane %v4858, %v4866
      %v4869 = vunpack.c.l.s4 1983009808
      %v4870 = vunpack.c.0.s8 %v4869
      %v4871 = vlaneseq
      %v4872 = vshrl.u32 %v4871, 7
      %v4873 = vsub.s32 %v4870, %v4872
      %v4874 = vrot.slane %v4860, %v4873
      %v4875 = vcombine.high %v4867, %v4867
      %v4876 = vcombine.high %v4874, %v4874
      %v4877 = vld [vmem:[%s9] sm:$0xf]
      %v4878 = vld [vmem:[%s9 + $0x4] sm:$0xf]
      %v4879 = vld [vmem:[%s9 + $0x8] sm:$0xf]
      %v4880 = vld [vmem:[%s9 + $0xc] sm:$0xf]
      %v4881 = vld [vmem:[%s9 + $0x10] sm:$0xf]
      %v4882 = vld [vmem:[%s9 + $0x14] sm:$0xf]
      %v4883 = vld [vmem:[%s9 + $0x18] sm:$0xf]
      %v4884 = vld [vmem:[%s9 + $0x1c] sm:$0xf]
      %v4885 = vld [vmem:[%s9 + $0x20] sm:$0xf]
      %v4886 = vld [vmem:[%s9 + $0x24] sm:$0xf]
      %v4887 = vld [vmem:[%s9 + $0x28] sm:$0xf]
      %v4888 = vld [vmem:[%s9 + $0x2c] sm:$0xf]
      %v4889 = vld [vmem:[%s9 + $0x30] sm:$0xf]
      %v4890 = vld [vmem:[%s9 + $0x34] sm:$0xf]
      %v4891 = vld [vmem:[%s9 + $0x38] sm:$0xf]
      %v4892 = vld [vmem:[%s9 + $0x3c] sm:$0xf]
      %v4893 = vld [vmem:[%s9 + $0x40] sm:$0xf]
      %v4894 = vld [vmem:[%s9 + $0x44] sm:$0xf]
      %v4895 = vld [vmem:[%s10] sm:$0x1]
      %v4896 = vld [vmem:[%s11] sm:$0xf]
      %v4897 = vld [vmem:[%s11 + $0x4] sm:$0xf]
      %v4898 = vld [vmem:[%s11 + $0x8] sm:$0xf]
      %v4899 = vld [vmem:[%s11 + $0xc] sm:$0xf]
      %v4900 = vld [vmem:[%s11 + $0x10] sm:$0xf]
      %v4901 = vld [vmem:[%s11 + $0x14] sm:$0xf]
      %v4902 = vld [vmem:[%s11 + $0x18] sm:$0xf]
      %v4903 = vld [vmem:[%s11 + $0x1c] sm:$0xf]
      %v4904 = vld [vmem:[%s11 + $0x20] sm:$0xf]
      %v4905 = vld [vmem:[%s11 + $0x24] sm:$0xf]
      %v4906 = vld [vmem:[%s11 + $0x28] sm:$0xf]
      %v4907 = vld [vmem:[%s11 + $0x2c] sm:$0xf]
      %v4908 = vld [vmem:[%s11 + $0x30] sm:$0xf]
      %v4909 = vld [vmem:[%s11 + $0x34] sm:$0xf]
      %v4910 = vld [vmem:[%s11 + $0x38] sm:$0xf]
      %v4911 = vld [vmem:[%s11 + $0x3c] sm:$0xf]
      %v4912 = vld [vmem:[%s11 + $0x40] sm:$0xf]
      %v4913 = vld [vmem:[%s11 + $0x44] sm:$0xf]
      %v4914 = vld [vmem:[%s12] sm:$0x1]
      %v4916 = vshrl.u32 %v4867, 16
      %v4918 = vrot.slane %v4916, 7
      %v4919 = vshll.u32 %v4867, 16
      %v4921 = vor.u32 %v4918, %v4919
      %v4923 = vshrl.u32 %v4875, 16
      %v4925 = vrot.slane %v4923, 7
      %v4926 = vshll.u32 %v4875, 16
      %v4928 = vor.u32 %v4925, %v4926
      %v4930 = vshrl.u32 %v4874, 16
      %v4932 = vrot.slane %v4930, 7
      %v4933 = vshll.u32 %v4874, 16
      %v4935 = vor.u32 %v4932, %v4933
      %v4937 = vshrl.u32 %v4876, 16
      %v4939 = vrot.slane %v4937, 7
      %v4940 = vshll.u32 %v4876, 16
      %v4942 = vor.u32 %v4939, %v4940
      %v4947 = vsel %vm880, 0, %v4921
      %v4948 = vsel %vm880, 0, %v4928
      %v4949 = vsel %vm880, 0, %v4935
      %v4950 = vsel %vm880, 0, %v4942
      %vm4951 = vcmask 1042432
      %vm4952 = vsmask.f32 2304
      %vm4953 = vmand %vm4951, %vm4952
      %v4954 = vsel %vm4953, %v881, 0
      %v4955 = vsel %vm4953, %v4947, 0
      %v4956 = vsel %vm4953, %v4948, 0
      %v4957 = vsel %vm4953, %v4949, 0
      %v4958 = vsel %vm4953, %v4950, 0
      %v4960 = vshrl.u32 %v4954, 16
      %v4962 = vshll.u32 %v4954, 16
      %v4964 = vrot.slane %v4962, 1
      %v4965 = vor.u32 %v4960, %v4964
      %v4967 = vshrl.u32 %v4955, 16
      %v4969 = vshll.u32 %v4955, 16
      %v4971 = vrot.slane %v4969, 1
      %v4972 = vor.u32 %v4967, %v4971
      %v4974 = vshrl.u32 %v4956, 16
      %v4976 = vshll.u32 %v4956, 16
      %v4978 = vrot.slane %v4976, 1
      %v4979 = vor.u32 %v4974, %v4978
      %v4981 = vshrl.u32 %v4957, 16
      %v4983 = vshll.u32 %v4957, 16
      %v4985 = vrot.slane %v4983, 1
      %v4986 = vor.u32 %v4981, %v4985
      %4987 = vrot.lane.b32.xlu0 %v4965, 16
      %v4988 = vpop.permute.xlu0 %4987
      %4989 = vrot.lane.b32.xlu0 %v4972, 16
      %v4990 = vpop.permute.xlu0 %4989
      %4991 = vrot.lane.b32.xlu0 %v4979, 16
      %v4992 = vpop.permute.xlu0 %4991
      %4993 = vrot.lane.b32.xlu0 %v4986, 16
      %v4994 = vpop.permute.xlu0 %4993
      %v4999 = vrot.slane %v4954, 1
      %v5000 = vrot.slane %v4955, 1
      %v5001 = vrot.slane %v4956, 1
      %v5002 = vrot.slane %v4957, 1
      %5003 = vrot.lane.b32.xlu0 %v4999, 32
      %v5004 = vpop.permute.xlu0 %5003
      %5005 = vrot.lane.b32.xlu0 %v5000, 32
      %v5006 = vpop.permute.xlu0 %5005
      %5007 = vrot.lane.b32.xlu0 %v5001, 32
      %v5008 = vpop.permute.xlu0 %5007
      %5009 = vrot.lane.b32.xlu0 %v5002, 32
      %v5010 = vpop.permute.xlu0 %5009
      %5012 = vrot.lane.b32.xlu0 %v4955, 48
      %v5013 = vpop.permute.xlu0 %5012
      %5014 = vrot.lane.b32.xlu0 %v4956, 48
      %v5015 = vpop.permute.xlu0 %5014
      %5016 = vrot.lane.b32.xlu0 %v4957, 48
      %v5017 = vpop.permute.xlu0 %5016
      %5018 = vrot.lane.b32.xlu0 %v4958, 48
      %v5019 = vpop.permute.xlu0 %5018
      %v5021 = vshrl.u32 %v4958, 16
      %v5023 = vshll.u32 %v4958, 16
      %v5025 = vrot.slane %v5023, 1
      %v5026 = vor.u32 %v5021, %v5025
      %5027 = vrot.lane.b32.xlu0 %v4972, 64
      %v5028 = vpop.permute.xlu0 %5027
      %5029 = vrot.lane.b32.xlu0 %v4979, 64
      %v5030 = vpop.permute.xlu0 %5029
      %5031 = vrot.lane.b32.xlu0 %v4986, 64
      %v5032 = vpop.permute.xlu0 %5031
      %5033 = vrot.lane.b32.xlu0 %v5026, 64
      %v5034 = vpop.permute.xlu0 %5033
      %v5035 = vrot.slane %v4958, 1
      %5036 = vrot.lane.b32.xlu0 %v5000, 80
      %v5037 = vpop.permute.xlu0 %5036
      %5038 = vrot.lane.b32.xlu0 %v5001, 80
      %v5039 = vpop.permute.xlu0 %5038
      %5040 = vrot.lane.b32.xlu0 %v5002, 80
      %v5041 = vpop.permute.xlu0 %5040
      %5042 = vrot.lane.b32.xlu0 %v5035, 80
      %v5043 = vpop.permute.xlu0 %5042
      %5044 = vrot.lane.b32.xlu0 %v4956, 96
      %v5045 = vpop.permute.xlu0 %5044
      %5046 = vrot.lane.b32.xlu0 %v4957, 96
      %v5047 = vpop.permute.xlu0 %5046
      %5048 = vrot.lane.b32.xlu0 %v4958, 96
      %v5049 = vpop.permute.xlu0 %5048
      %5050 = vrot.lane.b32.xlu0 %v4954, 96
      %v5051 = vpop.permute.xlu0 %5050
      %5052 = vrot.lane.b32.xlu0 %v4979, 112
      %v5053 = vpop.permute.xlu0 %5052
      %5054 = vrot.lane.b32.xlu0 %v4986, 112
      %v5055 = vpop.permute.xlu0 %5054
      %5056 = vrot.lane.b32.xlu0 %v5026, 112
      %v5057 = vpop.permute.xlu0 %5056
      %5058 = vrot.lane.b32.xlu0 %v4965, 112
      %v5059 = vpop.permute.xlu0 %5058
      %v5061 = vsel %vm1561, %v4954, %v4988
      %v5063 = vsel %vm1561, %v4955, %v4990
      %v5065 = vsel %vm1561, %v4956, %v4992
      %v5067 = vsel %vm1561, %v4957, %v4994
      %v5069 = vsel %vm1693, %v5061, %v5004
      %v5071 = vsel %vm1693, %v5063, %v5006
      %v5073 = vsel %vm1693, %v5065, %v5008
      %v5075 = vsel %vm1693, %v5067, %v5010
      %v5077 = vsel %vm2366, %v5069, %v5013
      %v5079 = vsel %vm2366, %v5071, %v5015
      %v5081 = vsel %vm2366, %v5073, %v5017
      %v5083 = vsel %vm2366, %v5075, %v5019
      %v5085 = vsel %vm2400, %v5077, %v5028
      %v5087 = vsel %vm2400, %v5079, %v5030
      %v5089 = vsel %vm2400, %v5081, %v5032
      %v5091 = vsel %vm2400, %v5083, %v5034
      %vm5092 = vcmask 654336
      %v5094 = vsel %vm5092, %v5085, %v5037
      %v5096 = vsel %vm5092, %v5087, %v5039
      %v5098 = vsel %vm5092, %v5089, %v5041
      %v5100 = vsel %vm5092, %v5091, %v5043
      %vm5101 = vcmask 785408
      %v5103 = vsel %vm5101, %v5094, %v5045
      %v5105 = vsel %vm5101, %v5096, %v5047
      %v5107 = vsel %vm5101, %v5098, %v5049
      %v5109 = vsel %vm5101, %v5100, %v5051
      %vm5110 = vcmask 916480
      %v5112 = vsel %vm5110, %v5103, %v5053
      %v5114 = vsel %vm5110, %v5105, %v5055
      %v5116 = vsel %vm5110, %v5107, %v5057
      %v5118 = vsel %vm5110, %v5109, %v5059
      %v5123 = vcombine.low %v5112, %v5001
      %v5125 = vunpack.c.l.s4 1983009808
      %v5126 = vunpack.c.0.s8 %v5125
      %v5127 = vlaneseq
      %v5128 = vshrl.u32 %v5127, 7
      %v5129 = vsub.s32 %v5126, %v5128
      %v5130 = vrot.slane %v5123, %v5129
      %v5131 = vcombine.low %v5114, %v5002
      %v5133 = vunpack.c.l.s4 1983009808
      %v5134 = vunpack.c.0.s8 %v5133
      %v5135 = vlaneseq
      %v5136 = vshrl.u32 %v5135, 7
      %v5137 = vsub.s32 %v5134, %v5136
      %v5138 = vrot.slane %v5131, %v5137
      %v5139 = vcombine.low %v5116, %v5035
      %v5141 = vunpack.c.l.s4 1983009808
      %v5142 = vunpack.c.0.s8 %v5141
      %v5143 = vlaneseq
      %v5144 = vshrl.u32 %v5143, 7
      %v5145 = vsub.s32 %v5142, %v5144
      %v5146 = vrot.slane %v5139, %v5145
      %v5147 = vcombine.low %v5118, %v4999
      %v5149 = vunpack.c.l.s4 1983009808
      %v5150 = vunpack.c.0.s8 %v5149
      %v5151 = vlaneseq
      %v5152 = vshrl.u32 %v5151, 7
      %v5153 = vsub.s32 %v5150, %v5152
      %v5154 = vrot.slane %v5147, %v5153
      %v5156 = vlaneseq
      %v5157 = vshrl.u32 %v5156, 7
      %v5158 = vsub.s32 0, %v5157
      %v5159 = vrot.slane %v4895, %v5158
      %v5161 = vcombine.low %v5130, %v5138
      %v5162 = vcombine.low %v5146, %v5154
      %v5164 = vunpack.c.l.s4 1983009808
      %v5165 = vunpack.c.0.s8 %v5164
      %v5166 = vlaneseq
      %v5167 = vshrl.u32 %v5166, 7
      %v5168 = vsub.s32 %v5165, %v5167
      %v5169 = vrot.slane %v5161, %v5168
      %v5171 = vunpack.c.l.s4 1983009808
      %v5172 = vunpack.c.0.s8 %v5171
      %v5173 = vlaneseq
      %v5174 = vshrl.u32 %v5173, 7
      %v5175 = vsub.s32 %v5172, %v5174
      %v5176 = vrot.slane %v5162, %v5175
      %v5177 = vcombine.low %v5169, %v5176
      %v5178 = vcombine.high %v5169, %v5176
      %v5198 = vunpack.c.l.b16 %v4877
      %v5199 = vunpack.c.l.b16 %v4878
      %v5200 = vunpack.c.l.b16 %v4879
      %v5201 = vunpack.c.l.b16 %v4880
      %v5202 = vunpack.c.l.b16 %v4881
      %v5203 = vunpack.c.l.b16 %v4882
      %v5204 = vunpack.c.l.b16 %v4883
      %v5205 = vunpack.c.l.b16 %v4884
      %v5206 = vunpack.c.l.b16 %v4885
      %v5207 = vunpack.c.l.b16 %v4886
      %v5208 = vunpack.c.l.b16 %v4887
      %v5209 = vunpack.c.l.b16 %v4888
      %v5210 = vunpack.c.l.b16 %v4889
      %v5211 = vunpack.c.l.b16 %v4890
      %v5212 = vunpack.c.l.b16 %v4891
      %v5213 = vunpack.c.l.b16 %v4892
      %v5214 = vunpack.c.l.b16 %v4893
      %v5215 = vunpack.c.l.b16 %v4894
      %v5216 = vpack.c.b16 %v5199, %v5198
      %v5217 = vpack.c.b16 %v5201, %v5200
      %v5218 = vpack.c.b16 %v5203, %v5202
      %v5219 = vpack.c.b16 %v5205, %v5204
      %v5220 = vpack.c.b16 %v5207, %v5206
      %v5221 = vpack.c.b16 %v5209, %v5208
      %v5222 = vpack.c.b16 %v5211, %v5210
      %v5223 = vpack.c.b16 %v5213, %v5212
      %v5224 = vpack.c.b16 %v5215, %v5214
      %v5235 = vsel %vm1561, %v5178, 0
      %5237 = vmatprep.subr.bf16.mxu0 0
      %5238 = vmatpush1.bf16.msra.mxu0 %v5216
      %5239 = vmatprep.subr.bf16.mxu0 0
      %5240 = vmatpush1.bf16.msra.mxu0 %v5217
      %5241 = vmatprep.subr.bf16.mxu0 0
      %5242 = vmatpush1.bf16.msra.mxu0 %v5218
      %5243 = vmatprep.subr.bf16.mxu0 0
      %5244 = vmatpush1.bf16.msra.mxu0 %v5219
      %5245 = vmatprep.subr.bf16.mxu0 0
      %5246 = vmatpush1.bf16.msra.mxu0 %v5220
      %5247 = vmatprep.subr.bf16.mxu0 0
      %5248 = vmatpush1.bf16.msra.mxu0 %v5221
      %5249 = vmatprep.subr.bf16.mxu0 0
      %5250 = vmatpush1.bf16.msra.mxu0 %v5222
      %5251 = vmatprep.subr.bf16.mxu0 0
      %5252 = vmatpush1.bf16.msra.mxu0 %v5223
      %5253 = vmatprep.subr.bf16.mxu0 0
      %5254 = vmatpush1.bf16.msra.mxu0 %v5224
      %5255 = vmatprep.subr.bf16.mxu0 0
      %5256 = vmatpush1.bf16.msra.mxu0 0
      %5257 = vmatprep.subr.bf16.mxu0 0
      %5258 = vmatpush1.bf16.msra.mxu0 0
      %5259 = vmatprep.subr.bf16.mxu0 0
      %5260 = vmatpush1.bf16.msra.mxu0 0
      %5261 = vmatprep.subr.bf16.mxu0 0
      %5262 = vmatpush1.bf16.msra.mxu0 0
      %5263 = vmatprep.subr.bf16.mxu0 0
      %5264 = vmatpush1.bf16.msra.mxu0 0
      %5265 = vmatprep.subr.bf16.mxu0 0
      %5266 = vmatpush1.bf16.msra.mxu0 0
      %5267 = vmatprep.subr.bf16.mxu0 0
      %5268 = vmatpush1.bf16.msra.mxu0 0
      %5269 = vmatprep.mubr.bf16.mxu0 %v5235
      %5270 = vmatmul.mubr.bf16.gmra.mrb[0].mxu0 %v5177
      %v5271 = vpop.f32.mrb[0].mxu0
      %v5272 = vadd.f32 %v5159, %v5271
      %v5273 = vpop.f32.mrb[0].mxu0
      %v5274 = vpop.f32.mrb[0].mxu0
      %v5275 = vadd.f32 %v5159, %v5274
      %v5276 = vpop.f32.mrb[0].mxu0
      %5277 = vdwg.mxu0
      %v5278 = vmax.f32 %v5272, 0.0
      %v5279 = vmax.f32 %v5275, 0.0
      %v5280 = vpack.c.bf16 %v5279, %v5278
      %v5282 = vcombine.high %v5280, %v5280
      %v5284 = vunpack.c.l.s4 1983009808
      %v5285 = vunpack.c.0.s8 %v5284
      %v5286 = vlaneseq
      %v5287 = vshrl.u32 %v5286, 7
      %v5288 = vsub.s32 %v5285, %v5287
      %v5289 = vrot.slane %v5280, %v5288
      %v5291 = vunpack.c.l.s4 1983009808
      %v5292 = vunpack.c.0.s8 %v5291
      %v5293 = vlaneseq
      %v5294 = vshrl.u32 %v5293, 7
      %v5295 = vsub.s32 %v5292, %v5294
      %v5296 = vrot.slane %v5282, %v5295
      %v5297 = vcombine.high %v5289, %v5289
      %v5298 = vcombine.high %v5296, %v5296
      %v5300 = vshrl.u32 %v5289, 16
      %v5302 = vrot.slane %v5300, 7
      %v5303 = vshll.u32 %v5289, 16
      %v5305 = vor.u32 %v5302, %v5303
      %v5307 = vshrl.u32 %v5297, 16
      %v5309 = vrot.slane %v5307, 7
      %v5310 = vshll.u32 %v5297, 16
      %v5312 = vor.u32 %v5309, %v5310
      %v5314 = vshrl.u32 %v5296, 16
      %v5316 = vrot.slane %v5314, 7
      %v5317 = vshll.u32 %v5296, 16
      %v5319 = vor.u32 %v5316, %v5317
      %v5321 = vshrl.u32 %v5298, 16
      %v5323 = vrot.slane %v5321, 7
      %v5324 = vshll.u32 %v5298, 16
      %v5326 = vor.u32 %v5323, %v5324
      %v5331 = vsel %vm880, 0, %v5305
      %v5332 = vsel %vm880, 0, %v5312
      %v5333 = vsel %vm880, 0, %v5319
      %v5334 = vsel %vm880, 0, %v5326
      %v5335 = vsel %vm4953, %v5331, 0
      %v5336 = vsel %vm4953, %v5332, 0
      %v5337 = vsel %vm4953, %v5333, 0
      %v5338 = vsel %vm4953, %v5334, 0
      %v5340 = vshrl.u32 %v5335, 16
      %v5342 = vshll.u32 %v5335, 16
      %v5344 = vrot.slane %v5342, 1
      %v5345 = vor.u32 %v5340, %v5344
      %v5347 = vshrl.u32 %v5336, 16
      %v5349 = vshll.u32 %v5336, 16
      %v5351 = vrot.slane %v5349, 1
      %v5352 = vor.u32 %v5347, %v5351
      %v5354 = vshrl.u32 %v5337, 16
      %v5356 = vshll.u32 %v5337, 16
      %v5358 = vrot.slane %v5356, 1
      %v5359 = vor.u32 %v5354, %v5358
      %5360 = vrot.lane.b32.xlu0 %v5345, 16
      %v5361 = vpop.permute.xlu0 %5360
      %5362 = vrot.lane.b32.xlu0 %v5352, 16
      %v5363 = vpop.permute.xlu0 %5362
      %5364 = vrot.lane.b32.xlu0 %v5359, 16
      %v5365 = vpop.permute.xlu0 %5364
      %v5369 = vrot.slane %v5335, 1
      %v5370 = vrot.slane %v5336, 1
      %v5371 = vrot.slane %v5337, 1
      %5372 = vrot.lane.b32.xlu0 %v5369, 32
      %v5373 = vpop.permute.xlu0 %5372
      %5374 = vrot.lane.b32.xlu0 %v5370, 32
      %v5375 = vpop.permute.xlu0 %5374
      %5376 = vrot.lane.b32.xlu0 %v5371, 32
      %v5377 = vpop.permute.xlu0 %5376
      %5379 = vrot.lane.b32.xlu0 %v5335, 48
      %v5380 = vpop.permute.xlu0 %5379
      %5381 = vrot.lane.b32.xlu0 %v5336, 48
      %v5382 = vpop.permute.xlu0 %5381
      %5383 = vrot.lane.b32.xlu0 %v5337, 48
      %v5384 = vpop.permute.xlu0 %5383
      %5385 = vrot.lane.b32.xlu0 %v5338, 48
      %v5386 = vpop.permute.xlu0 %5385
      %v5388 = vshrl.u32 %v5338, 16
      %v5390 = vshll.u32 %v5338, 16
      %v5392 = vrot.slane %v5390, 1
      %v5393 = vor.u32 %v5388, %v5392
      %5394 = vrot.lane.b32.xlu0 %v5345, 64
      %v5395 = vpop.permute.xlu0 %5394
      %5396 = vrot.lane.b32.xlu0 %v5352, 64
      %v5397 = vpop.permute.xlu0 %5396
      %5398 = vrot.lane.b32.xlu0 %v5359, 64
      %v5399 = vpop.permute.xlu0 %5398
      %5400 = vrot.lane.b32.xlu0 %v5393, 64
      %v5401 = vpop.permute.xlu0 %5400
      %v5402 = vrot.slane %v5338, 1
      %5403 = vrot.lane.b32.xlu0 %v5369, 80
      %v5404 = vpop.permute.xlu0 %5403
      %5405 = vrot.lane.b32.xlu0 %v5370, 80
      %v5406 = vpop.permute.xlu0 %5405
      %5407 = vrot.lane.b32.xlu0 %v5371, 80
      %v5408 = vpop.permute.xlu0 %5407
      %5409 = vrot.lane.b32.xlu0 %v5402, 80
      %v5410 = vpop.permute.xlu0 %5409
      %5411 = vrot.lane.b32.xlu0 %v5336, 96
      %v5412 = vpop.permute.xlu0 %5411
      %5413 = vrot.lane.b32.xlu0 %v5337, 96
      %v5414 = vpop.permute.xlu0 %5413
      %5415 = vrot.lane.b32.xlu0 %v5338, 96
      %v5416 = vpop.permute.xlu0 %5415
      %5417 = vrot.lane.b32.xlu0 %v5352, 112
      %v5418 = vpop.permute.xlu0 %5417
      %5419 = vrot.lane.b32.xlu0 %v5359, 112
      %v5420 = vpop.permute.xlu0 %5419
      %5421 = vrot.lane.b32.xlu0 %v5393, 112
      %v5422 = vpop.permute.xlu0 %5421
      %v5424 = vsel %vm1561, %v5335, %v5361
      %v5426 = vsel %vm1561, %v5336, %v5363
      %v5428 = vsel %vm1561, %v5337, %v5365
      %v5430 = vsel %vm1693, %v5424, %v5373
      %v5432 = vsel %vm1693, %v5426, %v5375
      %v5434 = vsel %vm1693, %v5428, %v5377
      %v5436 = vsel %vm2366, %v5069, %v5380
      %v5438 = vsel %vm2366, %v5430, %v5382
      %v5440 = vsel %vm2366, %v5432, %v5384
      %v5442 = vsel %vm2366, %v5434, %v5386
      %v5444 = vsel %vm2400, %v5436, %v5395
      %v5446 = vsel %vm2400, %v5438, %v5397
      %v5448 = vsel %vm2400, %v5440, %v5399
      %v5450 = vsel %vm2400, %v5442, %v5401
      %v5452 = vsel %vm5092, %v5444, %v5404
      %v5454 = vsel %vm5092, %v5446, %v5406
      %v5456 = vsel %vm5092, %v5448, %v5408
      %v5458 = vsel %vm5092, %v5450, %v5410
      %v5460 = vsel %vm5101, %v5452, %v5412
      %v5462 = vsel %vm5101, %v5454, %v5414
      %v5464 = vsel %vm5101, %v5456, %v5416
      %v5465 = vsel %vm5101, %v5458, %v5051
      %v5467 = vsel %vm5110, %v5460, %v5418
      %v5469 = vsel %vm5110, %v5462, %v5420
      %v5471 = vsel %vm5110, %v5464, %v5422
      %v5472 = vsel %vm5110, %v5465, %v5059
      %v5477 = vcombine.low %v5467, %v5370
      %v5479 = vunpack.c.l.s4 1983009808
      %v5480 = vunpack.c.0.s8 %v5479
      %v5481 = vlaneseq
      %v5482 = vshrl.u32 %v5481, 7
      %v5483 = vsub.s32 %v5480, %v5482
      %v5484 = vrot.slane %v5477, %v5483
      %v5485 = vcombine.low %v5469, %v5371
      %v5487 = vunpack.c.l.s4 1983009808
      %v5488 = vunpack.c.0.s8 %v5487
      %v5489 = vlaneseq
      %v5490 = vshrl.u32 %v5489, 7
      %v5491 = vsub.s32 %v5488, %v5490
      %v5492 = vrot.slane %v5485, %v5491
      %v5493 = vcombine.low %v5471, %v5402
      %v5495 = vunpack.c.l.s4 1983009808
      %v5496 = vunpack.c.0.s8 %v5495
      %v5497 = vlaneseq
      %v5498 = vshrl.u32 %v5497, 7
      %v5499 = vsub.s32 %v5496, %v5498
      %v5500 = vrot.slane %v5493, %v5499
      %v5501 = vcombine.low %v5472, %v4999
      %v5503 = vunpack.c.l.s4 1983009808
      %v5504 = vunpack.c.0.s8 %v5503
      %v5505 = vlaneseq
      %v5506 = vshrl.u32 %v5505, 7
      %v5507 = vsub.s32 %v5504, %v5506
      %v5508 = vrot.slane %v5501, %v5507
      %v5510 = vlaneseq
      %v5511 = vshrl.u32 %v5510, 7
      %v5512 = vsub.s32 0, %v5511
      %v5513 = vrot.slane %v4914, %v5512
      %v5515 = vcombine.low %v5484, %v5492
      %v5516 = vcombine.low %v5500, %v5508
      %v5518 = vunpack.c.l.s4 1983009808
      %v5519 = vunpack.c.0.s8 %v5518
      %v5520 = vlaneseq
      %v5521 = vshrl.u32 %v5520, 7
      %v5522 = vsub.s32 %v5519, %v5521
      %v5523 = vrot.slane %v5515, %v5522
      %v5525 = vunpack.c.l.s4 1983009808
      %v5526 = vunpack.c.0.s8 %v5525
      %v5527 = vlaneseq
      %v5528 = vshrl.u32 %v5527, 7
      %v5529 = vsub.s32 %v5526, %v5528
      %v5530 = vrot.slane %v5516, %v5529
      %v5531 = vcombine.low %v5523, %v5530
      %v5532 = vcombine.high %v5523, %v5530
      %v5552 = vunpack.c.l.b16 %v4896
      %v5553 = vunpack.c.l.b16 %v4897
      %v5554 = vunpack.c.l.b16 %v4898
      %v5555 = vunpack.c.l.b16 %v4899
      %v5556 = vunpack.c.l.b16 %v4900
      %v5557 = vunpack.c.l.b16 %v4901
      %v5558 = vunpack.c.l.b16 %v4902
      %v5559 = vunpack.c.l.b16 %v4903
      %v5560 = vunpack.c.l.b16 %v4904
      %v5561 = vunpack.c.l.b16 %v4905
      %v5562 = vunpack.c.l.b16 %v4906
      %v5563 = vunpack.c.l.b16 %v4907
      %v5564 = vunpack.c.l.b16 %v4908
      %v5565 = vunpack.c.l.b16 %v4909
      %v5566 = vunpack.c.l.b16 %v4910
      %v5567 = vunpack.c.l.b16 %v4911
      %v5568 = vunpack.c.l.b16 %v4912
      %v5569 = vunpack.c.l.b16 %v4913
      %v5570 = vpack.c.b16 %v5553, %v5552
      %v5571 = vpack.c.b16 %v5555, %v5554
      %v5572 = vpack.c.b16 %v5557, %v5556
      %v5573 = vpack.c.b16 %v5559, %v5558
      %v5574 = vpack.c.b16 %v5561, %v5560
      %v5575 = vpack.c.b16 %v5563, %v5562
      %v5576 = vpack.c.b16 %v5565, %v5564
      %v5577 = vpack.c.b16 %v5567, %v5566
      %v5578 = vpack.c.b16 %v5569, %v5568
      %v5589 = vsel %vm1561, %v5532, 0
      %5591 = vmatprep.subr.bf16.mxu0 0
      %5592 = vmatpush1.bf16.msra.mxu0 %v5570
      %5593 = vmatprep.subr.bf16.mxu0 0
      %5594 = vmatpush1.bf16.msra.mxu0 %v5571
      %5595 = vmatprep.subr.bf16.mxu0 0
      %5596 = vmatpush1.bf16.msra.mxu0 %v5572
      %5597 = vmatprep.subr.bf16.mxu0 0
      %5598 = vmatpush1.bf16.msra.mxu0 %v5573
      %5599 = vmatprep.subr.bf16.mxu0 0
      %5600 = vmatpush1.bf16.msra.mxu0 %v5574
      %5601 = vmatprep.subr.bf16.mxu0 0
      %5602 = vmatpush1.bf16.msra.mxu0 %v5575
      %5603 = vmatprep.subr.bf16.mxu0 0
      %5604 = vmatpush1.bf16.msra.mxu0 %v5576
      %5605 = vmatprep.subr.bf16.mxu0 0
      %5606 = vmatpush1.bf16.msra.mxu0 %v5577
      %5607 = vmatprep.subr.bf16.mxu0 0
      %5608 = vmatpush1.bf16.msra.mxu0 %v5578
      %5609 = vmatprep.subr.bf16.mxu0 0
      %5610 = vmatpush1.bf16.msra.mxu0 0
      %5611 = vmatprep.subr.bf16.mxu0 0
      %5612 = vmatpush1.bf16.msra.mxu0 0
      %5613 = vmatprep.subr.bf16.mxu0 0
      %5614 = vmatpush1.bf16.msra.mxu0 0
      %5615 = vmatprep.subr.bf16.mxu0 0
      %5616 = vmatpush1.bf16.msra.mxu0 0
      %5617 = vmatprep.subr.bf16.mxu0 0
      %5618 = vmatpush1.bf16.msra.mxu0 0
      %5619 = vmatprep.subr.bf16.mxu0 0
      %5620 = vmatpush1.bf16.msra.mxu0 0
      %5621 = vmatprep.subr.bf16.mxu0 0
      %5622 = vmatpush1.bf16.msra.mxu0 0
      %5623 = vmatprep.mubr.bf16.mxu0 %v5589
      %5624 = vmatmul.mubr.bf16.gmra.mrb[0].mxu0 %v5531
      %v5625 = vpop.f32.mrb[0].mxu0
      %v5626 = vadd.f32 %v5513, %v5625
      %v5627 = vpop.f32.mrb[0].mxu0
      %v5628 = vpop.f32.mrb[0].mxu0
      %v5629 = vadd.f32 %v5513, %v5628
      %v5630 = vpop.f32.mrb[0].mxu0
      %5631 = vdwg.mxu0
      %v5632 = vunpack.c.l.bf16 %v4858
      %v5633 = vunpack.c.h.bf16 %v4858
      %v5634 = vadd.f32 %v5626, %v5632
      %v5635 = vadd.f32 %v5629, %v5633
      %v5636 = vmax.f32 %v5634, 0.0
      %v5637 = vmax.f32 %v5635, 0.0
      %v5638 = vpack.c.bf16 %v5637, %v5636
      %v5640 = vcombine.high %v5638, %v5638
      %v5642 = vunpack.c.l.s4 1983009808
      %v5643 = vunpack.c.0.s8 %v5642
      %v5644 = vlaneseq
      %v5645 = vshrl.u32 %v5644, 7
      %v5646 = vsub.s32 %v5643, %v5645
      %v5647 = vrot.slane %v5638, %v5646
      %v5649 = vunpack.c.l.s4 1983009808
      %v5650 = vunpack.c.0.s8 %v5649
      %v5651 = vlaneseq
      %v5652 = vshrl.u32 %v5651, 7
      %v5653 = vsub.s32 %v5650, %v5652
      %v5654 = vrot.slane %v5640, %v5653
      %v5655 = vcombine.high %v5647, %v5647
      %v5656 = vcombine.high %v5654, %v5654
      %s5657 = scalar_lea.vmem %s9, 72
      %v5658 = vld [vmem:[%s5657] sm:$0xf]
      %v5659 = vld [vmem:[%s5657 + $0x4] sm:$0xf]
      %v5660 = vld [vmem:[%s5657 + $0x8] sm:$0xf]
      %v5661 = vld [vmem:[%s5657 + $0xc] sm:$0xf]
      %v5662 = vld [vmem:[%s5657 + $0x10] sm:$0xf]
      %v5663 = vld [vmem:[%s5657 + $0x14] sm:$0xf]
      %v5664 = vld [vmem:[%s5657 + $0x18] sm:$0xf]
      %v5665 = vld [vmem:[%s5657 + $0x1c] sm:$0xf]
      %v5666 = vld [vmem:[%s5657 + $0x20] sm:$0xf]
      %v5667 = vld [vmem:[%s5657 + $0x24] sm:$0xf]
      %v5668 = vld [vmem:[%s5657 + $0x28] sm:$0xf]
      %v5669 = vld [vmem:[%s5657 + $0x2c] sm:$0xf]
      %v5670 = vld [vmem:[%s5657 + $0x30] sm:$0xf]
      %v5671 = vld [vmem:[%s5657 + $0x34] sm:$0xf]
      %v5672 = vld [vmem:[%s5657 + $0x38] sm:$0xf]
      %v5673 = vld [vmem:[%s5657 + $0x3c] sm:$0xf]
      %v5674 = vld [vmem:[%s5657 + $0x40] sm:$0xf]
      %v5675 = vld [vmem:[%s5657 + $0x44] sm:$0xf]
      %s5676 = scalar_lea.vmem %s10, 1
      %v5677 = vld [vmem:[%s5676] sm:$0x1]
      %s5678 = scalar_lea.vmem %s11, 72
      %v5679 = vld [vmem:[%s5678] sm:$0xf]
      %v5680 = vld [vmem:[%s5678 + $0x4] sm:$0xf]
      %v5681 = vld [vmem:[%s5678 + $0x8] sm:$0xf]
      %v5682 = vld [vmem:[%s5678 + $0xc] sm:$0xf]
      %v5683 = vld [vmem:[%s5678 + $0x10] sm:$0xf]
      %v5684 = vld [vmem:[%s5678 + $0x14] sm:$0xf]
      %v5685 = vld [vmem:[%s5678 + $0x18] sm:$0xf]
      %v5686 = vld [vmem:[%s5678 + $0x1c] sm:$0xf]
      %v5687 = vld [vmem:[%s5678 + $0x20] sm:$0xf]
      %v5688 = vld [vmem:[%s5678 + $0x24] sm:$0xf]
      %v5689 = vld [vmem:[%s5678 + $0x28] sm:$0xf]
      %v5690 = vld [vmem:[%s5678 + $0x2c] sm:$0xf]
      %v5691 = vld [vmem:[%s5678 + $0x30] sm:$0xf]
      %v5692 = vld [vmem:[%s5678 + $0x34] sm:$0xf]
      %v5693 = vld [vmem:[%s5678 + $0x38] sm:$0xf]
      %v5694 = vld [vmem:[%s5678 + $0x3c] sm:$0xf]
      %v5695 = vld [vmem:[%s5678 + $0x40] sm:$0xf]
      %v5696 = vld [vmem:[%s5678 + $0x44] sm:$0xf]
      %s5697 = scalar_lea.vmem %s12, 1
      %v5698 = vld [vmem:[%s5697] sm:$0x1]
      %v5700 = vshrl.u32 %v5647, 16
      %v5702 = vrot.slane %v5700, 7
      %v5703 = vshll.u32 %v5647, 16
      %v5705 = vor.u32 %v5702, %v5703
      %v5707 = vshrl.u32 %v5655, 16
      %v5709 = vrot.slane %v5707, 7
      %v5710 = vshll.u32 %v5655, 16
      %v5712 = vor.u32 %v5709, %v5710
      %v5714 = vshrl.u32 %v5654, 16
      %v5716 = vrot.slane %v5714, 7
      %v5717 = vshll.u32 %v5654, 16
      %v5719 = vor.u32 %v5716, %v5717
      %v5721 = vshrl.u32 %v5656, 16
      %v5723 = vrot.slane %v5721, 7
      %v5724 = vshll.u32 %v5656, 16
      %v5726 = vor.u32 %v5723, %v5724
      %v5731 = vsel %vm880, 0, %v5705
      %v5732 = vsel %vm880, 0, %v5712
      %v5733 = vsel %vm880, 0, %v5719
      %v5734 = vsel %vm880, 0, %v5726
      %v5735 = vsel %vm4953, %v5731, 0
      %v5736 = vsel %vm4953, %v5732, 0
      %v5737 = vsel %vm4953, %v5733, 0
      %v5738 = vsel %vm4953, %v5734, 0
      %v5740 = vshrl.u32 %v5735, 16
      %v5742 = vshll.u32 %v5735, 16
      %v5744 = vrot.slane %v5742, 1
      %v5745 = vor.u32 %v5740, %v5744
      %v5747 = vshrl.u32 %v5736, 16
      %v5749 = vshll.u32 %v5736, 16
      %v5751 = vrot.slane %v5749, 1
      %v5752 = vor.u32 %v5747, %v5751
      %v5754 = vshrl.u32 %v5737, 16
      %v5756 = vshll.u32 %v5737, 16
      %v5758 = vrot.slane %v5756, 1
      %v5759 = vor.u32 %v5754, %v5758
      %5760 = vrot.lane.b32.xlu0 %v5745, 16
      %v5761 = vpop.permute.xlu0 %5760
      %5762 = vrot.lane.b32.xlu0 %v5752, 16
      %v5763 = vpop.permute.xlu0 %5762
      %5764 = vrot.lane.b32.xlu0 %v5759, 16
      %v5765 = vpop.permute.xlu0 %5764
      %v5769 = vrot.slane %v5735, 1
      %v5770 = vrot.slane %v5736, 1
      %v5771 = vrot.slane %v5737, 1
      %5772 = vrot.lane.b32.xlu0 %v5769, 32
      %v5773 = vpop.permute.xlu0 %5772
      %5774 = vrot.lane.b32.xlu0 %v5770, 32
      %v5775 = vpop.permute.xlu0 %5774
      %5776 = vrot.lane.b32.xlu0 %v5771, 32
      %v5777 = vpop.permute.xlu0 %5776
      %5779 = vrot.lane.b32.xlu0 %v5735, 48
      %v5780 = vpop.permute.xlu0 %5779
      %5781 = vrot.lane.b32.xlu0 %v5736, 48
      %v5782 = vpop.permute.xlu0 %5781
      %5783 = vrot.lane.b32.xlu0 %v5737, 48
      %v5784 = vpop.permute.xlu0 %5783
      %5785 = vrot.lane.b32.xlu0 %v5738, 48
      %v5786 = vpop.permute.xlu0 %5785
      %v5788 = vshrl.u32 %v5738, 16
      %v5790 = vshll.u32 %v5738, 16
      %v5792 = vrot.slane %v5790, 1
      %v5793 = vor.u32 %v5788, %v5792
      %5794 = vrot.lane.b32.xlu0 %v5745, 64
      %v5795 = vpop.permute.xlu0 %5794
      %5796 = vrot.lane.b32.xlu0 %v5752, 64
      %v5797 = vpop.permute.xlu0 %5796
      %5798 = vrot.lane.b32.xlu0 %v5759, 64
      %v5799 = vpop.permute.xlu0 %5798
      %5800 = vrot.lane.b32.xlu0 %v5793, 64
      %v5801 = vpop.permute.xlu0 %5800
      %v5802 = vrot.slane %v5738, 1
      %5803 = vrot.lane.b32.xlu0 %v5769, 80
      %v5804 = vpop.permute.xlu0 %5803
      %5805 = vrot.lane.b32.xlu0 %v5770, 80
      %v5806 = vpop.permute.xlu0 %5805
      %5807 = vrot.lane.b32.xlu0 %v5771, 80
      %v5808 = vpop.permute.xlu0 %5807
      %5809 = vrot.lane.b32.xlu0 %v5802, 80
      %v5810 = vpop.permute.xlu0 %5809
      %5811 = vrot.lane.b32.xlu0 %v5736, 96
      %v5812 = vpop.permute.xlu0 %5811
      %5813 = vrot.lane.b32.xlu0 %v5737, 96
      %v5814 = vpop.permute.xlu0 %5813
      %5815 = vrot.lane.b32.xlu0 %v5738, 96
      %v5816 = vpop.permute.xlu0 %5815
      %5817 = vrot.lane.b32.xlu0 %v5752, 112
      %v5818 = vpop.permute.xlu0 %5817
      %5819 = vrot.lane.b32.xlu0 %v5759, 112
      %v5820 = vpop.permute.xlu0 %5819
      %5821 = vrot.lane.b32.xlu0 %v5793, 112
      %v5822 = vpop.permute.xlu0 %5821
      %v5824 = vsel %vm1561, %v5735, %v5761
      %v5826 = vsel %vm1561, %v5736, %v5763
      %v5828 = vsel %vm1561, %v5737, %v5765
      %v5830 = vsel %vm1693, %v5824, %v5773
      %v5832 = vsel %vm1693, %v5826, %v5775
      %v5834 = vsel %vm1693, %v5828, %v5777
      %v5836 = vsel %vm2366, %v5069, %v5780
      %v5838 = vsel %vm2366, %v5830, %v5782
      %v5840 = vsel %vm2366, %v5832, %v5784
      %v5842 = vsel %vm2366, %v5834, %v5786
      %v5844 = vsel %vm2400, %v5836, %v5795
      %v5846 = vsel %vm2400, %v5838, %v5797
      %v5848 = vsel %vm2400, %v5840, %v5799
      %v5850 = vsel %vm2400, %v5842, %v5801
      %v5852 = vsel %vm5092, %v5844, %v5804
      %v5854 = vsel %vm5092, %v5846, %v5806
      %v5856 = vsel %vm5092, %v5848, %v5808
      %v5858 = vsel %vm5092, %v5850, %v5810
      %v5860 = vsel %vm5101, %v5852, %v5812
      %v5862 = vsel %vm5101, %v5854, %v5814
      %v5864 = vsel %vm5101, %v5856, %v5816
      %v5865 = vsel %vm5101, %v5858, %v5051
      %v5867 = vsel %vm5110, %v5860, %v5818
      %v5869 = vsel %vm5110, %v5862, %v5820
      %v5871 = vsel %vm5110, %v5864, %v5822
      %v5872 = vsel %vm5110, %v5865, %v5059
      %v5877 = vcombine.low %v5867, %v5770
      %v5879 = vunpack.c.l.s4 1983009808
      %v5880 = vunpack.c.0.s8 %v5879
      %v5881 = vlaneseq
      %v5882 = vshrl.u32 %v5881, 7
      %v5883 = vsub.s32 %v5880, %v5882
      %v5884 = vrot.slane %v5877, %v5883
      %v5885 = vcombine.low %v5869, %v5771
      %v5887 = vunpack.c.l.s4 1983009808
      %v5888 = vunpack.c.0.s8 %v5887
      %v5889 = vlaneseq
      %v5890 = vshrl.u32 %v5889, 7
      %v5891 = vsub.s32 %v5888, %v5890
      %v5892 = vrot.slane %v5885, %v5891
      %v5893 = vcombine.low %v5871, %v5802
      %v5895 = vunpack.c.l.s4 1983009808
      %v5896 = vunpack.c.0.s8 %v5895
      %v5897 = vlaneseq
      %v5898 = vshrl.u32 %v5897, 7
      %v5899 = vsub.s32 %v5896, %v5898
      %v5900 = vrot.slane %v5893, %v5899
      %v5901 = vcombine.low %v5872, %v4999
      %v5903 = vunpack.c.l.s4 1983009808
      %v5904 = vunpack.c.0.s8 %v5903
      %v5905 = vlaneseq
      %v5906 = vshrl.u32 %v5905, 7
      %v5907 = vsub.s32 %v5904, %v5906
      %v5908 = vrot.slane %v5901, %v5907
      %v5910 = vlaneseq
      %v5911 = vshrl.u32 %v5910, 7
      %v5912 = vsub.s32 0, %v5911
      %v5913 = vrot.slane %v5677, %v5912
      %v5915 = vcombine.low %v5884, %v5892
      %v5916 = vcombine.low %v5900, %v5908
      %v5918 = vunpack.c.l.s4 1983009808
      %v5919 = vunpack.c.0.s8 %v5918
      %v5920 = vlaneseq
      %v5921 = vshrl.u32 %v5920, 7
      %v5922 = vsub.s32 %v5919, %v5921
      %v5923 = vrot.slane %v5915, %v5922
      %v5925 = vunpack.c.l.s4 1983009808
      %v5926 = vunpack.c.0.s8 %v5925
      %v5927 = vlaneseq
      %v5928 = vshrl.u32 %v5927, 7
      %v5929 = vsub.s32 %v5926, %v5928
      %v5930 = vrot.slane %v5916, %v5929
      %v5931 = vcombine.low %v5923, %v5930
      %v5932 = vcombine.high %v5923, %v5930
      %v5952 = vunpack.c.l.b16 %v5658
      %v5953 = vunpack.c.l.b16 %v5659
      %v5954 = vunpack.c.l.b16 %v5660
      %v5955 = vunpack.c.l.b16 %v5661
      %v5956 = vunpack.c.l.b16 %v5662
      %v5957 = vunpack.c.l.b16 %v5663
      %v5958 = vunpack.c.l.b16 %v5664
      %v5959 = vunpack.c.l.b16 %v5665
      %v5960 = vunpack.c.l.b16 %v5666
      %v5961 = vunpack.c.l.b16 %v5667
      %v5962 = vunpack.c.l.b16 %v5668
      %v5963 = vunpack.c.l.b16 %v5669
      %v5964 = vunpack.c.l.b16 %v5670
      %v5965 = vunpack.c.l.b16 %v5671
      %v5966 = vunpack.c.l.b16 %v5672
      %v5967 = vunpack.c.l.b16 %v5673
      %v5968 = vunpack.c.l.b16 %v5674
      %v5969 = vunpack.c.l.b16 %v5675
      %v5970 = vpack.c.b16 %v5953, %v5952
      %v5971 = vpack.c.b16 %v5955, %v5954
      %v5972 = vpack.c.b16 %v5957, %v5956
      %v5973 = vpack.c.b16 %v5959, %v5958
      %v5974 = vpack.c.b16 %v5961, %v5960
      %v5975 = vpack.c.b16 %v5963, %v5962
      %v5976 = vpack.c.b16 %v5965, %v5964
      %v5977 = vpack.c.b16 %v5967, %v5966
      %v5978 = vpack.c.b16 %v5969, %v5968
      %v5989 = vsel %vm1561, %v5932, 0
      %5991 = vmatprep.subr.bf16.mxu0 0
      %5992 = vmatpush1.bf16.msra.mxu0 %v5970
      %5993 = vmatprep.subr.bf16.mxu0 0
      %5994 = vmatpush1.bf16.msra.mxu0 %v5971
      %5995 = vmatprep.subr.bf16.mxu0 0
      %5996 = vmatpush1.bf16.msra.mxu0 %v5972
      %5997 = vmatprep.subr.bf16.mxu0 0
      %5998 = vmatpush1.bf16.msra.mxu0 %v5973
      %5999 = vmatprep.subr.bf16.mxu0 0
      %6000 = vmatpush1.bf16.msra.mxu0 %v5974
      %6001 = vmatprep.subr.bf16.mxu0 0
      %6002 = vmatpush1.bf16.msra.mxu0 %v5975
      %6003 = vmatprep.subr.bf16.mxu0 0
      %6004 = vmatpush1.bf16.msra.mxu0 %v5976
      %6005 = vmatprep.subr.bf16.mxu0 0
      %6006 = vmatpush1.bf16.msra.mxu0 %v5977
      %6007 = vmatprep.subr.bf16.mxu0 0
      %6008 = vmatpush1.bf16.msra.mxu0 %v5978
      %6009 = vmatprep.subr.bf16.mxu0 0
      %6010 = vmatpush1.bf16.msra.mxu0 0
      %6011 = vmatprep.subr.bf16.mxu0 0
      %6012 = vmatpush1.bf16.msra.mxu0 0
      %6013 = vmatprep.subr.bf16.mxu0 0
      %6014 = vmatpush1.bf16.msra.mxu0 0
      %6015 = vmatprep.subr.bf16.mxu0 0
      %6016 = vmatpush1.bf16.msra.mxu0 0
      %6017 = vmatprep.subr.bf16.mxu0 0
      %6018 = vmatpush1.bf16.msra.mxu0 0
      %6019 = vmatprep.subr.bf16.mxu0 0
      %6020 = vmatpush1.bf16.msra.mxu0 0
      %6021 = vmatprep.subr.bf16.mxu0 0
      %6022 = vmatpush1.bf16.msra.mxu0 0
      %6023 = vmatprep.mubr.bf16.mxu0 %v5989
      %6024 = vmatmul.mubr.bf16.gmra.mrb[0].mxu0 %v5931
      %v6025 = vpop.f32.mrb[0].mxu0
      %v6026 = vadd.f32 %v5913, %v6025
      %v6027 = vpop.f32.mrb[0].mxu0
      %v6028 = vpop.f32.mrb[0].mxu0
      %v6029 = vadd.f32 %v5913, %v6028
      %v6030 = vpop.f32.mrb[0].mxu0
      %6031 = vdwg.mxu0
      %v6032 = vmax.f32 %v6026, 0.0
      %v6033 = vmax.f32 %v6029, 0.0
      %v6034 = vpack.c.bf16 %v6033, %v6032
      %v6036 = vcombine.high %v6034, %v6034
      %v6038 = vunpack.c.l.s4 1983009808
      %v6039 = vunpack.c.0.s8 %v6038
      %v6040 = vlaneseq
      %v6041 = vshrl.u32 %v6040, 7
      %v6042 = vsub.s32 %v6039, %v6041
      %v6043 = vrot.slane %v6034, %v6042
      %v6045 = vunpack.c.l.s4 1983009808
      %v6046 = vunpack.c.0.s8 %v6045
      %v6047 = vlaneseq
      %v6048 = vshrl.u32 %v6047, 7
      %v6049 = vsub.s32 %v6046, %v6048
      %v6050 = vrot.slane %v6036, %v6049
      %v6051 = vcombine.high %v6043, %v6043
      %v6052 = vcombine.high %v6050, %v6050
      %v6054 = vshrl.u32 %v6043, 16
      %v6056 = vrot.slane %v6054, 7
      %v6057 = vshll.u32 %v6043, 16
      %v6059 = vor.u32 %v6056, %v6057
      %v6061 = vshrl.u32 %v6051, 16
      %v6063 = vrot.slane %v6061, 7
      %v6064 = vshll.u32 %v6051, 16
      %v6066 = vor.u32 %v6063, %v6064
      %v6068 = vshrl.u32 %v6050, 16
      %v6070 = vrot.slane %v6068, 7
      %v6071 = vshll.u32 %v6050, 16
      %v6073 = vor.u32 %v6070, %v6071
      %v6075 = vshrl.u32 %v6052, 16
      %v6077 = vrot.slane %v6075, 7
      %v6078 = vshll.u32 %v6052, 16
      %v6080 = vor.u32 %v6077, %v6078
      %v6085 = vsel %vm880, 0, %v6059
      %v6086 = vsel %vm880, 0, %v6066
      %v6087 = vsel %vm880, 0, %v6073
      %v6088 = vsel %vm880, 0, %v6080
      %v6089 = vsel %vm4953, %v6085, 0
      %v6090 = vsel %vm4953, %v6086, 0
      %v6091 = vsel %vm4953, %v6087, 0
      %v6092 = vsel %vm4953, %v6088, 0
      %v6094 = vshrl.u32 %v6089, 16
      %v6096 = vshll.u32 %v6089, 16
      %v6098 = vrot.slane %v6096, 1
      %v6099 = vor.u32 %v6094, %v6098
      %v6101 = vshrl.u32 %v6090, 16
      %v6103 = vshll.u32 %v6090, 16
      %v6105 = vrot.slane %v6103, 1
      %v6106 = vor.u32 %v6101, %v6105
      %v6108 = vshrl.u32 %v6091, 16
      %v6110 = vshll.u32 %v6091, 16
      %v6112 = vrot.slane %v6110, 1
      %v6113 = vor.u32 %v6108, %v6112
      %6114 = vrot.lane.b32.xlu0 %v6099, 16
      %v6115 = vpop.permute.xlu0 %6114
      %6116 = vrot.lane.b32.xlu0 %v6106, 16
      %v6117 = vpop.permute.xlu0 %6116
      %6118 = vrot.lane.b32.xlu0 %v6113, 16
      %v6119 = vpop.permute.xlu0 %6118
      %v6123 = vrot.slane %v6089, 1
      %v6124 = vrot.slane %v6090, 1
      %v6125 = vrot.slane %v6091, 1
      %6126 = vrot.lane.b32.xlu0 %v6123, 32
      %v6127 = vpop.permute.xlu0 %6126
      %6128 = vrot.lane.b32.xlu0 %v6124, 32
      %v6129 = vpop.permute.xlu0 %6128
      %6130 = vrot.lane.b32.xlu0 %v6125, 32
      %v6131 = vpop.permute.xlu0 %6130
      %6133 = vrot.lane.b32.xlu0 %v6089, 48
      %v6134 = vpop.permute.xlu0 %6133
      %6135 = vrot.lane.b32.xlu0 %v6090, 48
      %v6136 = vpop.permute.xlu0 %6135
      %6137 = vrot.lane.b32.xlu0 %v6091, 48
      %v6138 = vpop.permute.xlu0 %6137
      %6139 = vrot.lane.b32.xlu0 %v6092, 48
      %v6140 = vpop.permute.xlu0 %6139
      %v6142 = vshrl.u32 %v6092, 16
      %v6144 = vshll.u32 %v6092, 16
      %v6146 = vrot.slane %v6144, 1
      %v6147 = vor.u32 %v6142, %v6146
      %6148 = vrot.lane.b32.xlu0 %v6099, 64
      %v6149 = vpop.permute.xlu0 %6148
      %6150 = vrot.lane.b32.xlu0 %v6106, 64
      %v6151 = vpop.permute.xlu0 %6150
      %6152 = vrot.lane.b32.xlu0 %v6113, 64
      %v6153 = vpop.permute.xlu0 %6152
      %6154 = vrot.lane.b32.xlu0 %v6147, 64
      %v6155 = vpop.permute.xlu0 %6154
      %v6156 = vrot.slane %v6092, 1
      %6157 = vrot.lane.b32.xlu0 %v6123, 80
      %v6158 = vpop.permute.xlu0 %6157
      %6159 = vrot.lane.b32.xlu0 %v6124, 80
      %v6160 = vpop.permute.xlu0 %6159
      %6161 = vrot.lane.b32.xlu0 %v6125, 80
      %v6162 = vpop.permute.xlu0 %6161
      %6163 = vrot.lane.b32.xlu0 %v6156, 80
      %v6164 = vpop.permute.xlu0 %6163
      %6165 = vrot.lane.b32.xlu0 %v6090, 96
      %v6166 = vpop.permute.xlu0 %6165
      %6167 = vrot.lane.b32.xlu0 %v6091, 96
      %v6168 = vpop.permute.xlu0 %6167
      %6169 = vrot.lane.b32.xlu0 %v6092, 96
      %v6170 = vpop.permute.xlu0 %6169
      %6171 = vrot.lane.b32.xlu0 %v6106, 112
      %v6172 = vpop.permute.xlu0 %6171
      %6173 = vrot.lane.b32.xlu0 %v6113, 112
      %v6174 = vpop.permute.xlu0 %6173
      %6175 = vrot.lane.b32.xlu0 %v6147, 112
      %v6176 = vpop.permute.xlu0 %6175
      %v6178 = vsel %vm1561, %v6089, %v6115
      %v6180 = vsel %vm1561, %v6090, %v6117
      %v6182 = vsel %vm1561, %v6091, %v6119
      %v6184 = vsel %vm1693, %v6178, %v6127
      %v6186 = vsel %vm1693, %v6180, %v6129
      %v6188 = vsel %vm1693, %v6182, %v6131
      %v6190 = vsel %vm2366, %v5069, %v6134
      %v6192 = vsel %vm2366, %v6184, %v6136
      %v6194 = vsel %vm2366, %v6186, %v6138
      %v6196 = vsel %vm2366, %v6188, %v6140
      %v6198 = vsel %vm2400, %v6190, %v6149
      %v6200 = vsel %vm2400, %v6192, %v6151
      %v6202 = vsel %vm2400, %v6194, %v6153
      %v6204 = vsel %vm2400, %v6196, %v6155
      %v6206 = vsel %vm5092, %v6198, %v6158
      %v6208 = vsel %vm5092, %v6200, %v6160
      %v6210 = vsel %vm5092, %v6202, %v6162
      %v6212 = vsel %vm5092, %v6204, %v6164
      %v6214 = vsel %vm5101, %v6206, %v6166
      %v6216 = vsel %vm5101, %v6208, %v6168
      %v6218 = vsel %vm5101, %v6210, %v6170
      %v6219 = vsel %vm5101, %v6212, %v5051
      %v6221 = vsel %vm5110, %v6214, %v6172
      %v6223 = vsel %vm5110, %v6216, %v6174
      %v6225 = vsel %vm5110, %v6218, %v6176
      %v6226 = vsel %vm5110, %v6219, %v5059
      %v6231 = vcombine.low %v6221, %v6124
      %v6233 = vunpack.c.l.s4 1983009808
      %v6234 = vunpack.c.0.s8 %v6233
      %v6235 = vlaneseq
      %v6236 = vshrl.u32 %v6235, 7
      %v6237 = vsub.s32 %v6234, %v6236
      %v6238 = vrot.slane %v6231, %v6237
      %v6239 = vcombine.low %v6223, %v6125
      %v6241 = vunpack.c.l.s4 1983009808
      %v6242 = vunpack.c.0.s8 %v6241
      %v6243 = vlaneseq
      %v6244 = vshrl.u32 %v6243, 7
      %v6245 = vsub.s32 %v6242, %v6244
      %v6246 = vrot.slane %v6239, %v6245
      %v6247 = vcombine.low %v6225, %v6156
      %v6249 = vunpack.c.l.s4 1983009808
      %v6250 = vunpack.c.0.s8 %v6249
      %v6251 = vlaneseq
      %v6252 = vshrl.u32 %v6251, 7
      %v6253 = vsub.s32 %v6250, %v6252
      %v6254 = vrot.slane %v6247, %v6253
      %v6255 = vcombine.low %v6226, %v4999
      %v6257 = vunpack.c.l.s4 1983009808
      %v6258 = vunpack.c.0.s8 %v6257
      %v6259 = vlaneseq
      %v6260 = vshrl.u32 %v6259, 7
      %v6261 = vsub.s32 %v6258, %v6260
      %v6262 = vrot.slane %v6255, %v6261
      %v6264 = vlaneseq
      %v6265 = vshrl.u32 %v6264, 7
      %v6266 = vsub.s32 0, %v6265
      %v6267 = vrot.slane %v5698, %v6266
      %v6269 = vcombine.low %v6238, %v6246
      %v6270 = vcombine.low %v6254, %v6262
      %v6272 = vunpack.c.l.s4 1983009808
      %v6273 = vunpack.c.0.s8 %v6272
      %v6274 = vlaneseq
      %v6275 = vshrl.u32 %v6274, 7
      %v6276 = vsub.s32 %v6273, %v6275
      %v6277 = vrot.slane %v6269, %v6276
      %v6279 = vunpack.c.l.s4 1983009808
      %v6280 = vunpack.c.0.s8 %v6279
      %v6281 = vlaneseq
      %v6282 = vshrl.u32 %v6281, 7
      %v6283 = vsub.s32 %v6280, %v6282
      %v6284 = vrot.slane %v6270, %v6283
      %v6285 = vcombine.low %v6277, %v6284
      %v6286 = vcombine.high %v6277, %v6284
      %v6306 = vunpack.c.l.b16 %v5679
      %v6307 = vunpack.c.l.b16 %v5680
      %v6308 = vunpack.c.l.b16 %v5681
      %v6309 = vunpack.c.l.b16 %v5682
      %v6310 = vunpack.c.l.b16 %v5683
      %v6311 = vunpack.c.l.b16 %v5684
      %v6312 = vunpack.c.l.b16 %v5685
      %v6313 = vunpack.c.l.b16 %v5686
      %v6314 = vunpack.c.l.b16 %v5687
      %v6315 = vunpack.c.l.b16 %v5688
      %v6316 = vunpack.c.l.b16 %v5689
      %v6317 = vunpack.c.l.b16 %v5690
      %v6318 = vunpack.c.l.b16 %v5691
      %v6319 = vunpack.c.l.b16 %v5692
      %v6320 = vunpack.c.l.b16 %v5693
      %v6321 = vunpack.c.l.b16 %v5694
      %v6322 = vunpack.c.l.b16 %v5695
      %v6323 = vunpack.c.l.b16 %v5696
      %v6324 = vpack.c.b16 %v6307, %v6306
      %v6325 = vpack.c.b16 %v6309, %v6308
      %v6326 = vpack.c.b16 %v6311, %v6310
      %v6327 = vpack.c.b16 %v6313, %v6312
      %v6328 = vpack.c.b16 %v6315, %v6314
      %v6329 = vpack.c.b16 %v6317, %v6316
      %v6330 = vpack.c.b16 %v6319, %v6318
      %v6331 = vpack.c.b16 %v6321, %v6320
      %v6332 = vpack.c.b16 %v6323, %v6322
      %v6343 = vsel %vm1561, %v6286, 0
      %6345 = vmatprep.subr.bf16.mxu0 0
      %6346 = vmatpush1.bf16.msra.mxu0 %v6324
      %6347 = vmatprep.subr.bf16.mxu0 0
      %6348 = vmatpush1.bf16.msra.mxu0 %v6325
      %6349 = vmatprep.subr.bf16.mxu0 0
      %6350 = vmatpush1.bf16.msra.mxu0 %v6326
      %6351 = vmatprep.subr.bf16.mxu0 0
      %6352 = vmatpush1.bf16.msra.mxu0 %v6327
      %6353 = vmatprep.subr.bf16.mxu0 0
      %6354 = vmatpush1.bf16.msra.mxu0 %v6328
      %6355 = vmatprep.subr.bf16.mxu0 0
      %6356 = vmatpush1.bf16.msra.mxu0 %v6329
      %6357 = vmatprep.subr.bf16.mxu0 0
      %6358 = vmatpush1.bf16.msra.mxu0 %v6330
      %6359 = vmatprep.subr.bf16.mxu0 0
      %6360 = vmatpush1.bf16.msra.mxu0 %v6331
      %6361 = vmatprep.subr.bf16.mxu0 0
      %6362 = vmatpush1.bf16.msra.mxu0 %v6332
      %6363 = vmatprep.subr.bf16.mxu0 0
      %6364 = vmatpush1.bf16.msra.mxu0 0
      %6365 = vmatprep.subr.bf16.mxu0 0
      %6366 = vmatpush1.bf16.msra.mxu0 0
      %6367 = vmatprep.subr.bf16.mxu0 0
      %6368 = vmatpush1.bf16.msra.mxu0 0
      %6369 = vmatprep.subr.bf16.mxu0 0
      %6370 = vmatpush1.bf16.msra.mxu0 0
      %6371 = vmatprep.subr.bf16.mxu0 0
      %6372 = vmatpush1.bf16.msra.mxu0 0
      %6373 = vmatprep.subr.bf16.mxu0 0
      %6374 = vmatpush1.bf16.msra.mxu0 0
      %6375 = vmatprep.subr.bf16.mxu0 0
      %6376 = vmatpush1.bf16.msra.mxu0 0
      %6377 = vmatprep.mubr.bf16.mxu0 %v6343
      %6378 = vmatmul.mubr.bf16.gmra.mrb[0].mxu0 %v6285
      %v6379 = vpop.f32.mrb[0].mxu0
      %v6380 = vadd.f32 %v6267, %v6379
      %v6381 = vpop.f32.mrb[0].mxu0
      %v6382 = vpop.f32.mrb[0].mxu0
      %v6383 = vadd.f32 %v6267, %v6382
      %v6384 = vpop.f32.mrb[0].mxu0
      %6385 = vdwg.mxu0
      %v6386 = vunpack.c.l.bf16 %v5638
      %v6387 = vunpack.c.h.bf16 %v5638
      %v6388 = vadd.f32 %v6380, %v6386
      %v6389 = vadd.f32 %v6383, %v6387
      %v6390 = vmax.f32 %v6388, 0.0
      %v6391 = vmax.f32 %v6389, 0.0
      %v6392 = vpack.c.bf16 %v6391, %v6390
      %v6394 = vcombine.high %v6392, %v6392
      %v6396 = vunpack.c.l.s4 1983009808
      %v6397 = vunpack.c.0.s8 %v6396
      %v6398 = vlaneseq
      %v6399 = vshrl.u32 %v6398, 7
      %v6400 = vsub.s32 %v6397, %v6399
      %v6401 = vrot.slane %v6392, %v6400
      %v6403 = vunpack.c.l.s4 1983009808
      %v6404 = vunpack.c.0.s8 %v6403
      %v6405 = vlaneseq
      %v6406 = vshrl.u32 %v6405, 7
      %v6407 = vsub.s32 %v6404, %v6406
      %v6408 = vrot.slane %v6394, %v6407
      %v6409 = vcombine.high %v6401, %v6401
      %v6410 = vcombine.high %v6408, %v6408
      %s6411 = scalar_lea.vmem %s9, 144
      %v6412 = vld [vmem:[%s6411] sm:$0xf]
      %v6413 = vld [vmem:[%s6411 + $0x4] sm:$0xf]
      %v6414 = vld [vmem:[%s6411 + $0x8] sm:$0xf]
      %v6415 = vld [vmem:[%s6411 + $0xc] sm:$0xf]
      %v6416 = vld [vmem:[%s6411 + $0x10] sm:$0xf]
      %v6417 = vld [vmem:[%s6411 + $0x14] sm:$0xf]
      %v6418 = vld [vmem:[%s6411 + $0x18] sm:$0xf]
      %v6419 = vld [vmem:[%s6411 + $0x1c] sm:$0xf]
      %v6420 = vld [vmem:[%s6411 + $0x20] sm:$0xf]
      %v6421 = vld [vmem:[%s6411 + $0x24] sm:$0xf]
      %v6422 = vld [vmem:[%s6411 + $0x28] sm:$0xf]
      %v6423 = vld [vmem:[%s6411 + $0x2c] sm:$0xf]
      %v6424 = vld [vmem:[%s6411 + $0x30] sm:$0xf]
      %v6425 = vld [vmem:[%s6411 + $0x34] sm:$0xf]
      %v6426 = vld [vmem:[%s6411 + $0x38] sm:$0xf]
      %v6427 = vld [vmem:[%s6411 + $0x3c] sm:$0xf]
      %v6428 = vld [vmem:[%s6411 + $0x40] sm:$0xf]
      %v6429 = vld [vmem:[%s6411 + $0x44] sm:$0xf]
      %s6430 = scalar_lea.vmem %s10, 2
      %v6431 = vld [vmem:[%s6430] sm:$0x1]
      %s6432 = scalar_lea.vmem %s11, 144
      %v6433 = vld [vmem:[%s6432] sm:$0xf]
      %v6434 = vld [vmem:[%s6432 + $0x4] sm:$0xf]
      %v6435 = vld [vmem:[%s6432 + $0x8] sm:$0xf]
      %v6436 = vld [vmem:[%s6432 + $0xc] sm:$0xf]
      %v6437 = vld [vmem:[%s6432 + $0x10] sm:$0xf]
      %v6438 = vld [vmem:[%s6432 + $0x14] sm:$0xf]
      %v6439 = vld [vmem:[%s6432 + $0x18] sm:$0xf]
      %v6440 = vld [vmem:[%s6432 + $0x1c] sm:$0xf]
      %v6441 = vld [vmem:[%s6432 + $0x20] sm:$0xf]
      %v6442 = vld [vmem:[%s6432 + $0x24] sm:$0xf]
      %v6443 = vld [vmem:[%s6432 + $0x28] sm:$0xf]
      %v6444 = vld [vmem:[%s6432 + $0x2c] sm:$0xf]
      %v6445 = vld [vmem:[%s6432 + $0x30] sm:$0xf]
      %v6446 = vld [vmem:[%s6432 + $0x34] sm:$0xf]
      %v6447 = vld [vmem:[%s6432 + $0x38] sm:$0xf]
      %v6448 = vld [vmem:[%s6432 + $0x3c] sm:$0xf]
      %v6449 = vld [vmem:[%s6432 + $0x40] sm:$0xf]
      %v6450 = vld [vmem:[%s6432 + $0x44] sm:$0xf]
      %s6451 = scalar_lea.vmem %s12, 2
      %v6452 = vld [vmem:[%s6451] sm:$0x1]
      %v6454 = vshrl.u32 %v6401, 16
      %v6456 = vrot.slane %v6454, 7
      %v6457 = vshll.u32 %v6401, 16
      %v6459 = vor.u32 %v6456, %v6457
      %v6461 = vshrl.u32 %v6409, 16
      %v6463 = vrot.slane %v6461, 7
      %v6464 = vshll.u32 %v6409, 16
      %v6466 = vor.u32 %v6463, %v6464
      %v6468 = vshrl.u32 %v6408, 16
      %v6470 = vrot.slane %v6468, 7
      %v6471 = vshll.u32 %v6408, 16
      %v6473 = vor.u32 %v6470, %v6471
      %v6475 = vshrl.u32 %v6410, 16
      %v6477 = vrot.slane %v6475, 7
      %v6478 = vshll.u32 %v6410, 16
      %v6480 = vor.u32 %v6477, %v6478
      %v6485 = vsel %vm880, 0, %v6459
      %v6486 = vsel %vm880, 0, %v6466
      %v6487 = vsel %vm880, 0, %v6473
      %v6488 = vsel %vm880, 0, %v6480
      %v6489 = vsel %vm4953, %v6485, 0
      %v6490 = vsel %vm4953, %v6486, 0
      %v6491 = vsel %vm4953, %v6487, 0
      %v6492 = vsel %vm4953, %v6488, 0
      %v6494 = vshrl.u32 %v6489, 16
      %v6496 = vshll.u32 %v6489, 16
      %v6498 = vrot.slane %v6496, 1
      %v6499 = vor.u32 %v6494, %v6498
      %v6501 = vshrl.u32 %v6490, 16
      %v6503 = vshll.u32 %v6490, 16
      %v6505 = vrot.slane %v6503, 1
      %v6506 = vor.u32 %v6501, %v6505
      %v6508 = vshrl.u32 %v6491, 16
      %v6510 = vshll.u32 %v6491, 16
      %v6512 = vrot.slane %v6510, 1
      %v6513 = vor.u32 %v6508, %v6512
      %6514 = vrot.lane.b32.xlu0 %v6499, 16
      %v6515 = vpop.permute.xlu0 %6514
      %6516 = vrot.lane.b32.xlu0 %v6506, 16
      %v6517 = vpop.permute.xlu0 %6516
      %6518 = vrot.lane.b32.xlu0 %v6513, 16
      %v6519 = vpop.permute.xlu0 %6518
      %v6523 = vrot.slane %v6489, 1
      %v6524 = vrot.slane %v6490, 1
      %v6525 = vrot.slane %v6491, 1
      %6526 = vrot.lane.b32.xlu0 %v6523, 32
      %v6527 = vpop.permute.xlu0 %6526
      %6528 = vrot.lane.b32.xlu0 %v6524, 32
      %v6529 = vpop.permute.xlu0 %6528
      %6530 = vrot.lane.b32.xlu0 %v6525, 32
      %v6531 = vpop.permute.xlu0 %6530
      %6533 = vrot.lane.b32.xlu0 %v6489, 48
      %v6534 = vpop.permute.xlu0 %6533
      %6535 = vrot.lane.b32.xlu0 %v6490, 48
      %v6536 = vpop.permute.xlu0 %6535
      %6537 = vrot.lane.b32.xlu0 %v6491, 48
      %v6538 = vpop.permute.xlu0 %6537
      %6539 = vrot.lane.b32.xlu0 %v6492, 48
      %v6540 = vpop.permute.xlu0 %6539
      %v6542 = vshrl.u32 %v6492, 16
      %v6544 = vshll.u32 %v6492, 16
      %v6546 = vrot.slane %v6544, 1
      %v6547 = vor.u32 %v6542, %v6546
      %6548 = vrot.lane.b32.xlu0 %v6499, 64
      %v6549 = vpop.permute.xlu0 %6548
      %6550 = vrot.lane.b32.xlu0 %v6506, 64
      %v6551 = vpop.permute.xlu0 %6550
      %6552 = vrot.lane.b32.xlu0 %v6513, 64
      %v6553 = vpop.permute.xlu0 %6552
      %6554 = vrot.lane.b32.xlu0 %v6547, 64
      %v6555 = vpop.permute.xlu0 %6554
      %v6556 = vrot.slane %v6492, 1
      %6557 = vrot.lane.b32.xlu0 %v6523, 80
      %v6558 = vpop.permute.xlu0 %6557
      %6559 = vrot.lane.b32.xlu0 %v6524, 80
      %v6560 = vpop.permute.xlu0 %6559
      %6561 = vrot.lane.b32.xlu0 %v6525, 80
      %v6562 = vpop.permute.xlu0 %6561
      %6563 = vrot.lane.b32.xlu0 %v6556, 80
      %v6564 = vpop.permute.xlu0 %6563
      %6565 = vrot.lane.b32.xlu0 %v6490, 96
      %v6566 = vpop.permute.xlu0 %6565
      %6567 = vrot.lane.b32.xlu0 %v6491, 96
      %v6568 = vpop.permute.xlu0 %6567
      %6569 = vrot.lane.b32.xlu0 %v6492, 96
      %v6570 = vpop.permute.xlu0 %6569
      %6571 = vrot.lane.b32.xlu0 %v6506, 112
      %v6572 = vpop.permute.xlu0 %6571
      %6573 = vrot.lane.b32.xlu0 %v6513, 112
      %v6574 = vpop.permute.xlu0 %6573
      %6575 = vrot.lane.b32.xlu0 %v6547, 112
      %v6576 = vpop.permute.xlu0 %6575
      %v6578 = vsel %vm1561, %v6489, %v6515
      %v6580 = vsel %vm1561, %v6490, %v6517
      %v6582 = vsel %vm1561, %v6491, %v6519
      %v6584 = vsel %vm1693, %v6578, %v6527
      %v6586 = vsel %vm1693, %v6580, %v6529
      %v6588 = vsel %vm1693, %v6582, %v6531
      %v6590 = vsel %vm2366, %v5069, %v6534
      %v6592 = vsel %vm2366, %v6584, %v6536
      %v6594 = vsel %vm2366, %v6586, %v6538
      %v6596 = vsel %vm2366, %v6588, %v6540
      %v6598 = vsel %vm2400, %v6590, %v6549
      %v6600 = vsel %vm2400, %v6592, %v6551
      %v6602 = vsel %vm2400, %v6594, %v6553
      %v6604 = vsel %vm2400, %v6596, %v6555
      %v6606 = vsel %vm5092, %v6598, %v6558
      %v6608 = vsel %vm5092, %v6600, %v6560
      %v6610 = vsel %vm5092, %v6602, %v6562
      %v6612 = vsel %vm5092, %v6604, %v6564
      %v6614 = vsel %vm5101, %v6606, %v6566
      %v6616 = vsel %vm5101, %v6608, %v6568
      %v6618 = vsel %vm5101, %v6610, %v6570
      %v6619 = vsel %vm5101, %v6612, %v5051
      %v6621 = vsel %vm5110, %v6614, %v6572
      %v6623 = vsel %vm5110, %v6616, %v6574
      %v6625 = vsel %vm5110, %v6618, %v6576
      %v6626 = vsel %vm5110, %v6619, %v5059
      %v6631 = vcombine.low %v6621, %v6524
      %v6633 = vunpack.c.l.s4 1983009808
      %v6634 = vunpack.c.0.s8 %v6633
      %v6635 = vlaneseq
      %v6636 = vshrl.u32 %v6635, 7
      %v6637 = vsub.s32 %v6634, %v6636
      %v6638 = vrot.slane %v6631, %v6637
      %v6639 = vcombine.low %v6623, %v6525
      %v6641 = vunpack.c.l.s4 1983009808
      %v6642 = vunpack.c.0.s8 %v6641
      %v6643 = vlaneseq
      %v6644 = vshrl.u32 %v6643, 7
      %v6645 = vsub.s32 %v6642, %v6644
      %v6646 = vrot.slane %v6639, %v6645
      %v6647 = vcombine.low %v6625, %v6556
      %v6649 = vunpack.c.l.s4 1983009808
      %v6650 = vunpack.c.0.s8 %v6649
      %v6651 = vlaneseq
      %v6652 = vshrl.u32 %v6651, 7
      %v6653 = vsub.s32 %v6650, %v6652
      %v6654 = vrot.slane %v6647, %v6653
      %v6655 = vcombine.low %v6626, %v4999
      %v6657 = vunpack.c.l.s4 1983009808
      %v6658 = vunpack.c.0.s8 %v6657
      %v6659 = vlaneseq
      %v6660 = vshrl.u32 %v6659, 7
      %v6661 = vsub.s32 %v6658, %v6660
      %v6662 = vrot.slane %v6655, %v6661
      %v6664 = vlaneseq
      %v6665 = vshrl.u32 %v6664, 7
      %v6666 = vsub.s32 0, %v6665
      %v6667 = vrot.slane %v6431, %v6666
      %v6669 = vcombine.low %v6638, %v6646
      %v6670 = vcombine.low %v6654, %v6662
      %v6672 = vunpack.c.l.s4 1983009808
      %v6673 = vunpack.c.0.s8 %v6672
      %v6674 = vlaneseq
      %v6675 = vshrl.u32 %v6674, 7
      %v6676 = vsub.s32 %v6673, %v6675
      %v6677 = vrot.slane %v6669, %v6676
      %v6679 = vunpack.c.l.s4 1983009808
      %v6680 = vunpack.c.0.s8 %v6679
      %v6681 = vlaneseq
      %v6682 = vshrl.u32 %v6681, 7
      %v6683 = vsub.s32 %v6680, %v6682
      %v6684 = vrot.slane %v6670, %v6683
      %v6685 = vcombine.low %v6677, %v6684
      %v6686 = vcombine.high %v6677, %v6684
      %v6706 = vunpack.c.l.b16 %v6412
      %v6707 = vunpack.c.l.b16 %v6413
      %v6708 = vunpack.c.l.b16 %v6414
      %v6709 = vunpack.c.l.b16 %v6415
      %v6710 = vunpack.c.l.b16 %v6416
      %v6711 = vunpack.c.l.b16 %v6417
      %v6712 = vunpack.c.l.b16 %v6418
      %v6713 = vunpack.c.l.b16 %v6419
      %v6714 = vunpack.c.l.b16 %v6420
      %v6715 = vunpack.c.l.b16 %v6421
      %v6716 = vunpack.c.l.b16 %v6422
      %v6717 = vunpack.c.l.b16 %v6423
      %v6718 = vunpack.c.l.b16 %v6424
      %v6719 = vunpack.c.l.b16 %v6425
      %v6720 = vunpack.c.l.b16 %v6426
      %v6721 = vunpack.c.l.b16 %v6427
      %v6722 = vunpack.c.l.b16 %v6428
      %v6723 = vunpack.c.l.b16 %v6429
      %v6724 = vpack.c.b16 %v6707, %v6706
      %v6725 = vpack.c.b16 %v6709, %v6708
      %v6726 = vpack.c.b16 %v6711, %v6710
      %v6727 = vpack.c.b16 %v6713, %v6712
      %v6728 = vpack.c.b16 %v6715, %v6714
      %v6729 = vpack.c.b16 %v6717, %v6716
      %v6730 = vpack.c.b16 %v6719, %v6718
      %v6731 = vpack.c.b16 %v6721, %v6720
      %v6732 = vpack.c.b16 %v6723, %v6722
      %v6743 = vsel %vm1561, %v6686, 0
      %6745 = vmatprep.subr.bf16.mxu0 0
      %6746 = vmatpush1.bf16.msra.mxu0 %v6724
      %6747 = vmatprep.subr.bf16.mxu0 0
      %6748 = vmatpush1.bf16.msra.mxu0 %v6725
      %6749 = vmatprep.subr.bf16.mxu0 0
      %6750 = vmatpush1.bf16.msra.mxu0 %v6726
      %6751 = vmatprep.subr.bf16.mxu0 0
      %6752 = vmatpush1.bf16.msra.mxu0 %v6727
      %6753 = vmatprep.subr.bf16.mxu0 0
      %6754 = vmatpush1.bf16.msra.mxu0 %v6728
      %6755 = vmatprep.subr.bf16.mxu0 0
      %6756 = vmatpush1.bf16.msra.mxu0 %v6729
      %6757 = vmatprep.subr.bf16.mxu0 0
      %6758 = vmatpush1.bf16.msra.mxu0 %v6730
      %6759 = vmatprep.subr.bf16.mxu0 0
      %6760 = vmatpush1.bf16.msra.mxu0 %v6731
      %6761 = vmatprep.subr.bf16.mxu0 0
      %6762 = vmatpush1.bf16.msra.mxu0 %v6732
      %6763 = vmatprep.subr.bf16.mxu0 0
      %6764 = vmatpush1.bf16.msra.mxu0 0
      %6765 = vmatprep.subr.bf16.mxu0 0
      %6766 = vmatpush1.bf16.msra.mxu0 0
      %6767 = vmatprep.subr.bf16.mxu0 0
      %6768 = vmatpush1.bf16.msra.mxu0 0
      %6769 = vmatprep.subr.bf16.mxu0 0
      %6770 = vmatpush1.bf16.msra.mxu0 0
      %6771 = vmatprep.subr.bf16.mxu0 0
      %6772 = vmatpush1.bf16.msra.mxu0 0
      %6773 = vmatprep.subr.bf16.mxu0 0
      %6774 = vmatpush1.bf16.msra.mxu0 0
      %6775 = vmatprep.subr.bf16.mxu0 0
      %6776 = vmatpush1.bf16.msra.mxu0 0
      %6777 = vmatprep.mubr.bf16.mxu0 %v6743
      %6778 = vmatmul.mubr.bf16.gmra.mrb[0].mxu0 %v6685
      %v6779 = vpop.f32.mrb[0].mxu0
      %v6780 = vadd.f32 %v6667, %v6779
      %v6781 = vpop.f32.mrb[0].mxu0
      %v6782 = vpop.f32.mrb[0].mxu0
      %v6783 = vadd.f32 %v6667, %v6782
      %v6784 = vpop.f32.mrb[0].mxu0
      %6785 = vdwg.mxu0
      %v6786 = vmax.f32 %v6780, 0.0
      %v6787 = vmax.f32 %v6783, 0.0
      %v6788 = vpack.c.bf16 %v6787, %v6786
      %v6790 = vcombine.high %v6788, %v6788
      %v6792 = vunpack.c.l.s4 1983009808
      %v6793 = vunpack.c.0.s8 %v6792
      %v6794 = vlaneseq
      %v6795 = vshrl.u32 %v6794, 7
      %v6796 = vsub.s32 %v6793, %v6795
      %v6797 = vrot.slane %v6788, %v6796
      %v6799 = vunpack.c.l.s4 1983009808
      %v6800 = vunpack.c.0.s8 %v6799
      %v6801 = vlaneseq
      %v6802 = vshrl.u32 %v6801, 7
      %v6803 = vsub.s32 %v6800, %v6802
      %v6804 = vrot.slane %v6790, %v6803
      %v6805 = vcombine.high %v6797, %v6797
      %v6806 = vcombine.high %v6804, %v6804
      %v6808 = vshrl.u32 %v6797, 16
      %v6810 = vrot.slane %v6808, 7
      %v6811 = vshll.u32 %v6797, 16
      %v6813 = vor.u32 %v6810, %v6811
      %v6815 = vshrl.u32 %v6805, 16
      %v6817 = vrot.slane %v6815, 7
      %v6818 = vshll.u32 %v6805, 16
      %v6820 = vor.u32 %v6817, %v6818
      %v6822 = vshrl.u32 %v6804, 16
      %v6824 = vrot.slane %v6822, 7
      %v6825 = vshll.u32 %v6804, 16
      %v6827 = vor.u32 %v6824, %v6825
      %v6829 = vshrl.u32 %v6806, 16
      %v6831 = vrot.slane %v6829, 7
      %v6832 = vshll.u32 %v6806, 16
      %v6834 = vor.u32 %v6831, %v6832
      %v6839 = vsel %vm880, 0, %v6813
      %v6840 = vsel %vm880, 0, %v6820
      %v6841 = vsel %vm880, 0, %v6827
      %v6842 = vsel %vm880, 0, %v6834
      %v6843 = vsel %vm4953, %v6839, 0
      %v6844 = vsel %vm4953, %v6840, 0
      %v6845 = vsel %vm4953, %v6841, 0
      %v6846 = vsel %vm4953, %v6842, 0
      %v6848 = vshrl.u32 %v6843, 16
      %v6850 = vshll.u32 %v6843, 16
      %v6852 = vrot.slane %v6850, 1
      %v6853 = vor.u32 %v6848, %v6852
      %v6855 = vshrl.u32 %v6844, 16
      %v6857 = vshll.u32 %v6844, 16
      %v6859 = vrot.slane %v6857, 1
      %v6860 = vor.u32 %v6855, %v6859
      %v6862 = vshrl.u32 %v6845, 16
      %v6864 = vshll.u32 %v6845, 16
      %v6866 = vrot.slane %v6864, 1
      %v6867 = vor.u32 %v6862, %v6866
      %6868 = vrot.lane.b32.xlu0 %v6853, 16
      %v6869 = vpop.permute.xlu0 %6868
      %6870 = vrot.lane.b32.xlu0 %v6860, 16
      %v6871 = vpop.permute.xlu0 %6870
      %6872 = vrot.lane.b32.xlu0 %v6867, 16
      %v6873 = vpop.permute.xlu0 %6872
      %v6877 = vrot.slane %v6843, 1
      %v6878 = vrot.slane %v6844, 1
      %v6879 = vrot.slane %v6845, 1
      %6880 = vrot.lane.b32.xlu0 %v6877, 32
      %v6881 = vpop.permute.xlu0 %6880
      %6882 = vrot.lane.b32.xlu0 %v6878, 32
      %v6883 = vpop.permute.xlu0 %6882
      %6884 = vrot.lane.b32.xlu0 %v6879, 32
      %v6885 = vpop.permute.xlu0 %6884
      %6887 = vrot.lane.b32.xlu0 %v6843, 48
      %v6888 = vpop.permute.xlu0 %6887
      %6889 = vrot.lane.b32.xlu0 %v6844, 48
      %v6890 = vpop.permute.xlu0 %6889
      %6891 = vrot.lane.b32.xlu0 %v6845, 48
      %v6892 = vpop.permute.xlu0 %6891
      %6893 = vrot.lane.b32.xlu0 %v6846, 48
      %v6894 = vpop.permute.xlu0 %6893
      %v6896 = vshrl.u32 %v6846, 16
      %v6898 = vshll.u32 %v6846, 16
      %v6900 = vrot.slane %v6898, 1
      %v6901 = vor.u32 %v6896, %v6900
      %6902 = vrot.lane.b32.xlu0 %v6853, 64
      %v6903 = vpop.permute.xlu0 %6902
      %6904 = vrot.lane.b32.xlu0 %v6860, 64
      %v6905 = vpop.permute.xlu0 %6904
      %6906 = vrot.lane.b32.xlu0 %v6867, 64
      %v6907 = vpop.permute.xlu0 %6906
      %6908 = vrot.lane.b32.xlu0 %v6901, 64
      %v6909 = vpop.permute.xlu0 %6908
      %v6910 = vrot.slane %v6846, 1
      %6911 = vrot.lane.b32.xlu0 %v6877, 80
      %v6912 = vpop.permute.xlu0 %6911
      %6913 = vrot.lane.b32.xlu0 %v6878, 80
      %v6914 = vpop.permute.xlu0 %6913
      %6915 = vrot.lane.b32.xlu0 %v6879, 80
      %v6916 = vpop.permute.xlu0 %6915
      %6917 = vrot.lane.b32.xlu0 %v6910, 80
      %v6918 = vpop.permute.xlu0 %6917
      %6919 = vrot.lane.b32.xlu0 %v6844, 96
      %v6920 = vpop.permute.xlu0 %6919
      %6921 = vrot.lane.b32.xlu0 %v6845, 96
      %v6922 = vpop.permute.xlu0 %6921
      %6923 = vrot.lane.b32.xlu0 %v6846, 96
      %v6924 = vpop.permute.xlu0 %6923
      %6925 = vrot.lane.b32.xlu0 %v6860, 112
      %v6926 = vpop.permute.xlu0 %6925
      %6927 = vrot.lane.b32.xlu0 %v6867, 112
      %v6928 = vpop.permute.xlu0 %6927
      %6929 = vrot.lane.b32.xlu0 %v6901, 112
      %v6930 = vpop.permute.xlu0 %6929
      %v6932 = vsel %vm1561, %v6843, %v6869
      %v6934 = vsel %vm1561, %v6844, %v6871
      %v6936 = vsel %vm1561, %v6845, %v6873
      %v6938 = vsel %vm1693, %v6932, %v6881
      %v6940 = vsel %vm1693, %v6934, %v6883
      %v6942 = vsel %vm1693, %v6936, %v6885
      %v6944 = vsel %vm2366, %v5069, %v6888
      %v6946 = vsel %vm2366, %v6938, %v6890
      %v6948 = vsel %vm2366, %v6940, %v6892
      %v6950 = vsel %vm2366, %v6942, %v6894
      %v6952 = vsel %vm2400, %v6944, %v6903
      %v6954 = vsel %vm2400, %v6946, %v6905
      %v6956 = vsel %vm2400, %v6948, %v6907
      %v6958 = vsel %vm2400, %v6950, %v6909
      %v6960 = vsel %vm5092, %v6952, %v6912
      %v6962 = vsel %vm5092, %v6954, %v6914
      %v6964 = vsel %vm5092, %v6956, %v6916
      %v6966 = vsel %vm5092, %v6958, %v6918
      %v6968 = vsel %vm5101, %v6960, %v6920
      %v6970 = vsel %vm5101, %v6962, %v6922
      %v6972 = vsel %vm5101, %v6964, %v6924
      %v6973 = vsel %vm5101, %v6966, %v5051
      %v6975 = vsel %vm5110, %v6968, %v6926
      %v6977 = vsel %vm5110, %v6970, %v6928
      %v6979 = vsel %vm5110, %v6972, %v6930
      %v6980 = vsel %vm5110, %v6973, %v5059
      %v6985 = vcombine.low %v6975, %v6878
      %v6987 = vunpack.c.l.s4 1983009808
      %v6988 = vunpack.c.0.s8 %v6987
      %v6989 = vlaneseq
      %v6990 = vshrl.u32 %v6989, 7
      %v6991 = vsub.s32 %v6988, %v6990
      %v6992 = vrot.slane %v6985, %v6991
      %v6993 = vcombine.low %v6977, %v6879
      %v6995 = vunpack.c.l.s4 1983009808
      %v6996 = vunpack.c.0.s8 %v6995
      %v6997 = vlaneseq
      %v6998 = vshrl.u32 %v6997, 7
      %v6999 = vsub.s32 %v6996, %v6998
      %v7000 = vrot.slane %v6993, %v6999
      %v7001 = vcombine.low %v6979, %v6910
      %v7003 = vunpack.c.l.s4 1983009808
      %v7004 = vunpack.c.0.s8 %v7003
      %v7005 = vlaneseq
      %v7006 = vshrl.u32 %v7005, 7
      %v7007 = vsub.s32 %v7004, %v7006
      %v7008 = vrot.slane %v7001, %v7007
      %v7009 = vcombine.low %v6980, %v4999
      %v7011 = vunpack.c.l.s4 1983009808
      %v7012 = vunpack.c.0.s8 %v7011
      %v7013 = vlaneseq
      %v7014 = vshrl.u32 %v7013, 7
      %v7015 = vsub.s32 %v7012, %v7014
      %v7016 = vrot.slane %v7009, %v7015
      %v7018 = vlaneseq
      %v7019 = vshrl.u32 %v7018, 7
      %v7020 = vsub.s32 0, %v7019
      %v7021 = vrot.slane %v6452, %v7020
      %v7023 = vcombine.low %v6992, %v7000
      %v7024 = vcombine.low %v7008, %v7016
      %v7026 = vunpack.c.l.s4 1983009808
      %v7027 = vunpack.c.0.s8 %v7026
      %v7028 = vlaneseq
      %v7029 = vshrl.u32 %v7028, 7
      %v7030 = vsub.s32 %v7027, %v7029
      %v7031 = vrot.slane %v7023, %v7030
      %v7033 = vunpack.c.l.s4 1983009808
      %v7034 = vunpack.c.0.s8 %v7033
      %v7035 = vlaneseq
      %v7036 = vshrl.u32 %v7035, 7
      %v7037 = vsub.s32 %v7034, %v7036
      %v7038 = vrot.slane %v7024, %v7037
      %v7039 = vcombine.low %v7031, %v7038
      %v7040 = vcombine.high %v7031, %v7038
      %v7060 = vunpack.c.l.b16 %v6433
      %v7061 = vunpack.c.l.b16 %v6434
      %v7062 = vunpack.c.l.b16 %v6435
      %v7063 = vunpack.c.l.b16 %v6436
      %v7064 = vunpack.c.l.b16 %v6437
      %v7065 = vunpack.c.l.b16 %v6438
      %v7066 = vunpack.c.l.b16 %v6439
      %v7067 = vunpack.c.l.b16 %v6440
      %v7068 = vunpack.c.l.b16 %v6441
      %v7069 = vunpack.c.l.b16 %v6442
      %v7070 = vunpack.c.l.b16 %v6443
      %v7071 = vunpack.c.l.b16 %v6444
      %v7072 = vunpack.c.l.b16 %v6445
      %v7073 = vunpack.c.l.b16 %v6446
      %v7074 = vunpack.c.l.b16 %v6447
      %v7075 = vunpack.c.l.b16 %v6448
      %v7076 = vunpack.c.l.b16 %v6449
      %v7077 = vunpack.c.l.b16 %v6450
      %v7078 = vpack.c.b16 %v7061, %v7060
      %v7079 = vpack.c.b16 %v7063, %v7062
      %v7080 = vpack.c.b16 %v7065, %v7064
      %v7081 = vpack.c.b16 %v7067, %v7066
      %v7082 = vpack.c.b16 %v7069, %v7068
      %v7083 = vpack.c.b16 %v7071, %v7070
      %v7084 = vpack.c.b16 %v7073, %v7072
      %v7085 = vpack.c.b16 %v7075, %v7074
      %v7086 = vpack.c.b16 %v7077, %v7076
      %v7097 = vsel %vm1561, %v7040, 0
      %7099 = vmatprep.subr.bf16.mxu0 0
      %7100 = vmatpush1.bf16.msra.mxu0 %v7078
      %7101 = vmatprep.subr.bf16.mxu0 0
      %7102 = vmatpush1.bf16.msra.mxu0 %v7079
      %7103 = vmatprep.subr.bf16.mxu0 0
      %7104 = vmatpush1.bf16.msra.mxu0 %v7080
      %7105 = vmatprep.subr.bf16.mxu0 0
      %7106 = vmatpush1.bf16.msra.mxu0 %v7081
      %7107 = vmatprep.subr.bf16.mxu0 0
      %7108 = vmatpush1.bf16.msra.mxu0 %v7082
      %7109 = vmatprep.subr.bf16.mxu0 0
      %7110 = vmatpush1.bf16.msra.mxu0 %v7083
      %7111 = vmatprep.subr.bf16.mxu0 0
      %7112 = vmatpush1.bf16.msra.mxu0 %v7084
      %7113 = vmatprep.subr.bf16.mxu0 0
      %7114 = vmatpush1.bf16.msra.mxu0 %v7085
      %7115 = vmatprep.subr.bf16.mxu0 0
      %7116 = vmatpush1.bf16.msra.mxu0 %v7086
      %7117 = vmatprep.subr.bf16.mxu0 0
      %7118 = vmatpush1.bf16.msra.mxu0 0
      %7119 = vmatprep.subr.bf16.mxu0 0
      %7120 = vmatpush1.bf16.msra.mxu0 0
      %7121 = vmatprep.subr.bf16.mxu0 0
      %7122 = vmatpush1.bf16.msra.mxu0 0
      %7123 = vmatprep.subr.bf16.mxu0 0
      %7124 = vmatpush1.bf16.msra.mxu0 0
      %7125 = vmatprep.subr.bf16.mxu0 0
      %7126 = vmatpush1.bf16.msra.mxu0 0
      %7127 = vmatprep.subr.bf16.mxu0 0
      %7128 = vmatpush1.bf16.msra.mxu0 0
      %7129 = vmatprep.subr.bf16.mxu0 0
      %7130 = vmatpush1.bf16.msra.mxu0 0
      %7131 = vmatprep.mubr.bf16.mxu0 %v7097
      %7132 = vmatmul.mubr.bf16.gmra.mrb[0].mxu0 %v7039
      %v7133 = vpop.f32.mrb[0].mxu0
      %v7134 = vadd.f32 %v7021, %v7133
      %v7135 = vpop.f32.mrb[0].mxu0
      %v7136 = vpop.f32.mrb[0].mxu0
      %v7137 = vadd.f32 %v7021, %v7136
      %v7138 = vpop.f32.mrb[0].mxu0
      %7139 = vdwg.mxu0
      %v7140 = vunpack.c.l.bf16 %v6392
      %v7141 = vunpack.c.h.bf16 %v6392
      %v7142 = vadd.f32 %v7134, %v7140
      %v7143 = vadd.f32 %v7137, %v7141
      %v7144 = vmax.f32 %v7142, 0.0
      %v7145 = vmax.f32 %v7143, 0.0
      %v7146 = vpack.c.bf16 %v7145, %v7144
      %v7148 = vcombine.high %v7146, %v7146
      %v7150 = vunpack.c.l.s4 1983009808
      %v7151 = vunpack.c.0.s8 %v7150
      %v7152 = vlaneseq
      %v7153 = vshrl.u32 %v7152, 7
      %v7154 = vsub.s32 %v7151, %v7153
      %v7155 = vrot.slane %v7146, %v7154
      %v7157 = vunpack.c.l.s4 1983009808
      %v7158 = vunpack.c.0.s8 %v7157
      %v7159 = vlaneseq
      %v7160 = vshrl.u32 %v7159, 7
      %v7161 = vsub.s32 %v7158, %v7160
      %v7162 = vrot.slane %v7148, %v7161
      %v7163 = vcombine.high %v7155, %v7155
      %v7164 = vcombine.high %v7162, %v7162
      %v7165 = vld [vmem:[%s13] sm:$0x3]
      %v7167 = vshrl.u32 %v7155, 16
      %v7169 = vrot.slane %v7167, 7
      %v7170 = vshll.u32 %v7155, 16
      %v7172 = vor.u32 %v7169, %v7170
      %v7174 = vshrl.u32 %v7163, 16
      %v7176 = vrot.slane %v7174, 7
      %v7177 = vshll.u32 %v7163, 16
      %v7179 = vor.u32 %v7176, %v7177
      %v7181 = vshrl.u32 %v7162, 16
      %v7183 = vrot.slane %v7181, 7
      %v7184 = vshll.u32 %v7162, 16
      %v7186 = vor.u32 %v7183, %v7184
      %v7188 = vshrl.u32 %v7164, 16
      %v7190 = vrot.slane %v7188, 7
      %v7191 = vshll.u32 %v7164, 16
      %v7193 = vor.u32 %v7190, %v7191
      %v7198 = vsel %vm880, 0, %v7172
      %v7199 = vsel %vm880, 0, %v7179
      %v7200 = vsel %vm880, 0, %v7186
      %v7201 = vsel %vm880, 0, %v7193
      %v7202 = vsel %vm4953, %v7198, 0
      %v7203 = vsel %vm4953, %v7199, 0
      %v7204 = vsel %vm4953, %v7200, 0
      %v7205 = vsel %vm4953, %v7201, 0
      %v7211 = vunpack.c.l.s4 1966171168
      %v7212 = vunpack.c.0.s8 %v7211
      %v7213 = vlaneseq
      %v7214 = vshrl.u32 %v7213, 7
      %v7215 = vsub.s32 %v7212, %v7214
      %v7216 = vrot.slane %v4954, %v7215
      %v7217 = vcombine.high %v7216, %v7216
      %v7219 = vunpack.c.l.s4 1966171168
      %v7220 = vunpack.c.0.s8 %v7219
      %v7221 = vlaneseq
      %v7222 = vshrl.u32 %v7221, 7
      %v7223 = vsub.s32 %v7220, %v7222
      %v7224 = vrot.slane %v7216, %v7223
      %v7226 = vunpack.c.l.s4 1966171168
      %v7227 = vunpack.c.0.s8 %v7226
      %v7228 = vlaneseq
      %v7229 = vshrl.u32 %v7228, 7
      %v7230 = vsub.s32 %v7227, %v7229
      %v7231 = vrot.slane %v7217, %v7230
      %v7232 = vcombine.high %v7224, %v7224
      %v7234 = vunpack.c.l.s4 1966171168
      %v7235 = vunpack.c.0.s8 %v7234
      %v7236 = vlaneseq
      %v7237 = vshrl.u32 %v7236, 7
      %v7238 = vsub.s32 %v7235, %v7237
      %v7239 = vrot.slane %v7202, %v7238
      %v7240 = vcombine.high %v7239, %v7239
      %v7242 = vunpack.c.l.s4 1966171168
      %v7243 = vunpack.c.0.s8 %v7242
      %v7244 = vlaneseq
      %v7245 = vshrl.u32 %v7244, 7
      %v7246 = vsub.s32 %v7243, %v7245
      %v7247 = vrot.slane %v7239, %v7246
      %v7249 = vunpack.c.l.s4 1966171168
      %v7250 = vunpack.c.0.s8 %v7249
      %v7251 = vlaneseq
      %v7252 = vshrl.u32 %v7251, 7
      %v7253 = vsub.s32 %v7250, %v7252
      %v7254 = vrot.slane %v7240, %v7253
      %v7255 = vcombine.high %v7247, %v7247
      %v7257 = vunpack.c.l.s4 1966171168
      %v7258 = vunpack.c.0.s8 %v7257
      %v7259 = vlaneseq
      %v7260 = vshrl.u32 %v7259, 7
      %v7261 = vsub.s32 %v7258, %v7260
      %v7262 = vrot.slane %v7203, %v7261
      %v7263 = vcombine.high %v7262, %v7262
      %v7265 = vunpack.c.l.s4 1966171168
      %v7266 = vunpack.c.0.s8 %v7265
      %v7267 = vlaneseq
      %v7268 = vshrl.u32 %v7267, 7
      %v7269 = vsub.s32 %v7266, %v7268
      %v7270 = vrot.slane %v7262, %v7269
      %v7272 = vunpack.c.l.s4 1966171168
      %v7273 = vunpack.c.0.s8 %v7272
      %v7274 = vlaneseq
      %v7275 = vshrl.u32 %v7274, 7
      %v7276 = vsub.s32 %v7273, %v7275
      %v7277 = vrot.slane %v7263, %v7276
      %v7278 = vcombine.high %v7270, %v7270
      %v7280 = vunpack.c.l.s4 1966171168
      %v7281 = vunpack.c.0.s8 %v7280
      %v7282 = vlaneseq
      %v7283 = vshrl.u32 %v7282, 7
      %v7284 = vsub.s32 %v7281, %v7283
      %v7285 = vrot.slane %v7204, %v7284
      %v7286 = vcombine.high %v7285, %v7285
      %v7288 = vunpack.c.l.s4 1966171168
      %v7289 = vunpack.c.0.s8 %v7288
      %v7290 = vlaneseq
      %v7291 = vshrl.u32 %v7290, 7
      %v7292 = vsub.s32 %v7289, %v7291
      %v7293 = vrot.slane %v7285, %v7292
      %v7295 = vunpack.c.l.s4 1966171168
      %v7296 = vunpack.c.0.s8 %v7295
      %v7297 = vlaneseq
      %v7298 = vshrl.u32 %v7297, 7
      %v7299 = vsub.s32 %v7296, %v7298
      %v7300 = vrot.slane %v7286, %v7299
      %v7301 = vcombine.high %v7293, %v7293
      %v7303 = vunpack.c.l.s4 1966171168
      %v7304 = vunpack.c.0.s8 %v7303
      %v7305 = vlaneseq
      %v7306 = vshrl.u32 %v7305, 7
      %v7307 = vsub.s32 %v7304, %v7306
      %v7308 = vrot.slane %v7205, %v7307
      %v7309 = vcombine.high %v7308, %v7308
      %v7311 = vunpack.c.l.s4 1966171168
      %v7312 = vunpack.c.0.s8 %v7311
      %v7313 = vlaneseq
      %v7314 = vshrl.u32 %v7313, 7
      %v7315 = vsub.s32 %v7312, %v7314
      %v7316 = vrot.slane %v7308, %v7315
      %v7318 = vunpack.c.l.s4 1966171168
      %v7319 = vunpack.c.0.s8 %v7318
      %v7320 = vlaneseq
      %v7321 = vshrl.u32 %v7320, 7
      %v7322 = vsub.s32 %v7319, %v7321
      %v7323 = vrot.slane %v7309, %v7322
      %v7324 = vcombine.high %v7316, %v7316
      %v7325 = vcombine.low %v7224, %v7231
      %v7326 = vcombine.low %v7232, %v7247
      %v7327 = vcombine.low %v7254, %v7255
      %v7328 = vcombine.low %v7270, %v7277
      %v7330 = vunpack.c.l.s4 1966171168
      %v7331 = vunpack.c.0.s8 %v7330
      %v7332 = vlaneseq
      %v7333 = vshrl.u32 %v7332, 7
      %v7334 = vsub.s32 %v7331, %v7333
      %v7335 = vrot.slane %v7325, %v7334
      %v7337 = vunpack.c.l.s4 1966171168
      %v7338 = vunpack.c.0.s8 %v7337
      %v7339 = vlaneseq
      %v7340 = vshrl.u32 %v7339, 7
      %v7341 = vsub.s32 %v7338, %v7340
      %v7342 = vrot.slane %v7326, %v7341
      %v7344 = vunpack.c.l.s4 1966171168
      %v7345 = vunpack.c.0.s8 %v7344
      %v7346 = vlaneseq
      %v7347 = vshrl.u32 %v7346, 7
      %v7348 = vsub.s32 %v7345, %v7347
      %v7349 = vrot.slane %v7327, %v7348
      %v7351 = vunpack.c.l.s4 1966171168
      %v7352 = vunpack.c.0.s8 %v7351
      %v7353 = vlaneseq
      %v7354 = vshrl.u32 %v7353, 7
      %v7355 = vsub.s32 %v7352, %v7354
      %v7356 = vrot.slane %v7328, %v7355
      %v7357 = vcombine.low %v7335, %v7342
      %v7358 = vcombine.low %v7349, %v7356
      %v7360 = vunpack.c.l.s4 1966171168
      %v7361 = vunpack.c.0.s8 %v7360
      %v7362 = vlaneseq
      %v7363 = vshrl.u32 %v7362, 7
      %v7364 = vsub.s32 %v7361, %v7363
      %v7365 = vrot.slane %v7357, %v7364
      %v7367 = vunpack.c.l.s4 1966171168
      %v7368 = vunpack.c.0.s8 %v7367
      %v7369 = vlaneseq
      %v7370 = vshrl.u32 %v7369, 7
      %v7371 = vsub.s32 %v7368, %v7370
      %v7372 = vrot.slane %v7358, %v7371
      %v7373 = vcombine.low %v7365, %v7372
      %v7374 = vcombine.low %v7278, %v7293
      %v7375 = vcombine.low %v7300, %v7301
      %v7376 = vcombine.low %v7316, %v7323
      %v7377 = vcombine.low %v7324, %v7224
      %v7379 = vunpack.c.l.s4 1966171168
      %v7380 = vunpack.c.0.s8 %v7379
      %v7381 = vlaneseq
      %v7382 = vshrl.u32 %v7381, 7
      %v7383 = vsub.s32 %v7380, %v7382
      %v7384 = vrot.slane %v7374, %v7383
      %v7386 = vunpack.c.l.s4 1966171168
      %v7387 = vunpack.c.0.s8 %v7386
      %v7388 = vlaneseq
      %v7389 = vshrl.u32 %v7388, 7
      %v7390 = vsub.s32 %v7387, %v7389
      %v7391 = vrot.slane %v7375, %v7390
      %v7393 = vunpack.c.l.s4 1966171168
      %v7394 = vunpack.c.0.s8 %v7393
      %v7395 = vlaneseq
      %v7396 = vshrl.u32 %v7395, 7
      %v7397 = vsub.s32 %v7394, %v7396
      %v7398 = vrot.slane %v7376, %v7397
      %v7400 = vunpack.c.l.s4 1966171168
      %v7401 = vunpack.c.0.s8 %v7400
      %v7402 = vlaneseq
      %v7403 = vshrl.u32 %v7402, 7
      %v7404 = vsub.s32 %v7401, %v7403
      %v7405 = vrot.slane %v7377, %v7404
      %v7406 = vcombine.low %v7384, %v7391
      %v7407 = vcombine.low %v7398, %v7405
      %v7409 = vunpack.c.l.s4 1966171168
      %v7410 = vunpack.c.0.s8 %v7409
      %v7411 = vlaneseq
      %v7412 = vshrl.u32 %v7411, 7
      %v7413 = vsub.s32 %v7410, %v7412
      %v7414 = vrot.slane %v7406, %v7413
      %v7416 = vunpack.c.l.s4 1966171168
      %v7417 = vunpack.c.0.s8 %v7416
      %v7418 = vlaneseq
      %v7419 = vshrl.u32 %v7418, 7
      %v7420 = vsub.s32 %v7417, %v7419
      %v7421 = vrot.slane %v7407, %v7420
      %v7422 = vcombine.low %v7414, %v7421
      %v7423 = vcombine.low %v7231, %v7232
      %v7425 = vunpack.c.l.s4 1966171168
      %v7426 = vunpack.c.0.s8 %v7425
      %v7427 = vlaneseq
      %v7428 = vshrl.u32 %v7427, 7
      %v7429 = vsub.s32 %v7426, %v7428
      %v7430 = vrot.slane %v7423, %v7429
      %v7432 = vunpack.c.l.s4 1966171168
      %v7433 = vunpack.c.0.s8 %v7432
      %v7434 = vlaneseq
      %v7435 = vshrl.u32 %v7434, 7
      %v7436 = vsub.s32 %v7433, %v7435
      %v7437 = vrot.slane %v7430, %v7436
      %v7441 = vsel %vm1866, %v7165, 0
      %v7444 = vsel %vm1879, %v7437, 0
      %7446 = vmatprep.subr.bf16.mxu0 0
      %7447 = vmatpush1.bf16.msra.mxu0 %v7373
      %7448 = vmatprep.subr.bf16.mxu0 0
      %7449 = vmatpush1.bf16.msra.mxu0 %v7422
      %7450 = vmatprep.subr.bf16.mxu0 0
      %7451 = vmatpush1.bf16.msra.mxu0 %v7444
      %7452 = vmatprep.subr.bf16.mxu0 0
      %7453 = vmatpush1.bf16.msra.mxu0 0
      %7454 = vmatprep.subr.bf16.mxu0 0
      %7455 = vmatpush1.bf16.msra.mxu0 0
      %7456 = vmatprep.subr.bf16.mxu0 0
      %7457 = vmatpush1.bf16.msra.mxu0 0
      %7458 = vmatprep.subr.bf16.mxu0 0
      %7459 = vmatpush1.bf16.msra.mxu0 0
      %7460 = vmatprep.subr.bf16.mxu0 0
      %7461 = vmatpush1.bf16.msra.mxu0 0
      %7462 = vmatprep.subr.bf16.mxu0 0
      %7463 = vmatpush1.bf16.msra.mxu0 0
      %7464 = vmatprep.subr.bf16.mxu0 0
      %7465 = vmatpush1.bf16.msra.mxu0 0
      %7466 = vmatprep.subr.bf16.mxu0 0
      %7467 = vmatpush1.bf16.msra.mxu0 0
      %7468 = vmatprep.subr.bf16.mxu0 0
      %7469 = vmatpush1.bf16.msra.mxu0 0
      %7470 = vmatprep.subr.bf16.mxu0 0
      %7471 = vmatpush1.bf16.msra.mxu0 0
      %7472 = vmatprep.subr.bf16.mxu0 0
      %7473 = vmatpush1.bf16.msra.mxu0 0
      %7474 = vmatprep.subr.bf16.mxu0 0
      %7475 = vmatpush1.bf16.msra.mxu0 0
      %7476 = vmatprep.subr.bf16.mxu0 0
      %7477 = vmatpush1.bf16.msra.mxu0 0
      %7478 = vmatprep.mubr.bf16.mxu0 0
      %7479 = vmatmul.mubr.bf16.gmra.mrb[0].mxu0 %v7441
      %v7480 = vpop.f32.mrb[0].mxu0
      %v7481 = vadd.f32 0.0, %v7480
      %v7482 = vpop.f32.mrb[0].mxu0
      %v7483 = vpop.f32.mrb[0].mxu0
      %v7484 = vpop.f32.mrb[0].mxu0
      %7485 = vdwg.mxu0
      %v7486 = vmul.f32 %v7481, 0.11111111
      %v7487 = vpack.c.bf16 %v7486, %v7486
      %v7490 = vunpack.c.l.s4 1966171168
      %v7491 = vunpack.c.0.s8 %v7490
      %v7492 = vlaneseq
      %v7493 = vshrl.u32 %v7492, 7
      %v7494 = vsub.s32 %v7491, %v7493
      %v7495 = vrot.slane %v7487, %v7494
      %v7496 = vcombine.high %v7495, %v7495
      %v7498 = vunpack.c.l.s4 1966171168
      %v7499 = vunpack.c.0.s8 %v7498
      %v7500 = vlaneseq
      %v7501 = vshrl.u32 %v7500, 7
      %v7502 = vsub.s32 %v7499, %v7501
      %v7503 = vrot.slane %v7495, %v7502
      %v7505 = vunpack.c.l.s4 1966171168
      %v7506 = vunpack.c.0.s8 %v7505
      %v7507 = vlaneseq
      %v7508 = vshrl.u32 %v7507, 7
      %v7509 = vsub.s32 %v7506, %v7508
      %v7510 = vrot.slane %v7496, %v7509
      %v7511 = vld [vmem:[%s14] sm:$0xf]
      %v7512 = vld [vmem:[%s14 + $0x4] sm:$0xf]
      %v7513 = vld [vmem:[%s14 + $0x8] sm:$0xf]
      %v7514 = vld [vmem:[%s14 + $0xc] sm:$0xf]
      %v7515 = vld [vmem:[%s14 + $0x10] sm:$0xf]
      %v7516 = vld [vmem:[%s14 + $0x14] sm:$0xf]
      %v7517 = vld [vmem:[%s14 + $0x18] sm:$0xf]
      %v7518 = vld [vmem:[%s14 + $0x1c] sm:$0xf]
      %v7519 = vld [vmem:[%s14 + $0x20] sm:$0xf]
      %v7520 = vld [vmem:[%s14 + $0x24] sm:$0xf]
      %v7521 = vld [vmem:[%s14 + $0x28] sm:$0xf]
      %v7522 = vld [vmem:[%s14 + $0x2c] sm:$0xf]
      %v7523 = vld [vmem:[%s14 + $0x30] sm:$0xf]
      %v7524 = vld [vmem:[%s14 + $0x34] sm:$0xf]
      %v7525 = vld [vmem:[%s14 + $0x38] sm:$0xf]
      %v7526 = vld [vmem:[%s14 + $0x3c] sm:$0xf]
      %v7527 = vld [vmem:[%s14 + $0x40] sm:$0xf]
      %v7528 = vld [vmem:[%s14 + $0x44] sm:$0xf]
      %v7529 = vld [vmem:[%s15] sm:$0x1]
      %v7530 = vld [vmem:[%s16] sm:$0xf]
      %v7531 = vld [vmem:[%s16 + $0x4] sm:$0xf]
      %v7532 = vld [vmem:[%s16 + $0x8] sm:$0xf]
      %v7533 = vld [vmem:[%s16 + $0xc] sm:$0xf]
      %v7534 = vld [vmem:[%s16 + $0x10] sm:$0xf]
      %v7535 = vld [vmem:[%s16 + $0x14] sm:$0xf]
      %v7536 = vld [vmem:[%s16 + $0x18] sm:$0xf]
      %v7537 = vld [vmem:[%s16 + $0x1c] sm:$0xf]
      %v7538 = vld [vmem:[%s16 + $0x20] sm:$0xf]
      %v7539 = vld [vmem:[%s16 + $0x24] sm:$0xf]
      %v7540 = vld [vmem:[%s16 + $0x28] sm:$0xf]
      %v7541 = vld [vmem:[%s16 + $0x2c] sm:$0xf]
      %v7542 = vld [vmem:[%s16 + $0x30] sm:$0xf]
      %v7543 = vld [vmem:[%s16 + $0x34] sm:$0xf]
      %v7544 = vld [vmem:[%s16 + $0x38] sm:$0xf]
      %v7545 = vld [vmem:[%s16 + $0x3c] sm:$0xf]
      %v7546 = vld [vmem:[%s16 + $0x40] sm:$0xf]
      %v7547 = vld [vmem:[%s16 + $0x44] sm:$0xf]
      %v7548 = vld [vmem:[%s17] sm:$0x1]
      %v7550 = vshrl.u32 %v7503, 16
      %v7552 = vrot.slane %v7550, 7
      %v7553 = vshll.u32 %v7503, 16
      %v7555 = vor.u32 %v7552, %v7553
      %v7557 = vshrl.u32 %v7510, 16
      %v7559 = vrot.slane %v7557, 7
      %v7560 = vshll.u32 %v7510, 16
      %v7562 = vor.u32 %v7559, %v7560
      %v7565 = vsel %vm880, 0, %v7555
      %v7566 = vsel %vm880, 0, %v7562
      %vm7567 = vcmask 1041408
      %vm7568 = vsmask.f32 1280
      %vm7569 = vmand %vm7567, %vm7568
      %v7570 = vsel %vm7569, %v881, 0
      %v7571 = vsel %vm7569, %v7565, 0
      %v7572 = vsel %vm7569, %v7566, 0
      %v7574 = vshrl.u32 %v7570, 16
      %v7576 = vshll.u32 %v7570, 16
      %v7578 = vrot.slane %v7576, 1
      %v7579 = vor.u32 %v7574, %v7578
      %v7581 = vshrl.u32 %v7571, 16
      %v7583 = vshll.u32 %v7571, 16
      %v7585 = vrot.slane %v7583, 1
      %v7586 = vor.u32 %v7581, %v7585
      %7587 = vrot.lane.b32.xlu0 %v7579, 16
      %v7588 = vpop.permute.xlu0 %7587
      %7589 = vrot.lane.b32.xlu0 %v7586, 16
      %v7590 = vpop.permute.xlu0 %7589
      %v7593 = vrot.slane %v7570, 1
      %v7594 = vrot.slane %v7571, 1
      %7595 = vrot.lane.b32.xlu0 %v7593, 32
      %v7596 = vpop.permute.xlu0 %7595
      %7597 = vrot.lane.b32.xlu0 %v7594, 32
      %v7598 = vpop.permute.xlu0 %7597
      %7600 = vrot.lane.b32.xlu0 %v7571, 48
      %v7601 = vpop.permute.xlu0 %7600
      %7602 = vrot.lane.b32.xlu0 %v7572, 48
      %v7603 = vpop.permute.xlu0 %7602
      %v7605 = vshrl.u32 %v7572, 16
      %v7607 = vshll.u32 %v7572, 16
      %v7609 = vrot.slane %v7607, 1
      %v7610 = vor.u32 %v7605, %v7609
      %7611 = vrot.lane.b32.xlu0 %v7586, 64
      %v7612 = vpop.permute.xlu0 %7611
      %7613 = vrot.lane.b32.xlu0 %v7610, 64
      %v7614 = vpop.permute.xlu0 %7613
      %v7615 = vrot.slane %v7572, 1
      %7616 = vrot.lane.b32.xlu0 %v7594, 80
      %v7617 = vpop.permute.xlu0 %7616
      %7618 = vrot.lane.b32.xlu0 %v7615, 80
      %v7619 = vpop.permute.xlu0 %7618
      %7620 = vrot.lane.b32.xlu0 %v7572, 96
      %v7621 = vpop.permute.xlu0 %7620
      %7622 = vrot.lane.b32.xlu0 %v7570, 96
      %v7623 = vpop.permute.xlu0 %7622
      %7624 = vrot.lane.b32.xlu0 %v7610, 112
      %v7625 = vpop.permute.xlu0 %7624
      %7626 = vrot.lane.b32.xlu0 %v7579, 112
      %v7627 = vpop.permute.xlu0 %7626
      %v7629 = vsel %vm1561, %v7570, %v7588
      %v7631 = vsel %vm1561, %v7571, %v7590
      %v7633 = vsel %vm1693, %v7629, %v7596
      %v7635 = vsel %vm1693, %v7631, %v7598
      %v7637 = vsel %vm2366, %v7633, %v7601
      %v7639 = vsel %vm2366, %v7635, %v7603
      %v7641 = vsel %vm2400, %v7637, %v7612
      %v7643 = vsel %vm2400, %v7639, %v7614
      %v7645 = vsel %vm5092, %v7641, %v7617
      %v7647 = vsel %vm5092, %v7643, %v7619
      %v7649 = vsel %vm5101, %v7645, %v7621
      %v7651 = vsel %vm5101, %v7647, %v7623
      %v7653 = vsel %vm5110, %v7649, %v7625
      %v7655 = vsel %vm5110, %v7651, %v7627
      %v7658 = vcombine.low %v7653, %v7615
      %v7660 = vunpack.c.l.s4 1966171168
      %v7661 = vunpack.c.0.s8 %v7660
      %v7662 = vlaneseq
      %v7663 = vshrl.u32 %v7662, 7
      %v7664 = vsub.s32 %v7661, %v7663
      %v7665 = vrot.slane %v7658, %v7664
      %v7667 = vunpack.c.l.s4 1966171168
      %v7668 = vunpack.c.0.s8 %v7667
      %v7669 = vlaneseq
      %v7670 = vshrl.u32 %v7669, 7
      %v7671 = vsub.s32 %v7668, %v7670
      %v7672 = vrot.slane %v7665, %v7671
      %v7673 = vcombine.low %v7655, %v7593
      %v7675 = vunpack.c.l.s4 1966171168
      %v7676 = vunpack.c.0.s8 %v7675
      %v7677 = vlaneseq
      %v7678 = vshrl.u32 %v7677, 7
      %v7679 = vsub.s32 %v7676, %v7678
      %v7680 = vrot.slane %v7673, %v7679
      %v7682 = vunpack.c.l.s4 1966171168
      %v7683 = vunpack.c.0.s8 %v7682
      %v7684 = vlaneseq
      %v7685 = vshrl.u32 %v7684, 7
      %v7686 = vsub.s32 %v7683, %v7685
      %v7687 = vrot.slane %v7680, %v7686
      %v7689 = vlaneseq
      %v7690 = vshrl.u32 %v7689, 7
      %v7691 = vsub.s32 0, %v7690
      %v7692 = vrot.slane %v7529, %v7691
      %v7694 = vcombine.low %v7672, %v7687
      %v7696 = vunpack.c.l.s4 1966171168
      %v7697 = vunpack.c.0.s8 %v7696
      %v7698 = vlaneseq
      %v7699 = vshrl.u32 %v7698, 7
      %v7700 = vsub.s32 %v7697, %v7699
      %v7701 = vrot.slane %v7694, %v7700
      %v7702 = vcombine.high %v7701, %v7701
      %v7704 = vunpack.c.l.s4 1966171168
      %v7705 = vunpack.c.0.s8 %v7704
      %v7706 = vlaneseq
      %v7707 = vshrl.u32 %v7706, 7
      %v7708 = vsub.s32 %v7705, %v7707
      %v7709 = vrot.slane %v7701, %v7708
      %v7711 = vunpack.c.l.s4 1966171168
      %v7712 = vunpack.c.0.s8 %v7711
      %v7713 = vlaneseq
      %v7714 = vshrl.u32 %v7713, 7
      %v7715 = vsub.s32 %v7712, %v7714
      %v7716 = vrot.slane %v7702, %v7715
      %v7736 = vunpack.c.l.b16 %v7511
      %v7737 = vunpack.c.l.b16 %v7512
      %v7738 = vunpack.c.l.b16 %v7513
      %v7739 = vunpack.c.l.b16 %v7514
      %v7740 = vunpack.c.l.b16 %v7515
      %v7741 = vunpack.c.l.b16 %v7516
      %v7742 = vunpack.c.l.b16 %v7517
      %v7743 = vunpack.c.l.b16 %v7518
      %v7744 = vunpack.c.l.b16 %v7519
      %v7745 = vunpack.c.l.b16 %v7520
      %v7746 = vunpack.c.l.b16 %v7521
      %v7747 = vunpack.c.l.b16 %v7522
      %v7748 = vunpack.c.l.b16 %v7523
      %v7749 = vunpack.c.l.b16 %v7524
      %v7750 = vunpack.c.l.b16 %v7525
      %v7751 = vunpack.c.l.b16 %v7526
      %v7752 = vunpack.c.l.b16 %v7527
      %v7753 = vunpack.c.l.b16 %v7528
      %v7754 = vpack.c.b16 %v7737, %v7736
      %v7755 = vpack.c.b16 %v7739, %v7738
      %v7756 = vpack.c.b16 %v7741, %v7740
      %v7757 = vpack.c.b16 %v7743, %v7742
      %v7758 = vpack.c.b16 %v7745, %v7744
      %v7759 = vpack.c.b16 %v7747, %v7746
      %v7760 = vpack.c.b16 %v7749, %v7748
      %v7761 = vpack.c.b16 %v7751, %v7750
      %v7762 = vpack.c.b16 %v7753, %v7752
      %v7773 = vsel %vm1561, %v7716, 0
      %7775 = vmatprep.subr.bf16.mxu0 0
      %7776 = vmatpush1.bf16.msra.mxu0 %v7754
      %7777 = vmatprep.subr.bf16.mxu0 0
      %7778 = vmatpush1.bf16.msra.mxu0 %v7755
      %7779 = vmatprep.subr.bf16.mxu0 0
      %7780 = vmatpush1.bf16.msra.mxu0 %v7756
      %7781 = vmatprep.subr.bf16.mxu0 0
      %7782 = vmatpush1.bf16.msra.mxu0 %v7757
      %7783 = vmatprep.subr.bf16.mxu0 0
      %7784 = vmatpush1.bf16.msra.mxu0 %v7758
      %7785 = vmatprep.subr.bf16.mxu0 0
      %7786 = vmatpush1.bf16.msra.mxu0 %v7759
      %7787 = vmatprep.subr.bf16.mxu0 0
      %7788 = vmatpush1.bf16.msra.mxu0 %v7760
      %7789 = vmatprep.subr.bf16.mxu0 0
      %7790 = vmatpush1.bf16.msra.mxu0 %v7761
      %7791 = vmatprep.subr.bf16.mxu0 0
      %7792 = vmatpush1.bf16.msra.mxu0 %v7762
      %7793 = vmatprep.subr.bf16.mxu0 0
      %7794 = vmatpush1.bf16.msra.mxu0 0
      %7795 = vmatprep.subr.bf16.mxu0 0
      %7796 = vmatpush1.bf16.msra.mxu0 0
      %7797 = vmatprep.subr.bf16.mxu0 0
      %7798 = vmatpush1.bf16.msra.mxu0 0
      %7799 = vmatprep.subr.bf16.mxu0 0
      %7800 = vmatpush1.bf16.msra.mxu0 0
      %7801 = vmatprep.subr.bf16.mxu0 0
      %7802 = vmatpush1.bf16.msra.mxu0 0
      %7803 = vmatprep.subr.bf16.mxu0 0
      %7804 = vmatpush1.bf16.msra.mxu0 0
      %7805 = vmatprep.subr.bf16.mxu0 0
      %7806 = vmatpush1.bf16.msra.mxu0 0
      %7807 = vmatprep.mubr.bf16.mxu0 %v7773
      %7808 = vmatmul.mubr.bf16.gmra.mrb[0].mxu0 %v7709
      %v7809 = vpop.f32.mrb[0].mxu0
      %v7810 = vadd.f32 %v7692, %v7809
      %v7811 = vpop.f32.mrb[0].mxu0
      %v7812 = vpop.f32.mrb[0].mxu0
      %v7813 = vpop.f32.mrb[0].mxu0
      %7814 = vdwg.mxu0
      %v7815 = vmax.f32 %v7810, 0.0
      %v7816 = vpack.c.bf16 %v7815, %v7815
      %v7819 = vunpack.c.l.s4 1966171168
      %v7820 = vunpack.c.0.s8 %v7819
      %v7821 = vlaneseq
      %v7822 = vshrl.u32 %v7821, 7
      %v7823 = vsub.s32 %v7820, %v7822
      %v7824 = vrot.slane %v7816, %v7823
      %v7825 = vcombine.high %v7824, %v7824
      %v7827 = vunpack.c.l.s4 1966171168
      %v7828 = vunpack.c.0.s8 %v7827
      %v7829 = vlaneseq
      %v7830 = vshrl.u32 %v7829, 7
      %v7831 = vsub.s32 %v7828, %v7830
      %v7832 = vrot.slane %v7824, %v7831
      %v7834 = vunpack.c.l.s4 1966171168
      %v7835 = vunpack.c.0.s8 %v7834
      %v7836 = vlaneseq
      %v7837 = vshrl.u32 %v7836, 7
      %v7838 = vsub.s32 %v7835, %v7837
      %v7839 = vrot.slane %v7825, %v7838
      %v7841 = vshrl.u32 %v7832, 16
      %v7843 = vrot.slane %v7841, 7
      %v7844 = vshll.u32 %v7832, 16
      %v7846 = vor.u32 %v7843, %v7844
      %v7848 = vshrl.u32 %v7839, 16
      %v7850 = vrot.slane %v7848, 7
      %v7851 = vshll.u32 %v7839, 16
      %v7853 = vor.u32 %v7850, %v7851
      %v7856 = vsel %vm880, 0, %v7846
      %v7857 = vsel %vm880, 0, %v7853
      %v7858 = vsel %vm7569, %v7856, 0
      %v7859 = vsel %vm7569, %v7857, 0
      %v7861 = vshrl.u32 %v7858, 16
      %v7863 = vshll.u32 %v7858, 16
      %v7865 = vrot.slane %v7863, 1
      %v7866 = vor.u32 %v7861, %v7865
      %7867 = vrot.lane.b32.xlu0 %v7866, 16
      %v7868 = vpop.permute.xlu0 %7867
      %v7870 = vrot.slane %v7858, 1
      %7871 = vrot.lane.b32.xlu0 %v7870, 32
      %v7872 = vpop.permute.xlu0 %7871
      %7874 = vrot.lane.b32.xlu0 %v7858, 48
      %v7875 = vpop.permute.xlu0 %7874
      %7876 = vrot.lane.b32.xlu0 %v7859, 48
      %v7877 = vpop.permute.xlu0 %7876
      %v7879 = vshrl.u32 %v7859, 16
      %v7881 = vshll.u32 %v7859, 16
      %v7883 = vrot.slane %v7881, 1
      %v7884 = vor.u32 %v7879, %v7883
      %7885 = vrot.lane.b32.xlu0 %v7866, 64
      %v7886 = vpop.permute.xlu0 %7885
      %7887 = vrot.lane.b32.xlu0 %v7884, 64
      %v7888 = vpop.permute.xlu0 %7887
      %v7889 = vrot.slane %v7859, 1
      %7890 = vrot.lane.b32.xlu0 %v7870, 80
      %v7891 = vpop.permute.xlu0 %7890
      %7892 = vrot.lane.b32.xlu0 %v7889, 80
      %v7893 = vpop.permute.xlu0 %7892
      %7894 = vrot.lane.b32.xlu0 %v7859, 96
      %v7895 = vpop.permute.xlu0 %7894
      %7896 = vrot.lane.b32.xlu0 %v7884, 112
      %v7897 = vpop.permute.xlu0 %7896
      %v7899 = vsel %vm1561, %v7858, %v7868
      %v7901 = vsel %vm1693, %v7899, %v7872
      %v7903 = vsel %vm2366, %v7633, %v7875
      %v7905 = vsel %vm2366, %v7901, %v7877
      %v7907 = vsel %vm2400, %v7903, %v7886
      %v7909 = vsel %vm2400, %v7905, %v7888
      %v7911 = vsel %vm5092, %v7907, %v7891
      %v7913 = vsel %vm5092, %v7909, %v7893
      %v7915 = vsel %vm5101, %v7911, %v7895
      %v7916 = vsel %vm5101, %v7913, %v7623
      %v7918 = vsel %vm5110, %v7915, %v7897
      %v7919 = vsel %vm5110, %v7916, %v7627
      %v7922 = vcombine.low %v7918, %v7889
      %v7924 = vunpack.c.l.s4 1966171168
      %v7925 = vunpack.c.0.s8 %v7924
      %v7926 = vlaneseq
      %v7927 = vshrl.u32 %v7926, 7
      %v7928 = vsub.s32 %v7925, %v7927
      %v7929 = vrot.slane %v7922, %v7928
      %v7931 = vunpack.c.l.s4 1966171168
      %v7932 = vunpack.c.0.s8 %v7931
      %v7933 = vlaneseq
      %v7934 = vshrl.u32 %v7933, 7
      %v7935 = vsub.s32 %v7932, %v7934
      %v7936 = vrot.slane %v7929, %v7935
      %v7937 = vcombine.low %v7919, %v7593
      %v7939 = vunpack.c.l.s4 1966171168
      %v7940 = vunpack.c.0.s8 %v7939
      %v7941 = vlaneseq
      %v7942 = vshrl.u32 %v7941, 7
      %v7943 = vsub.s32 %v7940, %v7942
      %v7944 = vrot.slane %v7937, %v7943
      %v7946 = vunpack.c.l.s4 1966171168
      %v7947 = vunpack.c.0.s8 %v7946
      %v7948 = vlaneseq
      %v7949 = vshrl.u32 %v7948, 7
      %v7950 = vsub.s32 %v7947, %v7949
      %v7951 = vrot.slane %v7944, %v7950
      %v7953 = vlaneseq
      %v7954 = vshrl.u32 %v7953, 7
      %v7955 = vsub.s32 0, %v7954
      %v7956 = vrot.slane %v7548, %v7955
      %v7958 = vcombine.low %v7936, %v7951
      %v7960 = vunpack.c.l.s4 1966171168
      %v7961 = vunpack.c.0.s8 %v7960
      %v7962 = vlaneseq
      %v7963 = vshrl.u32 %v7962, 7
      %v7964 = vsub.s32 %v7961, %v7963
      %v7965 = vrot.slane %v7958, %v7964
      %v7966 = vcombine.high %v7965, %v7965
      %v7968 = vunpack.c.l.s4 1966171168
      %v7969 = vunpack.c.0.s8 %v7968
      %v7970 = vlaneseq
      %v7971 = vshrl.u32 %v7970, 7
      %v7972 = vsub.s32 %v7969, %v7971
      %v7973 = vrot.slane %v7965, %v7972
      %v7975 = vunpack.c.l.s4 1966171168
      %v7976 = vunpack.c.0.s8 %v7975
      %v7977 = vlaneseq
      %v7978 = vshrl.u32 %v7977, 7
      %v7979 = vsub.s32 %v7976, %v7978
      %v7980 = vrot.slane %v7966, %v7979
      %v8000 = vunpack.c.l.b16 %v7530
      %v8001 = vunpack.c.l.b16 %v7531
      %v8002 = vunpack.c.l.b16 %v7532
      %v8003 = vunpack.c.l.b16 %v7533
      %v8004 = vunpack.c.l.b16 %v7534
      %v8005 = vunpack.c.l.b16 %v7535
      %v8006 = vunpack.c.l.b16 %v7536
      %v8007 = vunpack.c.l.b16 %v7537
      %v8008 = vunpack.c.l.b16 %v7538
      %v8009 = vunpack.c.l.b16 %v7539
      %v8010 = vunpack.c.l.b16 %v7540
      %v8011 = vunpack.c.l.b16 %v7541
      %v8012 = vunpack.c.l.b16 %v7542
      %v8013 = vunpack.c.l.b16 %v7543
      %v8014 = vunpack.c.l.b16 %v7544
      %v8015 = vunpack.c.l.b16 %v7545
      %v8016 = vunpack.c.l.b16 %v7546
      %v8017 = vunpack.c.l.b16 %v7547
      %v8018 = vpack.c.b16 %v8001, %v8000
      %v8019 = vpack.c.b16 %v8003, %v8002
      %v8020 = vpack.c.b16 %v8005, %v8004
      %v8021 = vpack.c.b16 %v8007, %v8006
      %v8022 = vpack.c.b16 %v8009, %v8008
      %v8023 = vpack.c.b16 %v8011, %v8010
      %v8024 = vpack.c.b16 %v8013, %v8012
      %v8025 = vpack.c.b16 %v8015, %v8014
      %v8026 = vpack.c.b16 %v8017, %v8016
      %v8037 = vsel %vm1561, %v7980, 0
      %8039 = vmatprep.subr.bf16.mxu0 0
      %8040 = vmatpush1.bf16.msra.mxu0 %v8018
      %8041 = vmatprep.subr.bf16.mxu0 0
      %8042 = vmatpush1.bf16.msra.mxu0 %v8019
      %8043 = vmatprep.subr.bf16.mxu0 0
      %8044 = vmatpush1.bf16.msra.mxu0 %v8020
      %8045 = vmatprep.subr.bf16.mxu0 0
      %8046 = vmatpush1.bf16.msra.mxu0 %v8021
      %8047 = vmatprep.subr.bf16.mxu0 0
      %8048 = vmatpush1.bf16.msra.mxu0 %v8022
      %8049 = vmatprep.subr.bf16.mxu0 0
      %8050 = vmatpush1.bf16.msra.mxu0 %v8023
      %8051 = vmatprep.subr.bf16.mxu0 0
      %8052 = vmatpush1.bf16.msra.mxu0 %v8024
      %8053 = vmatprep.subr.bf16.mxu0 0
      %8054 = vmatpush1.bf16.msra.mxu0 %v8025
      %8055 = vmatprep.subr.bf16.mxu0 0
      %8056 = vmatpush1.bf16.msra.mxu0 %v8026
      %8057 = vmatprep.subr.bf16.mxu0 0
      %8058 = vmatpush1.bf16.msra.mxu0 0
      %8059 = vmatprep.subr.bf16.mxu0 0
      %8060 = vmatpush1.bf16.msra.mxu0 0
      %8061 = vmatprep.subr.bf16.mxu0 0
      %8062 = vmatpush1.bf16.msra.mxu0 0
      %8063 = vmatprep.subr.bf16.mxu0 0
      %8064 = vmatpush1.bf16.msra.mxu0 0
      %8065 = vmatprep.subr.bf16.mxu0 0
      %8066 = vmatpush1.bf16.msra.mxu0 0
      %8067 = vmatprep.subr.bf16.mxu0 0
      %8068 = vmatpush1.bf16.msra.mxu0 0
      %8069 = vmatprep.subr.bf16.mxu0 0
      %8070 = vmatpush1.bf16.msra.mxu0 0
      %8071 = vmatprep.mubr.bf16.mxu0 %v8037
      %8072 = vmatmul.mubr.bf16.gmra.mrb[0].mxu0 %v7973
      %v8073 = vpop.f32.mrb[0].mxu0
      %v8074 = vadd.f32 %v7956, %v8073
      %v8075 = vpop.f32.mrb[0].mxu0
      %v8076 = vpop.f32.mrb[0].mxu0
      %v8077 = vpop.f32.mrb[0].mxu0
      %8078 = vdwg.mxu0
      %v8079 = vunpack.c.l.bf16 %v7487
      %v8080 = vadd.f32 %v8074, %v8079
      %v8081 = vmax.f32 %v8080, 0.0
      %v8082 = vpack.c.bf16 %v8081, %v8081
      %v8085 = vunpack.c.l.s4 1966171168
      %v8086 = vunpack.c.0.s8 %v8085
      %v8087 = vlaneseq
      %v8088 = vshrl.u32 %v8087, 7
      %v8089 = vsub.s32 %v8086, %v8088
      %v8090 = vrot.slane %v8082, %v8089
      %v8091 = vcombine.high %v8090, %v8090
      %v8093 = vunpack.c.l.s4 1966171168
      %v8094 = vunpack.c.0.s8 %v8093
      %v8095 = vlaneseq
      %v8096 = vshrl.u32 %v8095, 7
      %v8097 = vsub.s32 %v8094, %v8096
      %v8098 = vrot.slane %v8090, %v8097
      %v8100 = vunpack.c.l.s4 1966171168
      %v8101 = vunpack.c.0.s8 %v8100
      %v8102 = vlaneseq
      %v8103 = vshrl.u32 %v8102, 7
      %v8104 = vsub.s32 %v8101, %v8103
      %v8105 = vrot.slane %v8091, %v8104
      %s8106 = scalar_lea.vmem %s14, 72
      %v8107 = vld [vmem:[%s8106] sm:$0xf]
      %v8108 = vld [vmem:[%s8106 + $0x4] sm:$0xf]
      %v8109 = vld [vmem:[%s8106 + $0x8] sm:$0xf]
      %v8110 = vld [vmem:[%s8106 + $0xc] sm:$0xf]
      %v8111 = vld [vmem:[%s8106 + $0x10] sm:$0xf]
      %v8112 = vld [vmem:[%s8106 + $0x14] sm:$0xf]
      %v8113 = vld [vmem:[%s8106 + $0x18] sm:$0xf]
      %v8114 = vld [vmem:[%s8106 + $0x1c] sm:$0xf]
      %v8115 = vld [vmem:[%s8106 + $0x20] sm:$0xf]
      %v8116 = vld [vmem:[%s8106 + $0x24] sm:$0xf]
      %v8117 = vld [vmem:[%s8106 + $0x28] sm:$0xf]
      %v8118 = vld [vmem:[%s8106 + $0x2c] sm:$0xf]
      %v8119 = vld [vmem:[%s8106 + $0x30] sm:$0xf]
      %v8120 = vld [vmem:[%s8106 + $0x34] sm:$0xf]
      %v8121 = vld [vmem:[%s8106 + $0x38] sm:$0xf]
      %v8122 = vld [vmem:[%s8106 + $0x3c] sm:$0xf]
      %v8123 = vld [vmem:[%s8106 + $0x40] sm:$0xf]
      %v8124 = vld [vmem:[%s8106 + $0x44] sm:$0xf]
      %s8125 = scalar_lea.vmem %s15, 1
      %v8126 = vld [vmem:[%s8125] sm:$0x1]
      %s8127 = scalar_lea.vmem %s16, 72
      %v8128 = vld [vmem:[%s8127] sm:$0xf]
      %v8129 = vld [vmem:[%s8127 + $0x4] sm:$0xf]
      %v8130 = vld [vmem:[%s8127 + $0x8] sm:$0xf]
      %v8131 = vld [vmem:[%s8127 + $0xc] sm:$0xf]
      %v8132 = vld [vmem:[%s8127 + $0x10] sm:$0xf]
      %v8133 = vld [vmem:[%s8127 + $0x14] sm:$0xf]
      %v8134 = vld [vmem:[%s8127 + $0x18] sm:$0xf]
      %v8135 = vld [vmem:[%s8127 + $0x1c] sm:$0xf]
      %v8136 = vld [vmem:[%s8127 + $0x20] sm:$0xf]
      %v8137 = vld [vmem:[%s8127 + $0x24] sm:$0xf]
      %v8138 = vld [vmem:[%s8127 + $0x28] sm:$0xf]
      %v8139 = vld [vmem:[%s8127 + $0x2c] sm:$0xf]
      %v8140 = vld [vmem:[%s8127 + $0x30] sm:$0xf]
      %v8141 = vld [vmem:[%s8127 + $0x34] sm:$0xf]
      %v8142 = vld [vmem:[%s8127 + $0x38] sm:$0xf]
      %v8143 = vld [vmem:[%s8127 + $0x3c] sm:$0xf]
      %v8144 = vld [vmem:[%s8127 + $0x40] sm:$0xf]
      %v8145 = vld [vmem:[%s8127 + $0x44] sm:$0xf]
      %s8146 = scalar_lea.vmem %s17, 1
      %v8147 = vld [vmem:[%s8146] sm:$0x1]
      %v8149 = vshrl.u32 %v8098, 16
      %v8151 = vrot.slane %v8149, 7
      %v8152 = vshll.u32 %v8098, 16
      %v8154 = vor.u32 %v8151, %v8152
      %v8156 = vshrl.u32 %v8105, 16
      %v8158 = vrot.slane %v8156, 7
      %v8159 = vshll.u32 %v8105, 16
      %v8161 = vor.u32 %v8158, %v8159
      %v8164 = vsel %vm880, 0, %v8154
      %v8165 = vsel %vm880, 0, %v8161
      %v8166 = vsel %vm7569, %v8164, 0
      %v8167 = vsel %vm7569, %v8165, 0
      %v8169 = vshrl.u32 %v8166, 16
      %v8171 = vshll.u32 %v8166, 16
      %v8173 = vrot.slane %v8171, 1
      %v8174 = vor.u32 %v8169, %v8173
      %8175 = vrot.lane.b32.xlu0 %v8174, 16
      %v8176 = vpop.permute.xlu0 %8175
      %v8178 = vrot.slane %v8166, 1
      %8179 = vrot.lane.b32.xlu0 %v8178, 32
      %v8180 = vpop.permute.xlu0 %8179
      %8182 = vrot.lane.b32.xlu0 %v8166, 48
      %v8183 = vpop.permute.xlu0 %8182
      %8184 = vrot.lane.b32.xlu0 %v8167, 48
      %v8185 = vpop.permute.xlu0 %8184
      %v8187 = vshrl.u32 %v8167, 16
      %v8189 = vshll.u32 %v8167, 16
      %v8191 = vrot.slane %v8189, 1
      %v8192 = vor.u32 %v8187, %v8191
      %8193 = vrot.lane.b32.xlu0 %v8174, 64
      %v8194 = vpop.permute.xlu0 %8193
      %8195 = vrot.lane.b32.xlu0 %v8192, 64
      %v8196 = vpop.permute.xlu0 %8195
      %v8197 = vrot.slane %v8167, 1
      %8198 = vrot.lane.b32.xlu0 %v8178, 80
      %v8199 = vpop.permute.xlu0 %8198
      %8200 = vrot.lane.b32.xlu0 %v8197, 80
      %v8201 = vpop.permute.xlu0 %8200
      %8202 = vrot.lane.b32.xlu0 %v8167, 96
      %v8203 = vpop.permute.xlu0 %8202
      %8204 = vrot.lane.b32.xlu0 %v8192, 112
      %v8205 = vpop.permute.xlu0 %8204
      %v8207 = vsel %vm1561, %v8166, %v8176
      %v8209 = vsel %vm1693, %v8207, %v8180
      %v8211 = vsel %vm2366, %v7633, %v8183
      %v8213 = vsel %vm2366, %v8209, %v8185
      %v8215 = vsel %vm2400, %v8211, %v8194
      %v8217 = vsel %vm2400, %v8213, %v8196
      %v8219 = vsel %vm5092, %v8215, %v8199
      %v8221 = vsel %vm5092, %v8217, %v8201
      %v8223 = vsel %vm5101, %v8219, %v8203
      %v8224 = vsel %vm5101, %v8221, %v7623
      %v8226 = vsel %vm5110, %v8223, %v8205
      %v8227 = vsel %vm5110, %v8224, %v7627
      %v8230 = vcombine.low %v8226, %v8197
      %v8232 = vunpack.c.l.s4 1966171168
      %v8233 = vunpack.c.0.s8 %v8232
      %v8234 = vlaneseq
      %v8235 = vshrl.u32 %v8234, 7
      %v8236 = vsub.s32 %v8233, %v8235
      %v8237 = vrot.slane %v8230, %v8236
      %v8239 = vunpack.c.l.s4 1966171168
      %v8240 = vunpack.c.0.s8 %v8239
      %v8241 = vlaneseq
      %v8242 = vshrl.u32 %v8241, 7
      %v8243 = vsub.s32 %v8240, %v8242
      %v8244 = vrot.slane %v8237, %v8243
      %v8245 = vcombine.low %v8227, %v7593
      %v8247 = vunpack.c.l.s4 1966171168
      %v8248 = vunpack.c.0.s8 %v8247
      %v8249 = vlaneseq
      %v8250 = vshrl.u32 %v8249, 7
      %v8251 = vsub.s32 %v8248, %v8250
      %v8252 = vrot.slane %v8245, %v8251
      %v8254 = vunpack.c.l.s4 1966171168
      %v8255 = vunpack.c.0.s8 %v8254
      %v8256 = vlaneseq
      %v8257 = vshrl.u32 %v8256, 7
      %v8258 = vsub.s32 %v8255, %v8257
      %v8259 = vrot.slane %v8252, %v8258
      %v8261 = vlaneseq
      %v8262 = vshrl.u32 %v8261, 7
      %v8263 = vsub.s32 0, %v8262
      %v8264 = vrot.slane %v8126, %v8263
      %v8266 = vcombine.low %v8244, %v8259
      %v8268 = vunpack.c.l.s4 1966171168
      %v8269 = vunpack.c.0.s8 %v8268
      %v8270 = vlaneseq
      %v8271 = vshrl.u32 %v8270, 7
      %v8272 = vsub.s32 %v8269, %v8271
      %v8273 = vrot.slane %v8266, %v8272
      %v8274 = vcombine.high %v8273, %v8273
      %v8276 = vunpack.c.l.s4 1966171168
      %v8277 = vunpack.c.0.s8 %v8276
      %v8278 = vlaneseq
      %v8279 = vshrl.u32 %v8278, 7
      %v8280 = vsub.s32 %v8277, %v8279
      %v8281 = vrot.slane %v8273, %v8280
      %v8283 = vunpack.c.l.s4 1966171168
      %v8284 = vunpack.c.0.s8 %v8283
      %v8285 = vlaneseq
      %v8286 = vshrl.u32 %v8285, 7
      %v8287 = vsub.s32 %v8284, %v8286
      %v8288 = vrot.slane %v8274, %v8287
      %v8308 = vunpack.c.l.b16 %v8107
      %v8309 = vunpack.c.l.b16 %v8108
      %v8310 = vunpack.c.l.b16 %v8109
      %v8311 = vunpack.c.l.b16 %v8110
      %v8312 = vunpack.c.l.b16 %v8111
      %v8313 = vunpack.c.l.b16 %v8112
      %v8314 = vunpack.c.l.b16 %v8113
      %v8315 = vunpack.c.l.b16 %v8114
      %v8316 = vunpack.c.l.b16 %v8115
      %v8317 = vunpack.c.l.b16 %v8116
      %v8318 = vunpack.c.l.b16 %v8117
      %v8319 = vunpack.c.l.b16 %v8118
      %v8320 = vunpack.c.l.b16 %v8119
      %v8321 = vunpack.c.l.b16 %v8120
      %v8322 = vunpack.c.l.b16 %v8121
      %v8323 = vunpack.c.l.b16 %v8122
      %v8324 = vunpack.c.l.b16 %v8123
      %v8325 = vunpack.c.l.b16 %v8124
      %v8326 = vpack.c.b16 %v8309, %v8308
      %v8327 = vpack.c.b16 %v8311, %v8310
      %v8328 = vpack.c.b16 %v8313, %v8312
      %v8329 = vpack.c.b16 %v8315, %v8314
      %v8330 = vpack.c.b16 %v8317, %v8316
      %v8331 = vpack.c.b16 %v8319, %v8318
      %v8332 = vpack.c.b16 %v8321, %v8320
      %v8333 = vpack.c.b16 %v8323, %v8322
      %v8334 = vpack.c.b16 %v8325, %v8324
      %v8345 = vsel %vm1561, %v8288, 0
      %8347 = vmatprep.subr.bf16.mxu0 0
      %8348 = vmatpush1.bf16.msra.mxu0 %v8326
      %8349 = vmatprep.subr.bf16.mxu0 0
      %8350 = vmatpush1.bf16.msra.mxu0 %v8327
      %8351 = vmatprep.subr.bf16.mxu0 0
      %8352 = vmatpush1.bf16.msra.mxu0 %v8328
      %8353 = vmatprep.subr.bf16.mxu0 0
      %8354 = vmatpush1.bf16.msra.mxu0 %v8329
      %8355 = vmatprep.subr.bf16.mxu0 0
      %8356 = vmatpush1.bf16.msra.mxu0 %v8330
      %8357 = vmatprep.subr.bf16.mxu0 0
      %8358 = vmatpush1.bf16.msra.mxu0 %v8331
      %8359 = vmatprep.subr.bf16.mxu0 0
      %8360 = vmatpush1.bf16.msra.mxu0 %v8332
      %8361 = vmatprep.subr.bf16.mxu0 0
      %8362 = vmatpush1.bf16.msra.mxu0 %v8333
      %8363 = vmatprep.subr.bf16.mxu0 0
      %8364 = vmatpush1.bf16.msra.mxu0 %v8334
      %8365 = vmatprep.subr.bf16.mxu0 0
      %8366 = vmatpush1.bf16.msra.mxu0 0
      %8367 = vmatprep.subr.bf16.mxu0 0
      %8368 = vmatpush1.bf16.msra.mxu0 0
      %8369 = vmatprep.subr.bf16.mxu0 0
      %8370 = vmatpush1.bf16.msra.mxu0 0
      %8371 = vmatprep.subr.bf16.mxu0 0
      %8372 = vmatpush1.bf16.msra.mxu0 0
      %8373 = vmatprep.subr.bf16.mxu0 0
      %8374 = vmatpush1.bf16.msra.mxu0 0
      %8375 = vmatprep.subr.bf16.mxu0 0
      %8376 = vmatpush1.bf16.msra.mxu0 0
      %8377 = vmatprep.subr.bf16.mxu0 0
      %8378 = vmatpush1.bf16.msra.mxu0 0
      %8379 = vmatprep.mubr.bf16.mxu0 %v8345
      %8380 = vmatmul.mubr.bf16.gmra.mrb[0].mxu0 %v8281
      %v8381 = vpop.f32.mrb[0].mxu0
      %v8382 = vadd.f32 %v8264, %v8381
      %v8383 = vpop.f32.mrb[0].mxu0
      %v8384 = vpop.f32.mrb[0].mxu0
      %v8385 = vpop.f32.mrb[0].mxu0
      %8386 = vdwg.mxu0
      %v8387 = vmax.f32 %v8382, 0.0
      %v8388 = vpack.c.bf16 %v8387, %v8387
      %v8391 = vunpack.c.l.s4 1966171168
      %v8392 = vunpack.c.0.s8 %v8391
      %v8393 = vlaneseq
      %v8394 = vshrl.u32 %v8393, 7
      %v8395 = vsub.s32 %v8392, %v8394
      %v8396 = vrot.slane %v8388, %v8395
      %v8397 = vcombine.high %v8396, %v8396
      %v8399 = vunpack.c.l.s4 1966171168
      %v8400 = vunpack.c.0.s8 %v8399
      %v8401 = vlaneseq
      %v8402 = vshrl.u32 %v8401, 7
      %v8403 = vsub.s32 %v8400, %v8402
      %v8404 = vrot.slane %v8396, %v8403
      %v8406 = vunpack.c.l.s4 1966171168
      %v8407 = vunpack.c.0.s8 %v8406
      %v8408 = vlaneseq
      %v8409 = vshrl.u32 %v8408, 7
      %v8410 = vsub.s32 %v8407, %v8409
      %v8411 = vrot.slane %v8397, %v8410
      %v8413 = vshrl.u32 %v8404, 16
      %v8415 = vrot.slane %v8413, 7
      %v8416 = vshll.u32 %v8404, 16
      %v8418 = vor.u32 %v8415, %v8416
      %v8420 = vshrl.u32 %v8411, 16
      %v8422 = vrot.slane %v8420, 7
      %v8423 = vshll.u32 %v8411, 16
      %v8425 = vor.u32 %v8422, %v8423
      %v8428 = vsel %vm880, 0, %v8418
      %v8429 = vsel %vm880, 0, %v8425
      %v8430 = vsel %vm7569, %v8428, 0
      %v8431 = vsel %vm7569, %v8429, 0
      %v8433 = vshrl.u32 %v8430, 16
      %v8435 = vshll.u32 %v8430, 16
      %v8437 = vrot.slane %v8435, 1
      %v8438 = vor.u32 %v8433, %v8437
      %8439 = vrot.lane.b32.xlu0 %v8438, 16
      %v8440 = vpop.permute.xlu0 %8439
      %v8442 = vrot.slane %v8430, 1
      %8443 = vrot.lane.b32.xlu0 %v8442, 32
      %v8444 = vpop.permute.xlu0 %8443
      %8446 = vrot.lane.b32.xlu0 %v8430, 48
      %v8447 = vpop.permute.xlu0 %8446
      %8448 = vrot.lane.b32.xlu0 %v8431, 48
      %v8449 = vpop.permute.xlu0 %8448
      %v8451 = vshrl.u32 %v8431, 16
      %v8453 = vshll.u32 %v8431, 16
      %v8455 = vrot.slane %v8453, 1
      %v8456 = vor.u32 %v8451, %v8455
      %8457 = vrot.lane.b32.xlu0 %v8438, 64
      %v8458 = vpop.permute.xlu0 %8457
      %8459 = vrot.lane.b32.xlu0 %v8456, 64
      %v8460 = vpop.permute.xlu0 %8459
      %v8461 = vrot.slane %v8431, 1
      %8462 = vrot.lane.b32.xlu0 %v8442, 80
      %v8463 = vpop.permute.xlu0 %8462
      %8464 = vrot.lane.b32.xlu0 %v8461, 80
      %v8465 = vpop.permute.xlu0 %8464
      %8466 = vrot.lane.b32.xlu0 %v8431, 96
      %v8467 = vpop.permute.xlu0 %8466
      %8468 = vrot.lane.b32.xlu0 %v8456, 112
      %v8469 = vpop.permute.xlu0 %8468
      %v8471 = vsel %vm1561, %v8430, %v8440
      %v8473 = vsel %vm1693, %v8471, %v8444
      %v8475 = vsel %vm2366, %v7633, %v8447
      %v8477 = vsel %vm2366, %v8473, %v8449
      %v8479 = vsel %vm2400, %v8475, %v8458
      %v8481 = vsel %vm2400, %v8477, %v8460
      %v8483 = vsel %vm5092, %v8479, %v8463
      %v8485 = vsel %vm5092, %v8481, %v8465
      %v8487 = vsel %vm5101, %v8483, %v8467
      %v8488 = vsel %vm5101, %v8485, %v7623
      %v8490 = vsel %vm5110, %v8487, %v8469
      %v8491 = vsel %vm5110, %v8488, %v7627
      %v8494 = vcombine.low %v8490, %v8461
      %v8496 = vunpack.c.l.s4 1966171168
      %v8497 = vunpack.c.0.s8 %v8496
      %v8498 = vlaneseq
      %v8499 = vshrl.u32 %v8498, 7
      %v8500 = vsub.s32 %v8497, %v8499
      %v8501 = vrot.slane %v8494, %v8500
      %v8503 = vunpack.c.l.s4 1966171168
      %v8504 = vunpack.c.0.s8 %v8503
      %v8505 = vlaneseq
      %v8506 = vshrl.u32 %v8505, 7
      %v8507 = vsub.s32 %v8504, %v8506
      %v8508 = vrot.slane %v8501, %v8507
      %v8509 = vcombine.low %v8491, %v7593
      %v8511 = vunpack.c.l.s4 1966171168
      %v8512 = vunpack.c.0.s8 %v8511
      %v8513 = vlaneseq
      %v8514 = vshrl.u32 %v8513, 7
      %v8515 = vsub.s32 %v8512, %v8514
      %v8516 = vrot.slane %v8509, %v8515
      %v8518 = vunpack.c.l.s4 1966171168
      %v8519 = vunpack.c.0.s8 %v8518
      %v8520 = vlaneseq
      %v8521 = vshrl.u32 %v8520, 7
      %v8522 = vsub.s32 %v8519, %v8521
      %v8523 = vrot.slane %v8516, %v8522
      %v8525 = vlaneseq
      %v8526 = vshrl.u32 %v8525, 7
      %v8527 = vsub.s32 0, %v8526
      %v8528 = vrot.slane %v8147, %v8527
      %v8530 = vcombine.low %v8508, %v8523
      %v8532 = vunpack.c.l.s4 1966171168
      %v8533 = vunpack.c.0.s8 %v8532
      %v8534 = vlaneseq
      %v8535 = vshrl.u32 %v8534, 7
      %v8536 = vsub.s32 %v8533, %v8535
      %v8537 = vrot.slane %v8530, %v8536
      %v8538 = vcombine.high %v8537, %v8537
      %v8540 = vunpack.c.l.s4 1966171168
      %v8541 = vunpack.c.0.s8 %v8540
      %v8542 = vlaneseq
      %v8543 = vshrl.u32 %v8542, 7
      %v8544 = vsub.s32 %v8541, %v8543
      %v8545 = vrot.slane %v8537, %v8544
      %v8547 = vunpack.c.l.s4 1966171168
      %v8548 = vunpack.c.0.s8 %v8547
      %v8549 = vlaneseq
      %v8550 = vshrl.u32 %v8549, 7
      %v8551 = vsub.s32 %v8548, %v8550
      %v8552 = vrot.slane %v8538, %v8551
      %v8572 = vunpack.c.l.b16 %v8128
      %v8573 = vunpack.c.l.b16 %v8129
      %v8574 = vunpack.c.l.b16 %v8130
      %v8575 = vunpack.c.l.b16 %v8131
      %v8576 = vunpack.c.l.b16 %v8132
      %v8577 = vunpack.c.l.b16 %v8133
      %v8578 = vunpack.c.l.b16 %v8134
      %v8579 = vunpack.c.l.b16 %v8135
      %v8580 = vunpack.c.l.b16 %v8136
      %v8581 = vunpack.c.l.b16 %v8137
      %v8582 = vunpack.c.l.b16 %v8138
      %v8583 = vunpack.c.l.b16 %v8139
      %v8584 = vunpack.c.l.b16 %v8140
      %v8585 = vunpack.c.l.b16 %v8141
      %v8586 = vunpack.c.l.b16 %v8142
      %v8587 = vunpack.c.l.b16 %v8143
      %v8588 = vunpack.c.l.b16 %v8144
      %v8589 = vunpack.c.l.b16 %v8145
      %v8590 = vpack.c.b16 %v8573, %v8572
      %v8591 = vpack.c.b16 %v8575, %v8574
      %v8592 = vpack.c.b16 %v8577, %v8576
      %v8593 = vpack.c.b16 %v8579, %v8578
      %v8594 = vpack.c.b16 %v8581, %v8580
      %v8595 = vpack.c.b16 %v8583, %v8582
      %v8596 = vpack.c.b16 %v8585, %v8584
      %v8597 = vpack.c.b16 %v8587, %v8586
      %v8598 = vpack.c.b16 %v8589, %v8588
      %v8609 = vsel %vm1561, %v8552, 0
      %8611 = vmatprep.subr.bf16.mxu0 0
      %8612 = vmatpush1.bf16.msra.mxu0 %v8590
      %8613 = vmatprep.subr.bf16.mxu0 0
      %8614 = vmatpush1.bf16.msra.mxu0 %v8591
      %8615 = vmatprep.subr.bf16.mxu0 0
      %8616 = vmatpush1.bf16.msra.mxu0 %v8592
      %8617 = vmatprep.subr.bf16.mxu0 0
      %8618 = vmatpush1.bf16.msra.mxu0 %v8593
      %8619 = vmatprep.subr.bf16.mxu0 0
      %8620 = vmatpush1.bf16.msra.mxu0 %v8594
      %8621 = vmatprep.subr.bf16.mxu0 0
      %8622 = vmatpush1.bf16.msra.mxu0 %v8595
      %8623 = vmatprep.subr.bf16.mxu0 0
      %8624 = vmatpush1.bf16.msra.mxu0 %v8596
      %8625 = vmatprep.subr.bf16.mxu0 0
      %8626 = vmatpush1.bf16.msra.mxu0 %v8597
      %8627 = vmatprep.subr.bf16.mxu0 0
      %8628 = vmatpush1.bf16.msra.mxu0 %v8598
      %8629 = vmatprep.subr.bf16.mxu0 0
      %8630 = vmatpush1.bf16.msra.mxu0 0
      %8631 = vmatprep.subr.bf16.mxu0 0
      %8632 = vmatpush1.bf16.msra.mxu0 0
      %8633 = vmatprep.subr.bf16.mxu0 0
      %8634 = vmatpush1.bf16.msra.mxu0 0
      %8635 = vmatprep.subr.bf16.mxu0 0
      %8636 = vmatpush1.bf16.msra.mxu0 0
      %8637 = vmatprep.subr.bf16.mxu0 0
      %8638 = vmatpush1.bf16.msra.mxu0 0
      %8639 = vmatprep.subr.bf16.mxu0 0
      %8640 = vmatpush1.bf16.msra.mxu0 0
      %8641 = vmatprep.subr.bf16.mxu0 0
      %8642 = vmatpush1.bf16.msra.mxu0 0
      %8643 = vmatprep.mubr.bf16.mxu0 %v8609
      %8644 = vmatmul.mubr.bf16.gmra.mrb[0].mxu0 %v8545
      %v8645 = vpop.f32.mrb[0].mxu0
      %v8646 = vadd.f32 %v8528, %v8645
      %v8647 = vpop.f32.mrb[0].mxu0
      %v8648 = vpop.f32.mrb[0].mxu0
      %v8649 = vpop.f32.mrb[0].mxu0
      %8650 = vdwg.mxu0
      %v8651 = vunpack.c.l.bf16 %v8082
      %v8652 = vadd.f32 %v8646, %v8651
      %v8653 = vmax.f32 %v8652, 0.0
      %v8654 = vpack.c.bf16 %v8653, %v8653
      %v8657 = vunpack.c.l.s4 1966171168
      %v8658 = vunpack.c.0.s8 %v8657
      %v8659 = vlaneseq
      %v8660 = vshrl.u32 %v8659, 7
      %v8661 = vsub.s32 %v8658, %v8660
      %v8662 = vrot.slane %v8654, %v8661
      %v8663 = vcombine.high %v8662, %v8662
      %v8665 = vunpack.c.l.s4 1966171168
      %v8666 = vunpack.c.0.s8 %v8665
      %v8667 = vlaneseq
      %v8668 = vshrl.u32 %v8667, 7
      %v8669 = vsub.s32 %v8666, %v8668
      %v8670 = vrot.slane %v8662, %v8669
      %v8672 = vunpack.c.l.s4 1966171168
      %v8673 = vunpack.c.0.s8 %v8672
      %v8674 = vlaneseq
      %v8675 = vshrl.u32 %v8674, 7
      %v8676 = vsub.s32 %v8673, %v8675
      %v8677 = vrot.slane %v8663, %v8676
      %s8678 = scalar_lea.vmem %s14, 144
      %v8679 = vld [vmem:[%s8678] sm:$0xf]
      %v8680 = vld [vmem:[%s8678 + $0x4] sm:$0xf]
      %v8681 = vld [vmem:[%s8678 + $0x8] sm:$0xf]
      %v8682 = vld [vmem:[%s8678 + $0xc] sm:$0xf]
      %v8683 = vld [vmem:[%s8678 + $0x10] sm:$0xf]
      %v8684 = vld [vmem:[%s8678 + $0x14] sm:$0xf]
      %v8685 = vld [vmem:[%s8678 + $0x18] sm:$0xf]
      %v8686 = vld [vmem:[%s8678 + $0x1c] sm:$0xf]
      %v8687 = vld [vmem:[%s8678 + $0x20] sm:$0xf]
      %v8688 = vld [vmem:[%s8678 + $0x24] sm:$0xf]
      %v8689 = vld [vmem:[%s8678 + $0x28] sm:$0xf]
      %v8690 = vld [vmem:[%s8678 + $0x2c] sm:$0xf]
      %v8691 = vld [vmem:[%s8678 + $0x30] sm:$0xf]
      %v8692 = vld [vmem:[%s8678 + $0x34] sm:$0xf]
      %v8693 = vld [vmem:[%s8678 + $0x38] sm:$0xf]
      %v8694 = vld [vmem:[%s8678 + $0x3c] sm:$0xf]
      %v8695 = vld [vmem:[%s8678 + $0x40] sm:$0xf]
      %v8696 = vld [vmem:[%s8678 + $0x44] sm:$0xf]
      %s8697 = scalar_lea.vmem %s15, 2
      %v8698 = vld [vmem:[%s8697] sm:$0x1]
      %s8699 = scalar_lea.vmem %s16, 144
      %v8700 = vld [vmem:[%s8699] sm:$0xf]
      %v8701 = vld [vmem:[%s8699 + $0x4] sm:$0xf]
      %v8702 = vld [vmem:[%s8699 + $0x8] sm:$0xf]
      %v8703 = vld [vmem:[%s8699 + $0xc] sm:$0xf]
      %v8704 = vld [vmem:[%s8699 + $0x10] sm:$0xf]
      %v8705 = vld [vmem:[%s8699 + $0x14] sm:$0xf]
      %v8706 = vld [vmem:[%s8699 + $0x18] sm:$0xf]
      %v8707 = vld [vmem:[%s8699 + $0x1c] sm:$0xf]
      %v8708 = vld [vmem:[%s8699 + $0x20] sm:$0xf]
      %v8709 = vld [vmem:[%s8699 + $0x24] sm:$0xf]
      %v8710 = vld [vmem:[%s8699 + $0x28] sm:$0xf]
      %v8711 = vld [vmem:[%s8699 + $0x2c] sm:$0xf]
      %v8712 = vld [vmem:[%s8699 + $0x30] sm:$0xf]
      %v8713 = vld [vmem:[%s8699 + $0x34] sm:$0xf]
      %v8714 = vld [vmem:[%s8699 + $0x38] sm:$0xf]
      %v8715 = vld [vmem:[%s8699 + $0x3c] sm:$0xf]
      %v8716 = vld [vmem:[%s8699 + $0x40] sm:$0xf]
      %v8717 = vld [vmem:[%s8699 + $0x44] sm:$0xf]
      %s8718 = scalar_lea.vmem %s17, 2
      %v8719 = vld [vmem:[%s8718] sm:$0x1]
      %v8721 = vshrl.u32 %v8670, 16
      %v8723 = vrot.slane %v8721, 7
      %v8724 = vshll.u32 %v8670, 16
      %v8726 = vor.u32 %v8723, %v8724
      %v8728 = vshrl.u32 %v8677, 16
      %v8730 = vrot.slane %v8728, 7
      %v8731 = vshll.u32 %v8677, 16
      %v8733 = vor.u32 %v8730, %v8731
      %v8736 = vsel %vm880, 0, %v8726
      %v8737 = vsel %vm880, 0, %v8733
      %v8738 = vsel %vm7569, %v8736, 0
      %v8739 = vsel %vm7569, %v8737, 0
      %v8741 = vshrl.u32 %v8738, 16
      %v8743 = vshll.u32 %v8738, 16
      %v8745 = vrot.slane %v8743, 1
      %v8746 = vor.u32 %v8741, %v8745
      %8747 = vrot.lane.b32.xlu0 %v8746, 16
      %v8748 = vpop.permute.xlu0 %8747
      %v8750 = vrot.slane %v8738, 1
      %8751 = vrot.lane.b32.xlu0 %v8750, 32
      %v8752 = vpop.permute.xlu0 %8751
      %8754 = vrot.lane.b32.xlu0 %v8738, 48
      %v8755 = vpop.permute.xlu0 %8754
      %8756 = vrot.lane.b32.xlu0 %v8739, 48
      %v8757 = vpop.permute.xlu0 %8756
      %v8759 = vshrl.u32 %v8739, 16
      %v8761 = vshll.u32 %v8739, 16
      %v8763 = vrot.slane %v8761, 1
      %v8764 = vor.u32 %v8759, %v8763
      %8765 = vrot.lane.b32.xlu0 %v8746, 64
      %v8766 = vpop.permute.xlu0 %8765
      %8767 = vrot.lane.b32.xlu0 %v8764, 64
      %v8768 = vpop.permute.xlu0 %8767
      %v8769 = vrot.slane %v8739, 1
      %8770 = vrot.lane.b32.xlu0 %v8750, 80
      %v8771 = vpop.permute.xlu0 %8770
      %8772 = vrot.lane.b32.xlu0 %v8769, 80
      %v8773 = vpop.permute.xlu0 %8772
      %8774 = vrot.lane.b32.xlu0 %v8739, 96
      %v8775 = vpop.permute.xlu0 %8774
      %8776 = vrot.lane.b32.xlu0 %v8764, 112
      %v8777 = vpop.permute.xlu0 %8776
      %v8779 = vsel %vm1561, %v8738, %v8748
      %v8781 = vsel %vm1693, %v8779, %v8752
      %v8783 = vsel %vm2366, %v7633, %v8755
      %v8785 = vsel %vm2366, %v8781, %v8757
      %v8787 = vsel %vm2400, %v8783, %v8766
      %v8789 = vsel %vm2400, %v8785, %v8768
      %v8791 = vsel %vm5092, %v8787, %v8771
      %v8793 = vsel %vm5092, %v8789, %v8773
      %v8795 = vsel %vm5101, %v8791, %v8775
      %v8796 = vsel %vm5101, %v8793, %v7623
      %v8798 = vsel %vm5110, %v8795, %v8777
      %v8799 = vsel %vm5110, %v8796, %v7627
      %v8802 = vcombine.low %v8798, %v8769
      %v8804 = vunpack.c.l.s4 1966171168
      %v8805 = vunpack.c.0.s8 %v8804
      %v8806 = vlaneseq
      %v8807 = vshrl.u32 %v8806, 7
      %v8808 = vsub.s32 %v8805, %v8807
      %v8809 = vrot.slane %v8802, %v8808
      %v8811 = vunpack.c.l.s4 1966171168
      %v8812 = vunpack.c.0.s8 %v8811
      %v8813 = vlaneseq
      %v8814 = vshrl.u32 %v8813, 7
      %v8815 = vsub.s32 %v8812, %v8814
      %v8816 = vrot.slane %v8809, %v8815
      %v8817 = vcombine.low %v8799, %v7593
      %v8819 = vunpack.c.l.s4 1966171168
      %v8820 = vunpack.c.0.s8 %v8819
      %v8821 = vlaneseq
      %v8822 = vshrl.u32 %v8821, 7
      %v8823 = vsub.s32 %v8820, %v8822
      %v8824 = vrot.slane %v8817, %v8823
      %v8826 = vunpack.c.l.s4 1966171168
      %v8827 = vunpack.c.0.s8 %v8826
      %v8828 = vlaneseq
      %v8829 = vshrl.u32 %v8828, 7
      %v8830 = vsub.s32 %v8827, %v8829
      %v8831 = vrot.slane %v8824, %v8830
      %v8833 = vlaneseq
      %v8834 = vshrl.u32 %v8833, 7
      %v8835 = vsub.s32 0, %v8834
      %v8836 = vrot.slane %v8698, %v8835
      %v8838 = vcombine.low %v8816, %v8831
      %v8840 = vunpack.c.l.s4 1966171168
      %v8841 = vunpack.c.0.s8 %v8840
      %v8842 = vlaneseq
      %v8843 = vshrl.u32 %v8842, 7
      %v8844 = vsub.s32 %v8841, %v8843
      %v8845 = vrot.slane %v8838, %v8844
      %v8846 = vcombine.high %v8845, %v8845
      %v8848 = vunpack.c.l.s4 1966171168
      %v8849 = vunpack.c.0.s8 %v8848
      %v8850 = vlaneseq
      %v8851 = vshrl.u32 %v8850, 7
      %v8852 = vsub.s32 %v8849, %v8851
      %v8853 = vrot.slane %v8845, %v8852
      %v8855 = vunpack.c.l.s4 1966171168
      %v8856 = vunpack.c.0.s8 %v8855
      %v8857 = vlaneseq
      %v8858 = vshrl.u32 %v8857, 7
      %v8859 = vsub.s32 %v8856, %v8858
      %v8860 = vrot.slane %v8846, %v8859
      %v8880 = vunpack.c.l.b16 %v8679
      %v8881 = vunpack.c.l.b16 %v8680
      %v8882 = vunpack.c.l.b16 %v8681
      %v8883 = vunpack.c.l.b16 %v8682
      %v8884 = vunpack.c.l.b16 %v8683
      %v8885 = vunpack.c.l.b16 %v8684
      %v8886 = vunpack.c.l.b16 %v8685
      %v8887 = vunpack.c.l.b16 %v8686
      %v8888 = vunpack.c.l.b16 %v8687
      %v8889 = vunpack.c.l.b16 %v8688
      %v8890 = vunpack.c.l.b16 %v8689
      %v8891 = vunpack.c.l.b16 %v8690
      %v8892 = vunpack.c.l.b16 %v8691
      %v8893 = vunpack.c.l.b16 %v8692
      %v8894 = vunpack.c.l.b16 %v8693
      %v8895 = vunpack.c.l.b16 %v8694
      %v8896 = vunpack.c.l.b16 %v8695
      %v8897 = vunpack.c.l.b16 %v8696
      %v8898 = vpack.c.b16 %v8881, %v8880
      %v8899 = vpack.c.b16 %v8883, %v8882
      %v8900 = vpack.c.b16 %v8885, %v8884
      %v8901 = vpack.c.b16 %v8887, %v8886
      %v8902 = vpack.c.b16 %v8889, %v8888
      %v8903 = vpack.c.b16 %v8891, %v8890
      %v8904 = vpack.c.b16 %v8893, %v8892
      %v8905 = vpack.c.b16 %v8895, %v8894
      %v8906 = vpack.c.b16 %v8897, %v8896
      %v8917 = vsel %vm1561, %v8860, 0
      %8919 = vmatprep.subr.bf16.mxu0 0
      %8920 = vmatpush1.bf16.msra.mxu0 %v8898
      %8921 = vmatprep.subr.bf16.mxu0 0
      %8922 = vmatpush1.bf16.msra.mxu0 %v8899
      %8923 = vmatprep.subr.bf16.mxu0 0
      %8924 = vmatpush1.bf16.msra.mxu0 %v8900
      %8925 = vmatprep.subr.bf16.mxu0 0
      %8926 = vmatpush1.bf16.msra.mxu0 %v8901
      %8927 = vmatprep.subr.bf16.mxu0 0
      %8928 = vmatpush1.bf16.msra.mxu0 %v8902
      %8929 = vmatprep.subr.bf16.mxu0 0
      %8930 = vmatpush1.bf16.msra.mxu0 %v8903
      %8931 = vmatprep.subr.bf16.mxu0 0
      %8932 = vmatpush1.bf16.msra.mxu0 %v8904
      %8933 = vmatprep.subr.bf16.mxu0 0
      %8934 = vmatpush1.bf16.msra.mxu0 %v8905
      %8935 = vmatprep.subr.bf16.mxu0 0
      %8936 = vmatpush1.bf16.msra.mxu0 %v8906
      %8937 = vmatprep.subr.bf16.mxu0 0
      %8938 = vmatpush1.bf16.msra.mxu0 0
      %8939 = vmatprep.subr.bf16.mxu0 0
      %8940 = vmatpush1.bf16.msra.mxu0 0
      %8941 = vmatprep.subr.bf16.mxu0 0
      %8942 = vmatpush1.bf16.msra.mxu0 0
      %8943 = vmatprep.subr.bf16.mxu0 0
      %8944 = vmatpush1.bf16.msra.mxu0 0
      %8945 = vmatprep.subr.bf16.mxu0 0
      %8946 = vmatpush1.bf16.msra.mxu0 0
      %8947 = vmatprep.subr.bf16.mxu0 0
      %8948 = vmatpush1.bf16.msra.mxu0 0
      %8949 = vmatprep.subr.bf16.mxu0 0
      %8950 = vmatpush1.bf16.msra.mxu0 0
      %8951 = vmatprep.mubr.bf16.mxu0 %v8917
      %8952 = vmatmul.mubr.bf16.gmra.mrb[0].mxu0 %v8853
      %v8953 = vpop.f32.mrb[0].mxu0
      %v8954 = vadd.f32 %v8836, %v8953
      %v8955 = vpop.f32.mrb[0].mxu0
      %v8956 = vpop.f32.mrb[0].mxu0
      %v8957 = vpop.f32.mrb[0].mxu0
      %8958 = vdwg.mxu0
      %v8959 = vmax.f32 %v8954, 0.0
      %v8960 = vpack.c.bf16 %v8959, %v8959
      %v8963 = vunpack.c.l.s4 1966171168
      %v8964 = vunpack.c.0.s8 %v8963
      %v8965 = vlaneseq
      %v8966 = vshrl.u32 %v8965, 7
      %v8967 = vsub.s32 %v8964, %v8966
      %v8968 = vrot.slane %v8960, %v8967
      %v8969 = vcombine.high %v8968, %v8968
      %v8971 = vunpack.c.l.s4 1966171168
      %v8972 = vunpack.c.0.s8 %v8971
      %v8973 = vlaneseq
      %v8974 = vshrl.u32 %v8973, 7
      %v8975 = vsub.s32 %v8972, %v8974
      %v8976 = vrot.slane %v8968, %v8975
      %v8978 = vunpack.c.l.s4 1966171168
      %v8979 = vunpack.c.0.s8 %v8978
      %v8980 = vlaneseq
      %v8981 = vshrl.u32 %v8980, 7
      %v8982 = vsub.s32 %v8979, %v8981
      %v8983 = vrot.slane %v8969, %v8982
      %v8985 = vshrl.u32 %v8976, 16
      %v8987 = vrot.slane %v8985, 7
      %v8988 = vshll.u32 %v8976, 16
      %v8990 = vor.u32 %v8987, %v8988
      %v8992 = vshrl.u32 %v8983, 16
      %v8994 = vrot.slane %v8992, 7
      %v8995 = vshll.u32 %v8983, 16
      %v8997 = vor.u32 %v8994, %v8995
      %v9000 = vsel %vm880, 0, %v8990
      %v9001 = vsel %vm880, 0, %v8997
      %v9002 = vsel %vm7569, %v9000, 0
      %v9003 = vsel %vm7569, %v9001, 0
      %v9005 = vshrl.u32 %v9002, 16
      %v9007 = vshll.u32 %v9002, 16
      %v9009 = vrot.slane %v9007, 1
      %v9010 = vor.u32 %v9005, %v9009
      %9011 = vrot.lane.b32.xlu0 %v9010, 16
      %v9012 = vpop.permute.xlu0 %9011
      %v9014 = vrot.slane %v9002, 1
      %9015 = vrot.lane.b32.xlu0 %v9014, 32
      %v9016 = vpop.permute.xlu0 %9015
      %9018 = vrot.lane.b32.xlu0 %v9002, 48
      %v9019 = vpop.permute.xlu0 %9018
      %9020 = vrot.lane.b32.xlu0 %v9003, 48
      %v9021 = vpop.permute.xlu0 %9020
      %v9023 = vshrl.u32 %v9003, 16
      %v9025 = vshll.u32 %v9003, 16
      %v9027 = vrot.slane %v9025, 1
      %v9028 = vor.u32 %v9023, %v9027
      %9029 = vrot.lane.b32.xlu0 %v9010, 64
      %v9030 = vpop.permute.xlu0 %9029
      %9031 = vrot.lane.b32.xlu0 %v9028, 64
      %v9032 = vpop.permute.xlu0 %9031
      %v9033 = vrot.slane %v9003, 1
      %9034 = vrot.lane.b32.xlu0 %v9014, 80
      %v9035 = vpop.permute.xlu0 %9034
      %9036 = vrot.lane.b32.xlu0 %v9033, 80
      %v9037 = vpop.permute.xlu0 %9036
      %9038 = vrot.lane.b32.xlu0 %v9003, 96
      %v9039 = vpop.permute.xlu0 %9038
      %9040 = vrot.lane.b32.xlu0 %v9028, 112
      %v9041 = vpop.permute.xlu0 %9040
      %v9043 = vsel %vm1561, %v9002, %v9012
      %v9045 = vsel %vm1693, %v9043, %v9016
      %v9047 = vsel %vm2366, %v7633, %v9019
      %v9049 = vsel %vm2366, %v9045, %v9021
      %v9051 = vsel %vm2400, %v9047, %v9030
      %v9053 = vsel %vm2400, %v9049, %v9032
      %v9055 = vsel %vm5092, %v9051, %v9035
      %v9057 = vsel %vm5092, %v9053, %v9037
      %v9059 = vsel %vm5101, %v9055, %v9039
      %v9060 = vsel %vm5101, %v9057, %v7623
      %v9062 = vsel %vm5110, %v9059, %v9041
      %v9063 = vsel %vm5110, %v9060, %v7627
      %v9066 = vcombine.low %v9062, %v9033
      %v9068 = vunpack.c.l.s4 1966171168
      %v9069 = vunpack.c.0.s8 %v9068
      %v9070 = vlaneseq
      %v9071 = vshrl.u32 %v9070, 7
      %v9072 = vsub.s32 %v9069, %v9071
      %v9073 = vrot.slane %v9066, %v9072
      %v9075 = vunpack.c.l.s4 1966171168
      %v9076 = vunpack.c.0.s8 %v9075
      %v9077 = vlaneseq
      %v9078 = vshrl.u32 %v9077, 7
      %v9079 = vsub.s32 %v9076, %v9078
      %v9080 = vrot.slane %v9073, %v9079
      %v9081 = vcombine.low %v9063, %v7593
      %v9083 = vunpack.c.l.s4 1966171168
      %v9084 = vunpack.c.0.s8 %v9083
      %v9085 = vlaneseq
      %v9086 = vshrl.u32 %v9085, 7
      %v9087 = vsub.s32 %v9084, %v9086
      %v9088 = vrot.slane %v9081, %v9087
      %v9090 = vunpack.c.l.s4 1966171168
      %v9091 = vunpack.c.0.s8 %v9090
      %v9092 = vlaneseq
      %v9093 = vshrl.u32 %v9092, 7
      %v9094 = vsub.s32 %v9091, %v9093
      %v9095 = vrot.slane %v9088, %v9094
      %v9097 = vlaneseq
      %v9098 = vshrl.u32 %v9097, 7
      %v9099 = vsub.s32 0, %v9098
      %v9100 = vrot.slane %v8719, %v9099
      %v9102 = vcombine.low %v9080, %v9095
      %v9104 = vunpack.c.l.s4 1966171168
      %v9105 = vunpack.c.0.s8 %v9104
      %v9106 = vlaneseq
      %v9107 = vshrl.u32 %v9106, 7
      %v9108 = vsub.s32 %v9105, %v9107
      %v9109 = vrot.slane %v9102, %v9108
      %v9110 = vcombine.high %v9109, %v9109
      %v9112 = vunpack.c.l.s4 1966171168
      %v9113 = vunpack.c.0.s8 %v9112
      %v9114 = vlaneseq
      %v9115 = vshrl.u32 %v9114, 7
      %v9116 = vsub.s32 %v9113, %v9115
      %v9117 = vrot.slane %v9109, %v9116
      %v9119 = vunpack.c.l.s4 1966171168
      %v9120 = vunpack.c.0.s8 %v9119
      %v9121 = vlaneseq
      %v9122 = vshrl.u32 %v9121, 7
      %v9123 = vsub.s32 %v9120, %v9122
      %v9124 = vrot.slane %v9110, %v9123
      %v9144 = vunpack.c.l.b16 %v8700
      %v9145 = vunpack.c.l.b16 %v8701
      %v9146 = vunpack.c.l.b16 %v8702
      %v9147 = vunpack.c.l.b16 %v8703
      %v9148 = vunpack.c.l.b16 %v8704
      %v9149 = vunpack.c.l.b16 %v8705
      %v9150 = vunpack.c.l.b16 %v8706
      %v9151 = vunpack.c.l.b16 %v8707
      %v9152 = vunpack.c.l.b16 %v8708
      %v9153 = vunpack.c.l.b16 %v8709
      %v9154 = vunpack.c.l.b16 %v8710
      %v9155 = vunpack.c.l.b16 %v8711
      %v9156 = vunpack.c.l.b16 %v8712
      %v9157 = vunpack.c.l.b16 %v8713
      %v9158 = vunpack.c.l.b16 %v8714
      %v9159 = vunpack.c.l.b16 %v8715
      %v9160 = vunpack.c.l.b16 %v8716
      %v9161 = vunpack.c.l.b16 %v8717
      %v9162 = vpack.c.b16 %v9145, %v9144
      %v9163 = vpack.c.b16 %v9147, %v9146
      %v9164 = vpack.c.b16 %v9149, %v9148
      %v9165 = vpack.c.b16 %v9151, %v9150
      %v9166 = vpack.c.b16 %v9153, %v9152
      %v9167 = vpack.c.b16 %v9155, %v9154
      %v9168 = vpack.c.b16 %v9157, %v9156
      %v9169 = vpack.c.b16 %v9159, %v9158
      %v9170 = vpack.c.b16 %v9161, %v9160
      %v9181 = vsel %vm1561, %v9124, 0
      %9183 = vmatprep.subr.bf16.mxu0 0
      %9184 = vmatpush1.bf16.msra.mxu0 %v9162
      %9185 = vmatprep.subr.bf16.mxu0 0
      %9186 = vmatpush1.bf16.msra.mxu0 %v9163
      %9187 = vmatprep.subr.bf16.mxu0 0
      %9188 = vmatpush1.bf16.msra.mxu0 %v9164
      %9189 = vmatprep.subr.bf16.mxu0 0
      %9190 = vmatpush1.bf16.msra.mxu0 %v9165
      %9191 = vmatprep.subr.bf16.mxu0 0
      %9192 = vmatpush1.bf16.msra.mxu0 %v9166
      %9193 = vmatprep.subr.bf16.mxu0 0
      %9194 = vmatpush1.bf16.msra.mxu0 %v9167
      %9195 = vmatprep.subr.bf16.mxu0 0
      %9196 = vmatpush1.bf16.msra.mxu0 %v9168
      %9197 = vmatprep.subr.bf16.mxu0 0
      %9198 = vmatpush1.bf16.msra.mxu0 %v9169
      %9199 = vmatprep.subr.bf16.mxu0 0
      %9200 = vmatpush1.bf16.msra.mxu0 %v9170
      %9201 = vmatprep.subr.bf16.mxu0 0
      %9202 = vmatpush1.bf16.msra.mxu0 0
      %9203 = vmatprep.subr.bf16.mxu0 0
      %9204 = vmatpush1.bf16.msra.mxu0 0
      %9205 = vmatprep.subr.bf16.mxu0 0
      %9206 = vmatpush1.bf16.msra.mxu0 0
      %9207 = vmatprep.subr.bf16.mxu0 0
      %9208 = vmatpush1.bf16.msra.mxu0 0
      %9209 = vmatprep.subr.bf16.mxu0 0
      %9210 = vmatpush1.bf16.msra.mxu0 0
      %9211 = vmatprep.subr.bf16.mxu0 0
      %9212 = vmatpush1.bf16.msra.mxu0 0
      %9213 = vmatprep.subr.bf16.mxu0 0
      %9214 = vmatpush1.bf16.msra.mxu0 0
      %9215 = vmatprep.mubr.bf16.mxu0 %v9181
      %9216 = vmatmul.mubr.bf16.gmra.mrb[0].mxu0 %v9117
      %v9217 = vpop.f32.mrb[0].mxu0
      %v9218 = vadd.f32 %v9100, %v9217
      %v9219 = vpop.f32.mrb[0].mxu0
      %v9220 = vpop.f32.mrb[0].mxu0
      %v9221 = vpop.f32.mrb[0].mxu0
      %9222 = vdwg.mxu0
      %v9223 = vunpack.c.l.bf16 %v8654
      %v9224 = vadd.f32 %v9218, %v9223
      %v9225 = vmax.f32 %v9224, 0.0
      %v9226 = vpack.c.bf16 %v9225, %v9225
      %v9229 = vunpack.c.l.s4 1966171168
      %v9230 = vunpack.c.0.s8 %v9229
      %v9231 = vlaneseq
      %v9232 = vshrl.u32 %v9231, 7
      %v9233 = vsub.s32 %v9230, %v9232
      %v9234 = vrot.slane %v9226, %v9233
      %v9235 = vcombine.high %v9234, %v9234
      %v9237 = vunpack.c.l.s4 1966171168
      %v9238 = vunpack.c.0.s8 %v9237
      %v9239 = vlaneseq
      %v9240 = vshrl.u32 %v9239, 7
      %v9241 = vsub.s32 %v9238, %v9240
      %v9242 = vrot.slane %v9234, %v9241
      %v9244 = vunpack.c.l.s4 1966171168
      %v9245 = vunpack.c.0.s8 %v9244
      %v9246 = vlaneseq
      %v9247 = vshrl.u32 %v9246, 7
      %v9248 = vsub.s32 %v9245, %v9247
      %v9249 = vrot.slane %v9235, %v9248
      %v9250 = vld [vmem:[%s18] sm:$0x1]
      %v9252 = vshrl.u32 %v9242, 16
      %v9254 = vrot.slane %v9252, 7
      %v9255 = vshll.u32 %v9242, 16
      %v9257 = vor.u32 %v9254, %v9255
      %v9259 = vshrl.u32 %v9249, 16
      %v9261 = vrot.slane %v9259, 7
      %v9262 = vshll.u32 %v9249, 16
      %v9264 = vor.u32 %v9261, %v9262
      %v9267 = vsel %vm880, 0, %v9257
      %v9268 = vsel %vm880, 0, %v9264
      %v9269 = vsel %vm7569, %v9267, 0
      %v9270 = vsel %vm7569, %v9268, 0
      %v9273 = vcombine.low %v7570, %v9269
      %v9274 = vcombine.low %v9270, %v7570
      %v9276 = vunpack.c.l.s4 1983009808
      %v9277 = vunpack.c.0.s8 %v9276
      %v9278 = vlaneseq
      %v9279 = vshrl.u32 %v9278, 7
      %v9280 = vsub.s32 %v9277, %v9279
      %v9281 = vrot.slane %v9273, %v9280
      %v9283 = vunpack.c.l.s4 1983009808
      %v9284 = vunpack.c.0.s8 %v9283
      %v9285 = vlaneseq
      %v9286 = vshrl.u32 %v9285, 7
      %v9287 = vsub.s32 %v9284, %v9286
      %v9288 = vrot.slane %v9274, %v9287
      %v9289 = vcombine.low %v9281, %v9288
      %v9292 = vsel %vm1561, %v9250, 0
      %9294 = vmatprep.subr.bf16.mxu0 0
      %9295 = vmatpush1.bf16.msra.mxu0 %v9289
      %9296 = vmatprep.subr.bf16.mxu0 0
      %9297 = vmatpush1.bf16.msra.mxu0 0
      %9298 = vmatprep.subr.bf16.mxu0 0
      %9299 = vmatpush1.bf16.msra.mxu0 0
      %9300 = vmatprep.subr.bf16.mxu0 0
      %9301 = vmatpush1.bf16.msra.mxu0 0
      %9302 = vmatprep.subr.bf16.mxu0 0
      %9303 = vmatpush1.bf16.msra.mxu0 0
      %9304 = vmatprep.subr.bf16.mxu0 0
      %9305 = vmatpush1.bf16.msra.mxu0 0
      %9306 = vmatprep.subr.bf16.mxu0 0
      %9307 = vmatpush1.bf16.msra.mxu0 0
      %9308 = vmatprep.subr.bf16.mxu0 0
      %9309 = vmatpush1.bf16.msra.mxu0 0
      %9310 = vmatprep.subr.bf16.mxu0 0
      %9311 = vmatpush1.bf16.msra.mxu0 0
      %9312 = vmatprep.subr.bf16.mxu0 0
      %9313 = vmatpush1.bf16.msra.mxu0 0
      %9314 = vmatprep.subr.bf16.mxu0 0
      %9315 = vmatpush1.bf16.msra.mxu0 0
      %9316 = vmatprep.subr.bf16.mxu0 0
      %9317 = vmatpush1.bf16.msra.mxu0 0
      %9318 = vmatprep.subr.bf16.mxu0 0
      %9319 = vmatpush1.bf16.msra.mxu0 0
      %9320 = vmatprep.subr.bf16.mxu0 0
      %9321 = vmatpush1.bf16.msra.mxu0 0
      %9322 = vmatprep.subr.bf16.mxu0 0
      %9323 = vmatpush1.bf16.msra.mxu0 0
      %9324 = vmatprep.subr.bf16.mxu0 0
      %9325 = vmatpush1.bf16.msra.mxu0 0
      %9326 = vmatprep.mubr.bf16.mxu0 0
      %9327 = vmatmul.mubr.bf16.gmra.mrb[0].mxu0 %v9292
      %v9328 = vpop.f32.mrb[0].mxu0
      %v9329 = vadd.f32 0.0, %v9328
      %v9330 = vpop.f32.mrb[0].mxu0
      %v9331 = vpop.f32.mrb[0].mxu0
      %v9332 = vpop.f32.mrb[0].mxu0
      %9333 = vdwg.mxu0
      %v9334 = vmul.f32 %v9329, 0.11111111
      %v9335 = vpack.c.bf16 %v9334, %v9334
      %vm9336 = vcmask 122880
      %vm9337 = vmand %vm9336, %vm879
      %v9338 = vld [vmem:[%s598] sm:$0x1]
      %v9339 = vsel %vm9337, %v9335, %v9338
      %9340 = vst [vmem:[%s598] sm:$0x1] %v9339
      %p9341 = scmp.lt.s32.totalorder %s30, 1
      %s9342 = scalar_select %p9341, %s30, 1
      %s9343 = scalar_lea.vmem %s19, %s9342
      // Predicated region
      $region97: #{downsample_forward.1} parent=95 // pred_check
        %p9344 = pneg %p452
      $region98: #{downsample_forward.1} parent=95 // pred_check_branch
        %9346 = sbr.rel (%p9344) target = $region100
      $region99: #{downsample_forward.1} parent=95 // pred_region
        _
      $region100: #{downsample_forward.1} parent=95 // pred_fallthru
        _
    $region96: #{downsample_forward.1} parent=5 // pred_fallthru
      _
    %p9347 = scmp.le.s32.totalorder 2, %s25
    // Predicated region
    $region101: #{downsample_forward.1} parent=5 // pred_check
      %p9348 = pneg %p9347
    $region102: #{downsample_forward.1} parent=5 // pred_check_branch
      %9350 = sbr.rel (%p9348) target = $region104
    $region103: #{downsample_forward.1} parent=5 // pred_region
      %s9351 = ssub.s32 %s25, 2
      // Predicated region
      $region105: #{downsample_forward.1} parent=103 // pred_check
        %p9352 = pneg %p458
      $region106: #{downsample_forward.1} parent=103 // pred_check_branch
        %9354 = sbr.rel (%p9352) target = $region108
      $region107: #{downsample_forward.1} parent=103 // pred_region
        %p9355 = scmp.lt.s32.totalorder %s31, 1
        %s9356 = scalar_select %p9355, %s31, 1
        %s9357 = scalar_lea.vmem %s19, %s9356
      $region108: #{downsample_forward.1} parent=103 // pred_fallthru
        _
    $region104: #{downsample_forward.1} parent=5 // pred_fallthru
      _
  $region6: #{downsample_forward.1} parent=0 // loop_footer
    %s29 = sadd.s32 1, %s25
  $region7: #{downsample_forward.1} parent=0 // loop_footer_branch
    %24 = sbr.rel target = $region3
  $region8: #{downsample_forward.1} parent=0 // loop_exit
    _

</llo_original>
